<compile_context>
chip_gen: v6e
topology: v6e:2x2x1
jax: 0.10.0
libtpu: 0.0.40
codegen_flags: <defaults>
</compile_context>

<pallas_src>
import functools

import jax
import jax.numpy as jnp
from jax.experimental import pallas as pl
from jax.experimental.pallas import tpu as pltpu


def _decoder3x3_kernel(x_ref, mask_ref, w1_ref, b1_ref, w2_ref, b2_ref,
                       w3_ref, b3_ref, o_ref, a1_ref, a2_ref, a3_ref,
                       *, H, W, Ch):
    """Fused 3-layer 3x3 'same' conv network for one batch element.

    x_ref : (1, Cin, H*W)   input, channels on sublanes, flat spatial on lanes
    mask  : (1, P)          1.0 at interior pixels of the padded image, else 0
    wK    : (9, Cout, Cin)  per-tap cross-correlation weights (t = dy*3+dx)
    bK    : (Cout, 1)       bias
    o_ref : (1, 1, P)       layer-3 output over the padded flat grid
    aK    : (C, G)          VMEM scratch: guarded, zero-padded flat activation
    """
    Wp = W + 2                     # padded image width
    P = (H + 2) * Wp               # padded image pixel count
    GUARD = W + 3                  # guard zeros so every tap slice is in-bounds

    mask = mask_ref[...]           # (1, P)

    # Zero scratches: guard bands + pad ring stay zero for the whole step.
    a1_ref[...] = jnp.zeros_like(a1_ref)
    a2_ref[...] = jnp.zeros_like(a2_ref)
    a3_ref[...] = jnp.zeros_like(a3_ref)

    # Scatter input rows into the guarded, zero-padded flat layout:
    #   a1[:, GUARD + (y+1)*Wp + 1 + x] = x[:, y*W + x]
    x = x_ref[0]                   # (Cin, H*W)
    for y in range(H):
        dst = GUARD + (y + 1) * Wp + 1
        a1_ref[:, dst:dst + W] = x[:, y * W:(y + 1) * W]

    def conv3x3(a_ref, w_ref, b_ref, cout, apply_elu):
        # acc[o, q] = b[o] + sum_t sum_i w[t, o, i] * a[i, GUARD + q + s_t]
        # with s_t = (dy-1)*Wp + (dx-1); exact for all interior q.
        acc = jnp.broadcast_to(b_ref[...], (cout, P)).astype(jnp.float32)
        for dy in range(3):
            for dx in range(3):
                t = dy * 3 + dx
                s = (dy - 1) * Wp + (dx - 1)
                taps = a_ref[:, GUARD + s:GUARD + s + P]      # (cin, P)
                acc = acc + jnp.dot(w_ref[t], taps,
                                    preferred_element_type=jnp.float32)
        if apply_elu:
            # ELU(alpha=1).  exp(x)-1 (vs expm1) keeps the lowering on the
            # plain EUP exp op; absolute deviation <= 1 ulp of 1.0.
            acc = jnp.where(acc > 0.0, acc,
                            jnp.exp(jnp.minimum(acc, 0.0)) - 1.0)
        return acc

    h1 = conv3x3(a1_ref, w1_ref, b1_ref, Ch, True)
    a2_ref[:, GUARD:GUARD + P] = h1 * mask      # re-zero pad ring, keep interior
    h2 = conv3x3(a2_ref, w2_ref, b2_ref, Ch, True)
    a3_ref[:, GUARD:GUARD + P] = h2 * mask
    h3 = conv3x3(a3_ref, w3_ref, b3_ref, 1, False)
    o_ref[...] = h3.reshape(1, 1, P).astype(o_ref.dtype)   # lane-dense store


def init_decoder3x3_params(key, z_dim, hidden_dim):
    """Deterministic parameter init, PyTorch-native weight layouts."""
    ks = jax.random.split(key, 6)
    s = 0.1
    return {
        # Conv2d weight: (out, in, kH, kW)
        "conv1_w": s * jax.random.normal(ks[0], (hidden_dim, z_dim, 3, 3), jnp.float32),
        "conv1_b": s * jax.random.normal(ks[1], (hidden_dim,), jnp.float32),
        # ConvTranspose2d weight: (in, out, kH, kW)
        "deconv1_w": s * jax.random.normal(ks[2], (hidden_dim, hidden_dim, 3, 3), jnp.float32),
        "deconv1_b": s * jax.random.normal(ks[3], (hidden_dim,), jnp.float32),
        "deconv2_w": s * jax.random.normal(ks[4], (hidden_dim, 1, 3, 3), jnp.float32),
        "deconv2_b": s * jax.random.normal(ks[5], (1,), jnp.float32),
    }


def preprocess_decoder3x3_params(params):
    """One-time weight layout prep (hoisted out of the forward pass)."""
    def conv_taps(w_oihw):           # Conv2d: cross-correlation as-is
        o, i = w_oihw.shape[0], w_oihw.shape[1]
        return jnp.transpose(w_oihw, (2, 3, 0, 1)).reshape(9, o, i)

    def deconv_taps(w_iohw):         # ConvTranspose2d(stride=1, pad=1)
        i, o = w_iohw.shape[0], w_iohw.shape[1]
        w = jnp.transpose(w_iohw, (2, 3, 1, 0))[::-1, ::-1]   # flip kH, kW
        return w.reshape(9, o, i)    # taps[t][o, i] = w[i, o, 2-dy, 2-dx]

    return {
        "w1": conv_taps(params["conv1_w"]),
        "b1": params["conv1_b"].reshape(-1, 1),
        "w2": deconv_taps(params["deconv1_w"]),
        "b2": params["deconv1_b"].reshape(-1, 1),
        "w3": deconv_taps(params["deconv2_w"]),
        "b3": params["deconv2_b"].reshape(-1, 1),
    }


def decoder3x3_forward(x_nchw, prep):
    """Forward pass matching Decoder3x3.forward; input/output are NCHW."""
    N, Cin, H, W = x_nchw.shape
    Ch = prep["w1"].shape[1]
    Wp = W + 2
    P = (H + 2) * Wp
    GUARD = W + 3
    G = P + 2 * GUARD

    x_flat = x_nchw.reshape(N, Cin, H * W).astype(jnp.float32)

    # Interior mask over the flattened padded image (1 inside, 0 on pad ring).
    q = jnp.arange(P, dtype=jnp.int32)
    r, c = q // Wp, q % Wp
    mask = ((r >= 1) & (r <= H) & (c >= 1) & (c <= W)).astype(jnp.float32)
    mask = mask.reshape(1, P)

    kernel = functools.partial(_decoder3x3_kernel, H=H, W=W, Ch=Ch)

    out_flat = pl.pallas_call(
        kernel,
        out_shape=jax.ShapeDtypeStruct((N, 1, P), jnp.float32),
        grid_spec=pltpu.PrefetchScalarGridSpec(
            num_scalar_prefetch=0,
            grid=(N,),
            in_specs=[
                pl.BlockSpec((1, Cin, H * W), lambda n: (n, 0, 0)),
                pl.BlockSpec((1, P), lambda n: (0, 0)),
                pl.BlockSpec((9, Ch, Cin), lambda n: (0, 0, 0)),
                pl.BlockSpec((Ch, 1), lambda n: (0, 0)),
                pl.BlockSpec((9, Ch, Ch), lambda n: (0, 0, 0)),
                pl.BlockSpec((Ch, 1), lambda n: (0, 0)),
                pl.BlockSpec((9, 1, Ch), lambda n: (0, 0, 0)),
                pl.BlockSpec((1, 1), lambda n: (0, 0)),
            ],
            out_specs=pl.BlockSpec((1, 1, P), lambda n: (n, 0, 0)),
            scratch_shapes=[
                pltpu.VMEM((Cin, G), jnp.float32),   # padded input
                pltpu.VMEM((Ch, G), jnp.float32),    # padded hidden 1
                pltpu.VMEM((Ch, G), jnp.float32),    # padded hidden 2
            ],
        ),
        compiler_params=pltpu.CompilerParams(
            dimension_semantics=("parallel",)),
    )(x_flat, mask, prep["w1"], prep["b1"], prep["w2"], prep["b2"],
      prep["w3"], prep["b3"])

    # Crop the pad ring and return NCHW to match the PyTorch module.
    out = out_flat.reshape(N, H + 2, Wp)[:, 1:H + 1, 1:W + 1]
    return out.reshape(N, 1, H, W)


def _reference_forward(x_nchw, params):
    """Pure-JAX/XLA reference for in-script validation."""
    dn = ("NCHW", "OIHW", "NCHW")

    def conv(x, w, b):
        y = jax.lax.conv_general_dilated(x, w, (1, 1), ((1, 1), (1, 1)),
                                         dimension_numbers=dn)
        return y + b[None, :, None, None]

    def deconv_as_conv_w(w_iohw):    # ConvTranspose2d(s=1,p=1) == flipped conv
        return jnp.transpose(w_iohw, (1, 0, 2, 3))[:, :, ::-1, ::-1]

    h = jax.nn.elu(conv(x_nchw, params["conv1_w"], params["conv1_b"]))
    h = jax.nn.elu(conv(h, deconv_as_conv_w(params["deconv1_w"]),
                        params["deconv1_b"]))
    return conv(h, deconv_as_conv_w(params["deconv2_w"]), params["deconv2_b"])


if __name__ == "__main__":
    key = jax.random.PRNGKey(0)
    k_params, k_x = jax.random.split(key)

    N, z_dim, hidden_dim, H, W = 2, 4, 32, 16, 16
    params = init_decoder3x3_params(k_params, z_dim, hidden_dim)
    prep = preprocess_decoder3x3_params(params)
    x = jax.random.normal(k_x, (N, z_dim, H, W), jnp.float32)

    fwd = jax.jit(decoder3x3_forward)
    out = fwd(x, prep)
    jax.block_until_ready(out)

    assert out.shape == (N, 1, H, W), out.shape
    assert out.dtype == jnp.float32

    ref = _reference_forward(x, params)
    max_err = float(jnp.max(jnp.abs(out - ref)))
    assert max_err < 1e-3, f"max abs error vs reference: {max_err}"

    print("KERNEL_OK")
</pallas_src>

<mosaic_0001>
module attributes {stable_mosaic.version = 11 : i64} {
  func.func @_decoder3x3_kernel(%arg0: i32, %arg1: memref<1x4x256xf32, #tpu.memory_space<vmem>>, %arg2: memref<1x324xf32, #tpu.memory_space<vmem>>, %arg3: memref<9x32x4xf32, #tpu.memory_space<vmem>>, %arg4: memref<32x1xf32, #tpu.memory_space<vmem>>, %arg5: memref<9x32x32xf32, #tpu.memory_space<vmem>>, %arg6: memref<32x1xf32, #tpu.memory_space<vmem>>, %arg7: memref<9x1x32xf32, #tpu.memory_space<vmem>>, %arg8: memref<1x1xf32, #tpu.memory_space<vmem>>, %arg9: memref<1x1x324xf32, #tpu.memory_space<vmem>>, %arg10: memref<4x362xf32, #tpu.memory_space<vmem>>, %arg11: memref<32x362xf32, #tpu.memory_space<vmem>>, %arg12: memref<32x362xf32, #tpu.memory_space<vmem>>) attributes {dimension_semantics = [#tpu.dimension_semantics<parallel>], iteration_bounds = array<i64: 2>, scalar_prefetch = 0 : i64, scratch_operands = 3 : i64, tpu.core_type = #tpu.core_type<tc>, window_params = [{transform_indices = @transform_0, window_bounds = array<i64: 1, 4, 256>}, {pipeline_mode = #tpu.pipeline_mode<synchronous>, transform_indices = @transform_1, window_bounds = array<i64: 1, 324>}, {pipeline_mode = #tpu.pipeline_mode<synchronous>, transform_indices = @transform_2, window_bounds = array<i64: 9, 32, 4>}, {pipeline_mode = #tpu.pipeline_mode<synchronous>, transform_indices = @transform_3, window_bounds = array<i64: 32, 1>}, {pipeline_mode = #tpu.pipeline_mode<synchronous>, transform_indices = @transform_4, window_bounds = array<i64: 9, 32, 32>}, {pipeline_mode = #tpu.pipeline_mode<synchronous>, transform_indices = @transform_5, window_bounds = array<i64: 32, 1>}, {pipeline_mode = #tpu.pipeline_mode<synchronous>, transform_indices = @transform_6, window_bounds = array<i64: 9, 1, 32>}, {pipeline_mode = #tpu.pipeline_mode<synchronous>, transform_indices = @transform_7, window_bounds = array<i64: 1, 1>}, {transform_indices = @transform_8, window_bounds = array<i64: 1, 1, 324>}]} {
    %c0 = arith.constant 0 : index
    %c0_0 = arith.constant 0 : index
    %0 = vector.load %arg2[%c0, %c0_0] : memref<1x324xf32, #tpu.memory_space<vmem>>, vector<1x324xf32>
    %cst = arith.constant 0.000000e+00 : f32
    %1 = vector.broadcast %cst : f32 to vector<4x362xf32>
    %c0_1 = arith.constant 0 : index
    %c0_2 = arith.constant 0 : index
    %2 = vector.load %arg10[%c0_1, %c0_2] : memref<4x362xf32, #tpu.memory_space<vmem>>, vector<4x362xf32>
    tpu.vector_store %arg10[%c0_1, %c0_2], %1 {strides = array<i32>} : memref<4x362xf32, #tpu.memory_space<vmem>>, vector<4x362xf32>,
    %cst_3 = arith.constant 0.000000e+00 : f32
    %3 = vector.broadcast %cst_3 : f32 to vector<32x362xf32>
    %c0_4 = arith.constant 0 : index
    %c0_5 = arith.constant 0 : index
    %4 = vector.load %arg11[%c0_4, %c0_5] : memref<32x362xf32, #tpu.memory_space<vmem>>, vector<32x362xf32>
    tpu.vector_store %arg11[%c0_4, %c0_5], %3 {strides = array<i32>} : memref<32x362xf32, #tpu.memory_space<vmem>>, vector<32x362xf32>,
    %cst_6 = arith.constant 0.000000e+00 : f32
    %5 = vector.broadcast %cst_6 : f32 to vector<32x362xf32>
    %c0_7 = arith.constant 0 : index
    %c0_8 = arith.constant 0 : index
    %6 = vector.load %arg12[%c0_7, %c0_8] : memref<32x362xf32, #tpu.memory_space<vmem>>, vector<32x362xf32>
    tpu.vector_store %arg12[%c0_7, %c0_8], %5 {strides = array<i32>} : memref<32x362xf32, #tpu.memory_space<vmem>>, vector<32x362xf32>,
    %c0_9 = arith.constant 0 : index
    %c0_10 = arith.constant 0 : index
    %c0_11 = arith.constant 0 : index
    %7 = vector.load %arg1[%c0_9, %c0_10, %c0_11] : memref<1x4x256xf32, #tpu.memory_space<vmem>>, vector<1x4x256xf32>
    %8 = vector.shape_cast %7 : vector<1x4x256xf32> to vector<4x256xf32>
    %9 = vector.extract_strided_slice %8 {offsets = [0, 0], sizes = [4, 16], strides = [1, 1]} : vector<4x256xf32> to vector<4x16xf32>
    %c0_12 = arith.constant 0 : index
    %c38 = arith.constant 38 : index
    %10 = vector.load %arg10[%c0_12, %c38] : memref<4x362xf32, #tpu.memory_space<vmem>>, vector<4x16xf32>
    tpu.vector_store %arg10[%c0_12, %c38], %9 {strides = array<i32>} : memref<4x362xf32, #tpu.memory_space<vmem>>, vector<4x16xf32>,
    %11 = vector.extract_strided_slice %8 {offsets = [0, 16], sizes = [4, 16], strides = [1, 1]} : vector<4x256xf32> to vector<4x16xf32>
    %c0_13 = arith.constant 0 : index
    %c56 = arith.constant 56 : index
    %12 = vector.load %arg10[%c0_13, %c56] : memref<4x362xf32, #tpu.memory_space<vmem>>, vector<4x16xf32>
    tpu.vector_store %arg10[%c0_13, %c56], %11 {strides = array<i32>} : memref<4x362xf32, #tpu.memory_space<vmem>>, vector<4x16xf32>,
    %13 = vector.extract_strided_slice %8 {offsets = [0, 32], sizes = [4, 16], strides = [1, 1]} : vector<4x256xf32> to vector<4x16xf32>
    %c0_14 = arith.constant 0 : index
    %c74 = arith.constant 74 : index
    %14 = vector.load %arg10[%c0_14, %c74] : memref<4x362xf32, #tpu.memory_space<vmem>>, vector<4x16xf32>
    tpu.vector_store %arg10[%c0_14, %c74], %13 {strides = array<i32>} : memref<4x362xf32, #tpu.memory_space<vmem>>, vector<4x16xf32>,
    %15 = vector.extract_strided_slice %8 {offsets = [0, 48], sizes = [4, 16], strides = [1, 1]} : vector<4x256xf32> to vector<4x16xf32>
    %c0_15 = arith.constant 0 : index
    %c92 = arith.constant 92 : index
    %16 = vector.load %arg10[%c0_15, %c92] : memref<4x362xf32, #tpu.memory_space<vmem>>, vector<4x16xf32>
    tpu.vector_store %arg10[%c0_15, %c92], %15 {strides = array<i32>} : memref<4x362xf32, #tpu.memory_space<vmem>>, vector<4x16xf32>,
    %17 = vector.extract_strided_slice %8 {offsets = [0, 64], sizes = [4, 16], strides = [1, 1]} : vector<4x256xf32> to vector<4x16xf32>
    %c0_16 = arith.constant 0 : index
    %c110 = arith.constant 110 : index
    %18 = vector.load %arg10[%c0_16, %c110] : memref<4x362xf32, #tpu.memory_space<vmem>>, vector<4x16xf32>
    tpu.vector_store %arg10[%c0_16, %c110], %17 {strides = array<i32>} : memref<4x362xf32, #tpu.memory_space<vmem>>, vector<4x16xf32>,
    %19 = vector.extract_strided_slice %8 {offsets = [0, 80], sizes = [4, 16], strides = [1, 1]} : vector<4x256xf32> to vector<4x16xf32>
    %c0_17 = arith.constant 0 : index
    %c128 = arith.constant 128 : index
    %20 = vector.load %arg10[%c0_17, %c128] : memref<4x362xf32, #tpu.memory_space<vmem>>, vector<4x16xf32>
    tpu.vector_store %arg10[%c0_17, %c128], %19 {strides = array<i32>} : memref<4x362xf32, #tpu.memory_space<vmem>>, vector<4x16xf32>,
    %21 = vector.extract_strided_slice %8 {offsets = [0, 96], sizes = [4, 16], strides = [1, 1]} : vector<4x256xf32> to vector<4x16xf32>
    %c0_18 = arith.constant 0 : index
    %c146 = arith.constant 146 : index
    %22 = vector.load %arg10[%c0_18, %c146] : memref<4x362xf32, #tpu.memory_space<vmem>>, vector<4x16xf32>
    tpu.vector_store %arg10[%c0_18, %c146], %21 {strides = array<i32>} : memref<4x362xf32, #tpu.memory_space<vmem>>, vector<4x16xf32>,
    %23 = vector.extract_strided_slice %8 {offsets = [0, 112], sizes = [4, 16], strides = [1, 1]} : vector<4x256xf32> to vector<4x16xf32>
    %c0_19 = arith.constant 0 : index
    %c164 = arith.constant 164 : index
    %24 = vector.load %arg10[%c0_19, %c164] : memref<4x362xf32, #tpu.memory_space<vmem>>, vector<4x16xf32>
    tpu.vector_store %arg10[%c0_19, %c164], %23 {strides = array<i32>} : memref<4x362xf32, #tpu.memory_space<vmem>>, vector<4x16xf32>,
    %25 = vector.extract_strided_slice %8 {offsets = [0, 128], sizes = [4, 16], strides = [1, 1]} : vector<4x256xf32> to vector<4x16xf32>
    %c0_20 = arith.constant 0 : index
    %c182 = arith.constant 182 : index
    %26 = vector.load %arg10[%c0_20, %c182] : memref<4x362xf32, #tpu.memory_space<vmem>>, vector<4x16xf32>
    tpu.vector_store %arg10[%c0_20, %c182], %25 {strides = array<i32>} : memref<4x362xf32, #tpu.memory_space<vmem>>, vector<4x16xf32>,
    %27 = vector.extract_strided_slice %8 {offsets = [0, 144], sizes = [4, 16], strides = [1, 1]} : vector<4x256xf32> to vector<4x16xf32>
    %c0_21 = arith.constant 0 : index
    %c200 = arith.constant 200 : index
    %28 = vector.load %arg10[%c0_21, %c200] : memref<4x362xf32, #tpu.memory_space<vmem>>, vector<4x16xf32>
    tpu.vector_store %arg10[%c0_21, %c200], %27 {strides = array<i32>} : memref<4x362xf32, #tpu.memory_space<vmem>>, vector<4x16xf32>,
    %29 = vector.extract_strided_slice %8 {offsets = [0, 160], sizes = [4, 16], strides = [1, 1]} : vector<4x256xf32> to vector<4x16xf32>
    %c0_22 = arith.constant 0 : index
    %c218 = arith.constant 218 : index
    %30 = vector.load %arg10[%c0_22, %c218] : memref<4x362xf32, #tpu.memory_space<vmem>>, vector<4x16xf32>
    tpu.vector_store %arg10[%c0_22, %c218], %29 {strides = array<i32>} : memref<4x362xf32, #tpu.memory_space<vmem>>, vector<4x16xf32>,
    %31 = vector.extract_strided_slice %8 {offsets = [0, 176], sizes = [4, 16], strides = [1, 1]} : vector<4x256xf32> to vector<4x16xf32>
    %c0_23 = arith.constant 0 : index
    %c236 = arith.constant 236 : index
    %32 = vector.load %arg10[%c0_23, %c236] : memref<4x362xf32, #tpu.memory_space<vmem>>, vector<4x16xf32>
    tpu.vector_store %arg10[%c0_23, %c236], %31 {strides = array<i32>} : memref<4x362xf32, #tpu.memory_space<vmem>>, vector<4x16xf32>,
    %33 = vector.extract_strided_slice %8 {offsets = [0, 192], sizes = [4, 16], strides = [1, 1]} : vector<4x256xf32> to vector<4x16xf32>
    %c0_24 = arith.constant 0 : index
    %c254 = arith.constant 254 : index
    %34 = vector.load %arg10[%c0_24, %c254] : memref<4x362xf32, #tpu.memory_space<vmem>>, vector<4x16xf32>
    tpu.vector_store %arg10[%c0_24, %c254], %33 {strides = array<i32>} : memref<4x362xf32, #tpu.memory_space<vmem>>, vector<4x16xf32>,
    %35 = vector.extract_strided_slice %8 {offsets = [0, 208], sizes = [4, 16], strides = [1, 1]} : vector<4x256xf32> to vector<4x16xf32>
    %c0_25 = arith.constant 0 : index
    %c272 = arith.constant 272 : index
    %36 = vector.load %arg10[%c0_25, %c272] : memref<4x362xf32, #tpu.memory_space<vmem>>, vector<4x16xf32>
    tpu.vector_store %arg10[%c0_25, %c272], %35 {strides = array<i32>} : memref<4x362xf32, #tpu.memory_space<vmem>>, vector<4x16xf32>,
    %37 = vector.extract_strided_slice %8 {offsets = [0, 224], sizes = [4, 16], strides = [1, 1]} : vector<4x256xf32> to vector<4x16xf32>
    %c0_26 = arith.constant 0 : index
    %c290 = arith.constant 290 : index
    %38 = vector.load %arg10[%c0_26, %c290] : memref<4x362xf32, #tpu.memory_space<vmem>>, vector<4x16xf32>
    tpu.vector_store %arg10[%c0_26, %c290], %37 {strides = array<i32>} : memref<4x362xf32, #tpu.memory_space<vmem>>, vector<4x16xf32>,
    %39 = vector.extract_strided_slice %8 {offsets = [0, 240], sizes = [4, 16], strides = [1, 1]} : vector<4x256xf32> to vector<4x16xf32>
    %c0_27 = arith.constant 0 : index
    %c308 = arith.constant 308 : index
    %40 = vector.load %arg10[%c0_27, %c308] : memref<4x362xf32, #tpu.memory_space<vmem>>, vector<4x16xf32>
    tpu.vector_store %arg10[%c0_27, %c308], %39 {strides = array<i32>} : memref<4x362xf32, #tpu.memory_space<vmem>>, vector<4x16xf32>,
    %c0_28 = arith.constant 0 : index
    %c0_29 = arith.constant 0 : index
    %41 = vector.load %arg4[%c0_28, %c0_29] : memref<32x1xf32, #tpu.memory_space<vmem>>, vector<32x1xf32>
    %42 = vector.shape_cast %41 : vector<32x1xf32> to vector<32x1xf32>
    %43 = vector.broadcast %42 : vector<32x1xf32> to vector<32x324xf32>
    %c0_30 = arith.constant 0 : index
    %c0_31 = arith.constant 0 : index
    %44 = vector.load %arg10[%c0_30, %c0_31] : memref<4x362xf32, #tpu.memory_space<vmem>>, vector<4x324xf32>
    %c0_32 = arith.constant 0 : index
    %c0_33 = arith.constant 0 : index
    %c0_34 = arith.constant 0 : index
    %45 = vector.load %arg3[%c0_32, %c0_33, %c0_34] : memref<9x32x4xf32, #tpu.memory_space<vmem>>, vector<1x32x4xf32>
    %46 = vector.shape_cast %45 : vector<1x32x4xf32> to vector<32x4xf32>
    %cst_35 = arith.constant dense<0.000000e+00> : vector<32x324xf32>
    %47 = tpu.matmul %46, %44, %cst_35 {dimension_numbers = #tpu.dot_dimension_numbers<[1], [0], [0], [1], [0, 0, 1, 1], [], []>} : vector<32x4xf32>, vector<4x324xf32>, vector<32x324xf32> -> vector<32x324xf32>
    %48 = arith.addf %43, %47 : vector<32x324xf32>
    %c0_36 = arith.constant 0 : index
    %c1 = arith.constant 1 : index
    %49 = vector.load %arg10[%c0_36, %c1] : memref<4x362xf32, #tpu.memory_space<vmem>>, vector<4x324xf32>
    %c1_37 = arith.constant 1 : index
    %c0_38 = arith.constant 0 : index
    %c0_39 = arith.constant 0 : index
    %50 = vector.load %arg3[%c1_37, %c0_38, %c0_39] : memref<9x32x4xf32, #tpu.memory_space<vmem>>, vector<1x32x4xf32>
    %51 = vector.shape_cast %50 : vector<1x32x4xf32> to vector<32x4xf32>
    %cst_40 = arith.constant dense<0.000000e+00> : vector<32x324xf32>
    %52 = tpu.matmul %51, %49, %cst_40 {dimension_numbers = #tpu.dot_dimension_numbers<[1], [0], [0], [1], [0, 0, 1, 1], [], []>} : vector<32x4xf32>, vector<4x324xf32>, vector<32x324xf32> -> vector<32x324xf32>
    %53 = arith.addf %48, %52 : vector<32x324xf32>
    %c0_41 = arith.constant 0 : index
    %c2 = arith.constant 2 : index
    %54 = vector.load %arg10[%c0_41, %c2] : memref<4x362xf32, #tpu.memory_space<vmem>>, vector<4x324xf32>
    %c2_42 = arith.constant 2 : index
    %c0_43 = arith.constant 0 : index
    %c0_44 = arith.constant 0 : index
    %55 = vector.load %arg3[%c2_42, %c0_43, %c0_44] : memref<9x32x4xf32, #tpu.memory_space<vmem>>, vector<1x32x4xf32>
    %56 = vector.shape_cast %55 : vector<1x32x4xf32> to vector<32x4xf32>
    %cst_45 = arith.constant dense<0.000000e+00> : vector<32x324xf32>
    %57 = tpu.matmul %56, %54, %cst_45 {dimension_numbers = #tpu.dot_dimension_numbers<[1], [0], [0], [1], [0, 0, 1, 1], [], []>} : vector<32x4xf32>, vector<4x324xf32>, vector<32x324xf32> -> vector<32x324xf32>
    %58 = arith.addf %53, %57 : vector<32x324xf32>
    %c0_46 = arith.constant 0 : index
    %c18 = arith.constant 18 : index
    %59 = vector.load %arg10[%c0_46, %c18] : memref<4x362xf32, #tpu.memory_space<vmem>>, vector<4x324xf32>
    %c3 = arith.constant 3 : index
    %c0_47 = arith.constant 0 : index
    %c0_48 = arith.constant 0 : index
    %60 = vector.load %arg3[%c3, %c0_47, %c0_48] : memref<9x32x4xf32, #tpu.memory_space<vmem>>, vector<1x32x4xf32>
    %61 = vector.shape_cast %60 : vector<1x32x4xf32> to vector<32x4xf32>
    %cst_49 = arith.constant dense<0.000000e+00> : vector<32x324xf32>
    %62 = tpu.matmul %61, %59, %cst_49 {dimension_numbers = #tpu.dot_dimension_numbers<[1], [0], [0], [1], [0, 0, 1, 1], [], []>} : vector<32x4xf32>, vector<4x324xf32>, vector<32x324xf32> -> vector<32x324xf32>
    %63 = arith.addf %58, %62 : vector<32x324xf32>
    %c0_50 = arith.constant 0 : index
    %c19 = arith.constant 19 : index
    %64 = vector.load %arg10[%c0_50, %c19] : memref<4x362xf32, #tpu.memory_space<vmem>>, vector<4x324xf32>
    %c4 = arith.constant 4 : index
    %c0_51 = arith.constant 0 : index
    %c0_52 = arith.constant 0 : index
    %65 = vector.load %arg3[%c4, %c0_51, %c0_52] : memref<9x32x4xf32, #tpu.memory_space<vmem>>, vector<1x32x4xf32>
    %66 = vector.shape_cast %65 : vector<1x32x4xf32> to vector<32x4xf32>
    %cst_53 = arith.constant dense<0.000000e+00> : vector<32x324xf32>
    %67 = tpu.matmul %66, %64, %cst_53 {dimension_numbers = #tpu.dot_dimension_numbers<[1], [0], [0], [1], [0, 0, 1, 1], [], []>} : vector<32x4xf32>, vector<4x324xf32>, vector<32x324xf32> -> vector<32x324xf32>
    %68 = arith.addf %63, %67 : vector<32x324xf32>
    %c0_54 = arith.constant 0 : index
    %c20 = arith.constant 20 : index
    %69 = vector.load %arg10[%c0_54, %c20] : memref<4x362xf32, #tpu.memory_space<vmem>>, vector<4x324xf32>
    %c5 = arith.constant 5 : index
    %c0_55 = arith.constant 0 : index
    %c0_56 = arith.constant 0 : index
    %70 = vector.load %arg3[%c5, %c0_55, %c0_56] : memref<9x32x4xf32, #tpu.memory_space<vmem>>, vector<1x32x4xf32>
    %71 = vector.shape_cast %70 : vector<1x32x4xf32> to vector<32x4xf32>
    %cst_57 = arith.constant dense<0.000000e+00> : vector<32x324xf32>
    %72 = tpu.matmul %71, %69, %cst_57 {dimension_numbers = #tpu.dot_dimension_numbers<[1], [0], [0], [1], [0, 0, 1, 1], [], []>} : vector<32x4xf32>, vector<4x324xf32>, vector<32x324xf32> -> vector<32x324xf32>
    %73 = arith.addf %68, %72 : vector<32x324xf32>
    %c0_58 = arith.constant 0 : index
    %c36 = arith.constant 36 : index
    %74 = vector.load %arg10[%c0_58, %c36] : memref<4x362xf32, #tpu.memory_space<vmem>>, vector<4x324xf32>
    %c6 = arith.constant 6 : index
    %c0_59 = arith.constant 0 : index
    %c0_60 = arith.constant 0 : index
    %75 = vector.load %arg3[%c6, %c0_59, %c0_60] : memref<9x32x4xf32, #tpu.memory_space<vmem>>, vector<1x32x4xf32>
    %76 = vector.shape_cast %75 : vector<1x32x4xf32> to vector<32x4xf32>
    %cst_61 = arith.constant dense<0.000000e+00> : vector<32x324xf32>
    %77 = tpu.matmul %76, %74, %cst_61 {dimension_numbers = #tpu.dot_dimension_numbers<[1], [0], [0], [1], [0, 0, 1, 1], [], []>} : vector<32x4xf32>, vector<4x324xf32>, vector<32x324xf32> -> vector<32x324xf32>
    %78 = arith.addf %73, %77 : vector<32x324xf32>
    %c0_62 = arith.constant 0 : index
    %c37 = arith.constant 37 : index
    %79 = vector.load %arg10[%c0_62, %c37] : memref<4x362xf32, #tpu.memory_space<vmem>>, vector<4x324xf32>
    %c7 = arith.constant 7 : index
    %c0_63 = arith.constant 0 : index
    %c0_64 = arith.constant 0 : index
    %80 = vector.load %arg3[%c7, %c0_63, %c0_64] : memref<9x32x4xf32, #tpu.memory_space<vmem>>, vector<1x32x4xf32>
    %81 = vector.shape_cast %80 : vector<1x32x4xf32> to vector<32x4xf32>
    %cst_65 = arith.constant dense<0.000000e+00> : vector<32x324xf32>
    %82 = tpu.matmul %81, %79, %cst_65 {dimension_numbers = #tpu.dot_dimension_numbers<[1], [0], [0], [1], [0, 0, 1, 1], [], []>} : vector<32x4xf32>, vector<4x324xf32>, vector<32x324xf32> -> vector<32x324xf32>
    %83 = arith.addf %78, %82 : vector<32x324xf32>
    %c0_66 = arith.constant 0 : index
    %c38_67 = arith.constant 38 : index
    %84 = vector.load %arg10[%c0_66, %c38_67] : memref<4x362xf32, #tpu.memory_space<vmem>>, vector<4x324xf32>
    %c8 = arith.constant 8 : index
    %c0_68 = arith.constant 0 : index
    %c0_69 = arith.constant 0 : index
    %85 = vector.load %arg3[%c8, %c0_68, %c0_69] : memref<9x32x4xf32, #tpu.memory_space<vmem>>, vector<1x32x4xf32>
    %86 = vector.shape_cast %85 : vector<1x32x4xf32> to vector<32x4xf32>
    %cst_70 = arith.constant dense<0.000000e+00> : vector<32x324xf32>
    %87 = tpu.matmul %86, %84, %cst_70 {dimension_numbers = #tpu.dot_dimension_numbers<[1], [0], [0], [1], [0, 0, 1, 1], [], []>} : vector<32x4xf32>, vector<4x324xf32>, vector<32x324xf32> -> vector<32x324xf32>
    %88 = arith.addf %83, %87 : vector<32x324xf32>
    %cst_71 = arith.constant 0.000000e+00 : f32
    %89 = vector.broadcast %cst_71 : f32 to vector<32x324xf32>
    %90 = arith.cmpf ogt, %88, %89 : vector<32x324xf32>
    %cst_72 = arith.constant 0.000000e+00 : f32
    %91 = vector.broadcast %cst_72 : f32 to vector<32x324xf32>
    %92 = arith.minimumf %88, %91 : vector<32x324xf32>
    %93 = math.exp %92 : vector<32x324xf32>
    %cst_73 = arith.constant 1.000000e+00 : f32
    %94 = vector.broadcast %cst_73 : f32 to vector<32x324xf32>
    %95 = arith.subf %93, %94 : vector<32x324xf32>
    %96 = arith.select %90, %88, %95 : vector<32x324xi1>, vector<32x324xf32>
    %97 = vector.broadcast %0 : vector<1x324xf32> to vector<32x324xf32>
    %98 = arith.mulf %96, %97 : vector<32x324xf32>
    %c0_74 = arith.constant 0 : index
    %c19_75 = arith.constant 19 : index
    %99 = vector.load %arg11[%c0_74, %c19_75] : memref<32x362xf32, #tpu.memory_space<vmem>>, vector<32x324xf32>
    tpu.vector_store %arg11[%c0_74, %c19_75], %98 {strides = array<i32>} : memref<32x362xf32, #tpu.memory_space<vmem>>, vector<32x324xf32>,
    %c0_76 = arith.constant 0 : index
    %c0_77 = arith.constant 0 : index
    %100 = vector.load %arg6[%c0_76, %c0_77] : memref<32x1xf32, #tpu.memory_space<vmem>>, vector<32x1xf32>
    %101 = vector.shape_cast %100 : vector<32x1xf32> to vector<32x1xf32>
    %102 = vector.broadcast %101 : vector<32x1xf32> to vector<32x324xf32>
    %c0_78 = arith.constant 0 : index
    %c0_79 = arith.constant 0 : index
    %103 = vector.load %arg11[%c0_78, %c0_79] : memref<32x362xf32, #tpu.memory_space<vmem>>, vector<32x324xf32>
    %c0_80 = arith.constant 0 : index
    %c0_81 = arith.constant 0 : index
    %c0_82 = arith.constant 0 : index
    %104 = vector.load %arg5[%c0_80, %c0_81, %c0_82] : memref<9x32x32xf32, #tpu.memory_space<vmem>>, vector<1x32x32xf32>
    %105 = vector.shape_cast %104 : vector<1x32x32xf32> to vector<32x32xf32>
    %cst_83 = arith.constant dense<0.000000e+00> : vector<32x324xf32>
    %106 = tpu.matmul %105, %103, %cst_83 {dimension_numbers = #tpu.dot_dimension_numbers<[1], [0], [0], [1], [0, 0, 1, 1], [], []>} : vector<32x32xf32>, vector<32x324xf32>, vector<32x324xf32> -> vector<32x324xf32>
    %107 = arith.addf %102, %106 : vector<32x324xf32>
    %c0_84 = arith.constant 0 : index
    %c1_85 = arith.constant 1 : index
    %108 = vector.load %arg11[%c0_84, %c1_85] : memref<32x362xf32, #tpu.memory_space<vmem>>, vector<32x324xf32>
    %c1_86 = arith.constant 1 : index
    %c0_87 = arith.constant 0 : index
    %c0_88 = arith.constant 0 : index
    %109 = vector.load %arg5[%c1_86, %c0_87, %c0_88] : memref<9x32x32xf32, #tpu.memory_space<vmem>>, vector<1x32x32xf32>
    %110 = vector.shape_cast %109 : vector<1x32x32xf32> to vector<32x32xf32>
    %cst_89 = arith.constant dense<0.000000e+00> : vector<32x324xf32>
    %111 = tpu.matmul %110, %108, %cst_89 {dimension_numbers = #tpu.dot_dimension_numbers<[1], [0], [0], [1], [0, 0, 1, 1], [], []>} : vector<32x32xf32>, vector<32x324xf32>, vector<32x324xf32> -> vector<32x324xf32>
    %112 = arith.addf %107, %111 : vector<32x324xf32>
    %c0_90 = arith.constant 0 : index
    %c2_91 = arith.constant 2 : index
    %113 = vector.load %arg11[%c0_90, %c2_91] : memref<32x362xf32, #tpu.memory_space<vmem>>, vector<32x324xf32>
    %c2_92 = arith.constant 2 : index
    %c0_93 = arith.constant 0 : index
    %c0_94 = arith.constant 0 : index
    %114 = vector.load %arg5[%c2_92, %c0_93, %c0_94] : memref<9x32x32xf32, #tpu.memory_space<vmem>>, vector<1x32x32xf32>
    %115 = vector.shape_cast %114 : vector<1x32x32xf32> to vector<32x32xf32>
    %cst_95 = arith.constant dense<0.000000e+00> : vector<32x324xf32>
    %116 = tpu.matmul %115, %113, %cst_95 {dimension_numbers = #tpu.dot_dimension_numbers<[1], [0], [0], [1], [0, 0, 1, 1], [], []>} : vector<32x32xf32>, vector<32x324xf32>, vector<32x324xf32> -> vector<32x324xf32>
    %117 = arith.addf %112, %116 : vector<32x324xf32>
    %c0_96 = arith.constant 0 : index
    %c18_97 = arith.constant 18 : index
    %118 = vector.load %arg11[%c0_96, %c18_97] : memref<32x362xf32, #tpu.memory_space<vmem>>, vector<32x324xf32>
    %c3_98 = arith.constant 3 : index
    %c0_99 = arith.constant 0 : index
    %c0_100 = arith.constant 0 : index
    %119 = vector.load %arg5[%c3_98, %c0_99, %c0_100] : memref<9x32x32xf32, #tpu.memory_space<vmem>>, vector<1x32x32xf32>
    %120 = vector.shape_cast %119 : vector<1x32x32xf32> to vector<32x32xf32>
    %cst_101 = arith.constant dense<0.000000e+00> : vector<32x324xf32>
    %121 = tpu.matmul %120, %118, %cst_101 {dimension_numbers = #tpu.dot_dimension_numbers<[1], [0], [0], [1], [0, 0, 1, 1], [], []>} : vector<32x32xf32>, vector<32x324xf32>, vector<32x324xf32> -> vector<32x324xf32>
    %122 = arith.addf %117, %121 : vector<32x324xf32>
    %c0_102 = arith.constant 0 : index
    %c19_103 = arith.constant 19 : index
    %123 = vector.load %arg11[%c0_102, %c19_103] : memref<32x362xf32, #tpu.memory_space<vmem>>, vector<32x324xf32>
    %c4_104 = arith.constant 4 : index
    %c0_105 = arith.constant 0 : index
    %c0_106 = arith.constant 0 : index
    %124 = vector.load %arg5[%c4_104, %c0_105, %c0_106] : memref<9x32x32xf32, #tpu.memory_space<vmem>>, vector<1x32x32xf32>
    %125 = vector.shape_cast %124 : vector<1x32x32xf32> to vector<32x32xf32>
    %cst_107 = arith.constant dense<0.000000e+00> : vector<32x324xf32>
    %126 = tpu.matmul %125, %123, %cst_107 {dimension_numbers = #tpu.dot_dimension_numbers<[1], [0], [0], [1], [0, 0, 1, 1], [], []>} : vector<32x32xf32>, vector<32x324xf32>, vector<32x324xf32> -> vector<32x324xf32>
    %127 = arith.addf %122, %126 : vector<32x324xf32>
    %c0_108 = arith.constant 0 : index
    %c20_109 = arith.constant 20 : index
    %128 = vector.load %arg11[%c0_108, %c20_109] : memref<32x362xf32, #tpu.memory_space<vmem>>, vector<32x324xf32>
    %c5_110 = arith.constant 5 : index
    %c0_111 = arith.constant 0 : index
    %c0_112 = arith.constant 0 : index
    %129 = vector.load %arg5[%c5_110, %c0_111, %c0_112] : memref<9x32x32xf32, #tpu.memory_space<vmem>>, vector<1x32x32xf32>
    %130 = vector.shape_cast %129 : vector<1x32x32xf32> to vector<32x32xf32>
    %cst_113 = arith.constant dense<0.000000e+00> : vector<32x324xf32>
    %131 = tpu.matmul %130, %128, %cst_113 {dimension_numbers = #tpu.dot_dimension_numbers<[1], [0], [0], [1], [0, 0, 1, 1], [], []>} : vector<32x32xf32>, vector<32x324xf32>, vector<32x324xf32> -> vector<32x324xf32>
    %132 = arith.addf %127, %131 : vector<32x324xf32>
    %c0_114 = arith.constant 0 : index
    %c36_115 = arith.constant 36 : index
    %133 = vector.load %arg11[%c0_114, %c36_115] : memref<32x362xf32, #tpu.memory_space<vmem>>, vector<32x324xf32>
    %c6_116 = arith.constant 6 : index
    %c0_117 = arith.constant 0 : index
    %c0_118 = arith.constant 0 : index
    %134 = vector.load %arg5[%c6_116, %c0_117, %c0_118] : memref<9x32x32xf32, #tpu.memory_space<vmem>>, vector<1x32x32xf32>
    %135 = vector.shape_cast %134 : vector<1x32x32xf32> to vector<32x32xf32>
    %cst_119 = arith.constant dense<0.000000e+00> : vector<32x324xf32>
    %136 = tpu.matmul %135, %133, %cst_119 {dimension_numbers = #tpu.dot_dimension_numbers<[1], [0], [0], [1], [0, 0, 1, 1], [], []>} : vector<32x32xf32>, vector<32x324xf32>, vector<32x324xf32> -> vector<32x324xf32>
    %137 = arith.addf %132, %136 : vector<32x324xf32>
    %c0_120 = arith.constant 0 : index
    %c37_121 = arith.constant 37 : index
    %138 = vector.load %arg11[%c0_120, %c37_121] : memref<32x362xf32, #tpu.memory_space<vmem>>, vector<32x324xf32>
    %c7_122 = arith.constant 7 : index
    %c0_123 = arith.constant 0 : index
    %c0_124 = arith.constant 0 : index
    %139 = vector.load %arg5[%c7_122, %c0_123, %c0_124] : memref<9x32x32xf32, #tpu.memory_space<vmem>>, vector<1x32x32xf32>
    %140 = vector.shape_cast %139 : vector<1x32x32xf32> to vector<32x32xf32>
    %cst_125 = arith.constant dense<0.000000e+00> : vector<32x324xf32>
    %141 = tpu.matmul %140, %138, %cst_125 {dimension_numbers = #tpu.dot_dimension_numbers<[1], [0], [0], [1], [0, 0, 1, 1], [], []>} : vector<32x32xf32>, vector<32x324xf32>, vector<32x324xf32> -> vector<32x324xf32>
    %142 = arith.addf %137, %141 : vector<32x324xf32>
    %c0_126 = arith.constant 0 : index
    %c38_127 = arith.constant 38 : index
    %143 = vector.load %arg11[%c0_126, %c38_127] : memref<32x362xf32, #tpu.memory_space<vmem>>, vector<32x324xf32>
    %c8_128 = arith.constant 8 : index
    %c0_129 = arith.constant 0 : index
    %c0_130 = arith.constant 0 : index
    %144 = vector.load %arg5[%c8_128, %c0_129, %c0_130] : memref<9x32x32xf32, #tpu.memory_space<vmem>>, vector<1x32x32xf32>
    %145 = vector.shape_cast %144 : vector<1x32x32xf32> to vector<32x32xf32>
    %cst_131 = arith.constant dense<0.000000e+00> : vector<32x324xf32>
    %146 = tpu.matmul %145, %143, %cst_131 {dimension_numbers = #tpu.dot_dimension_numbers<[1], [0], [0], [1], [0, 0, 1, 1], [], []>} : vector<32x32xf32>, vector<32x324xf32>, vector<32x324xf32> -> vector<32x324xf32>
    %147 = arith.addf %142, %146 : vector<32x324xf32>
    %cst_132 = arith.constant 0.000000e+00 : f32
    %148 = vector.broadcast %cst_132 : f32 to vector<32x324xf32>
    %149 = arith.cmpf ogt, %147, %148 : vector<32x324xf32>
    %cst_133 = arith.constant 0.000000e+00 : f32
    %150 = vector.broadcast %cst_133 : f32 to vector<32x324xf32>
    %151 = arith.minimumf %147, %150 : vector<32x324xf32>
    %152 = math.exp %151 : vector<32x324xf32>
    %cst_134 = arith.constant 1.000000e+00 : f32
    %153 = vector.broadcast %cst_134 : f32 to vector<32x324xf32>
    %154 = arith.subf %152, %153 : vector<32x324xf32>
    %155 = arith.select %149, %147, %154 : vector<32x324xi1>, vector<32x324xf32>
    %156 = vector.broadcast %0 : vector<1x324xf32> to vector<32x324xf32>
    %157 = arith.mulf %155, %156 : vector<32x324xf32>
    %c0_135 = arith.constant 0 : index
    %c19_136 = arith.constant 19 : index
    %158 = vector.load %arg12[%c0_135, %c19_136] : memref<32x362xf32, #tpu.memory_space<vmem>>, vector<32x324xf32>
    tpu.vector_store %arg12[%c0_135, %c19_136], %157 {strides = array<i32>} : memref<32x362xf32, #tpu.memory_space<vmem>>, vector<32x324xf32>,
    %c0_137 = arith.constant 0 : index
    %c0_138 = arith.constant 0 : index
    %159 = vector.load %arg8[%c0_137, %c0_138] : memref<1x1xf32, #tpu.memory_space<vmem>>, vector<1x1xf32>
    %160 = vector.shape_cast %159 : vector<1x1xf32> to vector<1x1xf32>
    %161 = vector.broadcast %160 : vector<1x1xf32> to vector<1x324xf32>
    %c0_139 = arith.constant 0 : index
    %c0_140 = arith.constant 0 : index
    %162 = vector.load %arg12[%c0_139, %c0_140] : memref<32x362xf32, #tpu.memory_space<vmem>>, vector<32x324xf32>
    %c0_141 = arith.constant 0 : index
    %c0_142 = arith.constant 0 : index
    %c0_143 = arith.constant 0 : index
    %163 = vector.load %arg7[%c0_141, %c0_142, %c0_143] : memref<9x1x32xf32, #tpu.memory_space<vmem>>, vector<1x1x32xf32>
    %164 = vector.shape_cast %163 : vector<1x1x32xf32> to vector<1x32xf32>
    %cst_144 = arith.constant dense<0.000000e+00> : vector<1x324xf32>
    %165 = tpu.matmul %164, %162, %cst_144 {dimension_numbers = #tpu.dot_dimension_numbers<[1], [0], [0], [1], [0, 0, 1, 1], [], []>} : vector<1x32xf32>, vector<32x324xf32>, vector<1x324xf32> -> vector<1x324xf32>
    %166 = arith.addf %161, %165 : vector<1x324xf32>
    %c0_145 = arith.constant 0 : index
    %c1_146 = arith.constant 1 : index
    %167 = vector.load %arg12[%c0_145, %c1_146] : memref<32x362xf32, #tpu.memory_space<vmem>>, vector<32x324xf32>
    %c1_147 = arith.constant 1 : index
    %c0_148 = arith.constant 0 : index
    %c0_149 = arith.constant 0 : index
    %168 = vector.load %arg7[%c1_147, %c0_148, %c0_149] : memref<9x1x32xf32, #tpu.memory_space<vmem>>, vector<1x1x32xf32>
    %169 = vector.shape_cast %168 : vector<1x1x32xf32> to vector<1x32xf32>
    %cst_150 = arith.constant dense<0.000000e+00> : vector<1x324xf32>
    %170 = tpu.matmul %169, %167, %cst_150 {dimension_numbers = #tpu.dot_dimension_numbers<[1], [0], [0], [1], [0, 0, 1, 1], [], []>} : vector<1x32xf32>, vector<32x324xf32>, vector<1x324xf32> -> vector<1x324xf32>
    %171 = arith.addf %166, %170 : vector<1x324xf32>
    %c0_151 = arith.constant 0 : index
    %c2_152 = arith.constant 2 : index
    %172 = vector.load %arg12[%c0_151, %c2_152] : memref<32x362xf32, #tpu.memory_space<vmem>>, vector<32x324xf32>
    %c2_153 = arith.constant 2 : index
    %c0_154 = arith.constant 0 : index
    %c0_155 = arith.constant 0 : index
    %173 = vector.load %arg7[%c2_153, %c0_154, %c0_155] : memref<9x1x32xf32, #tpu.memory_space<vmem>>, vector<1x1x32xf32>
    %174 = vector.shape_cast %173 : vector<1x1x32xf32> to vector<1x32xf32>
    %cst_156 = arith.constant dense<0.000000e+00> : vector<1x324xf32>
    %175 = tpu.matmul %174, %172, %cst_156 {dimension_numbers = #tpu.dot_dimension_numbers<[1], [0], [0], [1], [0, 0, 1, 1], [], []>} : vector<1x32xf32>, vector<32x324xf32>, vector<1x324xf32> -> vector<1x324xf32>
    %176 = arith.addf %171, %175 : vector<1x324xf32>
    %c0_157 = arith.constant 0 : index
    %c18_158 = arith.constant 18 : index
    %177 = vector.load %arg12[%c0_157, %c18_158] : memref<32x362xf32, #tpu.memory_space<vmem>>, vector<32x324xf32>
    %c3_159 = arith.constant 3 : index
    %c0_160 = arith.constant 0 : index
    %c0_161 = arith.constant 0 : index
    %178 = vector.load %arg7[%c3_159, %c0_160, %c0_161] : memref<9x1x32xf32, #tpu.memory_space<vmem>>, vector<1x1x32xf32>
    %179 = vector.shape_cast %178 : vector<1x1x32xf32> to vector<1x32xf32>
    %cst_162 = arith.constant dense<0.000000e+00> : vector<1x324xf32>
    %180 = tpu.matmul %179, %177, %cst_162 {dimension_numbers = #tpu.dot_dimension_numbers<[1], [0], [0], [1], [0, 0, 1, 1], [], []>} : vector<1x32xf32>, vector<32x324xf32>, vector<1x324xf32> -> vector<1x324xf32>
    %181 = arith.addf %176, %180 : vector<1x324xf32>
    %c0_163 = arith.constant 0 : index
    %c19_164 = arith.constant 19 : index
    %182 = vector.load %arg12[%c0_163, %c19_164] : memref<32x362xf32, #tpu.memory_space<vmem>>, vector<32x324xf32>
    %c4_165 = arith.constant 4 : index
    %c0_166 = arith.constant 0 : index
    %c0_167 = arith.constant 0 : index
    %183 = vector.load %arg7[%c4_165, %c0_166, %c0_167] : memref<9x1x32xf32, #tpu.memory_space<vmem>>, vector<1x1x32xf32>
    %184 = vector.shape_cast %183 : vector<1x1x32xf32> to vector<1x32xf32>
    %cst_168 = arith.constant dense<0.000000e+00> : vector<1x324xf32>
    %185 = tpu.matmul %184, %182, %cst_168 {dimension_numbers = #tpu.dot_dimension_numbers<[1], [0], [0], [1], [0, 0, 1, 1], [], []>} : vector<1x32xf32>, vector<32x324xf32>, vector<1x324xf32> -> vector<1x324xf32>
    %186 = arith.addf %181, %185 : vector<1x324xf32>
    %c0_169 = arith.constant 0 : index
    %c20_170 = arith.constant 20 : index
    %187 = vector.load %arg12[%c0_169, %c20_170] : memref<32x362xf32, #tpu.memory_space<vmem>>, vector<32x324xf32>
    %c5_171 = arith.constant 5 : index
    %c0_172 = arith.constant 0 : index
    %c0_173 = arith.constant 0 : index
    %188 = vector.load %arg7[%c5_171, %c0_172, %c0_173] : memref<9x1x32xf32, #tpu.memory_space<vmem>>, vector<1x1x32xf32>
    %189 = vector.shape_cast %188 : vector<1x1x32xf32> to vector<1x32xf32>
    %cst_174 = arith.constant dense<0.000000e+00> : vector<1x324xf32>
    %190 = tpu.matmul %189, %187, %cst_174 {dimension_numbers = #tpu.dot_dimension_numbers<[1], [0], [0], [1], [0, 0, 1, 1], [], []>} : vector<1x32xf32>, vector<32x324xf32>, vector<1x324xf32> -> vector<1x324xf32>
    %191 = arith.addf %186, %190 : vector<1x324xf32>
    %c0_175 = arith.constant 0 : index
    %c36_176 = arith.constant 36 : index
    %192 = vector.load %arg12[%c0_175, %c36_176] : memref<32x362xf32, #tpu.memory_space<vmem>>, vector<32x324xf32>
    %c6_177 = arith.constant 6 : index
    %c0_178 = arith.constant 0 : index
    %c0_179 = arith.constant 0 : index
    %193 = vector.load %arg7[%c6_177, %c0_178, %c0_179] : memref<9x1x32xf32, #tpu.memory_space<vmem>>, vector<1x1x32xf32>
    %194 = vector.shape_cast %193 : vector<1x1x32xf32> to vector<1x32xf32>
    %cst_180 = arith.constant dense<0.000000e+00> : vector<1x324xf32>
    %195 = tpu.matmul %194, %192, %cst_180 {dimension_numbers = #tpu.dot_dimension_numbers<[1], [0], [0], [1], [0, 0, 1, 1], [], []>} : vector<1x32xf32>, vector<32x324xf32>, vector<1x324xf32> -> vector<1x324xf32>
    %196 = arith.addf %191, %195 : vector<1x324xf32>
    %c0_181 = arith.constant 0 : index
    %c37_182 = arith.constant 37 : index
    %197 = vector.load %arg12[%c0_181, %c37_182] : memref<32x362xf32, #tpu.memory_space<vmem>>, vector<32x324xf32>
    %c7_183 = arith.constant 7 : index
    %c0_184 = arith.constant 0 : index
    %c0_185 = arith.constant 0 : index
    %198 = vector.load %arg7[%c7_183, %c0_184, %c0_185] : memref<9x1x32xf32, #tpu.memory_space<vmem>>, vector<1x1x32xf32>
    %199 = vector.shape_cast %198 : vector<1x1x32xf32> to vector<1x32xf32>
    %cst_186 = arith.constant dense<0.000000e+00> : vector<1x324xf32>
    %200 = tpu.matmul %199, %197, %cst_186 {dimension_numbers = #tpu.dot_dimension_numbers<[1], [0], [0], [1], [0, 0, 1, 1], [], []>} : vector<1x32xf32>, vector<32x324xf32>, vector<1x324xf32> -> vector<1x324xf32>
    %201 = arith.addf %196, %200 : vector<1x324xf32>
    %c0_187 = arith.constant 0 : index
    %c38_188 = arith.constant 38 : index
    %202 = vector.load %arg12[%c0_187, %c38_188] : memref<32x362xf32, #tpu.memory_space<vmem>>, vector<32x324xf32>
    %c8_189 = arith.constant 8 : index
    %c0_190 = arith.constant 0 : index
    %c0_191 = arith.constant 0 : index
    %203 = vector.load %arg7[%c8_189, %c0_190, %c0_191] : memref<9x1x32xf32, #tpu.memory_space<vmem>>, vector<1x1x32xf32>
    %204 = vector.shape_cast %203 : vector<1x1x32xf32> to vector<1x32xf32>
    %cst_192 = arith.constant dense<0.000000e+00> : vector<1x324xf32>
    %205 = tpu.matmul %204, %202, %cst_192 {dimension_numbers = #tpu.dot_dimension_numbers<[1], [0], [0], [1], [0, 0, 1, 1], [], []>} : vector<1x32xf32>, vector<32x324xf32>, vector<1x324xf32> -> vector<1x324xf32>
    %206 = arith.addf %201, %205 : vector<1x324xf32>
    %207 = vector.shape_cast %206 : vector<1x324xf32> to vector<1x1x324xf32>
    %c0_193 = arith.constant 0 : index
    %c0_194 = arith.constant 0 : index
    %c0_195 = arith.constant 0 : index
    %208 = vector.load %arg9[%c0_193, %c0_194, %c0_195] : memref<1x1x324xf32, #tpu.memory_space<vmem>>, vector<1x1x324xf32>
    tpu.vector_store %arg9[%c0_193, %c0_194, %c0_195], %207 {strides = array<i32>} : memref<1x1x324xf32, #tpu.memory_space<vmem>>, vector<1x1x324xf32>,
    return
  }
  func.func @transform_0(%arg0: i32) -> (i32, i32, i32) {
    %c0_i32 = arith.constant 0 : i32
    %c0_i32_0 = arith.constant 0 : i32
    %c0_i32_1 = arith.constant 0 : i32
    return %arg0, %c0_i32, %c0_i32_0 : i32, i32, i32
  }
  func.func @transform_1(%arg0: i32) -> (i32, i32) {
    %c0_i32 = arith.constant 0 : i32
    %c0_i32_0 = arith.constant 0 : i32
    %c0_i32_1 = arith.constant 0 : i32
    return %c0_i32, %c0_i32_0 : i32, i32
  }
  func.func @transform_2(%arg0: i32) -> (i32, i32, i32) {
    %c0_i32 = arith.constant 0 : i32
    %c0_i32_0 = arith.constant 0 : i32
    %c0_i32_1 = arith.constant 0 : i32
    %c0_i32_2 = arith.constant 0 : i32
    return %c0_i32, %c0_i32_0, %c0_i32_1 : i32, i32, i32
  }
  func.func @transform_3(%arg0: i32) -> (i32, i32) {
    %c0_i32 = arith.constant 0 : i32
    %c0_i32_0 = arith.constant 0 : i32
    %c0_i32_1 = arith.constant 0 : i32
    return %c0_i32, %c0_i32_0 : i32, i32
  }
  func.func @transform_4(%arg0: i32) -> (i32, i32, i32) {
    %c0_i32 = arith.constant 0 : i32
    %c0_i32_0 = arith.constant 0 : i32
    %c0_i32_1 = arith.constant 0 : i32
    %c0_i32_2 = arith.constant 0 : i32
    return %c0_i32, %c0_i32_0, %c0_i32_1 : i32, i32, i32
  }
  func.func @transform_5(%arg0: i32) -> (i32, i32) {
    %c0_i32 = arith.constant 0 : i32
    %c0_i32_0 = arith.constant 0 : i32
    %c0_i32_1 = arith.constant 0 : i32
    return %c0_i32, %c0_i32_0 : i32, i32
  }
  func.func @transform_6(%arg0: i32) -> (i32, i32, i32) {
    %c0_i32 = arith.constant 0 : i32
    %c0_i32_0 = arith.constant 0 : i32
    %c0_i32_1 = arith.constant 0 : i32
    %c0_i32_2 = arith.constant 0 : i32
    return %c0_i32, %c0_i32_0, %c0_i32_1 : i32, i32, i32
  }
  func.func @transform_7(%arg0: i32) -> (i32, i32) {
    %c0_i32 = arith.constant 0 : i32
    %c0_i32_0 = arith.constant 0 : i32
    %c0_i32_1 = arith.constant 0 : i32
    return %c0_i32, %c0_i32_0 : i32, i32
  }
  func.func @transform_8(%arg0: i32) -> (i32, i32, i32) {
    %c0_i32 = arith.constant 0 : i32
    %c0_i32_0 = arith.constant 0 : i32
    %c0_i32_1 = arith.constant 0 : i32
    return %arg0, %c0_i32, %c0_i32_0 : i32, i32, i32
  }
}

</mosaic_0001>

<llo_original>
// kernel: decoder3x3_forward.1
$region0: #{decoder3x3_forward.1}
  #allocation0 [shape = 'u32[]', space=smem, size = 0x4, offset = 0x4, fixed_abs, tag = 'smem constant byte address 0x4 - core index']
  #allocation1 [shape = 'u32[144,128]{1,0:T(1,128)}', space=vmem, size = 0x12000, scoped, tag = 'internal scratch']
  #allocation2 [shape = 'f32[4,362]{1,0:T(4,128)}', space=vmem, size = 0x1800, scoped, tag = 'scratch operand']
  #allocation3 [shape = 'f32[32,362]{1,0:T(8,128)}', space=vmem, size = 0xc000, scoped, tag = 'scratch operand']
  #allocation4 [shape = 'f32[32,362]{1,0:T(8,128)}', space=vmem, size = 0xc000, scoped, tag = 'scratch operand']
  #allocation5 [shape = 'f32[1,1]{1,0:T(1,128)S(1)}', space=vmem, size = 0x200, scoped, tag = 'scoped memory for decoder3x3_forward.1']
  %s0 = inlined_call_operand.vmem [shape: f32[2,4,256], index: 0, kind: input, shape index: {}]
  %s1 = inlined_call_operand.vmem [shape: f32[1,324], index: 1, kind: input, shape index: {}]
  %s2 = inlined_call_operand.vmem [shape: f32[9,32,4], index: 2, kind: input, shape index: {}]
  %s3 = inlined_call_operand.vmem [shape: f32[32,1], index: 3, kind: input, shape index: {}]
  %s4 = inlined_call_operand.vmem [shape: f32[9,32,32], index: 4, kind: input, shape index: {}]
  %s5 = inlined_call_operand.vmem [shape: f32[32,1], index: 5, kind: input, shape index: {}]
  %s6 = inlined_call_operand.vmem [shape: f32[9,1,32], index: 6, kind: input, shape index: {}]
  %s7 = inlined_call_operand.<no memory space> [shape: f32[1,1], index: 7, kind: input, shape index: {}]
  %s8 = inlined_call_operand.vmem [shape: f32[2,1,324], index: 8, kind: output, shape index: {}]
  %s9 = sld [smem:[#allocation0]]
  $region65: #{decoder3x3_forward.1} parent=0
    _
  %s11 = ssub.s32 1, %s9
  %s12 = scalar_select 0, %s11, %s9
  %v13 = vstv %s7
  %14 = vst [vmem:[#allocation5] sm:$0x1] %v13
  loop: start=0, step=1, limit=4
  $region2: #{decoder3x3_forward.1} parent=0 // loop_pre_header
    _
  $region3: #{decoder3x3_forward.1} parent=0 // loop_header
    %s16 = sphi 0, %s20
    %p17 = scmp.ge.s32.totalorder %s16, 4
    %s26 = sphi 0, %s28
    %s29 = sphi 0, %s26
    %s30 = sphi 0, %s29
    %s46 = sphi 0, %s30
    %s50 = sphi 0, %s50
    %s52 = sphi 0, %s50
    %s53 = sphi 0, %s52
    %s67 = sphi 0, %s53
    %s71 = sphi 0, %s71
    %s73 = sphi 0, %s71
    %s74 = sphi 0, %s73
    %s88 = sphi 0, %s74
    %s92 = sphi 0, %s92
    %s94 = sphi 0, %s92
    %s95 = sphi 0, %s94
    %s109 = sphi 0, %s95
    %s113 = sphi 0, %s113
    %s115 = sphi 0, %s113
    %s116 = sphi 0, %s115
    %s130 = sphi 0, %s116
    %s134 = sphi 0, %s134
    %s136 = sphi 0, %s134
    %s137 = sphi 0, %s136
    %s151 = sphi 0, %s137
    %s155 = sphi 0, %s155
    %s157 = sphi 0, %s155
    %s158 = sphi 0, %s157
    %s172 = sphi 0, %s158
    %s176 = sphi 0, %s176
    %s178 = sphi 0, %s176
    %s179 = sphi 0, %s178
    %s193 = sphi 0, %s179
    %s199 = sphi 0, %s201
    %s202 = sphi 0, %s199
    %s203 = sphi 0, %s202
    %s219 = sphi 0, %s203
  $region4: #{decoder3x3_forward.1} parent=0 // loop_header_branch
    %19 = sbr.rel (%p17) target = $region8
  $region5: #{decoder3x3_forward.1} parent=0 // loop_body
    %s21 = ssub.s32 %s16, 1
    %s22 = ssub.s32 %s16, 2
    %s23 = sadd.s32 %s16, 1
    %s24 = ssub.s32 %s16, %s23
    %p25 = scmp.eq.s32.totalorder %s24, 0
    %s27 = sadd.s32 %s26, 1
    %s28 = scalar_select %p25, %s26, %s27
    %p31 = pneg %p25
    %p32 = scmp.eq.s32.totalorder %s16, 1
    %p33 = por %p31, %p32
    %p34 = scmp.ne.s32.totalorder %s26, %s29
    %p35 = scmp.eq.s32.totalorder %s16, 0
    %p36 = por %p34, %p35
    %p37 = scmp.ne.s32.totalorder %s26, %s29
    %p38 = scmp.eq.s32.totalorder %s21, 1
    %p39 = por %p37, %p38
    %p40 = scmp.ne.s32.totalorder %s29, %s30
    %p41 = scmp.eq.s32.totalorder %s21, 0
    %p42 = por %p40, %p41
    %p43 = scmp.ne.s32.totalorder %s29, %s30
    %p44 = scmp.eq.s32.totalorder %s22, 1
    %p45 = por %p43, %p44
    %p47 = scmp.ne.s32.totalorder %s30, %s46
    %p48 = scmp.eq.s32.totalorder %s22, 0
    %p49 = por %p47, %p48
    %s51 = sadd.s32 %s50, 1
    %p54 = scmp.eq.s32.totalorder %s16, 1
    %p55 = scmp.ne.s32.totalorder %s50, %s52
    %p56 = scmp.eq.s32.totalorder %s16, 0
    %p57 = por %p55, %p56
    %p58 = scmp.ne.s32.totalorder %s50, %s52
    %p59 = scmp.eq.s32.totalorder %s21, 1
    %p60 = por %p58, %p59
    %p61 = scmp.ne.s32.totalorder %s52, %s53
    %p62 = scmp.eq.s32.totalorder %s21, 0
    %p63 = por %p61, %p62
    %p64 = scmp.ne.s32.totalorder %s52, %s53
    %p65 = scmp.eq.s32.totalorder %s22, 1
    %p66 = por %p64, %p65
    %p68 = scmp.ne.s32.totalorder %s53, %s67
    %p69 = scmp.eq.s32.totalorder %s22, 0
    %p70 = por %p68, %p69
    %s72 = sadd.s32 %s71, 1
    %p75 = scmp.eq.s32.totalorder %s16, 1
    %p76 = scmp.ne.s32.totalorder %s71, %s73
    %p77 = scmp.eq.s32.totalorder %s16, 0
    %p78 = por %p76, %p77
    %p79 = scmp.ne.s32.totalorder %s71, %s73
    %p80 = scmp.eq.s32.totalorder %s21, 1
    %p81 = por %p79, %p80
    %p82 = scmp.ne.s32.totalorder %s73, %s74
    %p83 = scmp.eq.s32.totalorder %s21, 0
    %p84 = por %p82, %p83
    %p85 = scmp.ne.s32.totalorder %s73, %s74
    %p86 = scmp.eq.s32.totalorder %s22, 1
    %p87 = por %p85, %p86
    %p89 = scmp.ne.s32.totalorder %s74, %s88
    %p90 = scmp.eq.s32.totalorder %s22, 0
    %p91 = por %p89, %p90
    %s93 = sadd.s32 %s92, 1
    %p96 = scmp.eq.s32.totalorder %s16, 1
    %p97 = scmp.ne.s32.totalorder %s92, %s94
    %p98 = scmp.eq.s32.totalorder %s16, 0
    %p99 = por %p97, %p98
    %p100 = scmp.ne.s32.totalorder %s92, %s94
    %p101 = scmp.eq.s32.totalorder %s21, 1
    %p102 = por %p100, %p101
    %p103 = scmp.ne.s32.totalorder %s94, %s95
    %p104 = scmp.eq.s32.totalorder %s21, 0
    %p105 = por %p103, %p104
    %p106 = scmp.ne.s32.totalorder %s94, %s95
    %p107 = scmp.eq.s32.totalorder %s22, 1
    %p108 = por %p106, %p107
    %p110 = scmp.ne.s32.totalorder %s95, %s109
    %p111 = scmp.eq.s32.totalorder %s22, 0
    %p112 = por %p110, %p111
    %s114 = sadd.s32 %s113, 1
    %p117 = scmp.eq.s32.totalorder %s16, 1
    %p118 = scmp.ne.s32.totalorder %s113, %s115
    %p119 = scmp.eq.s32.totalorder %s16, 0
    %p120 = por %p118, %p119
    %p121 = scmp.ne.s32.totalorder %s113, %s115
    %p122 = scmp.eq.s32.totalorder %s21, 1
    %p123 = por %p121, %p122
    %p124 = scmp.ne.s32.totalorder %s115, %s116
    %p125 = scmp.eq.s32.totalorder %s21, 0
    %p126 = por %p124, %p125
    %p127 = scmp.ne.s32.totalorder %s115, %s116
    %p128 = scmp.eq.s32.totalorder %s22, 1
    %p129 = por %p127, %p128
    %p131 = scmp.ne.s32.totalorder %s116, %s130
    %p132 = scmp.eq.s32.totalorder %s22, 0
    %p133 = por %p131, %p132
    %s135 = sadd.s32 %s134, 1
    %p138 = scmp.eq.s32.totalorder %s16, 1
    %p139 = scmp.ne.s32.totalorder %s134, %s136
    %p140 = scmp.eq.s32.totalorder %s16, 0
    %p141 = por %p139, %p140
    %p142 = scmp.ne.s32.totalorder %s134, %s136
    %p143 = scmp.eq.s32.totalorder %s21, 1
    %p144 = por %p142, %p143
    %p145 = scmp.ne.s32.totalorder %s136, %s137
    %p146 = scmp.eq.s32.totalorder %s21, 0
    %p147 = por %p145, %p146
    %p148 = scmp.ne.s32.totalorder %s136, %s137
    %p149 = scmp.eq.s32.totalorder %s22, 1
    %p150 = por %p148, %p149
    %p152 = scmp.ne.s32.totalorder %s137, %s151
    %p153 = scmp.eq.s32.totalorder %s22, 0
    %p154 = por %p152, %p153
    %s156 = sadd.s32 %s155, 1
    %p159 = scmp.eq.s32.totalorder %s16, 1
    %p160 = scmp.ne.s32.totalorder %s155, %s157
    %p161 = scmp.eq.s32.totalorder %s16, 0
    %p162 = por %p160, %p161
    %p163 = scmp.ne.s32.totalorder %s155, %s157
    %p164 = scmp.eq.s32.totalorder %s21, 1
    %p165 = por %p163, %p164
    %p166 = scmp.ne.s32.totalorder %s157, %s158
    %p167 = scmp.eq.s32.totalorder %s21, 0
    %p168 = por %p166, %p167
    %p169 = scmp.ne.s32.totalorder %s157, %s158
    %p170 = scmp.eq.s32.totalorder %s22, 1
    %p171 = por %p169, %p170
    %p173 = scmp.ne.s32.totalorder %s158, %s172
    %p174 = scmp.eq.s32.totalorder %s22, 0
    %p175 = por %p173, %p174
    %s177 = sadd.s32 %s176, 1
    %p180 = scmp.eq.s32.totalorder %s16, 1
    %p181 = scmp.ne.s32.totalorder %s176, %s178
    %p182 = scmp.eq.s32.totalorder %s16, 0
    %p183 = por %p181, %p182
    %p184 = scmp.ne.s32.totalorder %s176, %s178
    %p185 = scmp.eq.s32.totalorder %s21, 1
    %p186 = por %p184, %p185
    %p187 = scmp.ne.s32.totalorder %s178, %s179
    %p188 = scmp.eq.s32.totalorder %s21, 0
    %p189 = por %p187, %p188
    %p190 = scmp.ne.s32.totalorder %s178, %s179
    %p191 = scmp.eq.s32.totalorder %s22, 1
    %p192 = por %p190, %p191
    %p194 = scmp.ne.s32.totalorder %s179, %s193
    %p195 = scmp.eq.s32.totalorder %s22, 0
    %p196 = por %p194, %p195
    %s197 = ssub.s32 %s16, %s23
    %p198 = scmp.eq.s32.totalorder %s197, 0
    %s200 = sadd.s32 %s199, 1
    %s201 = scalar_select %p198, %s199, %s200
    %p204 = pneg %p198
    %p205 = scmp.eq.s32.totalorder %s16, 1
    %p206 = por %p204, %p205
    %p207 = scmp.ne.s32.totalorder %s199, %s202
    %p208 = scmp.eq.s32.totalorder %s16, 0
    %p209 = por %p207, %p208
    %p210 = scmp.ne.s32.totalorder %s199, %s202
    %p211 = scmp.eq.s32.totalorder %s21, 1
    %p212 = por %p210, %p211
    %p213 = scmp.ne.s32.totalorder %s202, %s203
    %p214 = scmp.eq.s32.totalorder %s21, 0
    %p215 = por %p213, %p214
    %p216 = scmp.ne.s32.totalorder %s202, %s203
    %p217 = scmp.eq.s32.totalorder %s22, 1
    %p218 = por %p216, %p217
    %p220 = scmp.ne.s32.totalorder %s203, %s219
    %p221 = scmp.eq.s32.totalorder %s22, 0
    %p222 = por %p220, %p221
    %p223 = scmp.le.s32.totalorder 1, %s16
    %p224 = scmp.lt.s32.totalorder %s16, 3
    %p225 = pnand %p223, %p224
    %p226 = pneg %p225
    // Predicated region
    $region9: #{decoder3x3_forward.1} parent=5 // pred_check
      _
    $region10: #{decoder3x3_forward.1} parent=5 // pred_check_branch
      %228 = sbr.rel (%p225) target = $region12
    $region11: #{decoder3x3_forward.1} parent=5 // pred_region
      %s229 = ssub.s32 %s16, 1
      // Predicated region
      $region13: #{decoder3x3_forward.1} parent=11 // pred_check
        %p230 = pneg %p63
      $region14: #{decoder3x3_forward.1} parent=11 // pred_check_branch
        %232 = sbr.rel (%p230) target = $region16
      $region15: #{decoder3x3_forward.1} parent=11 // pred_region
        _
      $region16: #{decoder3x3_forward.1} parent=11 // pred_fallthru
        _
      // Predicated region
      $region17: #{decoder3x3_forward.1} parent=11 // pred_check
        %p233 = pneg %p84
      $region18: #{decoder3x3_forward.1} parent=11 // pred_check_branch
        %235 = sbr.rel (%p233) target = $region20
      $region19: #{decoder3x3_forward.1} parent=11 // pred_region
        _
      $region20: #{decoder3x3_forward.1} parent=11 // pred_fallthru
        _
      // Predicated region
      $region21: #{decoder3x3_forward.1} parent=11 // pred_check
        %p236 = pneg %p105
      $region22: #{decoder3x3_forward.1} parent=11 // pred_check_branch
        %238 = sbr.rel (%p236) target = $region24
      $region23: #{decoder3x3_forward.1} parent=11 // pred_region
        _
      $region24: #{decoder3x3_forward.1} parent=11 // pred_fallthru
        _
      // Predicated region
      $region25: #{decoder3x3_forward.1} parent=11 // pred_check
        %p239 = pneg %p126
      $region26: #{decoder3x3_forward.1} parent=11 // pred_check_branch
        %241 = sbr.rel (%p239) target = $region28
      $region27: #{decoder3x3_forward.1} parent=11 // pred_region
        _
      $region28: #{decoder3x3_forward.1} parent=11 // pred_fallthru
        _
      // Predicated region
      $region29: #{decoder3x3_forward.1} parent=11 // pred_check
        %p242 = pneg %p147
      $region30: #{decoder3x3_forward.1} parent=11 // pred_check_branch
        %244 = sbr.rel (%p242) target = $region32
      $region31: #{decoder3x3_forward.1} parent=11 // pred_region
        _
      $region32: #{decoder3x3_forward.1} parent=11 // pred_fallthru
        _
      // Predicated region
      $region33: #{decoder3x3_forward.1} parent=11 // pred_check
        %p245 = pneg %p168
      $region34: #{decoder3x3_forward.1} parent=11 // pred_check_branch
        %247 = sbr.rel (%p245) target = $region36
      $region35: #{decoder3x3_forward.1} parent=11 // pred_region
        _
      $region36: #{decoder3x3_forward.1} parent=11 // pred_fallthru
        _
      // Predicated region
      $region37: #{decoder3x3_forward.1} parent=11 // pred_check
        %p248 = pneg %p189
      $region38: #{decoder3x3_forward.1} parent=11 // pred_check_branch
        %250 = sbr.rel (%p248) target = $region40
      $region39: #{decoder3x3_forward.1} parent=11 // pred_region
        _
      $region40: #{decoder3x3_forward.1} parent=11 // pred_fallthru
        _
    $region12: #{decoder3x3_forward.1} parent=5 // pred_fallthru
      _
    %p251 = scmp.lt.s32.totalorder %s16, 2
    // Predicated region
    $region41: #{decoder3x3_forward.1} parent=5 // pred_check
      %p252 = pneg %p251
    $region42: #{decoder3x3_forward.1} parent=5 // pred_check_branch
      %254 = sbr.rel (%p252) target = $region44
    $region43: #{decoder3x3_forward.1} parent=5 // pred_region
      // Predicated region
      $region45: #{decoder3x3_forward.1} parent=43 // pred_check
        %p255 = pneg %p36
      $region46: #{decoder3x3_forward.1} parent=43 // pred_check_branch
        %257 = sbr.rel (%p255) target = $region48
      $region47: #{decoder3x3_forward.1} parent=43 // pred_region
        %p258 = scmp.lt.s32.totalorder %s16, 1
        %s259 = scalar_select %p258, %s16, 1
        %s260 = smul.addr %s259, 2
        %s261 = smul.addr %s260, 4
        %s262 = scalar_lea.vmem %s0, %s261
      $region48: #{decoder3x3_forward.1} parent=43 // pred_fallthru
        _
    $region44: #{decoder3x3_forward.1} parent=5 // pred_fallthru
      _
    %p263 = scmp.le.s32.totalorder 1, %s16
    %p264 = scmp.lt.s32.totalorder %s16, 3
    %p265 = pnand %p263, %p264
    %p266 = pneg %p265
    // Predicated region
    $region49: #{decoder3x3_forward.1} parent=5 // pred_check
      _
    $region50: #{decoder3x3_forward.1} parent=5 // pred_check_branch
      %268 = sbr.rel (%p265) target = $region52
    $region51: #{decoder3x3_forward.1} parent=5 // pred_region
      %s269 = ssub.s32 %s16, 1
      %p270 = scmp.lt.s32.totalorder %s21, 1
      %s271 = scalar_select %p270, %s21, 1
      %s272 = smul.addr %s271, 2
      %s273 = smul.addr %s272, 4
      %s274 = scalar_lea.vmem %s0, %s273
      %p275 = pneg %p42
      %p276 = pneg %p39
      %p277 = pneg %p63
      %p278 = pneg %p60
      %p279 = pneg %p84
      %p280 = pneg %p81
      %p281 = pneg %p105
      %p282 = pneg %p102
      %p283 = pneg %p126
      %p284 = pneg %p123
      %p285 = pneg %p147
      %p286 = pneg %p144
      %p287 = pneg %p168
      %p288 = pneg %p165
      %p289 = pneg %p189
      %p290 = pneg %p186
      %p291 = pneg %p215
      %p292 = pneg %p212
      %p293 = scmp.lt.s32.totalorder %s21, 1
      %s294 = scalar_select %p293, %s21, 1
      %s295 = smul.addr %s294, 3
      %s296 = scalar_lea.vmem %s8, %s295
      %p297 = scmp.lt.s32.totalorder %s21, 1
      %s298 = scalar_select %p297, %s21, 1
      %s299 = smul.addr %s298, 2
      %s300 = smul.addr %s299, 4
      %s301 = scalar_lea.vmem %s0, %s300
      %p302 = scmp.lt.s32.totalorder %s21, 1
      %s303 = scalar_select %p302, %s21, 1
      %s304 = smul.addr %s303, 3
      %s305 = scalar_lea.vmem %s8, %s304
      %v306 = vld [vmem:[%s1] sm:$0x7]
      %307 = vst [vmem:[#allocation2] sm:$0xff] 0.0
      %vm308 = vcmask 863232
      %309 = vst.msk [vmem:[#allocation2 + $0x8] sm:$0xf] %vm308, 0.0
      %310 = vst [vmem:[#allocation3] sm:$0xff] 0.0
      %311 = vst [vmem:[#allocation3 + $0x8] sm:$0xff] 0.0
      %vm312 = vcmask 867328
      %313 = vst.msk [vmem:[#allocation3 + $0x10] sm:$0xff] %vm312, 0.0
      %314 = vst [vmem:[#allocation3 + $0x18] sm:$0xff] 0.0
      %315 = vst [vmem:[#allocation3 + $0x20] sm:$0xff] 0.0
      %316 = vst.msk [vmem:[#allocation3 + $0x28] sm:$0xff] %vm312, 0.0
      %317 = vst [vmem:[#allocation3 + $0x30] sm:$0xff] 0.0
      %318 = vst [vmem:[#allocation3 + $0x38] sm:$0xff] 0.0
      %319 = vst.msk [vmem:[#allocation3 + $0x40] sm:$0xff] %vm312, 0.0
      %320 = vst [vmem:[#allocation3 + $0x48] sm:$0xff] 0.0
      %321 = vst [vmem:[#allocation3 + $0x50] sm:$0xff] 0.0
      %322 = vst.msk [vmem:[#allocation3 + $0x58] sm:$0xff] %vm312, 0.0
      %323 = vst [vmem:[#allocation4] sm:$0xff] 0.0
      %324 = vst [vmem:[#allocation4 + $0x8] sm:$0xff] 0.0
      %325 = vst.msk [vmem:[#allocation4 + $0x10] sm:$0xff] %vm312, 0.0
      %326 = vst [vmem:[#allocation4 + $0x18] sm:$0xff] 0.0
      %327 = vst [vmem:[#allocation4 + $0x20] sm:$0xff] 0.0
      %328 = vst.msk [vmem:[#allocation4 + $0x28] sm:$0xff] %vm312, 0.0
      %329 = vst [vmem:[#allocation4 + $0x30] sm:$0xff] 0.0
      %330 = vst [vmem:[#allocation4 + $0x38] sm:$0xff] 0.0
      %331 = vst.msk [vmem:[#allocation4 + $0x40] sm:$0xff] %vm312, 0.0
      %332 = vst [vmem:[#allocation4 + $0x48] sm:$0xff] 0.0
      %333 = vst [vmem:[#allocation4 + $0x50] sm:$0xff] 0.0
      %334 = vst.msk [vmem:[#allocation4 + $0x58] sm:$0xff] %vm312, 0.0
      %v335 = vld [vmem:[%s301] sm:$0xff]
      %337 = vrot.lane.b32.xlu0 %v335, 38
      %v338 = vpop.permute.xlu0 %337
      %vm340 = vcmask 437552
      %341 = vst.msk [vmem:[#allocation2] sm:$0xf] %vm340, %v338
      %342 = vrot.lane.b32.xlu0 %v335, 40
      %v343 = vpop.permute.xlu0 %342
      %vm345 = vcmask 585152
      %346 = vst.msk [vmem:[#allocation2] sm:$0xf] %vm345, %v343
      %347 = vrot.lane.b32.xlu0 %v335, 42
      %v348 = vpop.permute.xlu0 %347
      %vm350 = vcmask 732752
      %351 = vst.msk [vmem:[#allocation2] sm:$0xf] %vm350, %v348
      %352 = vrot.lane.b32.xlu0 %v335, 44
      %v353 = vpop.permute.xlu0 %352
      %vm355 = vcmask 880352
      %356 = vst.msk [vmem:[#allocation2] sm:$0xf] %vm355, %v353
      %357 = vrot.lane.b32.xlu0 %v335, 46
      %v358 = vpop.permute.xlu0 %357
      %vm360 = vcmask 1027952
      %361 = vst.msk [vmem:[#allocation2] sm:$0xf] %vm360, %v358
      %362 = vrot.lane.b32.xlu0 %v335, 48
      %v363 = vpop.permute.xlu0 %362
      %vm365 = vcmask 125952
      %366 = vst.msk [vmem:[#allocation2 + $0x4] sm:$0xf] %vm365, %v363
      %367 = vrot.lane.b32.xlu0 %v335, 50
      %v368 = vpop.permute.xlu0 %367
      %vm370 = vcmask 273552
      %371 = vst.msk [vmem:[#allocation2 + $0x4] sm:$0xf] %vm370, %v368
      %372 = vrot.lane.b32.xlu0 %v335, 52
      %v373 = vpop.permute.xlu0 %372
      %vm375 = vcmask 421152
      %376 = vst.msk [vmem:[#allocation2 + $0x4] sm:$0xf] %vm375, %v373
      %377 = vrot.lane.b32.xlu0 %v335, 54
      %v378 = vpop.permute.xlu0 %377
      %v379 = vrot.slane %v378, 4
      %vm380 = vcmask 441344
      %v381 = vsel %vm380, %v378, %v379
      %vm383 = vcmask 568752
      %384 = vst.msk [vmem:[#allocation2 + $0x4] sm:$0xf] %vm383, %v381
      %385 = vrot.lane.b32.xlu0 %v335, 56
      %v386 = vpop.permute.xlu0 %385
      %v387 = vrot.slane %v386, 4
      %vm388 = vcmask 457728
      %v389 = vsel %vm388, %v386, %v387
      %vm391 = vcmask 716352
      %392 = vst.msk [vmem:[#allocation2 + $0x4] sm:$0xf] %vm391, %v389
      %393 = vrot.lane.b32.xlu0 %v335, 58
      %v394 = vpop.permute.xlu0 %393
      %v395 = vrot.slane %v394, 4
      %vm396 = vcmask 474112
      %v397 = vsel %vm396, %v394, %v395
      %vm399 = vcmask 863952
      %400 = vst.msk [vmem:[#allocation2 + $0x4] sm:$0xf] %vm399, %v397
      %401 = vrot.lane.b32.xlu0 %v335, 60
      %v402 = vpop.permute.xlu0 %401
      %v403 = vrot.slane %v402, 4
      %vm404 = vcmask 490496
      %v405 = vsel %vm404, %v402, %v403
      %vm407 = vcmask 1011552
      %408 = vst.msk [vmem:[#allocation2 + $0x4] sm:$0xf] %vm407, %v405
      %409 = vrot.lane.b32.xlu0 %v335, 62
      %v410 = vpop.permute.xlu0 %409
      %v411 = vrot.slane %v410, 4
      %vm412 = vcmask 506880
      %v413 = vsel %vm412, %v410, %v411
      %vm415 = vcmask 1044464
      %vm416 = vcmask 113668
      %vm417 = vmor %vm416, %vm415
      %418 = vst.msk [vmem:[#allocation2 + $0x4] sm:$0xff] %vm417, %v413
      %419 = vrot.lane.b32.xlu0 %v335, 64
      %v420 = vpop.permute.xlu0 %419
      %v421 = vrot.slane %v420, 4
      %vm423 = vcmask 257152
      %424 = vst.msk [vmem:[#allocation2 + $0x8] sm:$0xf] %vm423, %v421
      %425 = vrot.lane.b32.xlu0 %v335, 66
      %v426 = vpop.permute.xlu0 %425
      %v427 = vrot.slane %v426, 4
      %vm429 = vcmask 404752
      %430 = vst.msk [vmem:[#allocation2 + $0x8] sm:$0xf] %vm429, %v427
      %431 = vrot.lane.b32.xlu0 %v335, 68
      %v432 = vpop.permute.xlu0 %431
      %v433 = vrot.slane %v432, 4
      %vm435 = vcmask 552352
      %436 = vst.msk [vmem:[#allocation2 + $0x8] sm:$0xf] %vm435, %v433
      %v437 = vld [vmem:[%s3] sm:$0xff]
      %v438 = vld [vmem:[%s3 + $0x8] sm:$0xff]
      %v439 = vld [vmem:[%s3 + $0x10] sm:$0xff]
      %v440 = vld [vmem:[%s3 + $0x18] sm:$0xff]
      %442 = vset.pattern.permute.xlu0 0
      %443 = vperm.xlu0 %442, %v437
      %v444 = vpop.permute.xlu0 %443
      %447 = vset.pattern.permute.xlu0 0
      %448 = vperm.xlu0 %447, %v438
      %v449 = vpop.permute.xlu0 %448
      %452 = vset.pattern.permute.xlu0 0
      %453 = vperm.xlu0 %452, %v439
      %v454 = vpop.permute.xlu0 %453
      %457 = vset.pattern.permute.xlu0 0
      %458 = vperm.xlu0 %457, %v440
      %v459 = vpop.permute.xlu0 %458
      %v461 = vld [vmem:[#allocation2] sm:$0xff]
      %v462 = vld [vmem:[#allocation2 + $0x8] sm:$0xf]
      %v463 = vld [vmem:[%s2] sm:$0xff]
      %v464 = vld [vmem:[%s2 + $0x8] sm:$0xff]
      %v465 = vld [vmem:[%s2 + $0x10] sm:$0xff]
      %v466 = vld [vmem:[%s2 + $0x18] sm:$0xff]
      %v469 = vcombine.high %v461, %v461
      %vm470 = vcmask 31744
      %v472 = vsel %vm470, %v463, 0
      %v475 = vsel %vm470, %v464, 0
      %v478 = vsel %vm470, %v465, 0
      %v481 = vsel %vm470, %v466, 0
      %vm483 = vcmask 1043456
      %v484 = vsel %vm483, %v461, 0
      %v486 = vsel %vm483, %v469, 0
      %v488 = vsel %vm483, %v462, 0
      %490 = vmatprep.subr.mxu0 0.0
      %491 = vmatpush1.msra.mxu0 0.0
      %492 = vmatprep.subr.mxu0 0.0
      %493 = vmatpush1.msra.mxu0 0.0
      %494 = vmatprep.subr.mxu0 0.0
      %495 = vmatpush1.msra.mxu0 0.0
      %496 = vmatprep.subr.mxu0 0.0
      %497 = vmatpush1.msra.mxu0 0.0
      %498 = vmatprep.subr.mxu0 0.0
      %499 = vmatpush1.msra.mxu0 0.0
      %500 = vmatprep.subr.mxu0 0.0
      %501 = vmatpush1.msra.mxu0 0.0
      %502 = vmatprep.subr.mxu0 0.0
      %503 = vmatpush1.msra.mxu0 0.0
      %504 = vmatprep.subr.mxu0 0.0
      %505 = vmatpush1.msra.mxu0 0.0
      %506 = vmatprep.subr.mxu0 0.0
      %507 = vmatpush1.msra.mxu0 0.0
      %508 = vmatprep.subr.mxu0 0.0
      %509 = vmatpush1.msra.mxu0 0.0
      %510 = vmatprep.subr.mxu0 0.0
      %511 = vmatpush1.msra.mxu0 0.0
      %512 = vmatprep.subr.mxu0 0.0
      %513 = vmatpush1.msra.mxu0 0.0
      %514 = vmatprep.subr.mxu0 0.0
      %515 = vmatpush1.msra.mxu0 0.0
      %516 = vmatprep.subr.mxu0 0.0
      %517 = vmatpush1.msra.mxu0 0.0
      %518 = vmatprep.subr.mxu0 0.0
      %519 = vmatpush1.msra.mxu0 0.0
      %520 = vmatprep.subr.mxu0 %v486
      %521 = vmatpush1.msra.mxu0 %v484
      %522 = vmatprep.subr.mxu0 0.0
      %523 = vmatpush2.msra.mxu0 0.0
      %524 = vmatprep.subr.mxu0 0.0
      %525 = vmatpush2.msra.mxu0 0.0
      %526 = vmatprep.subr.mxu0 0.0
      %527 = vmatpush2.msra.mxu0 0.0
      %528 = vmatprep.subr.mxu0 0.0
      %529 = vmatpush2.msra.mxu0 0.0
      %530 = vmatprep.subr.mxu0 0.0
      %531 = vmatpush2.msra.mxu0 0.0
      %532 = vmatprep.subr.mxu0 0.0
      %533 = vmatpush2.msra.mxu0 0.0
      %534 = vmatprep.subr.mxu0 0.0
      %535 = vmatpush2.msra.mxu0 0.0
      %536 = vmatprep.subr.mxu0 0.0
      %537 = vmatpush2.msra.mxu0 0.0
      %538 = vmatprep.subr.mxu0 0.0
      %539 = vmatpush2.msra.mxu0 0.0
      %540 = vmatprep.subr.mxu0 0.0
      %541 = vmatpush2.msra.mxu0 0.0
      %542 = vmatprep.subr.mxu0 0.0
      %543 = vmatpush2.msra.mxu0 0.0
      %544 = vmatprep.subr.mxu0 0.0
      %545 = vmatpush2.msra.mxu0 0.0
      %546 = vmatprep.subr.mxu0 0.0
      %547 = vmatpush2.msra.mxu0 0.0
      %548 = vmatprep.subr.mxu0 0.0
      %549 = vmatpush2.msra.mxu0 0.0
      %550 = vmatprep.subr.mxu0 0.0
      %551 = vmatpush2.msra.mxu0 0.0
      %552 = vmatprep.subr.mxu0 0.0
      %553 = vmatpush2.msra.mxu0 0.0
      %554 = vmatprep.mubr.f32.mxu0 0.0
      %555 = vmatmul.mubr.f32.gmra.mxu0 %v472
      %v556 = vpop.f32.mrf.mxu0
      %v557 = vadd.f32 0.0, %v556
      %v558 = vpop.f32.mrf.mxu0
      %v559 = vadd.f32 0.0, %v558
      %560 = vmatprep.mubr.f32.mxu0 0.0
      %561 = vmatmul.mubr.f32.gmra.mxu0 %v475
      %v562 = vpop.f32.mrf.mxu0
      %v563 = vadd.f32 0.0, %v562
      %v564 = vpop.f32.mrf.mxu0
      %v565 = vadd.f32 0.0, %v564
      %566 = vmatprep.mubr.f32.mxu0 0.0
      %567 = vmatmul.mubr.f32.gmra.mxu0 %v478
      %v568 = vpop.f32.mrf.mxu0
      %v569 = vadd.f32 0.0, %v568
      %v570 = vpop.f32.mrf.mxu0
      %v571 = vadd.f32 0.0, %v570
      %572 = vmatprep.mubr.f32.mxu0 0.0
      %573 = vmatmul.mubr.f32.gmra.mxu0 %v481
      %v574 = vpop.f32.mrf.mxu0
      %v575 = vadd.f32 0.0, %v574
      %v576 = vpop.f32.mrf.mxu0
      %v577 = vadd.f32 0.0, %v576
      %578 = vdwg.mxu0
      %579 = vmatprep.subr.mxu0 0.0
      %580 = vmatpush1.msra.mxu0 0.0
      %581 = vmatprep.subr.mxu0 0.0
      %582 = vmatpush1.msra.mxu0 0.0
      %583 = vmatprep.subr.mxu0 0.0
      %584 = vmatpush1.msra.mxu0 0.0
      %585 = vmatprep.subr.mxu0 0.0
      %586 = vmatpush1.msra.mxu0 0.0
      %587 = vmatprep.subr.mxu0 0.0
      %588 = vmatpush1.msra.mxu0 0.0
      %589 = vmatprep.subr.mxu0 0.0
      %590 = vmatpush1.msra.mxu0 0.0
      %591 = vmatprep.subr.mxu0 0.0
      %592 = vmatpush1.msra.mxu0 0.0
      %593 = vmatprep.subr.mxu0 0.0
      %594 = vmatpush1.msra.mxu0 0.0
      %595 = vmatprep.subr.mxu0 0.0
      %596 = vmatpush1.msra.mxu0 0.0
      %597 = vmatprep.subr.mxu0 0.0
      %598 = vmatpush1.msra.mxu0 0.0
      %599 = vmatprep.subr.mxu0 0.0
      %600 = vmatpush1.msra.mxu0 0.0
      %601 = vmatprep.subr.mxu0 0.0
      %602 = vmatpush1.msra.mxu0 0.0
      %603 = vmatprep.subr.mxu0 0.0
      %604 = vmatpush1.msra.mxu0 0.0
      %605 = vmatprep.subr.mxu0 0.0
      %606 = vmatpush1.msra.mxu0 0.0
      %607 = vmatprep.subr.mxu0 0.0
      %608 = vmatpush1.msra.mxu0 0.0
      %609 = vmatprep.subr.mxu0 0.0
      %610 = vmatpush1.msra.mxu0 %v488
      %611 = vmatprep.subr.mxu0 0.0
      %612 = vmatpush2.msra.mxu0 0.0
      %613 = vmatprep.subr.mxu0 0.0
      %614 = vmatpush2.msra.mxu0 0.0
      %615 = vmatprep.subr.mxu0 0.0
      %616 = vmatpush2.msra.mxu0 0.0
      %617 = vmatprep.subr.mxu0 0.0
      %618 = vmatpush2.msra.mxu0 0.0
      %619 = vmatprep.subr.mxu0 0.0
      %620 = vmatpush2.msra.mxu0 0.0
      %621 = vmatprep.subr.mxu0 0.0
      %622 = vmatpush2.msra.mxu0 0.0
      %623 = vmatprep.subr.mxu0 0.0
      %624 = vmatpush2.msra.mxu0 0.0
      %625 = vmatprep.subr.mxu0 0.0
      %626 = vmatpush2.msra.mxu0 0.0
      %627 = vmatprep.subr.mxu0 0.0
      %628 = vmatpush2.msra.mxu0 0.0
      %629 = vmatprep.subr.mxu0 0.0
      %630 = vmatpush2.msra.mxu0 0.0
      %631 = vmatprep.subr.mxu0 0.0
      %632 = vmatpush2.msra.mxu0 0.0
      %633 = vmatprep.subr.mxu0 0.0
      %634 = vmatpush2.msra.mxu0 0.0
      %635 = vmatprep.subr.mxu0 0.0
      %636 = vmatpush2.msra.mxu0 0.0
      %637 = vmatprep.subr.mxu0 0.0
      %638 = vmatpush2.msra.mxu0 0.0
      %639 = vmatprep.subr.mxu0 0.0
      %640 = vmatpush2.msra.mxu0 0.0
      %641 = vmatprep.subr.mxu0 0.0
      %642 = vmatpush2.msra.mxu0 0.0
      %643 = vmatprep.mubr.f32.mxu0 0.0
      %644 = vmatmul.mubr.f32.gmra.mxu0 %v472
      %v645 = vpop.f32.mrf.mxu0
      %v646 = vadd.f32 0.0, %v645
      %v647 = vpop.f32.mrf.mxu0
      %648 = vmatprep.mubr.f32.mxu0 0.0
      %649 = vmatmul.mubr.f32.gmra.mxu0 %v475
      %v650 = vpop.f32.mrf.mxu0
      %v651 = vadd.f32 0.0, %v650
      %v652 = vpop.f32.mrf.mxu0
      %653 = vmatprep.mubr.f32.mxu0 0.0
      %654 = vmatmul.mubr.f32.gmra.mxu0 %v478
      %v655 = vpop.f32.mrf.mxu0
      %v656 = vadd.f32 0.0, %v655
      %v657 = vpop.f32.mrf.mxu0
      %658 = vmatprep.mubr.f32.mxu0 0.0
      %659 = vmatmul.mubr.f32.gmra.mxu0 %v481
      %v660 = vpop.f32.mrf.mxu0
      %v661 = vadd.f32 0.0, %v660
      %v662 = vpop.f32.mrf.mxu0
      %663 = vdwg.mxu0
      %v664 = vadd.f32 %v444, %v557
      %v665 = vadd.f32 %v444, %v559
      %v666 = vadd.f32 %v444, %v646
      %v667 = vadd.f32 %v449, %v563
      %v668 = vadd.f32 %v449, %v565
      %v669 = vadd.f32 %v449, %v651
      %v670 = vadd.f32 %v454, %v569
      %v671 = vadd.f32 %v454, %v571
      %v672 = vadd.f32 %v454, %v656
      %v673 = vadd.f32 %v459, %v575
      %v674 = vadd.f32 %v459, %v577
      %v675 = vadd.f32 %v459, %v661
      %v676 = vld [vmem:[#allocation2] sm:$0xff]
      %v677 = vld [vmem:[#allocation2 + $0x8] sm:$0xf]
      %s678 = scalar_lea.vmem %s2, 32
      %v679 = vld [vmem:[%s678] sm:$0xff]
      %v680 = vld [vmem:[%s678 + $0x8] sm:$0xff]
      %v681 = vld [vmem:[%s678 + $0x10] sm:$0xff]
      %v682 = vld [vmem:[%s678 + $0x18] sm:$0xff]
      %v685 = vcombine.high %v676, %v676
      %686 = vrot.lane.b32.xlu0 %v676, 127
      %v687 = vpop.permute.xlu0 %686
      %688 = vrot.lane.b32.xlu0 %v685, 127
      %v689 = vpop.permute.xlu0 %688
      %690 = vrot.lane.b32.xlu0 %v677, 127
      %v691 = vpop.permute.xlu0 %690
      %vm692 = vcmask 1039360
      %v693 = vsel %vm692, %v687, %v689
      %v694 = vsel %vm692, %v689, %v691
      %v696 = vsel %vm470, %v679, 0
      %v699 = vsel %vm470, %v680, 0
      %v702 = vsel %vm470, %v681, 0
      %v705 = vsel %vm470, %v682, 0
      %v707 = vsel %vm483, %v693, 0
      %v709 = vsel %vm483, %v694, 0
      %v711 = vsel %vm483, %v691, 0
      %713 = vmatprep.subr.mxu0 0.0
      %714 = vmatpush1.msra.mxu0 0.0
      %715 = vmatprep.subr.mxu0 0.0
      %716 = vmatpush1.msra.mxu0 0.0
      %717 = vmatprep.subr.mxu0 0.0
      %718 = vmatpush1.msra.mxu0 0.0
      %719 = vmatprep.subr.mxu0 0.0
      %720 = vmatpush1.msra.mxu0 0.0
      %721 = vmatprep.subr.mxu0 0.0
      %722 = vmatpush1.msra.mxu0 0.0
      %723 = vmatprep.subr.mxu0 0.0
      %724 = vmatpush1.msra.mxu0 0.0
      %725 = vmatprep.subr.mxu0 0.0
      %726 = vmatpush1.msra.mxu0 0.0
      %727 = vmatprep.subr.mxu0 0.0
      %728 = vmatpush1.msra.mxu0 0.0
      %729 = vmatprep.subr.mxu0 0.0
      %730 = vmatpush1.msra.mxu0 0.0
      %731 = vmatprep.subr.mxu0 0.0
      %732 = vmatpush1.msra.mxu0 0.0
      %733 = vmatprep.subr.mxu0 0.0
      %734 = vmatpush1.msra.mxu0 0.0
      %735 = vmatprep.subr.mxu0 0.0
      %736 = vmatpush1.msra.mxu0 0.0
      %737 = vmatprep.subr.mxu0 0.0
      %738 = vmatpush1.msra.mxu0 0.0
      %739 = vmatprep.subr.mxu0 0.0
      %740 = vmatpush1.msra.mxu0 0.0
      %741 = vmatprep.subr.mxu0 0.0
      %742 = vmatpush1.msra.mxu0 0.0
      %743 = vmatprep.subr.mxu0 %v709
      %744 = vmatpush1.msra.mxu0 %v707
      %745 = vmatprep.subr.mxu0 0.0
      %746 = vmatpush2.msra.mxu0 0.0
      %747 = vmatprep.subr.mxu0 0.0
      %748 = vmatpush2.msra.mxu0 0.0
      %749 = vmatprep.subr.mxu0 0.0
      %750 = vmatpush2.msra.mxu0 0.0
      %751 = vmatprep.subr.mxu0 0.0
      %752 = vmatpush2.msra.mxu0 0.0
      %753 = vmatprep.subr.mxu0 0.0
      %754 = vmatpush2.msra.mxu0 0.0
      %755 = vmatprep.subr.mxu0 0.0
      %756 = vmatpush2.msra.mxu0 0.0
      %757 = vmatprep.subr.mxu0 0.0
      %758 = vmatpush2.msra.mxu0 0.0
      %759 = vmatprep.subr.mxu0 0.0
      %760 = vmatpush2.msra.mxu0 0.0
      %761 = vmatprep.subr.mxu0 0.0
      %762 = vmatpush2.msra.mxu0 0.0
      %763 = vmatprep.subr.mxu0 0.0
      %764 = vmatpush2.msra.mxu0 0.0
      %765 = vmatprep.subr.mxu0 0.0
      %766 = vmatpush2.msra.mxu0 0.0
      %767 = vmatprep.subr.mxu0 0.0
      %768 = vmatpush2.msra.mxu0 0.0
      %769 = vmatprep.subr.mxu0 0.0
      %770 = vmatpush2.msra.mxu0 0.0
      %771 = vmatprep.subr.mxu0 0.0
      %772 = vmatpush2.msra.mxu0 0.0
      %773 = vmatprep.subr.mxu0 0.0
      %774 = vmatpush2.msra.mxu0 0.0
      %775 = vmatprep.subr.mxu0 0.0
      %776 = vmatpush2.msra.mxu0 0.0
      %777 = vmatprep.mubr.f32.mxu0 0.0
      %778 = vmatmul.mubr.f32.gmra.mxu0 %v696
      %v779 = vpop.f32.mrf.mxu0
      %v780 = vadd.f32 0.0, %v779
      %v781 = vpop.f32.mrf.mxu0
      %v782 = vadd.f32 0.0, %v781
      %783 = vmatprep.mubr.f32.mxu0 0.0
      %784 = vmatmul.mubr.f32.gmra.mxu0 %v699
      %v785 = vpop.f32.mrf.mxu0
      %v786 = vadd.f32 0.0, %v785
      %v787 = vpop.f32.mrf.mxu0
      %v788 = vadd.f32 0.0, %v787
      %789 = vmatprep.mubr.f32.mxu0 0.0
      %790 = vmatmul.mubr.f32.gmra.mxu0 %v702
      %v791 = vpop.f32.mrf.mxu0
      %v792 = vadd.f32 0.0, %v791
      %v793 = vpop.f32.mrf.mxu0
      %v794 = vadd.f32 0.0, %v793
      %795 = vmatprep.mubr.f32.mxu0 0.0
      %796 = vmatmul.mubr.f32.gmra.mxu0 %v705
      %v797 = vpop.f32.mrf.mxu0
      %v798 = vadd.f32 0.0, %v797
      %v799 = vpop.f32.mrf.mxu0
      %v800 = vadd.f32 0.0, %v799
      %801 = vdwg.mxu0
      %802 = vmatprep.subr.mxu0 0.0
      %803 = vmatpush1.msra.mxu0 0.0
      %804 = vmatprep.subr.mxu0 0.0
      %805 = vmatpush1.msra.mxu0 0.0
      %806 = vmatprep.subr.mxu0 0.0
      %807 = vmatpush1.msra.mxu0 0.0
      %808 = vmatprep.subr.mxu0 0.0
      %809 = vmatpush1.msra.mxu0 0.0
      %810 = vmatprep.subr.mxu0 0.0
      %811 = vmatpush1.msra.mxu0 0.0
      %812 = vmatprep.subr.mxu0 0.0
      %813 = vmatpush1.msra.mxu0 0.0
      %814 = vmatprep.subr.mxu0 0.0
      %815 = vmatpush1.msra.mxu0 0.0
      %816 = vmatprep.subr.mxu0 0.0
      %817 = vmatpush1.msra.mxu0 0.0
      %818 = vmatprep.subr.mxu0 0.0
      %819 = vmatpush1.msra.mxu0 0.0
      %820 = vmatprep.subr.mxu0 0.0
      %821 = vmatpush1.msra.mxu0 0.0
      %822 = vmatprep.subr.mxu0 0.0
      %823 = vmatpush1.msra.mxu0 0.0
      %824 = vmatprep.subr.mxu0 0.0
      %825 = vmatpush1.msra.mxu0 0.0
      %826 = vmatprep.subr.mxu0 0.0
      %827 = vmatpush1.msra.mxu0 0.0
      %828 = vmatprep.subr.mxu0 0.0
      %829 = vmatpush1.msra.mxu0 0.0
      %830 = vmatprep.subr.mxu0 0.0
      %831 = vmatpush1.msra.mxu0 0.0
      %832 = vmatprep.subr.mxu0 0.0
      %833 = vmatpush1.msra.mxu0 %v711
      %834 = vmatprep.subr.mxu0 0.0
      %835 = vmatpush2.msra.mxu0 0.0
      %836 = vmatprep.subr.mxu0 0.0
      %837 = vmatpush2.msra.mxu0 0.0
      %838 = vmatprep.subr.mxu0 0.0
      %839 = vmatpush2.msra.mxu0 0.0
      %840 = vmatprep.subr.mxu0 0.0
      %841 = vmatpush2.msra.mxu0 0.0
      %842 = vmatprep.subr.mxu0 0.0
      %843 = vmatpush2.msra.mxu0 0.0
      %844 = vmatprep.subr.mxu0 0.0
      %845 = vmatpush2.msra.mxu0 0.0
      %846 = vmatprep.subr.mxu0 0.0
      %847 = vmatpush2.msra.mxu0 0.0
      %848 = vmatprep.subr.mxu0 0.0
      %849 = vmatpush2.msra.mxu0 0.0
      %850 = vmatprep.subr.mxu0 0.0
      %851 = vmatpush2.msra.mxu0 0.0
      %852 = vmatprep.subr.mxu0 0.0
      %853 = vmatpush2.msra.mxu0 0.0
      %854 = vmatprep.subr.mxu0 0.0
      %855 = vmatpush2.msra.mxu0 0.0
      %856 = vmatprep.subr.mxu0 0.0
      %857 = vmatpush2.msra.mxu0 0.0
      %858 = vmatprep.subr.mxu0 0.0
      %859 = vmatpush2.msra.mxu0 0.0
      %860 = vmatprep.subr.mxu0 0.0
      %861 = vmatpush2.msra.mxu0 0.0
      %862 = vmatprep.subr.mxu0 0.0
      %863 = vmatpush2.msra.mxu0 0.0
      %864 = vmatprep.subr.mxu0 0.0
      %865 = vmatpush2.msra.mxu0 0.0
      %866 = vmatprep.mubr.f32.mxu0 0.0
      %867 = vmatmul.mubr.f32.gmra.mxu0 %v696
      %v868 = vpop.f32.mrf.mxu0
      %v869 = vadd.f32 0.0, %v868
      %v870 = vpop.f32.mrf.mxu0
      %871 = vmatprep.mubr.f32.mxu0 0.0
      %872 = vmatmul.mubr.f32.gmra.mxu0 %v699
      %v873 = vpop.f32.mrf.mxu0
      %v874 = vadd.f32 0.0, %v873
      %v875 = vpop.f32.mrf.mxu0
      %876 = vmatprep.mubr.f32.mxu0 0.0
      %877 = vmatmul.mubr.f32.gmra.mxu0 %v702
      %v878 = vpop.f32.mrf.mxu0
      %v879 = vadd.f32 0.0, %v878
      %v880 = vpop.f32.mrf.mxu0
      %881 = vmatprep.mubr.f32.mxu0 0.0
      %882 = vmatmul.mubr.f32.gmra.mxu0 %v705
      %v883 = vpop.f32.mrf.mxu0
      %v884 = vadd.f32 0.0, %v883
      %v885 = vpop.f32.mrf.mxu0
      %886 = vdwg.mxu0
      %v887 = vadd.f32 %v664, %v780
      %v888 = vadd.f32 %v665, %v782
      %v889 = vadd.f32 %v666, %v869
      %v890 = vadd.f32 %v667, %v786
      %v891 = vadd.f32 %v668, %v788
      %v892 = vadd.f32 %v669, %v874
      %v893 = vadd.f32 %v670, %v792
      %v894 = vadd.f32 %v671, %v794
      %v895 = vadd.f32 %v672, %v879
      %v896 = vadd.f32 %v673, %v798
      %v897 = vadd.f32 %v674, %v800
      %v898 = vadd.f32 %v675, %v884
      %v899 = vld [vmem:[#allocation2] sm:$0xff]
      %v900 = vld [vmem:[#allocation2 + $0x8] sm:$0xf]
      %s901 = scalar_lea.vmem %s2, 64
      %v902 = vld [vmem:[%s901] sm:$0xff]
      %v903 = vld [vmem:[%s901 + $0x8] sm:$0xff]
      %v904 = vld [vmem:[%s901 + $0x10] sm:$0xff]
      %v905 = vld [vmem:[%s901 + $0x18] sm:$0xff]
      %v908 = vcombine.high %v899, %v899
      %909 = vrot.lane.b32.xlu0 %v899, 126
      %v910 = vpop.permute.xlu0 %909
      %911 = vrot.lane.b32.xlu0 %v908, 126
      %v912 = vpop.permute.xlu0 %911
      %913 = vrot.lane.b32.xlu0 %v900, 126
      %v914 = vpop.permute.xlu0 %913
      %vm915 = vcmask 1031168
      %v916 = vsel %vm915, %v910, %v912
      %v917 = vsel %vm915, %v912, %v914
      %v919 = vsel %vm470, %v902, 0
      %v922 = vsel %vm470, %v903, 0
      %v925 = vsel %vm470, %v904, 0
      %v928 = vsel %vm470, %v905, 0
      %v930 = vsel %vm483, %v916, 0
      %v932 = vsel %vm483, %v917, 0
      %v934 = vsel %vm483, %v914, 0
      %936 = vmatprep.subr.mxu0 0.0
      %937 = vmatpush1.msra.mxu0 0.0
      %938 = vmatprep.subr.mxu0 0.0
      %939 = vmatpush1.msra.mxu0 0.0
      %940 = vmatprep.subr.mxu0 0.0
      %941 = vmatpush1.msra.mxu0 0.0
      %942 = vmatprep.subr.mxu0 0.0
      %943 = vmatpush1.msra.mxu0 0.0
      %944 = vmatprep.subr.mxu0 0.0
      %945 = vmatpush1.msra.mxu0 0.0
      %946 = vmatprep.subr.mxu0 0.0
      %947 = vmatpush1.msra.mxu0 0.0
      %948 = vmatprep.subr.mxu0 0.0
      %949 = vmatpush1.msra.mxu0 0.0
      %950 = vmatprep.subr.mxu0 0.0
      %951 = vmatpush1.msra.mxu0 0.0
      %952 = vmatprep.subr.mxu0 0.0
      %953 = vmatpush1.msra.mxu0 0.0
      %954 = vmatprep.subr.mxu0 0.0
      %955 = vmatpush1.msra.mxu0 0.0
      %956 = vmatprep.subr.mxu0 0.0
      %957 = vmatpush1.msra.mxu0 0.0
      %958 = vmatprep.subr.mxu0 0.0
      %959 = vmatpush1.msra.mxu0 0.0
      %960 = vmatprep.subr.mxu0 0.0
      %961 = vmatpush1.msra.mxu0 0.0
      %962 = vmatprep.subr.mxu0 0.0
      %963 = vmatpush1.msra.mxu0 0.0
      %964 = vmatprep.subr.mxu0 0.0
      %965 = vmatpush1.msra.mxu0 0.0
      %966 = vmatprep.subr.mxu0 %v932
      %967 = vmatpush1.msra.mxu0 %v930
      %968 = vmatprep.subr.mxu0 0.0
      %969 = vmatpush2.msra.mxu0 0.0
      %970 = vmatprep.subr.mxu0 0.0
      %971 = vmatpush2.msra.mxu0 0.0
      %972 = vmatprep.subr.mxu0 0.0
      %973 = vmatpush2.msra.mxu0 0.0
      %974 = vmatprep.subr.mxu0 0.0
      %975 = vmatpush2.msra.mxu0 0.0
      %976 = vmatprep.subr.mxu0 0.0
      %977 = vmatpush2.msra.mxu0 0.0
      %978 = vmatprep.subr.mxu0 0.0
      %979 = vmatpush2.msra.mxu0 0.0
      %980 = vmatprep.subr.mxu0 0.0
      %981 = vmatpush2.msra.mxu0 0.0
      %982 = vmatprep.subr.mxu0 0.0
      %983 = vmatpush2.msra.mxu0 0.0
      %984 = vmatprep.subr.mxu0 0.0
      %985 = vmatpush2.msra.mxu0 0.0
      %986 = vmatprep.subr.mxu0 0.0
      %987 = vmatpush2.msra.mxu0 0.0
      %988 = vmatprep.subr.mxu0 0.0
      %989 = vmatpush2.msra.mxu0 0.0
      %990 = vmatprep.subr.mxu0 0.0
      %991 = vmatpush2.msra.mxu0 0.0
      %992 = vmatprep.subr.mxu0 0.0
      %993 = vmatpush2.msra.mxu0 0.0
      %994 = vmatprep.subr.mxu0 0.0
      %995 = vmatpush2.msra.mxu0 0.0
      %996 = vmatprep.subr.mxu0 0.0
      %997 = vmatpush2.msra.mxu0 0.0
      %998 = vmatprep.subr.mxu0 0.0
      %999 = vmatpush2.msra.mxu0 0.0
      %1000 = vmatprep.mubr.f32.mxu0 0.0
      %1001 = vmatmul.mubr.f32.gmra.mxu0 %v919
      %v1002 = vpop.f32.mrf.mxu0
      %v1003 = vadd.f32 0.0, %v1002
      %v1004 = vpop.f32.mrf.mxu0
      %v1005 = vadd.f32 0.0, %v1004
      %1006 = vmatprep.mubr.f32.mxu0 0.0
      %1007 = vmatmul.mubr.f32.gmra.mxu0 %v922
      %v1008 = vpop.f32.mrf.mxu0
      %v1009 = vadd.f32 0.0, %v1008
      %v1010 = vpop.f32.mrf.mxu0
      %v1011 = vadd.f32 0.0, %v1010
      %1012 = vmatprep.mubr.f32.mxu0 0.0
      %1013 = vmatmul.mubr.f32.gmra.mxu0 %v925
      %v1014 = vpop.f32.mrf.mxu0
      %v1015 = vadd.f32 0.0, %v1014
      %v1016 = vpop.f32.mrf.mxu0
      %v1017 = vadd.f32 0.0, %v1016
      %1018 = vmatprep.mubr.f32.mxu0 0.0
      %1019 = vmatmul.mubr.f32.gmra.mxu0 %v928
      %v1020 = vpop.f32.mrf.mxu0
      %v1021 = vadd.f32 0.0, %v1020
      %v1022 = vpop.f32.mrf.mxu0
      %v1023 = vadd.f32 0.0, %v1022
      %1024 = vdwg.mxu0
      %1025 = vmatprep.subr.mxu0 0.0
      %1026 = vmatpush1.msra.mxu0 0.0
      %1027 = vmatprep.subr.mxu0 0.0
      %1028 = vmatpush1.msra.mxu0 0.0
      %1029 = vmatprep.subr.mxu0 0.0
      %1030 = vmatpush1.msra.mxu0 0.0
      %1031 = vmatprep.subr.mxu0 0.0
      %1032 = vmatpush1.msra.mxu0 0.0
      %1033 = vmatprep.subr.mxu0 0.0
      %1034 = vmatpush1.msra.mxu0 0.0
      %1035 = vmatprep.subr.mxu0 0.0
      %1036 = vmatpush1.msra.mxu0 0.0
      %1037 = vmatprep.subr.mxu0 0.0
      %1038 = vmatpush1.msra.mxu0 0.0
      %1039 = vmatprep.subr.mxu0 0.0
      %1040 = vmatpush1.msra.mxu0 0.0
      %1041 = vmatprep.subr.mxu0 0.0
      %1042 = vmatpush1.msra.mxu0 0.0
      %1043 = vmatprep.subr.mxu0 0.0
      %1044 = vmatpush1.msra.mxu0 0.0
      %1045 = vmatprep.subr.mxu0 0.0
      %1046 = vmatpush1.msra.mxu0 0.0
      %1047 = vmatprep.subr.mxu0 0.0
      %1048 = vmatpush1.msra.mxu0 0.0
      %1049 = vmatprep.subr.mxu0 0.0
      %1050 = vmatpush1.msra.mxu0 0.0
      %1051 = vmatprep.subr.mxu0 0.0
      %1052 = vmatpush1.msra.mxu0 0.0
      %1053 = vmatprep.subr.mxu0 0.0
      %1054 = vmatpush1.msra.mxu0 0.0
      %1055 = vmatprep.subr.mxu0 0.0
      %1056 = vmatpush1.msra.mxu0 %v934
      %1057 = vmatprep.subr.mxu0 0.0
      %1058 = vmatpush2.msra.mxu0 0.0
      %1059 = vmatprep.subr.mxu0 0.0
      %1060 = vmatpush2.msra.mxu0 0.0
      %1061 = vmatprep.subr.mxu0 0.0
      %1062 = vmatpush2.msra.mxu0 0.0
      %1063 = vmatprep.subr.mxu0 0.0
      %1064 = vmatpush2.msra.mxu0 0.0
      %1065 = vmatprep.subr.mxu0 0.0
      %1066 = vmatpush2.msra.mxu0 0.0
      %1067 = vmatprep.subr.mxu0 0.0
      %1068 = vmatpush2.msra.mxu0 0.0
      %1069 = vmatprep.subr.mxu0 0.0
      %1070 = vmatpush2.msra.mxu0 0.0
      %1071 = vmatprep.subr.mxu0 0.0
      %1072 = vmatpush2.msra.mxu0 0.0
      %1073 = vmatprep.subr.mxu0 0.0
      %1074 = vmatpush2.msra.mxu0 0.0
      %1075 = vmatprep.subr.mxu0 0.0
      %1076 = vmatpush2.msra.mxu0 0.0
      %1077 = vmatprep.subr.mxu0 0.0
      %1078 = vmatpush2.msra.mxu0 0.0
      %1079 = vmatprep.subr.mxu0 0.0
      %1080 = vmatpush2.msra.mxu0 0.0
      %1081 = vmatprep.subr.mxu0 0.0
      %1082 = vmatpush2.msra.mxu0 0.0
      %1083 = vmatprep.subr.mxu0 0.0
      %1084 = vmatpush2.msra.mxu0 0.0
      %1085 = vmatprep.subr.mxu0 0.0
      %1086 = vmatpush2.msra.mxu0 0.0
      %1087 = vmatprep.subr.mxu0 0.0
      %1088 = vmatpush2.msra.mxu0 0.0
      %1089 = vmatprep.mubr.f32.mxu0 0.0
      %1090 = vmatmul.mubr.f32.gmra.mxu0 %v919
      %v1091 = vpop.f32.mrf.mxu0
      %v1092 = vadd.f32 0.0, %v1091
      %v1093 = vpop.f32.mrf.mxu0
      %1094 = vmatprep.mubr.f32.mxu0 0.0
      %1095 = vmatmul.mubr.f32.gmra.mxu0 %v922
      %v1096 = vpop.f32.mrf.mxu0
      %v1097 = vadd.f32 0.0, %v1096
      %v1098 = vpop.f32.mrf.mxu0
      %1099 = vmatprep.mubr.f32.mxu0 0.0
      %1100 = vmatmul.mubr.f32.gmra.mxu0 %v925
      %v1101 = vpop.f32.mrf.mxu0
      %v1102 = vadd.f32 0.0, %v1101
      %v1103 = vpop.f32.mrf.mxu0
      %1104 = vmatprep.mubr.f32.mxu0 0.0
      %1105 = vmatmul.mubr.f32.gmra.mxu0 %v928
      %v1106 = vpop.f32.mrf.mxu0
      %v1107 = vadd.f32 0.0, %v1106
      %v1108 = vpop.f32.mrf.mxu0
      %1109 = vdwg.mxu0
      %v1110 = vadd.f32 %v887, %v1003
      %v1111 = vadd.f32 %v888, %v1005
      %v1112 = vadd.f32 %v889, %v1092
      %v1113 = vadd.f32 %v890, %v1009
      %v1114 = vadd.f32 %v891, %v1011
      %v1115 = vadd.f32 %v892, %v1097
      %v1116 = vadd.f32 %v893, %v1015
      %v1117 = vadd.f32 %v894, %v1017
      %v1118 = vadd.f32 %v895, %v1102
      %v1119 = vadd.f32 %v896, %v1021
      %v1120 = vadd.f32 %v897, %v1023
      %v1121 = vadd.f32 %v898, %v1107
      %v1122 = vld [vmem:[#allocation2] sm:$0xff]
      %v1123 = vld [vmem:[#allocation2 + $0x8] sm:$0xf]
      %s1124 = scalar_lea.vmem %s2, 96
      %v1125 = vld [vmem:[%s1124] sm:$0xff]
      %v1126 = vld [vmem:[%s1124 + $0x8] sm:$0xff]
      %v1127 = vld [vmem:[%s1124 + $0x10] sm:$0xff]
      %v1128 = vld [vmem:[%s1124 + $0x18] sm:$0xff]
      %v1131 = vcombine.high %v1122, %v1122
      %1132 = vrot.lane.b32.xlu0 %v1122, 110
      %v1133 = vpop.permute.xlu0 %1132
      %1134 = vrot.lane.b32.xlu0 %v1131, 110
      %v1135 = vpop.permute.xlu0 %1134
      %1136 = vrot.lane.b32.xlu0 %v1123, 110
      %v1137 = vpop.permute.xlu0 %1136
      %vm1138 = vcmask 900096
      %v1139 = vsel %vm1138, %v1133, %v1135
      %v1140 = vsel %vm1138, %v1135, %v1137
      %v1142 = vsel %vm470, %v1125, 0
      %v1145 = vsel %vm470, %v1126, 0
      %v1148 = vsel %vm470, %v1127, 0
      %v1151 = vsel %vm470, %v1128, 0
      %v1153 = vsel %vm483, %v1139, 0
      %v1155 = vsel %vm483, %v1140, 0
      %v1157 = vsel %vm483, %v1137, 0
      %1159 = vmatprep.subr.mxu0 0.0
      %1160 = vmatpush1.msra.mxu0 0.0
      %1161 = vmatprep.subr.mxu0 0.0
      %1162 = vmatpush1.msra.mxu0 0.0
      %1163 = vmatprep.subr.mxu0 0.0
      %1164 = vmatpush1.msra.mxu0 0.0
      %1165 = vmatprep.subr.mxu0 0.0
      %1166 = vmatpush1.msra.mxu0 0.0
      %1167 = vmatprep.subr.mxu0 0.0
      %1168 = vmatpush1.msra.mxu0 0.0
      %1169 = vmatprep.subr.mxu0 0.0
      %1170 = vmatpush1.msra.mxu0 0.0
      %1171 = vmatprep.subr.mxu0 0.0
      %1172 = vmatpush1.msra.mxu0 0.0
      %1173 = vmatprep.subr.mxu0 0.0
      %1174 = vmatpush1.msra.mxu0 0.0
      %1175 = vmatprep.subr.mxu0 0.0
      %1176 = vmatpush1.msra.mxu0 0.0
      %1177 = vmatprep.subr.mxu0 0.0
      %1178 = vmatpush1.msra.mxu0 0.0
      %1179 = vmatprep.subr.mxu0 0.0
      %1180 = vmatpush1.msra.mxu0 0.0
      %1181 = vmatprep.subr.mxu0 0.0
      %1182 = vmatpush1.msra.mxu0 0.0
      %1183 = vmatprep.subr.mxu0 0.0
      %1184 = vmatpush1.msra.mxu0 0.0
      %1185 = vmatprep.subr.mxu0 0.0
      %1186 = vmatpush1.msra.mxu0 0.0
      %1187 = vmatprep.subr.mxu0 0.0
      %1188 = vmatpush1.msra.mxu0 0.0
      %1189 = vmatprep.subr.mxu0 %v1155
      %1190 = vmatpush1.msra.mxu0 %v1153
      %1191 = vmatprep.subr.mxu0 0.0
      %1192 = vmatpush2.msra.mxu0 0.0
      %1193 = vmatprep.subr.mxu0 0.0
      %1194 = vmatpush2.msra.mxu0 0.0
      %1195 = vmatprep.subr.mxu0 0.0
      %1196 = vmatpush2.msra.mxu0 0.0
      %1197 = vmatprep.subr.mxu0 0.0
      %1198 = vmatpush2.msra.mxu0 0.0
      %1199 = vmatprep.subr.mxu0 0.0
      %1200 = vmatpush2.msra.mxu0 0.0
      %1201 = vmatprep.subr.mxu0 0.0
      %1202 = vmatpush2.msra.mxu0 0.0
      %1203 = vmatprep.subr.mxu0 0.0
      %1204 = vmatpush2.msra.mxu0 0.0
      %1205 = vmatprep.subr.mxu0 0.0
      %1206 = vmatpush2.msra.mxu0 0.0
      %1207 = vmatprep.subr.mxu0 0.0
      %1208 = vmatpush2.msra.mxu0 0.0
      %1209 = vmatprep.subr.mxu0 0.0
      %1210 = vmatpush2.msra.mxu0 0.0
      %1211 = vmatprep.subr.mxu0 0.0
      %1212 = vmatpush2.msra.mxu0 0.0
      %1213 = vmatprep.subr.mxu0 0.0
      %1214 = vmatpush2.msra.mxu0 0.0
      %1215 = vmatprep.subr.mxu0 0.0
      %1216 = vmatpush2.msra.mxu0 0.0
      %1217 = vmatprep.subr.mxu0 0.0
      %1218 = vmatpush2.msra.mxu0 0.0
      %1219 = vmatprep.subr.mxu0 0.0
      %1220 = vmatpush2.msra.mxu0 0.0
      %1221 = vmatprep.subr.mxu0 0.0
      %1222 = vmatpush2.msra.mxu0 0.0
      %1223 = vmatprep.mubr.f32.mxu0 0.0
      %1224 = vmatmul.mubr.f32.gmra.mxu0 %v1142
      %v1225 = vpop.f32.mrf.mxu0
      %v1226 = vadd.f32 0.0, %v1225
      %v1227 = vpop.f32.mrf.mxu0
      %v1228 = vadd.f32 0.0, %v1227
      %1229 = vmatprep.mubr.f32.mxu0 0.0
      %1230 = vmatmul.mubr.f32.gmra.mxu0 %v1145
      %v1231 = vpop.f32.mrf.mxu0
      %v1232 = vadd.f32 0.0, %v1231
      %v1233 = vpop.f32.mrf.mxu0
      %v1234 = vadd.f32 0.0, %v1233
      %1235 = vmatprep.mubr.f32.mxu0 0.0
      %1236 = vmatmul.mubr.f32.gmra.mxu0 %v1148
      %v1237 = vpop.f32.mrf.mxu0
      %v1238 = vadd.f32 0.0, %v1237
      %v1239 = vpop.f32.mrf.mxu0
      %v1240 = vadd.f32 0.0, %v1239
      %1241 = vmatprep.mubr.f32.mxu0 0.0
      %1242 = vmatmul.mubr.f32.gmra.mxu0 %v1151
      %v1243 = vpop.f32.mrf.mxu0
      %v1244 = vadd.f32 0.0, %v1243
      %v1245 = vpop.f32.mrf.mxu0
      %v1246 = vadd.f32 0.0, %v1245
      %1247 = vdwg.mxu0
      %1248 = vmatprep.subr.mxu0 0.0
      %1249 = vmatpush1.msra.mxu0 0.0
      %1250 = vmatprep.subr.mxu0 0.0
      %1251 = vmatpush1.msra.mxu0 0.0
      %1252 = vmatprep.subr.mxu0 0.0
      %1253 = vmatpush1.msra.mxu0 0.0
      %1254 = vmatprep.subr.mxu0 0.0
      %1255 = vmatpush1.msra.mxu0 0.0
      %1256 = vmatprep.subr.mxu0 0.0
      %1257 = vmatpush1.msra.mxu0 0.0
      %1258 = vmatprep.subr.mxu0 0.0
      %1259 = vmatpush1.msra.mxu0 0.0
      %1260 = vmatprep.subr.mxu0 0.0
      %1261 = vmatpush1.msra.mxu0 0.0
      %1262 = vmatprep.subr.mxu0 0.0
      %1263 = vmatpush1.msra.mxu0 0.0
      %1264 = vmatprep.subr.mxu0 0.0
      %1265 = vmatpush1.msra.mxu0 0.0
      %1266 = vmatprep.subr.mxu0 0.0
      %1267 = vmatpush1.msra.mxu0 0.0
      %1268 = vmatprep.subr.mxu0 0.0
      %1269 = vmatpush1.msra.mxu0 0.0
      %1270 = vmatprep.subr.mxu0 0.0
      %1271 = vmatpush1.msra.mxu0 0.0
      %1272 = vmatprep.subr.mxu0 0.0
      %1273 = vmatpush1.msra.mxu0 0.0
      %1274 = vmatprep.subr.mxu0 0.0
      %1275 = vmatpush1.msra.mxu0 0.0
      %1276 = vmatprep.subr.mxu0 0.0
      %1277 = vmatpush1.msra.mxu0 0.0
      %1278 = vmatprep.subr.mxu0 0.0
      %1279 = vmatpush1.msra.mxu0 %v1157
      %1280 = vmatprep.subr.mxu0 0.0
      %1281 = vmatpush2.msra.mxu0 0.0
      %1282 = vmatprep.subr.mxu0 0.0
      %1283 = vmatpush2.msra.mxu0 0.0
      %1284 = vmatprep.subr.mxu0 0.0
      %1285 = vmatpush2.msra.mxu0 0.0
      %1286 = vmatprep.subr.mxu0 0.0
      %1287 = vmatpush2.msra.mxu0 0.0
      %1288 = vmatprep.subr.mxu0 0.0
      %1289 = vmatpush2.msra.mxu0 0.0
      %1290 = vmatprep.subr.mxu0 0.0
      %1291 = vmatpush2.msra.mxu0 0.0
      %1292 = vmatprep.subr.mxu0 0.0
      %1293 = vmatpush2.msra.mxu0 0.0
      %1294 = vmatprep.subr.mxu0 0.0
      %1295 = vmatpush2.msra.mxu0 0.0
      %1296 = vmatprep.subr.mxu0 0.0
      %1297 = vmatpush2.msra.mxu0 0.0
      %1298 = vmatprep.subr.mxu0 0.0
      %1299 = vmatpush2.msra.mxu0 0.0
      %1300 = vmatprep.subr.mxu0 0.0
      %1301 = vmatpush2.msra.mxu0 0.0
      %1302 = vmatprep.subr.mxu0 0.0
      %1303 = vmatpush2.msra.mxu0 0.0
      %1304 = vmatprep.subr.mxu0 0.0
      %1305 = vmatpush2.msra.mxu0 0.0
      %1306 = vmatprep.subr.mxu0 0.0
      %1307 = vmatpush2.msra.mxu0 0.0
      %1308 = vmatprep.subr.mxu0 0.0
      %1309 = vmatpush2.msra.mxu0 0.0
      %1310 = vmatprep.subr.mxu0 0.0
      %1311 = vmatpush2.msra.mxu0 0.0
      %1312 = vmatprep.mubr.f32.mxu0 0.0
      %1313 = vmatmul.mubr.f32.gmra.mxu0 %v1142
      %v1314 = vpop.f32.mrf.mxu0
      %v1315 = vadd.f32 0.0, %v1314
      %v1316 = vpop.f32.mrf.mxu0
      %1317 = vmatprep.mubr.f32.mxu0 0.0
      %1318 = vmatmul.mubr.f32.gmra.mxu0 %v1145
      %v1319 = vpop.f32.mrf.mxu0
      %v1320 = vadd.f32 0.0, %v1319
      %v1321 = vpop.f32.mrf.mxu0
      %1322 = vmatprep.mubr.f32.mxu0 0.0
      %1323 = vmatmul.mubr.f32.gmra.mxu0 %v1148
      %v1324 = vpop.f32.mrf.mxu0
      %v1325 = vadd.f32 0.0, %v1324
      %v1326 = vpop.f32.mrf.mxu0
      %1327 = vmatprep.mubr.f32.mxu0 0.0
      %1328 = vmatmul.mubr.f32.gmra.mxu0 %v1151
      %v1329 = vpop.f32.mrf.mxu0
      %v1330 = vadd.f32 0.0, %v1329
      %v1331 = vpop.f32.mrf.mxu0
      %1332 = vdwg.mxu0
      %v1333 = vadd.f32 %v1110, %v1226
      %v1334 = vadd.f32 %v1111, %v1228
      %v1335 = vadd.f32 %v1112, %v1315
      %v1336 = vadd.f32 %v1113, %v1232
      %v1337 = vadd.f32 %v1114, %v1234
      %v1338 = vadd.f32 %v1115, %v1320
      %v1339 = vadd.f32 %v1116, %v1238
      %v1340 = vadd.f32 %v1117, %v1240
      %v1341 = vadd.f32 %v1118, %v1325
      %v1342 = vadd.f32 %v1119, %v1244
      %v1343 = vadd.f32 %v1120, %v1246
      %v1344 = vadd.f32 %v1121, %v1330
      %v1345 = vld [vmem:[#allocation2] sm:$0xff]
      %v1346 = vld [vmem:[#allocation2 + $0x8] sm:$0xf]
      %s1347 = scalar_lea.vmem %s2, 128
      %v1348 = vld [vmem:[%s1347] sm:$0xff]
      %v1349 = vld [vmem:[%s1347 + $0x8] sm:$0xff]
      %v1350 = vld [vmem:[%s1347 + $0x10] sm:$0xff]
      %v1351 = vld [vmem:[%s1347 + $0x18] sm:$0xff]
      %v1354 = vcombine.high %v1345, %v1345
      %1355 = vrot.lane.b32.xlu0 %v1345, 109
      %v1356 = vpop.permute.xlu0 %1355
      %1357 = vrot.lane.b32.xlu0 %v1354, 109
      %v1358 = vpop.permute.xlu0 %1357
      %1359 = vrot.lane.b32.xlu0 %v1346, 109
      %v1360 = vpop.permute.xlu0 %1359
      %vm1361 = vcmask 891904
      %v1362 = vsel %vm1361, %v1356, %v1358
      %v1363 = vsel %vm1361, %v1358, %v1360
      %v1365 = vsel %vm470, %v1348, 0
      %v1368 = vsel %vm470, %v1349, 0
      %v1371 = vsel %vm470, %v1350, 0
      %v1374 = vsel %vm470, %v1351, 0
      %v1376 = vsel %vm483, %v1362, 0
      %v1378 = vsel %vm483, %v1363, 0
      %v1380 = vsel %vm483, %v1360, 0
      %1382 = vmatprep.subr.mxu0 0.0
      %1383 = vmatpush1.msra.mxu0 0.0
      %1384 = vmatprep.subr.mxu0 0.0
      %1385 = vmatpush1.msra.mxu0 0.0
      %1386 = vmatprep.subr.mxu0 0.0
      %1387 = vmatpush1.msra.mxu0 0.0
      %1388 = vmatprep.subr.mxu0 0.0
      %1389 = vmatpush1.msra.mxu0 0.0
      %1390 = vmatprep.subr.mxu0 0.0
      %1391 = vmatpush1.msra.mxu0 0.0
      %1392 = vmatprep.subr.mxu0 0.0
      %1393 = vmatpush1.msra.mxu0 0.0
      %1394 = vmatprep.subr.mxu0 0.0
      %1395 = vmatpush1.msra.mxu0 0.0
      %1396 = vmatprep.subr.mxu0 0.0
      %1397 = vmatpush1.msra.mxu0 0.0
      %1398 = vmatprep.subr.mxu0 0.0
      %1399 = vmatpush1.msra.mxu0 0.0
      %1400 = vmatprep.subr.mxu0 0.0
      %1401 = vmatpush1.msra.mxu0 0.0
      %1402 = vmatprep.subr.mxu0 0.0
      %1403 = vmatpush1.msra.mxu0 0.0
      %1404 = vmatprep.subr.mxu0 0.0
      %1405 = vmatpush1.msra.mxu0 0.0
      %1406 = vmatprep.subr.mxu0 0.0
      %1407 = vmatpush1.msra.mxu0 0.0
      %1408 = vmatprep.subr.mxu0 0.0
      %1409 = vmatpush1.msra.mxu0 0.0
      %1410 = vmatprep.subr.mxu0 0.0
      %1411 = vmatpush1.msra.mxu0 0.0
      %1412 = vmatprep.subr.mxu0 %v1378
      %1413 = vmatpush1.msra.mxu0 %v1376
      %1414 = vmatprep.subr.mxu0 0.0
      %1415 = vmatpush2.msra.mxu0 0.0
      %1416 = vmatprep.subr.mxu0 0.0
      %1417 = vmatpush2.msra.mxu0 0.0
      %1418 = vmatprep.subr.mxu0 0.0
      %1419 = vmatpush2.msra.mxu0 0.0
      %1420 = vmatprep.subr.mxu0 0.0
      %1421 = vmatpush2.msra.mxu0 0.0
      %1422 = vmatprep.subr.mxu0 0.0
      %1423 = vmatpush2.msra.mxu0 0.0
      %1424 = vmatprep.subr.mxu0 0.0
      %1425 = vmatpush2.msra.mxu0 0.0
      %1426 = vmatprep.subr.mxu0 0.0
      %1427 = vmatpush2.msra.mxu0 0.0
      %1428 = vmatprep.subr.mxu0 0.0
      %1429 = vmatpush2.msra.mxu0 0.0
      %1430 = vmatprep.subr.mxu0 0.0
      %1431 = vmatpush2.msra.mxu0 0.0
      %1432 = vmatprep.subr.mxu0 0.0
      %1433 = vmatpush2.msra.mxu0 0.0
      %1434 = vmatprep.subr.mxu0 0.0
      %1435 = vmatpush2.msra.mxu0 0.0
      %1436 = vmatprep.subr.mxu0 0.0
      %1437 = vmatpush2.msra.mxu0 0.0
      %1438 = vmatprep.subr.mxu0 0.0
      %1439 = vmatpush2.msra.mxu0 0.0
      %1440 = vmatprep.subr.mxu0 0.0
      %1441 = vmatpush2.msra.mxu0 0.0
      %1442 = vmatprep.subr.mxu0 0.0
      %1443 = vmatpush2.msra.mxu0 0.0
      %1444 = vmatprep.subr.mxu0 0.0
      %1445 = vmatpush2.msra.mxu0 0.0
      %1446 = vmatprep.mubr.f32.mxu0 0.0
      %1447 = vmatmul.mubr.f32.gmra.mxu0 %v1365
      %v1448 = vpop.f32.mrf.mxu0
      %v1449 = vadd.f32 0.0, %v1448
      %v1450 = vpop.f32.mrf.mxu0
      %v1451 = vadd.f32 0.0, %v1450
      %1452 = vmatprep.mubr.f32.mxu0 0.0
      %1453 = vmatmul.mubr.f32.gmra.mxu0 %v1368
      %v1454 = vpop.f32.mrf.mxu0
      %v1455 = vadd.f32 0.0, %v1454
      %v1456 = vpop.f32.mrf.mxu0
      %v1457 = vadd.f32 0.0, %v1456
      %1458 = vmatprep.mubr.f32.mxu0 0.0
      %1459 = vmatmul.mubr.f32.gmra.mxu0 %v1371
      %v1460 = vpop.f32.mrf.mxu0
      %v1461 = vadd.f32 0.0, %v1460
      %v1462 = vpop.f32.mrf.mxu0
      %v1463 = vadd.f32 0.0, %v1462
      %1464 = vmatprep.mubr.f32.mxu0 0.0
      %1465 = vmatmul.mubr.f32.gmra.mxu0 %v1374
      %v1466 = vpop.f32.mrf.mxu0
      %v1467 = vadd.f32 0.0, %v1466
      %v1468 = vpop.f32.mrf.mxu0
      %v1469 = vadd.f32 0.0, %v1468
      %1470 = vdwg.mxu0
      %1471 = vmatprep.subr.mxu0 0.0
      %1472 = vmatpush1.msra.mxu0 0.0
      %1473 = vmatprep.subr.mxu0 0.0
      %1474 = vmatpush1.msra.mxu0 0.0
      %1475 = vmatprep.subr.mxu0 0.0
      %1476 = vmatpush1.msra.mxu0 0.0
      %1477 = vmatprep.subr.mxu0 0.0
      %1478 = vmatpush1.msra.mxu0 0.0
      %1479 = vmatprep.subr.mxu0 0.0
      %1480 = vmatpush1.msra.mxu0 0.0
      %1481 = vmatprep.subr.mxu0 0.0
      %1482 = vmatpush1.msra.mxu0 0.0
      %1483 = vmatprep.subr.mxu0 0.0
      %1484 = vmatpush1.msra.mxu0 0.0
      %1485 = vmatprep.subr.mxu0 0.0
      %1486 = vmatpush1.msra.mxu0 0.0
      %1487 = vmatprep.subr.mxu0 0.0
      %1488 = vmatpush1.msra.mxu0 0.0
      %1489 = vmatprep.subr.mxu0 0.0
      %1490 = vmatpush1.msra.mxu0 0.0
      %1491 = vmatprep.subr.mxu0 0.0
      %1492 = vmatpush1.msra.mxu0 0.0
      %1493 = vmatprep.subr.mxu0 0.0
      %1494 = vmatpush1.msra.mxu0 0.0
      %1495 = vmatprep.subr.mxu0 0.0
      %1496 = vmatpush1.msra.mxu0 0.0
      %1497 = vmatprep.subr.mxu0 0.0
      %1498 = vmatpush1.msra.mxu0 0.0
      %1499 = vmatprep.subr.mxu0 0.0
      %1500 = vmatpush1.msra.mxu0 0.0
      %1501 = vmatprep.subr.mxu0 0.0
      %1502 = vmatpush1.msra.mxu0 %v1380
      %1503 = vmatprep.subr.mxu0 0.0
      %1504 = vmatpush2.msra.mxu0 0.0
      %1505 = vmatprep.subr.mxu0 0.0
      %1506 = vmatpush2.msra.mxu0 0.0
      %1507 = vmatprep.subr.mxu0 0.0
      %1508 = vmatpush2.msra.mxu0 0.0
      %1509 = vmatprep.subr.mxu0 0.0
      %1510 = vmatpush2.msra.mxu0 0.0
      %1511 = vmatprep.subr.mxu0 0.0
      %1512 = vmatpush2.msra.mxu0 0.0
      %1513 = vmatprep.subr.mxu0 0.0
      %1514 = vmatpush2.msra.mxu0 0.0
      %1515 = vmatprep.subr.mxu0 0.0
      %1516 = vmatpush2.msra.mxu0 0.0
      %1517 = vmatprep.subr.mxu0 0.0
      %1518 = vmatpush2.msra.mxu0 0.0
      %1519 = vmatprep.subr.mxu0 0.0
      %1520 = vmatpush2.msra.mxu0 0.0
      %1521 = vmatprep.subr.mxu0 0.0
      %1522 = vmatpush2.msra.mxu0 0.0
      %1523 = vmatprep.subr.mxu0 0.0
      %1524 = vmatpush2.msra.mxu0 0.0
      %1525 = vmatprep.subr.mxu0 0.0
      %1526 = vmatpush2.msra.mxu0 0.0
      %1527 = vmatprep.subr.mxu0 0.0
      %1528 = vmatpush2.msra.mxu0 0.0
      %1529 = vmatprep.subr.mxu0 0.0
      %1530 = vmatpush2.msra.mxu0 0.0
      %1531 = vmatprep.subr.mxu0 0.0
      %1532 = vmatpush2.msra.mxu0 0.0
      %1533 = vmatprep.subr.mxu0 0.0
      %1534 = vmatpush2.msra.mxu0 0.0
      %1535 = vmatprep.mubr.f32.mxu0 0.0
      %1536 = vmatmul.mubr.f32.gmra.mxu0 %v1365
      %v1537 = vpop.f32.mrf.mxu0
      %v1538 = vadd.f32 0.0, %v1537
      %v1539 = vpop.f32.mrf.mxu0
      %1540 = vmatprep.mubr.f32.mxu0 0.0
      %1541 = vmatmul.mubr.f32.gmra.mxu0 %v1368
      %v1542 = vpop.f32.mrf.mxu0
      %v1543 = vadd.f32 0.0, %v1542
      %v1544 = vpop.f32.mrf.mxu0
      %1545 = vmatprep.mubr.f32.mxu0 0.0
      %1546 = vmatmul.mubr.f32.gmra.mxu0 %v1371
      %v1547 = vpop.f32.mrf.mxu0
      %v1548 = vadd.f32 0.0, %v1547
      %v1549 = vpop.f32.mrf.mxu0
      %1550 = vmatprep.mubr.f32.mxu0 0.0
      %1551 = vmatmul.mubr.f32.gmra.mxu0 %v1374
      %v1552 = vpop.f32.mrf.mxu0
      %v1553 = vadd.f32 0.0, %v1552
      %v1554 = vpop.f32.mrf.mxu0
      %1555 = vdwg.mxu0
      %v1556 = vadd.f32 %v1333, %v1449
      %v1557 = vadd.f32 %v1334, %v1451
      %v1558 = vadd.f32 %v1335, %v1538
      %v1559 = vadd.f32 %v1336, %v1455
      %v1560 = vadd.f32 %v1337, %v1457
      %v1561 = vadd.f32 %v1338, %v1543
      %v1562 = vadd.f32 %v1339, %v1461
      %v1563 = vadd.f32 %v1340, %v1463
      %v1564 = vadd.f32 %v1341, %v1548
      %v1565 = vadd.f32 %v1342, %v1467
      %v1566 = vadd.f32 %v1343, %v1469
      %v1567 = vadd.f32 %v1344, %v1553
      %v1568 = vld [vmem:[#allocation2] sm:$0xff]
      %v1569 = vld [vmem:[#allocation2 + $0x8] sm:$0xf]
      %s1570 = scalar_lea.vmem %s2, 160
      %v1571 = vld [vmem:[%s1570] sm:$0xff]
      %v1572 = vld [vmem:[%s1570 + $0x8] sm:$0xff]
      %v1573 = vld [vmem:[%s1570 + $0x10] sm:$0xff]
      %v1574 = vld [vmem:[%s1570 + $0x18] sm:$0xff]
      %v1577 = vcombine.high %v1568, %v1568
      %1578 = vrot.lane.b32.xlu0 %v1568, 108
      %v1579 = vpop.permute.xlu0 %1578
      %1580 = vrot.lane.b32.xlu0 %v1577, 108
      %v1581 = vpop.permute.xlu0 %1580
      %1582 = vrot.lane.b32.xlu0 %v1569, 108
      %v1583 = vpop.permute.xlu0 %1582
      %vm1584 = vcmask 883712
      %v1585 = vsel %vm1584, %v1579, %v1581
      %v1586 = vsel %vm1584, %v1581, %v1583
      %v1588 = vsel %vm470, %v1571, 0
      %v1591 = vsel %vm470, %v1572, 0
      %v1594 = vsel %vm470, %v1573, 0
      %v1597 = vsel %vm470, %v1574, 0
      %v1599 = vsel %vm483, %v1585, 0
      %v1601 = vsel %vm483, %v1586, 0
      %v1603 = vsel %vm483, %v1583, 0
      %1605 = vmatprep.subr.mxu0 0.0
      %1606 = vmatpush1.msra.mxu0 0.0
      %1607 = vmatprep.subr.mxu0 0.0
      %1608 = vmatpush1.msra.mxu0 0.0
      %1609 = vmatprep.subr.mxu0 0.0
      %1610 = vmatpush1.msra.mxu0 0.0
      %1611 = vmatprep.subr.mxu0 0.0
      %1612 = vmatpush1.msra.mxu0 0.0
      %1613 = vmatprep.subr.mxu0 0.0
      %1614 = vmatpush1.msra.mxu0 0.0
      %1615 = vmatprep.subr.mxu0 0.0
      %1616 = vmatpush1.msra.mxu0 0.0
      %1617 = vmatprep.subr.mxu0 0.0
      %1618 = vmatpush1.msra.mxu0 0.0
      %1619 = vmatprep.subr.mxu0 0.0
      %1620 = vmatpush1.msra.mxu0 0.0
      %1621 = vmatprep.subr.mxu0 0.0
      %1622 = vmatpush1.msra.mxu0 0.0
      %1623 = vmatprep.subr.mxu0 0.0
      %1624 = vmatpush1.msra.mxu0 0.0
      %1625 = vmatprep.subr.mxu0 0.0
      %1626 = vmatpush1.msra.mxu0 0.0
      %1627 = vmatprep.subr.mxu0 0.0
      %1628 = vmatpush1.msra.mxu0 0.0
      %1629 = vmatprep.subr.mxu0 0.0
      %1630 = vmatpush1.msra.mxu0 0.0
      %1631 = vmatprep.subr.mxu0 0.0
      %1632 = vmatpush1.msra.mxu0 0.0
      %1633 = vmatprep.subr.mxu0 0.0
      %1634 = vmatpush1.msra.mxu0 0.0
      %1635 = vmatprep.subr.mxu0 %v1601
      %1636 = vmatpush1.msra.mxu0 %v1599
      %1637 = vmatprep.subr.mxu0 0.0
      %1638 = vmatpush2.msra.mxu0 0.0
      %1639 = vmatprep.subr.mxu0 0.0
      %1640 = vmatpush2.msra.mxu0 0.0
      %1641 = vmatprep.subr.mxu0 0.0
      %1642 = vmatpush2.msra.mxu0 0.0
      %1643 = vmatprep.subr.mxu0 0.0
      %1644 = vmatpush2.msra.mxu0 0.0
      %1645 = vmatprep.subr.mxu0 0.0
      %1646 = vmatpush2.msra.mxu0 0.0
      %1647 = vmatprep.subr.mxu0 0.0
      %1648 = vmatpush2.msra.mxu0 0.0
      %1649 = vmatprep.subr.mxu0 0.0
      %1650 = vmatpush2.msra.mxu0 0.0
      %1651 = vmatprep.subr.mxu0 0.0
      %1652 = vmatpush2.msra.mxu0 0.0
      %1653 = vmatprep.subr.mxu0 0.0
      %1654 = vmatpush2.msra.mxu0 0.0
      %1655 = vmatprep.subr.mxu0 0.0
      %1656 = vmatpush2.msra.mxu0 0.0
      %1657 = vmatprep.subr.mxu0 0.0
      %1658 = vmatpush2.msra.mxu0 0.0
      %1659 = vmatprep.subr.mxu0 0.0
      %1660 = vmatpush2.msra.mxu0 0.0
      %1661 = vmatprep.subr.mxu0 0.0
      %1662 = vmatpush2.msra.mxu0 0.0
      %1663 = vmatprep.subr.mxu0 0.0
      %1664 = vmatpush2.msra.mxu0 0.0
      %1665 = vmatprep.subr.mxu0 0.0
      %1666 = vmatpush2.msra.mxu0 0.0
      %1667 = vmatprep.subr.mxu0 0.0
      %1668 = vmatpush2.msra.mxu0 0.0
      %1669 = vmatprep.mubr.f32.mxu0 0.0
      %1670 = vmatmul.mubr.f32.gmra.mxu0 %v1588
      %v1671 = vpop.f32.mrf.mxu0
      %v1672 = vadd.f32 0.0, %v1671
      %v1673 = vpop.f32.mrf.mxu0
      %v1674 = vadd.f32 0.0, %v1673
      %1675 = vmatprep.mubr.f32.mxu0 0.0
      %1676 = vmatmul.mubr.f32.gmra.mxu0 %v1591
      %v1677 = vpop.f32.mrf.mxu0
      %v1678 = vadd.f32 0.0, %v1677
      %v1679 = vpop.f32.mrf.mxu0
      %v1680 = vadd.f32 0.0, %v1679
      %1681 = vmatprep.mubr.f32.mxu0 0.0
      %1682 = vmatmul.mubr.f32.gmra.mxu0 %v1594
      %v1683 = vpop.f32.mrf.mxu0
      %v1684 = vadd.f32 0.0, %v1683
      %v1685 = vpop.f32.mrf.mxu0
      %v1686 = vadd.f32 0.0, %v1685
      %1687 = vmatprep.mubr.f32.mxu0 0.0
      %1688 = vmatmul.mubr.f32.gmra.mxu0 %v1597
      %v1689 = vpop.f32.mrf.mxu0
      %v1690 = vadd.f32 0.0, %v1689
      %v1691 = vpop.f32.mrf.mxu0
      %v1692 = vadd.f32 0.0, %v1691
      %1693 = vdwg.mxu0
      %1694 = vmatprep.subr.mxu0 0.0
      %1695 = vmatpush1.msra.mxu0 0.0
      %1696 = vmatprep.subr.mxu0 0.0
      %1697 = vmatpush1.msra.mxu0 0.0
      %1698 = vmatprep.subr.mxu0 0.0
      %1699 = vmatpush1.msra.mxu0 0.0
      %1700 = vmatprep.subr.mxu0 0.0
      %1701 = vmatpush1.msra.mxu0 0.0
      %1702 = vmatprep.subr.mxu0 0.0
      %1703 = vmatpush1.msra.mxu0 0.0
      %1704 = vmatprep.subr.mxu0 0.0
      %1705 = vmatpush1.msra.mxu0 0.0
      %1706 = vmatprep.subr.mxu0 0.0
      %1707 = vmatpush1.msra.mxu0 0.0
      %1708 = vmatprep.subr.mxu0 0.0
      %1709 = vmatpush1.msra.mxu0 0.0
      %1710 = vmatprep.subr.mxu0 0.0
      %1711 = vmatpush1.msra.mxu0 0.0
      %1712 = vmatprep.subr.mxu0 0.0
      %1713 = vmatpush1.msra.mxu0 0.0
      %1714 = vmatprep.subr.mxu0 0.0
      %1715 = vmatpush1.msra.mxu0 0.0
      %1716 = vmatprep.subr.mxu0 0.0
      %1717 = vmatpush1.msra.mxu0 0.0
      %1718 = vmatprep.subr.mxu0 0.0
      %1719 = vmatpush1.msra.mxu0 0.0
      %1720 = vmatprep.subr.mxu0 0.0
      %1721 = vmatpush1.msra.mxu0 0.0
      %1722 = vmatprep.subr.mxu0 0.0
      %1723 = vmatpush1.msra.mxu0 0.0
      %1724 = vmatprep.subr.mxu0 0.0
      %1725 = vmatpush1.msra.mxu0 %v1603
      %1726 = vmatprep.subr.mxu0 0.0
      %1727 = vmatpush2.msra.mxu0 0.0
      %1728 = vmatprep.subr.mxu0 0.0
      %1729 = vmatpush2.msra.mxu0 0.0
      %1730 = vmatprep.subr.mxu0 0.0
      %1731 = vmatpush2.msra.mxu0 0.0
      %1732 = vmatprep.subr.mxu0 0.0
      %1733 = vmatpush2.msra.mxu0 0.0
      %1734 = vmatprep.subr.mxu0 0.0
      %1735 = vmatpush2.msra.mxu0 0.0
      %1736 = vmatprep.subr.mxu0 0.0
      %1737 = vmatpush2.msra.mxu0 0.0
      %1738 = vmatprep.subr.mxu0 0.0
      %1739 = vmatpush2.msra.mxu0 0.0
      %1740 = vmatprep.subr.mxu0 0.0
      %1741 = vmatpush2.msra.mxu0 0.0
      %1742 = vmatprep.subr.mxu0 0.0
      %1743 = vmatpush2.msra.mxu0 0.0
      %1744 = vmatprep.subr.mxu0 0.0
      %1745 = vmatpush2.msra.mxu0 0.0
      %1746 = vmatprep.subr.mxu0 0.0
      %1747 = vmatpush2.msra.mxu0 0.0
      %1748 = vmatprep.subr.mxu0 0.0
      %1749 = vmatpush2.msra.mxu0 0.0
      %1750 = vmatprep.subr.mxu0 0.0
      %1751 = vmatpush2.msra.mxu0 0.0
      %1752 = vmatprep.subr.mxu0 0.0
      %1753 = vmatpush2.msra.mxu0 0.0
      %1754 = vmatprep.subr.mxu0 0.0
      %1755 = vmatpush2.msra.mxu0 0.0
      %1756 = vmatprep.subr.mxu0 0.0
      %1757 = vmatpush2.msra.mxu0 0.0
      %1758 = vmatprep.mubr.f32.mxu0 0.0
      %1759 = vmatmul.mubr.f32.gmra.mxu0 %v1588
      %v1760 = vpop.f32.mrf.mxu0
      %v1761 = vadd.f32 0.0, %v1760
      %v1762 = vpop.f32.mrf.mxu0
      %1763 = vmatprep.mubr.f32.mxu0 0.0
      %1764 = vmatmul.mubr.f32.gmra.mxu0 %v1591
      %v1765 = vpop.f32.mrf.mxu0
      %v1766 = vadd.f32 0.0, %v1765
      %v1767 = vpop.f32.mrf.mxu0
      %1768 = vmatprep.mubr.f32.mxu0 0.0
      %1769 = vmatmul.mubr.f32.gmra.mxu0 %v1594
      %v1770 = vpop.f32.mrf.mxu0
      %v1771 = vadd.f32 0.0, %v1770
      %v1772 = vpop.f32.mrf.mxu0
      %1773 = vmatprep.mubr.f32.mxu0 0.0
      %1774 = vmatmul.mubr.f32.gmra.mxu0 %v1597
      %v1775 = vpop.f32.mrf.mxu0
      %v1776 = vadd.f32 0.0, %v1775
      %v1777 = vpop.f32.mrf.mxu0
      %1778 = vdwg.mxu0
      %v1779 = vadd.f32 %v1556, %v1672
      %v1780 = vadd.f32 %v1557, %v1674
      %v1781 = vadd.f32 %v1558, %v1761
      %v1782 = vadd.f32 %v1559, %v1678
      %v1783 = vadd.f32 %v1560, %v1680
      %v1784 = vadd.f32 %v1561, %v1766
      %v1785 = vadd.f32 %v1562, %v1684
      %v1786 = vadd.f32 %v1563, %v1686
      %v1787 = vadd.f32 %v1564, %v1771
      %v1788 = vadd.f32 %v1565, %v1690
      %v1789 = vadd.f32 %v1566, %v1692
      %v1790 = vadd.f32 %v1567, %v1776
      %v1791 = vld [vmem:[#allocation2] sm:$0xff]
      %v1792 = vld [vmem:[#allocation2 + $0x8] sm:$0xf]
      %s1793 = scalar_lea.vmem %s2, 192
      %v1794 = vld [vmem:[%s1793] sm:$0xff]
      %v1795 = vld [vmem:[%s1793 + $0x8] sm:$0xff]
      %v1796 = vld [vmem:[%s1793 + $0x10] sm:$0xff]
      %v1797 = vld [vmem:[%s1793 + $0x18] sm:$0xff]
      %v1800 = vcombine.high %v1791, %v1791
      %1801 = vrot.lane.b32.xlu0 %v1791, 92
      %v1802 = vpop.permute.xlu0 %1801
      %1803 = vrot.lane.b32.xlu0 %v1800, 92
      %v1804 = vpop.permute.xlu0 %1803
      %1805 = vrot.lane.b32.xlu0 %v1792, 92
      %v1806 = vpop.permute.xlu0 %1805
      %vm1807 = vcmask 752640
      %v1808 = vsel %vm1807, %v1802, %v1804
      %v1809 = vsel %vm1807, %v1804, %v1806
      %v1811 = vsel %vm470, %v1794, 0
      %v1814 = vsel %vm470, %v1795, 0
      %v1817 = vsel %vm470, %v1796, 0
      %v1820 = vsel %vm470, %v1797, 0
      %v1822 = vsel %vm483, %v1808, 0
      %v1824 = vsel %vm483, %v1809, 0
      %v1826 = vsel %vm483, %v1806, 0
      %1828 = vmatprep.subr.mxu0 0.0
      %1829 = vmatpush1.msra.mxu0 0.0
      %1830 = vmatprep.subr.mxu0 0.0
      %1831 = vmatpush1.msra.mxu0 0.0
      %1832 = vmatprep.subr.mxu0 0.0
      %1833 = vmatpush1.msra.mxu0 0.0
      %1834 = vmatprep.subr.mxu0 0.0
      %1835 = vmatpush1.msra.mxu0 0.0
      %1836 = vmatprep.subr.mxu0 0.0
      %1837 = vmatpush1.msra.mxu0 0.0
      %1838 = vmatprep.subr.mxu0 0.0
      %1839 = vmatpush1.msra.mxu0 0.0
      %1840 = vmatprep.subr.mxu0 0.0
      %1841 = vmatpush1.msra.mxu0 0.0
      %1842 = vmatprep.subr.mxu0 0.0
      %1843 = vmatpush1.msra.mxu0 0.0
      %1844 = vmatprep.subr.mxu0 0.0
      %1845 = vmatpush1.msra.mxu0 0.0
      %1846 = vmatprep.subr.mxu0 0.0
      %1847 = vmatpush1.msra.mxu0 0.0
      %1848 = vmatprep.subr.mxu0 0.0
      %1849 = vmatpush1.msra.mxu0 0.0
      %1850 = vmatprep.subr.mxu0 0.0
      %1851 = vmatpush1.msra.mxu0 0.0
      %1852 = vmatprep.subr.mxu0 0.0
      %1853 = vmatpush1.msra.mxu0 0.0
      %1854 = vmatprep.subr.mxu0 0.0
      %1855 = vmatpush1.msra.mxu0 0.0
      %1856 = vmatprep.subr.mxu0 0.0
      %1857 = vmatpush1.msra.mxu0 0.0
      %1858 = vmatprep.subr.mxu0 %v1824
      %1859 = vmatpush1.msra.mxu0 %v1822
      %1860 = vmatprep.subr.mxu0 0.0
      %1861 = vmatpush2.msra.mxu0 0.0
      %1862 = vmatprep.subr.mxu0 0.0
      %1863 = vmatpush2.msra.mxu0 0.0
      %1864 = vmatprep.subr.mxu0 0.0
      %1865 = vmatpush2.msra.mxu0 0.0
      %1866 = vmatprep.subr.mxu0 0.0
      %1867 = vmatpush2.msra.mxu0 0.0
      %1868 = vmatprep.subr.mxu0 0.0
      %1869 = vmatpush2.msra.mxu0 0.0
      %1870 = vmatprep.subr.mxu0 0.0
      %1871 = vmatpush2.msra.mxu0 0.0
      %1872 = vmatprep.subr.mxu0 0.0
      %1873 = vmatpush2.msra.mxu0 0.0
      %1874 = vmatprep.subr.mxu0 0.0
      %1875 = vmatpush2.msra.mxu0 0.0
      %1876 = vmatprep.subr.mxu0 0.0
      %1877 = vmatpush2.msra.mxu0 0.0
      %1878 = vmatprep.subr.mxu0 0.0
      %1879 = vmatpush2.msra.mxu0 0.0
      %1880 = vmatprep.subr.mxu0 0.0
      %1881 = vmatpush2.msra.mxu0 0.0
      %1882 = vmatprep.subr.mxu0 0.0
      %1883 = vmatpush2.msra.mxu0 0.0
      %1884 = vmatprep.subr.mxu0 0.0
      %1885 = vmatpush2.msra.mxu0 0.0
      %1886 = vmatprep.subr.mxu0 0.0
      %1887 = vmatpush2.msra.mxu0 0.0
      %1888 = vmatprep.subr.mxu0 0.0
      %1889 = vmatpush2.msra.mxu0 0.0
      %1890 = vmatprep.subr.mxu0 0.0
      %1891 = vmatpush2.msra.mxu0 0.0
      %1892 = vmatprep.mubr.f32.mxu0 0.0
      %1893 = vmatmul.mubr.f32.gmra.mxu0 %v1811
      %v1894 = vpop.f32.mrf.mxu0
      %v1895 = vadd.f32 0.0, %v1894
      %v1896 = vpop.f32.mrf.mxu0
      %v1897 = vadd.f32 0.0, %v1896
      %1898 = vmatprep.mubr.f32.mxu0 0.0
      %1899 = vmatmul.mubr.f32.gmra.mxu0 %v1814
      %v1900 = vpop.f32.mrf.mxu0
      %v1901 = vadd.f32 0.0, %v1900
      %v1902 = vpop.f32.mrf.mxu0
      %v1903 = vadd.f32 0.0, %v1902
      %1904 = vmatprep.mubr.f32.mxu0 0.0
      %1905 = vmatmul.mubr.f32.gmra.mxu0 %v1817
      %v1906 = vpop.f32.mrf.mxu0
      %v1907 = vadd.f32 0.0, %v1906
      %v1908 = vpop.f32.mrf.mxu0
      %v1909 = vadd.f32 0.0, %v1908
      %1910 = vmatprep.mubr.f32.mxu0 0.0
      %1911 = vmatmul.mubr.f32.gmra.mxu0 %v1820
      %v1912 = vpop.f32.mrf.mxu0
      %v1913 = vadd.f32 0.0, %v1912
      %v1914 = vpop.f32.mrf.mxu0
      %v1915 = vadd.f32 0.0, %v1914
      %1916 = vdwg.mxu0
      %1917 = vmatprep.subr.mxu0 0.0
      %1918 = vmatpush1.msra.mxu0 0.0
      %1919 = vmatprep.subr.mxu0 0.0
      %1920 = vmatpush1.msra.mxu0 0.0
      %1921 = vmatprep.subr.mxu0 0.0
      %1922 = vmatpush1.msra.mxu0 0.0
      %1923 = vmatprep.subr.mxu0 0.0
      %1924 = vmatpush1.msra.mxu0 0.0
      %1925 = vmatprep.subr.mxu0 0.0
      %1926 = vmatpush1.msra.mxu0 0.0
      %1927 = vmatprep.subr.mxu0 0.0
      %1928 = vmatpush1.msra.mxu0 0.0
      %1929 = vmatprep.subr.mxu0 0.0
      %1930 = vmatpush1.msra.mxu0 0.0
      %1931 = vmatprep.subr.mxu0 0.0
      %1932 = vmatpush1.msra.mxu0 0.0
      %1933 = vmatprep.subr.mxu0 0.0
      %1934 = vmatpush1.msra.mxu0 0.0
      %1935 = vmatprep.subr.mxu0 0.0
      %1936 = vmatpush1.msra.mxu0 0.0
      %1937 = vmatprep.subr.mxu0 0.0
      %1938 = vmatpush1.msra.mxu0 0.0
      %1939 = vmatprep.subr.mxu0 0.0
      %1940 = vmatpush1.msra.mxu0 0.0
      %1941 = vmatprep.subr.mxu0 0.0
      %1942 = vmatpush1.msra.mxu0 0.0
      %1943 = vmatprep.subr.mxu0 0.0
      %1944 = vmatpush1.msra.mxu0 0.0
      %1945 = vmatprep.subr.mxu0 0.0
      %1946 = vmatpush1.msra.mxu0 0.0
      %1947 = vmatprep.subr.mxu0 0.0
      %1948 = vmatpush1.msra.mxu0 %v1826
      %1949 = vmatprep.subr.mxu0 0.0
      %1950 = vmatpush2.msra.mxu0 0.0
      %1951 = vmatprep.subr.mxu0 0.0
      %1952 = vmatpush2.msra.mxu0 0.0
      %1953 = vmatprep.subr.mxu0 0.0
      %1954 = vmatpush2.msra.mxu0 0.0
      %1955 = vmatprep.subr.mxu0 0.0
      %1956 = vmatpush2.msra.mxu0 0.0
      %1957 = vmatprep.subr.mxu0 0.0
      %1958 = vmatpush2.msra.mxu0 0.0
      %1959 = vmatprep.subr.mxu0 0.0
      %1960 = vmatpush2.msra.mxu0 0.0
      %1961 = vmatprep.subr.mxu0 0.0
      %1962 = vmatpush2.msra.mxu0 0.0
      %1963 = vmatprep.subr.mxu0 0.0
      %1964 = vmatpush2.msra.mxu0 0.0
      %1965 = vmatprep.subr.mxu0 0.0
      %1966 = vmatpush2.msra.mxu0 0.0
      %1967 = vmatprep.subr.mxu0 0.0
      %1968 = vmatpush2.msra.mxu0 0.0
      %1969 = vmatprep.subr.mxu0 0.0
      %1970 = vmatpush2.msra.mxu0 0.0
      %1971 = vmatprep.subr.mxu0 0.0
      %1972 = vmatpush2.msra.mxu0 0.0
      %1973 = vmatprep.subr.mxu0 0.0
      %1974 = vmatpush2.msra.mxu0 0.0
      %1975 = vmatprep.subr.mxu0 0.0
      %1976 = vmatpush2.msra.mxu0 0.0
      %1977 = vmatprep.subr.mxu0 0.0
      %1978 = vmatpush2.msra.mxu0 0.0
      %1979 = vmatprep.subr.mxu0 0.0
      %1980 = vmatpush2.msra.mxu0 0.0
      %1981 = vmatprep.mubr.f32.mxu0 0.0
      %1982 = vmatmul.mubr.f32.gmra.mxu0 %v1811
      %v1983 = vpop.f32.mrf.mxu0
      %v1984 = vadd.f32 0.0, %v1983
      %v1985 = vpop.f32.mrf.mxu0
      %1986 = vmatprep.mubr.f32.mxu0 0.0
      %1987 = vmatmul.mubr.f32.gmra.mxu0 %v1814
      %v1988 = vpop.f32.mrf.mxu0
      %v1989 = vadd.f32 0.0, %v1988
      %v1990 = vpop.f32.mrf.mxu0
      %1991 = vmatprep.mubr.f32.mxu0 0.0
      %1992 = vmatmul.mubr.f32.gmra.mxu0 %v1817
      %v1993 = vpop.f32.mrf.mxu0
      %v1994 = vadd.f32 0.0, %v1993
      %v1995 = vpop.f32.mrf.mxu0
      %1996 = vmatprep.mubr.f32.mxu0 0.0
      %1997 = vmatmul.mubr.f32.gmra.mxu0 %v1820
      %v1998 = vpop.f32.mrf.mxu0
      %v1999 = vadd.f32 0.0, %v1998
      %v2000 = vpop.f32.mrf.mxu0
      %2001 = vdwg.mxu0
      %v2002 = vadd.f32 %v1779, %v1895
      %v2003 = vadd.f32 %v1780, %v1897
      %v2004 = vadd.f32 %v1781, %v1984
      %v2005 = vadd.f32 %v1782, %v1901
      %v2006 = vadd.f32 %v1783, %v1903
      %v2007 = vadd.f32 %v1784, %v1989
      %v2008 = vadd.f32 %v1785, %v1907
      %v2009 = vadd.f32 %v1786, %v1909
      %v2010 = vadd.f32 %v1787, %v1994
      %v2011 = vadd.f32 %v1788, %v1913
      %v2012 = vadd.f32 %v1789, %v1915
      %v2013 = vadd.f32 %v1790, %v1999
      %v2014 = vld [vmem:[#allocation2] sm:$0xff]
      %v2015 = vld [vmem:[#allocation2 + $0x8] sm:$0xf]
      %s2016 = scalar_lea.vmem %s2, 224
      %v2017 = vld [vmem:[%s2016] sm:$0xff]
      %v2018 = vld [vmem:[%s2016 + $0x8] sm:$0xff]
      %v2019 = vld [vmem:[%s2016 + $0x10] sm:$0xff]
      %v2020 = vld [vmem:[%s2016 + $0x18] sm:$0xff]
      %v2023 = vcombine.high %v2014, %v2014
      %2024 = vrot.lane.b32.xlu0 %v2014, 91
      %v2025 = vpop.permute.xlu0 %2024
      %2026 = vrot.lane.b32.xlu0 %v2023, 91
      %v2027 = vpop.permute.xlu0 %2026
      %2028 = vrot.lane.b32.xlu0 %v2015, 91
      %v2029 = vpop.permute.xlu0 %2028
      %vm2030 = vcmask 744448
      %v2031 = vsel %vm2030, %v2025, %v2027
      %v2032 = vsel %vm2030, %v2027, %v2029
      %v2034 = vsel %vm470, %v2017, 0
      %v2037 = vsel %vm470, %v2018, 0
      %v2040 = vsel %vm470, %v2019, 0
      %v2043 = vsel %vm470, %v2020, 0
      %v2045 = vsel %vm483, %v2031, 0
      %v2047 = vsel %vm483, %v2032, 0
      %v2049 = vsel %vm483, %v2029, 0
      %2051 = vmatprep.subr.mxu0 0.0
      %2052 = vmatpush1.msra.mxu0 0.0
      %2053 = vmatprep.subr.mxu0 0.0
      %2054 = vmatpush1.msra.mxu0 0.0
      %2055 = vmatprep.subr.mxu0 0.0
      %2056 = vmatpush1.msra.mxu0 0.0
      %2057 = vmatprep.subr.mxu0 0.0
      %2058 = vmatpush1.msra.mxu0 0.0
      %2059 = vmatprep.subr.mxu0 0.0
      %2060 = vmatpush1.msra.mxu0 0.0
      %2061 = vmatprep.subr.mxu0 0.0
      %2062 = vmatpush1.msra.mxu0 0.0
      %2063 = vmatprep.subr.mxu0 0.0
      %2064 = vmatpush1.msra.mxu0 0.0
      %2065 = vmatprep.subr.mxu0 0.0
      %2066 = vmatpush1.msra.mxu0 0.0
      %2067 = vmatprep.subr.mxu0 0.0
      %2068 = vmatpush1.msra.mxu0 0.0
      %2069 = vmatprep.subr.mxu0 0.0
      %2070 = vmatpush1.msra.mxu0 0.0
      %2071 = vmatprep.subr.mxu0 0.0
      %2072 = vmatpush1.msra.mxu0 0.0
      %2073 = vmatprep.subr.mxu0 0.0
      %2074 = vmatpush1.msra.mxu0 0.0
      %2075 = vmatprep.subr.mxu0 0.0
      %2076 = vmatpush1.msra.mxu0 0.0
      %2077 = vmatprep.subr.mxu0 0.0
      %2078 = vmatpush1.msra.mxu0 0.0
      %2079 = vmatprep.subr.mxu0 0.0
      %2080 = vmatpush1.msra.mxu0 0.0
      %2081 = vmatprep.subr.mxu0 %v2047
      %2082 = vmatpush1.msra.mxu0 %v2045
      %2083 = vmatprep.subr.mxu0 0.0
      %2084 = vmatpush2.msra.mxu0 0.0
      %2085 = vmatprep.subr.mxu0 0.0
      %2086 = vmatpush2.msra.mxu0 0.0
      %2087 = vmatprep.subr.mxu0 0.0
      %2088 = vmatpush2.msra.mxu0 0.0
      %2089 = vmatprep.subr.mxu0 0.0
      %2090 = vmatpush2.msra.mxu0 0.0
      %2091 = vmatprep.subr.mxu0 0.0
      %2092 = vmatpush2.msra.mxu0 0.0
      %2093 = vmatprep.subr.mxu0 0.0
      %2094 = vmatpush2.msra.mxu0 0.0
      %2095 = vmatprep.subr.mxu0 0.0
      %2096 = vmatpush2.msra.mxu0 0.0
      %2097 = vmatprep.subr.mxu0 0.0
      %2098 = vmatpush2.msra.mxu0 0.0
      %2099 = vmatprep.subr.mxu0 0.0
      %2100 = vmatpush2.msra.mxu0 0.0
      %2101 = vmatprep.subr.mxu0 0.0
      %2102 = vmatpush2.msra.mxu0 0.0
      %2103 = vmatprep.subr.mxu0 0.0
      %2104 = vmatpush2.msra.mxu0 0.0
      %2105 = vmatprep.subr.mxu0 0.0
      %2106 = vmatpush2.msra.mxu0 0.0
      %2107 = vmatprep.subr.mxu0 0.0
      %2108 = vmatpush2.msra.mxu0 0.0
      %2109 = vmatprep.subr.mxu0 0.0
      %2110 = vmatpush2.msra.mxu0 0.0
      %2111 = vmatprep.subr.mxu0 0.0
      %2112 = vmatpush2.msra.mxu0 0.0
      %2113 = vmatprep.subr.mxu0 0.0
      %2114 = vmatpush2.msra.mxu0 0.0
      %2115 = vmatprep.mubr.f32.mxu0 0.0
      %2116 = vmatmul.mubr.f32.gmra.mxu0 %v2034
      %v2117 = vpop.f32.mrf.mxu0
      %v2118 = vadd.f32 0.0, %v2117
      %v2119 = vpop.f32.mrf.mxu0
      %v2120 = vadd.f32 0.0, %v2119
      %2121 = vmatprep.mubr.f32.mxu0 0.0
      %2122 = vmatmul.mubr.f32.gmra.mxu0 %v2037
      %v2123 = vpop.f32.mrf.mxu0
      %v2124 = vadd.f32 0.0, %v2123
      %v2125 = vpop.f32.mrf.mxu0
      %v2126 = vadd.f32 0.0, %v2125
      %2127 = vmatprep.mubr.f32.mxu0 0.0
      %2128 = vmatmul.mubr.f32.gmra.mxu0 %v2040
      %v2129 = vpop.f32.mrf.mxu0
      %v2130 = vadd.f32 0.0, %v2129
      %v2131 = vpop.f32.mrf.mxu0
      %v2132 = vadd.f32 0.0, %v2131
      %2133 = vmatprep.mubr.f32.mxu0 0.0
      %2134 = vmatmul.mubr.f32.gmra.mxu0 %v2043
      %v2135 = vpop.f32.mrf.mxu0
      %v2136 = vadd.f32 0.0, %v2135
      %v2137 = vpop.f32.mrf.mxu0
      %v2138 = vadd.f32 0.0, %v2137
      %2139 = vdwg.mxu0
      %2140 = vmatprep.subr.mxu0 0.0
      %2141 = vmatpush1.msra.mxu0 0.0
      %2142 = vmatprep.subr.mxu0 0.0
      %2143 = vmatpush1.msra.mxu0 0.0
      %2144 = vmatprep.subr.mxu0 0.0
      %2145 = vmatpush1.msra.mxu0 0.0
      %2146 = vmatprep.subr.mxu0 0.0
      %2147 = vmatpush1.msra.mxu0 0.0
      %2148 = vmatprep.subr.mxu0 0.0
      %2149 = vmatpush1.msra.mxu0 0.0
      %2150 = vmatprep.subr.mxu0 0.0
      %2151 = vmatpush1.msra.mxu0 0.0
      %2152 = vmatprep.subr.mxu0 0.0
      %2153 = vmatpush1.msra.mxu0 0.0
      %2154 = vmatprep.subr.mxu0 0.0
      %2155 = vmatpush1.msra.mxu0 0.0
      %2156 = vmatprep.subr.mxu0 0.0
      %2157 = vmatpush1.msra.mxu0 0.0
      %2158 = vmatprep.subr.mxu0 0.0
      %2159 = vmatpush1.msra.mxu0 0.0
      %2160 = vmatprep.subr.mxu0 0.0
      %2161 = vmatpush1.msra.mxu0 0.0
      %2162 = vmatprep.subr.mxu0 0.0
      %2163 = vmatpush1.msra.mxu0 0.0
      %2164 = vmatprep.subr.mxu0 0.0
      %2165 = vmatpush1.msra.mxu0 0.0
      %2166 = vmatprep.subr.mxu0 0.0
      %2167 = vmatpush1.msra.mxu0 0.0
      %2168 = vmatprep.subr.mxu0 0.0
      %2169 = vmatpush1.msra.mxu0 0.0
      %2170 = vmatprep.subr.mxu0 0.0
      %2171 = vmatpush1.msra.mxu0 %v2049
      %2172 = vmatprep.subr.mxu0 0.0
      %2173 = vmatpush2.msra.mxu0 0.0
      %2174 = vmatprep.subr.mxu0 0.0
      %2175 = vmatpush2.msra.mxu0 0.0
      %2176 = vmatprep.subr.mxu0 0.0
      %2177 = vmatpush2.msra.mxu0 0.0
      %2178 = vmatprep.subr.mxu0 0.0
      %2179 = vmatpush2.msra.mxu0 0.0
      %2180 = vmatprep.subr.mxu0 0.0
      %2181 = vmatpush2.msra.mxu0 0.0
      %2182 = vmatprep.subr.mxu0 0.0
      %2183 = vmatpush2.msra.mxu0 0.0
      %2184 = vmatprep.subr.mxu0 0.0
      %2185 = vmatpush2.msra.mxu0 0.0
      %2186 = vmatprep.subr.mxu0 0.0
      %2187 = vmatpush2.msra.mxu0 0.0
      %2188 = vmatprep.subr.mxu0 0.0
      %2189 = vmatpush2.msra.mxu0 0.0
      %2190 = vmatprep.subr.mxu0 0.0
      %2191 = vmatpush2.msra.mxu0 0.0
      %2192 = vmatprep.subr.mxu0 0.0
      %2193 = vmatpush2.msra.mxu0 0.0
      %2194 = vmatprep.subr.mxu0 0.0
      %2195 = vmatpush2.msra.mxu0 0.0
      %2196 = vmatprep.subr.mxu0 0.0
      %2197 = vmatpush2.msra.mxu0 0.0
      %2198 = vmatprep.subr.mxu0 0.0
      %2199 = vmatpush2.msra.mxu0 0.0
      %2200 = vmatprep.subr.mxu0 0.0
      %2201 = vmatpush2.msra.mxu0 0.0
      %2202 = vmatprep.subr.mxu0 0.0
      %2203 = vmatpush2.msra.mxu0 0.0
      %2204 = vmatprep.mubr.f32.mxu0 0.0
      %2205 = vmatmul.mubr.f32.gmra.mxu0 %v2034
      %v2206 = vpop.f32.mrf.mxu0
      %v2207 = vadd.f32 0.0, %v2206
      %v2208 = vpop.f32.mrf.mxu0
      %2209 = vmatprep.mubr.f32.mxu0 0.0
      %2210 = vmatmul.mubr.f32.gmra.mxu0 %v2037
      %v2211 = vpop.f32.mrf.mxu0
      %v2212 = vadd.f32 0.0, %v2211
      %v2213 = vpop.f32.mrf.mxu0
      %2214 = vmatprep.mubr.f32.mxu0 0.0
      %2215 = vmatmul.mubr.f32.gmra.mxu0 %v2040
      %v2216 = vpop.f32.mrf.mxu0
      %v2217 = vadd.f32 0.0, %v2216
      %v2218 = vpop.f32.mrf.mxu0
      %2219 = vmatprep.mubr.f32.mxu0 0.0
      %2220 = vmatmul.mubr.f32.gmra.mxu0 %v2043
      %v2221 = vpop.f32.mrf.mxu0
      %v2222 = vadd.f32 0.0, %v2221
      %v2223 = vpop.f32.mrf.mxu0
      %2224 = vdwg.mxu0
      %v2225 = vadd.f32 %v2002, %v2118
      %v2226 = vadd.f32 %v2003, %v2120
      %v2227 = vadd.f32 %v2004, %v2207
      %v2228 = vadd.f32 %v2005, %v2124
      %v2229 = vadd.f32 %v2006, %v2126
      %v2230 = vadd.f32 %v2007, %v2212
      %v2231 = vadd.f32 %v2008, %v2130
      %v2232 = vadd.f32 %v2009, %v2132
      %v2233 = vadd.f32 %v2010, %v2217
      %v2234 = vadd.f32 %v2011, %v2136
      %v2235 = vadd.f32 %v2012, %v2138
      %v2236 = vadd.f32 %v2013, %v2222
      %v2237 = vld [vmem:[#allocation2] sm:$0xff]
      %v2238 = vld [vmem:[#allocation2 + $0x8] sm:$0xf]
      %s2239 = scalar_lea.vmem %s2, 256
      %v2240 = vld [vmem:[%s2239] sm:$0xff]
      %v2241 = vld [vmem:[%s2239 + $0x8] sm:$0xff]
      %v2242 = vld [vmem:[%s2239 + $0x10] sm:$0xff]
      %v2243 = vld [vmem:[%s2239 + $0x18] sm:$0xff]
      %v2246 = vcombine.high %v2237, %v2237
      %2247 = vrot.lane.b32.xlu0 %v2237, 90
      %v2248 = vpop.permute.xlu0 %2247
      %2249 = vrot.lane.b32.xlu0 %v2246, 90
      %v2250 = vpop.permute.xlu0 %2249
      %2251 = vrot.lane.b32.xlu0 %v2238, 90
      %v2252 = vpop.permute.xlu0 %2251
      %vm2253 = vcmask 736256
      %v2254 = vsel %vm2253, %v2248, %v2250
      %v2255 = vsel %vm2253, %v2250, %v2252
      %v2257 = vsel %vm470, %v2240, 0
      %v2260 = vsel %vm470, %v2241, 0
      %v2263 = vsel %vm470, %v2242, 0
      %v2266 = vsel %vm470, %v2243, 0
      %v2268 = vsel %vm483, %v2254, 0
      %v2270 = vsel %vm483, %v2255, 0
      %v2272 = vsel %vm483, %v2252, 0
      %2274 = vmatprep.subr.mxu0 0.0
      %2275 = vmatpush1.msra.mxu0 0.0
      %2276 = vmatprep.subr.mxu0 0.0
      %2277 = vmatpush1.msra.mxu0 0.0
      %2278 = vmatprep.subr.mxu0 0.0
      %2279 = vmatpush1.msra.mxu0 0.0
      %2280 = vmatprep.subr.mxu0 0.0
      %2281 = vmatpush1.msra.mxu0 0.0
      %2282 = vmatprep.subr.mxu0 0.0
      %2283 = vmatpush1.msra.mxu0 0.0
      %2284 = vmatprep.subr.mxu0 0.0
      %2285 = vmatpush1.msra.mxu0 0.0
      %2286 = vmatprep.subr.mxu0 0.0
      %2287 = vmatpush1.msra.mxu0 0.0
      %2288 = vmatprep.subr.mxu0 0.0
      %2289 = vmatpush1.msra.mxu0 0.0
      %2290 = vmatprep.subr.mxu0 0.0
      %2291 = vmatpush1.msra.mxu0 0.0
      %2292 = vmatprep.subr.mxu0 0.0
      %2293 = vmatpush1.msra.mxu0 0.0
      %2294 = vmatprep.subr.mxu0 0.0
      %2295 = vmatpush1.msra.mxu0 0.0
      %2296 = vmatprep.subr.mxu0 0.0
      %2297 = vmatpush1.msra.mxu0 0.0
      %2298 = vmatprep.subr.mxu0 0.0
      %2299 = vmatpush1.msra.mxu0 0.0
      %2300 = vmatprep.subr.mxu0 0.0
      %2301 = vmatpush1.msra.mxu0 0.0
      %2302 = vmatprep.subr.mxu0 0.0
      %2303 = vmatpush1.msra.mxu0 0.0
      %2304 = vmatprep.subr.mxu0 %v2270
      %2305 = vmatpush1.msra.mxu0 %v2268
      %2306 = vmatprep.subr.mxu0 0.0
      %2307 = vmatpush2.msra.mxu0 0.0
      %2308 = vmatprep.subr.mxu0 0.0
      %2309 = vmatpush2.msra.mxu0 0.0
      %2310 = vmatprep.subr.mxu0 0.0
      %2311 = vmatpush2.msra.mxu0 0.0
      %2312 = vmatprep.subr.mxu0 0.0
      %2313 = vmatpush2.msra.mxu0 0.0
      %2314 = vmatprep.subr.mxu0 0.0
      %2315 = vmatpush2.msra.mxu0 0.0
      %2316 = vmatprep.subr.mxu0 0.0
      %2317 = vmatpush2.msra.mxu0 0.0
      %2318 = vmatprep.subr.mxu0 0.0
      %2319 = vmatpush2.msra.mxu0 0.0
      %2320 = vmatprep.subr.mxu0 0.0
      %2321 = vmatpush2.msra.mxu0 0.0
      %2322 = vmatprep.subr.mxu0 0.0
      %2323 = vmatpush2.msra.mxu0 0.0
      %2324 = vmatprep.subr.mxu0 0.0
      %2325 = vmatpush2.msra.mxu0 0.0
      %2326 = vmatprep.subr.mxu0 0.0
      %2327 = vmatpush2.msra.mxu0 0.0
      %2328 = vmatprep.subr.mxu0 0.0
      %2329 = vmatpush2.msra.mxu0 0.0
      %2330 = vmatprep.subr.mxu0 0.0
      %2331 = vmatpush2.msra.mxu0 0.0
      %2332 = vmatprep.subr.mxu0 0.0
      %2333 = vmatpush2.msra.mxu0 0.0
      %2334 = vmatprep.subr.mxu0 0.0
      %2335 = vmatpush2.msra.mxu0 0.0
      %2336 = vmatprep.subr.mxu0 0.0
      %2337 = vmatpush2.msra.mxu0 0.0
      %2338 = vmatprep.mubr.f32.mxu0 0.0
      %2339 = vmatmul.mubr.f32.gmra.mxu0 %v2257
      %v2340 = vpop.f32.mrf.mxu0
      %v2341 = vadd.f32 0.0, %v2340
      %v2342 = vpop.f32.mrf.mxu0
      %v2343 = vadd.f32 0.0, %v2342
      %2344 = vmatprep.mubr.f32.mxu0 0.0
      %2345 = vmatmul.mubr.f32.gmra.mxu0 %v2260
      %v2346 = vpop.f32.mrf.mxu0
      %v2347 = vadd.f32 0.0, %v2346
      %v2348 = vpop.f32.mrf.mxu0
      %v2349 = vadd.f32 0.0, %v2348
      %2350 = vmatprep.mubr.f32.mxu0 0.0
      %2351 = vmatmul.mubr.f32.gmra.mxu0 %v2263
      %v2352 = vpop.f32.mrf.mxu0
      %v2353 = vadd.f32 0.0, %v2352
      %v2354 = vpop.f32.mrf.mxu0
      %v2355 = vadd.f32 0.0, %v2354
      %2356 = vmatprep.mubr.f32.mxu0 0.0
      %2357 = vmatmul.mubr.f32.gmra.mxu0 %v2266
      %v2358 = vpop.f32.mrf.mxu0
      %v2359 = vadd.f32 0.0, %v2358
      %v2360 = vpop.f32.mrf.mxu0
      %v2361 = vadd.f32 0.0, %v2360
      %2362 = vdwg.mxu0
      %2363 = vmatprep.subr.mxu0 0.0
      %2364 = vmatpush1.msra.mxu0 0.0
      %2365 = vmatprep.subr.mxu0 0.0
      %2366 = vmatpush1.msra.mxu0 0.0
      %2367 = vmatprep.subr.mxu0 0.0
      %2368 = vmatpush1.msra.mxu0 0.0
      %2369 = vmatprep.subr.mxu0 0.0
      %2370 = vmatpush1.msra.mxu0 0.0
      %2371 = vmatprep.subr.mxu0 0.0
      %2372 = vmatpush1.msra.mxu0 0.0
      %2373 = vmatprep.subr.mxu0 0.0
      %2374 = vmatpush1.msra.mxu0 0.0
      %2375 = vmatprep.subr.mxu0 0.0
      %2376 = vmatpush1.msra.mxu0 0.0
      %2377 = vmatprep.subr.mxu0 0.0
      %2378 = vmatpush1.msra.mxu0 0.0
      %2379 = vmatprep.subr.mxu0 0.0
      %2380 = vmatpush1.msra.mxu0 0.0
      %2381 = vmatprep.subr.mxu0 0.0
      %2382 = vmatpush1.msra.mxu0 0.0
      %2383 = vmatprep.subr.mxu0 0.0
      %2384 = vmatpush1.msra.mxu0 0.0
      %2385 = vmatprep.subr.mxu0 0.0
      %2386 = vmatpush1.msra.mxu0 0.0
      %2387 = vmatprep.subr.mxu0 0.0
      %2388 = vmatpush1.msra.mxu0 0.0
      %2389 = vmatprep.subr.mxu0 0.0
      %2390 = vmatpush1.msra.mxu0 0.0
      %2391 = vmatprep.subr.mxu0 0.0
      %2392 = vmatpush1.msra.mxu0 0.0
      %2393 = vmatprep.subr.mxu0 0.0
      %2394 = vmatpush1.msra.mxu0 %v2272
      %2395 = vmatprep.subr.mxu0 0.0
      %2396 = vmatpush2.msra.mxu0 0.0
      %2397 = vmatprep.subr.mxu0 0.0
      %2398 = vmatpush2.msra.mxu0 0.0
      %2399 = vmatprep.subr.mxu0 0.0
      %2400 = vmatpush2.msra.mxu0 0.0
      %2401 = vmatprep.subr.mxu0 0.0
      %2402 = vmatpush2.msra.mxu0 0.0
      %2403 = vmatprep.subr.mxu0 0.0
      %2404 = vmatpush2.msra.mxu0 0.0
      %2405 = vmatprep.subr.mxu0 0.0
      %2406 = vmatpush2.msra.mxu0 0.0
      %2407 = vmatprep.subr.mxu0 0.0
      %2408 = vmatpush2.msra.mxu0 0.0
      %2409 = vmatprep.subr.mxu0 0.0
      %2410 = vmatpush2.msra.mxu0 0.0
      %2411 = vmatprep.subr.mxu0 0.0
      %2412 = vmatpush2.msra.mxu0 0.0
      %2413 = vmatprep.subr.mxu0 0.0
      %2414 = vmatpush2.msra.mxu0 0.0
      %2415 = vmatprep.subr.mxu0 0.0
      %2416 = vmatpush2.msra.mxu0 0.0
      %2417 = vmatprep.subr.mxu0 0.0
      %2418 = vmatpush2.msra.mxu0 0.0
      %2419 = vmatprep.subr.mxu0 0.0
      %2420 = vmatpush2.msra.mxu0 0.0
      %2421 = vmatprep.subr.mxu0 0.0
      %2422 = vmatpush2.msra.mxu0 0.0
      %2423 = vmatprep.subr.mxu0 0.0
      %2424 = vmatpush2.msra.mxu0 0.0
      %2425 = vmatprep.subr.mxu0 0.0
      %2426 = vmatpush2.msra.mxu0 0.0
      %2427 = vmatprep.mubr.f32.mxu0 0.0
      %2428 = vmatmul.mubr.f32.gmra.mxu0 %v2257
      %v2429 = vpop.f32.mrf.mxu0
      %v2430 = vadd.f32 0.0, %v2429
      %v2431 = vpop.f32.mrf.mxu0
      %2432 = vmatprep.mubr.f32.mxu0 0.0
      %2433 = vmatmul.mubr.f32.gmra.mxu0 %v2260
      %v2434 = vpop.f32.mrf.mxu0
      %v2435 = vadd.f32 0.0, %v2434
      %v2436 = vpop.f32.mrf.mxu0
      %2437 = vmatprep.mubr.f32.mxu0 0.0
      %2438 = vmatmul.mubr.f32.gmra.mxu0 %v2263
      %v2439 = vpop.f32.mrf.mxu0
      %v2440 = vadd.f32 0.0, %v2439
      %v2441 = vpop.f32.mrf.mxu0
      %2442 = vmatprep.mubr.f32.mxu0 0.0
      %2443 = vmatmul.mubr.f32.gmra.mxu0 %v2266
      %v2444 = vpop.f32.mrf.mxu0
      %v2445 = vadd.f32 0.0, %v2444
      %v2446 = vpop.f32.mrf.mxu0
      %2447 = vdwg.mxu0
      %v2448 = vadd.f32 %v2225, %v2341
      %v2449 = vadd.f32 %v2226, %v2343
      %v2450 = vadd.f32 %v2227, %v2430
      %v2451 = vadd.f32 %v2228, %v2347
      %v2452 = vadd.f32 %v2229, %v2349
      %v2453 = vadd.f32 %v2230, %v2435
      %v2454 = vadd.f32 %v2231, %v2353
      %v2455 = vadd.f32 %v2232, %v2355
      %v2456 = vadd.f32 %v2233, %v2440
      %v2457 = vadd.f32 %v2234, %v2359
      %v2458 = vadd.f32 %v2235, %v2361
      %v2459 = vadd.f32 %v2236, %v2445
      %vm2460 = vcmp.gt.f32.partialorder %v2448, 0.0
      %vm2461 = vcmp.gt.f32.partialorder %v2449, 0.0
      %vm2462 = vcmp.gt.f32.partialorder %v2450, 0.0
      %vm2463 = vcmp.gt.f32.partialorder %v2451, 0.0
      %vm2464 = vcmp.gt.f32.partialorder %v2452, 0.0
      %vm2465 = vcmp.gt.f32.partialorder %v2453, 0.0
      %vm2466 = vcmp.gt.f32.partialorder %v2454, 0.0
      %vm2467 = vcmp.gt.f32.partialorder %v2455, 0.0
      %vm2468 = vcmp.gt.f32.partialorder %v2456, 0.0
      %vm2469 = vcmp.gt.f32.partialorder %v2457, 0.0
      %vm2470 = vcmp.gt.f32.partialorder %v2458, 0.0
      %vm2471 = vcmp.gt.f32.partialorder %v2459, 0.0
      %v2472 = vmin.f32 %v2448, 0.0
      %v2473 = vmin.f32 %v2449, 0.0
      %v2474 = vmin.f32 %v2450, 0.0
      %v2475 = vmin.f32 %v2451, 0.0
      %v2476 = vmin.f32 %v2452, 0.0
      %v2477 = vmin.f32 %v2453, 0.0
      %v2478 = vmin.f32 %v2454, 0.0
      %v2479 = vmin.f32 %v2455, 0.0
      %v2480 = vmin.f32 %v2456, 0.0
      %v2481 = vmin.f32 %v2457, 0.0
      %v2482 = vmin.f32 %v2458, 0.0
      %v2483 = vmin.f32 %v2459, 0.0
      %v2484 = vmul.f32 %v2472, 1.442695
      %v2485 = vpow.pop %v2484
      %v2486 = vmul.f32 %v2473, 1.442695
      %v2487 = vpow.pop %v2486
      %v2488 = vmul.f32 %v2474, 1.442695
      %v2489 = vpow.pop %v2488
      %v2490 = vmul.f32 %v2475, 1.442695
      %v2491 = vpow.pop %v2490
      %v2492 = vmul.f32 %v2476, 1.442695
      %v2493 = vpow.pop %v2492
      %v2494 = vmul.f32 %v2477, 1.442695
      %v2495 = vpow.pop %v2494
      %v2496 = vmul.f32 %v2478, 1.442695
      %v2497 = vpow.pop %v2496
      %v2498 = vmul.f32 %v2479, 1.442695
      %v2499 = vpow.pop %v2498
      %v2500 = vmul.f32 %v2480, 1.442695
      %v2501 = vpow.pop %v2500
      %v2502 = vmul.f32 %v2481, 1.442695
      %v2503 = vpow.pop %v2502
      %v2504 = vmul.f32 %v2482, 1.442695
      %v2505 = vpow.pop %v2504
      %v2506 = vmul.f32 %v2483, 1.442695
      %v2507 = vpow.pop %v2506
      %v2508 = vsub.f32 %v2485, 1.0
      %v2509 = vsub.f32 %v2487, 1.0
      %v2510 = vsub.f32 %v2489, 1.0
      %v2511 = vsub.f32 %v2491, 1.0
      %v2512 = vsub.f32 %v2493, 1.0
      %v2513 = vsub.f32 %v2495, 1.0
      %v2514 = vsub.f32 %v2497, 1.0
      %v2515 = vsub.f32 %v2499, 1.0
      %v2516 = vsub.f32 %v2501, 1.0
      %v2517 = vsub.f32 %v2503, 1.0
      %v2518 = vsub.f32 %v2505, 1.0
      %v2519 = vsub.f32 %v2507, 1.0
      %v2520 = vsel %vm2460, %v2448, %v2508
      %v2521 = vsel %vm2461, %v2449, %v2509
      %v2522 = vsel %vm2462, %v2450, %v2510
      %v2523 = vsel %vm2463, %v2451, %v2511
      %v2524 = vsel %vm2464, %v2452, %v2512
      %v2525 = vsel %vm2465, %v2453, %v2513
      %v2526 = vsel %vm2466, %v2454, %v2514
      %v2527 = vsel %vm2467, %v2455, %v2515
      %v2528 = vsel %vm2468, %v2456, %v2516
      %v2529 = vsel %vm2469, %v2457, %v2517
      %v2530 = vsel %vm2470, %v2458, %v2518
      %v2531 = vsel %vm2471, %v2459, %v2519
      %v2533 = vlaneseq
      %v2534 = vshrl.u32 %v2533, 7
      %v2535 = vsub.s32 0, %v2534
      %v2536 = vrot.slane %v306, %v2535
      %v2537 = vlaneseq
      %v2538 = vshrl.u32 %v2537, 7
      %v2539 = vsub.s32 1, %v2538
      %v2540 = vrot.slane %v306, %v2539
      %v2541 = vlaneseq
      %v2542 = vshrl.u32 %v2541, 7
      %v2543 = vsub.s32 2, %v2542
      %v2544 = vrot.slane %v306, %v2543
      %v2548 = vmul.f32 %v2520, %v2536
      %v2549 = vmul.f32 %v2521, %v2540
      %v2550 = vmul.f32 %v2522, %v2544
      %v2551 = vmul.f32 %v2523, %v2536
      %v2552 = vmul.f32 %v2524, %v2540
      %v2553 = vmul.f32 %v2525, %v2544
      %v2554 = vmul.f32 %v2526, %v2536
      %v2555 = vmul.f32 %v2527, %v2540
      %v2556 = vmul.f32 %v2528, %v2544
      %v2557 = vmul.f32 %v2529, %v2536
      %v2558 = vmul.f32 %v2530, %v2540
      %v2559 = vmul.f32 %v2531, %v2544
      %2572 = vrot.lane.b32.xlu0 %v2548, 19
      %v2573 = vpop.permute.xlu0 %2572
      %2574 = vrot.lane.b32.xlu0 %v2549, 19
      %v2575 = vpop.permute.xlu0 %2574
      %2576 = vrot.lane.b32.xlu0 %v2550, 19
      %v2577 = vpop.permute.xlu0 %2576
      %2578 = vrot.lane.b32.xlu0 %v2551, 19
      %v2579 = vpop.permute.xlu0 %2578
      %2580 = vrot.lane.b32.xlu0 %v2552, 19
      %v2581 = vpop.permute.xlu0 %2580
      %2582 = vrot.lane.b32.xlu0 %v2553, 19
      %v2583 = vpop.permute.xlu0 %2582
      %2584 = vrot.lane.b32.xlu0 %v2554, 19
      %v2585 = vpop.permute.xlu0 %2584
      %2586 = vrot.lane.b32.xlu0 %v2555, 19
      %v2587 = vpop.permute.xlu0 %2586
      %2588 = vrot.lane.b32.xlu0 %v2556, 19
      %v2589 = vpop.permute.xlu0 %2588
      %2590 = vrot.lane.b32.xlu0 %v2557, 19
      %v2591 = vpop.permute.xlu0 %2590
      %2592 = vrot.lane.b32.xlu0 %v2558, 19
      %v2593 = vpop.permute.xlu0 %2592
      %2594 = vrot.lane.b32.xlu0 %v2559, 19
      %v2595 = vpop.permute.xlu0 %2594
      %vm2596 = vcmask 154624
      %v2597 = vsel %vm2596, %v2573, %v2575
      %v2598 = vsel %vm2596, %v2575, %v2577
      %v2599 = vsel %vm2596, %v2579, %v2581
      %v2600 = vsel %vm2596, %v2581, %v2583
      %v2601 = vsel %vm2596, %v2585, %v2587
      %v2602 = vsel %vm2596, %v2587, %v2589
      %v2603 = vsel %vm2596, %v2591, %v2593
      %v2604 = vsel %vm2596, %v2593, %v2595
      %vm2617 = vcmask 1047704
      %2618 = vst.msk [vmem:[#allocation3] sm:$0xff] %vm2617, %v2573
      %2619 = vst [vmem:[#allocation3 + $0x8] sm:$0xff] %v2597
      %vm2620 = vcmask 711680
      %2621 = vst.msk [vmem:[#allocation3 + $0x10] sm:$0xff] %vm2620, %v2598
      %2622 = vst.msk [vmem:[#allocation3 + $0x18] sm:$0xff] %vm2617, %v2579
      %2623 = vst [vmem:[#allocation3 + $0x20] sm:$0xff] %v2599
      %2624 = vst.msk [vmem:[#allocation3 + $0x28] sm:$0xff] %vm2620, %v2600
      %2625 = vst.msk [vmem:[#allocation3 + $0x30] sm:$0xff] %vm2617, %v2585
      %2626 = vst [vmem:[#allocation3 + $0x38] sm:$0xff] %v2601
      %2627 = vst.msk [vmem:[#allocation3 + $0x40] sm:$0xff] %vm2620, %v2602
      %2628 = vst.msk [vmem:[#allocation3 + $0x48] sm:$0xff] %vm2617, %v2591
      %2629 = vst [vmem:[#allocation3 + $0x50] sm:$0xff] %v2603
      %2630 = vst.msk [vmem:[#allocation3 + $0x58] sm:$0xff] %vm2620, %v2604
      %v2631 = vld [vmem:[%s5] sm:$0xff]
      %v2632 = vld [vmem:[%s5 + $0x8] sm:$0xff]
      %v2633 = vld [vmem:[%s5 + $0x10] sm:$0xff]
      %v2634 = vld [vmem:[%s5 + $0x18] sm:$0xff]
      %2636 = vset.pattern.permute.xlu0 0
      %2637 = vperm.xlu0 %2636, %v2631
      %v2638 = vpop.permute.xlu0 %2637
      %2641 = vset.pattern.permute.xlu0 0
      %2642 = vperm.xlu0 %2641, %v2632
      %v2643 = vpop.permute.xlu0 %2642
      %2646 = vset.pattern.permute.xlu0 0
      %2647 = vperm.xlu0 %2646, %v2633
      %v2648 = vpop.permute.xlu0 %2647
      %2651 = vset.pattern.permute.xlu0 0
      %2652 = vperm.xlu0 %2651, %v2634
      %v2653 = vpop.permute.xlu0 %2652
      %v2655 = vld [vmem:[#allocation3] sm:$0xff]
      %v2656 = vld [vmem:[#allocation3 + $0x8] sm:$0xff]
      %v2657 = vld [vmem:[#allocation3 + $0x10] sm:$0xff]
      %v2658 = vld [vmem:[#allocation3 + $0x18] sm:$0xff]
      %v2659 = vld [vmem:[#allocation3 + $0x20] sm:$0xff]
      %v2660 = vld [vmem:[#allocation3 + $0x28] sm:$0xff]
      %v2661 = vld [vmem:[#allocation3 + $0x30] sm:$0xff]
      %v2662 = vld [vmem:[#allocation3 + $0x38] sm:$0xff]
      %v2663 = vld [vmem:[#allocation3 + $0x40] sm:$0xff]
      %v2664 = vld [vmem:[#allocation3 + $0x48] sm:$0xff]
      %v2665 = vld [vmem:[#allocation3 + $0x50] sm:$0xff]
      %v2666 = vld [vmem:[#allocation3 + $0x58] sm:$0xff]
      %v2667 = vld [vmem:[%s4] sm:$0xff]
      %v2668 = vld [vmem:[%s4 + $0x8] sm:$0xff]
      %v2669 = vld [vmem:[%s4 + $0x10] sm:$0xff]
      %v2670 = vld [vmem:[%s4 + $0x18] sm:$0xff]
      %vm2671 = vcmask 261120
      %v2673 = vsel %vm2671, %v2667, 0
      %v2676 = vsel %vm2671, %v2668, 0
      %v2679 = vsel %vm2671, %v2669, 0
      %v2682 = vsel %vm2671, %v2670, 0
      %2684 = vmatprep.subr.mxu0 0.0
      %2685 = vmatpush1.msra.mxu0 0.0
      %2686 = vmatprep.subr.mxu0 0.0
      %2687 = vmatpush1.msra.mxu0 0.0
      %2688 = vmatprep.subr.mxu0 0.0
      %2689 = vmatpush1.msra.mxu0 0.0
      %2690 = vmatprep.subr.mxu0 0.0
      %2691 = vmatpush1.msra.mxu0 0.0
      %2692 = vmatprep.subr.mxu0 0.0
      %2693 = vmatpush1.msra.mxu0 0.0
      %2694 = vmatprep.subr.mxu0 0.0
      %2695 = vmatpush1.msra.mxu0 0.0
      %2696 = vmatprep.subr.mxu0 0.0
      %2697 = vmatpush1.msra.mxu0 0.0
      %2698 = vmatprep.subr.mxu0 0.0
      %2699 = vmatpush1.msra.mxu0 0.0
      %2700 = vmatprep.subr.mxu0 0.0
      %2701 = vmatpush1.msra.mxu0 0.0
      %2702 = vmatprep.subr.mxu0 0.0
      %2703 = vmatpush1.msra.mxu0 0.0
      %2704 = vmatprep.subr.mxu0 0.0
      %2705 = vmatpush1.msra.mxu0 0.0
      %2706 = vmatprep.subr.mxu0 0.0
      %2707 = vmatpush1.msra.mxu0 0.0
      %2708 = vmatprep.subr.mxu0 %v2665
      %2709 = vmatpush1.msra.mxu0 %v2664
      %2710 = vmatprep.subr.mxu0 %v2662
      %2711 = vmatpush1.msra.mxu0 %v2661
      %2712 = vmatprep.subr.mxu0 %v2659
      %2713 = vmatpush1.msra.mxu0 %v2658
      %2714 = vmatprep.subr.mxu0 %v2656
      %2715 = vmatpush1.msra.mxu0 %v2655
      %2716 = vmatprep.subr.mxu0 0.0
      %2717 = vmatpush2.msra.mxu0 0.0
      %2718 = vmatprep.subr.mxu0 0.0
      %2719 = vmatpush2.msra.mxu0 0.0
      %2720 = vmatprep.subr.mxu0 0.0
      %2721 = vmatpush2.msra.mxu0 0.0
      %2722 = vmatprep.subr.mxu0 0.0
      %2723 = vmatpush2.msra.mxu0 0.0
      %2724 = vmatprep.subr.mxu0 0.0
      %2725 = vmatpush2.msra.mxu0 0.0
      %2726 = vmatprep.subr.mxu0 0.0
      %2727 = vmatpush2.msra.mxu0 0.0
      %2728 = vmatprep.subr.mxu0 0.0
      %2729 = vmatpush2.msra.mxu0 0.0
      %2730 = vmatprep.subr.mxu0 0.0
      %2731 = vmatpush2.msra.mxu0 0.0
      %2732 = vmatprep.subr.mxu0 0.0
      %2733 = vmatpush2.msra.mxu0 0.0
      %2734 = vmatprep.subr.mxu0 0.0
      %2735 = vmatpush2.msra.mxu0 0.0
      %2736 = vmatprep.subr.mxu0 0.0
      %2737 = vmatpush2.msra.mxu0 0.0
      %2738 = vmatprep.subr.mxu0 0.0
      %2739 = vmatpush2.msra.mxu0 0.0
      %2740 = vmatprep.subr.mxu0 0.0
      %2741 = vmatpush2.msra.mxu0 0.0
      %2742 = vmatprep.subr.mxu0 0.0
      %2743 = vmatpush2.msra.mxu0 0.0
      %2744 = vmatprep.subr.mxu0 0.0
      %2745 = vmatpush2.msra.mxu0 0.0
      %2746 = vmatprep.subr.mxu0 0.0
      %2747 = vmatpush2.msra.mxu0 0.0
      %2748 = vmatprep.mubr.f32.mxu0 0.0
      %2749 = vmatmul.mubr.f32.gmra.mxu0 %v2673
      %v2750 = vpop.f32.mrf.mxu0
      %v2751 = vadd.f32 0.0, %v2750
      %v2752 = vpop.f32.mrf.mxu0
      %v2753 = vadd.f32 0.0, %v2752
      %2754 = vmatprep.mubr.f32.mxu0 0.0
      %2755 = vmatmul.mubr.f32.gmra.mxu0 %v2676
      %v2756 = vpop.f32.mrf.mxu0
      %v2757 = vadd.f32 0.0, %v2756
      %v2758 = vpop.f32.mrf.mxu0
      %v2759 = vadd.f32 0.0, %v2758
      %2760 = vmatprep.mubr.f32.mxu0 0.0
      %2761 = vmatmul.mubr.f32.gmra.mxu0 %v2679
      %v2762 = vpop.f32.mrf.mxu0
      %v2763 = vadd.f32 0.0, %v2762
      %v2764 = vpop.f32.mrf.mxu0
      %v2765 = vadd.f32 0.0, %v2764
      %2766 = vmatprep.mubr.f32.mxu0 0.0
      %2767 = vmatmul.mubr.f32.gmra.mxu0 %v2682
      %v2768 = vpop.f32.mrf.mxu0
      %v2769 = vadd.f32 0.0, %v2768
      %v2770 = vpop.f32.mrf.mxu0
      %v2771 = vadd.f32 0.0, %v2770
      %2772 = vdwg.mxu0
      %2773 = vmatprep.subr.mxu0 0.0
      %2774 = vmatpush1.msra.mxu0 0.0
      %2775 = vmatprep.subr.mxu0 0.0
      %2776 = vmatpush1.msra.mxu0 0.0
      %2777 = vmatprep.subr.mxu0 0.0
      %2778 = vmatpush1.msra.mxu0 0.0
      %2779 = vmatprep.subr.mxu0 0.0
      %2780 = vmatpush1.msra.mxu0 0.0
      %2781 = vmatprep.subr.mxu0 0.0
      %2782 = vmatpush1.msra.mxu0 0.0
      %2783 = vmatprep.subr.mxu0 0.0
      %2784 = vmatpush1.msra.mxu0 0.0
      %2785 = vmatprep.subr.mxu0 0.0
      %2786 = vmatpush1.msra.mxu0 0.0
      %2787 = vmatprep.subr.mxu0 0.0
      %2788 = vmatpush1.msra.mxu0 0.0
      %2789 = vmatprep.subr.mxu0 0.0
      %2790 = vmatpush1.msra.mxu0 0.0
      %2791 = vmatprep.subr.mxu0 0.0
      %2792 = vmatpush1.msra.mxu0 0.0
      %2793 = vmatprep.subr.mxu0 0.0
      %2794 = vmatpush1.msra.mxu0 0.0
      %2795 = vmatprep.subr.mxu0 0.0
      %2796 = vmatpush1.msra.mxu0 0.0
      %2797 = vmatprep.subr.mxu0 0.0
      %2798 = vmatpush1.msra.mxu0 %v2666
      %2799 = vmatprep.subr.mxu0 0.0
      %2800 = vmatpush1.msra.mxu0 %v2663
      %2801 = vmatprep.subr.mxu0 0.0
      %2802 = vmatpush1.msra.mxu0 %v2660
      %2803 = vmatprep.subr.mxu0 0.0
      %2804 = vmatpush1.msra.mxu0 %v2657
      %2805 = vmatprep.subr.mxu0 0.0
      %2806 = vmatpush2.msra.mxu0 0.0
      %2807 = vmatprep.subr.mxu0 0.0
      %2808 = vmatpush2.msra.mxu0 0.0
      %2809 = vmatprep.subr.mxu0 0.0
      %2810 = vmatpush2.msra.mxu0 0.0
      %2811 = vmatprep.subr.mxu0 0.0
      %2812 = vmatpush2.msra.mxu0 0.0
      %2813 = vmatprep.subr.mxu0 0.0
      %2814 = vmatpush2.msra.mxu0 0.0
      %2815 = vmatprep.subr.mxu0 0.0
      %2816 = vmatpush2.msra.mxu0 0.0
      %2817 = vmatprep.subr.mxu0 0.0
      %2818 = vmatpush2.msra.mxu0 0.0
      %2819 = vmatprep.subr.mxu0 0.0
      %2820 = vmatpush2.msra.mxu0 0.0
      %2821 = vmatprep.subr.mxu0 0.0
      %2822 = vmatpush2.msra.mxu0 0.0
      %2823 = vmatprep.subr.mxu0 0.0
      %2824 = vmatpush2.msra.mxu0 0.0
      %2825 = vmatprep.subr.mxu0 0.0
      %2826 = vmatpush2.msra.mxu0 0.0
      %2827 = vmatprep.subr.mxu0 0.0
      %2828 = vmatpush2.msra.mxu0 0.0
      %2829 = vmatprep.subr.mxu0 0.0
      %2830 = vmatpush2.msra.mxu0 0.0
      %2831 = vmatprep.subr.mxu0 0.0
      %2832 = vmatpush2.msra.mxu0 0.0
      %2833 = vmatprep.subr.mxu0 0.0
      %2834 = vmatpush2.msra.mxu0 0.0
      %2835 = vmatprep.subr.mxu0 0.0
      %2836 = vmatpush2.msra.mxu0 0.0
      %2837 = vmatprep.mubr.f32.mxu0 0.0
      %2838 = vmatmul.mubr.f32.gmra.mxu0 %v2673
      %v2839 = vpop.f32.mrf.mxu0
      %v2840 = vadd.f32 0.0, %v2839
      %v2841 = vpop.f32.mrf.mxu0
      %2842 = vmatprep.mubr.f32.mxu0 0.0
      %2843 = vmatmul.mubr.f32.gmra.mxu0 %v2676
      %v2844 = vpop.f32.mrf.mxu0
      %v2845 = vadd.f32 0.0, %v2844
      %v2846 = vpop.f32.mrf.mxu0
      %2847 = vmatprep.mubr.f32.mxu0 0.0
      %2848 = vmatmul.mubr.f32.gmra.mxu0 %v2679
      %v2849 = vpop.f32.mrf.mxu0
      %v2850 = vadd.f32 0.0, %v2849
      %v2851 = vpop.f32.mrf.mxu0
      %2852 = vmatprep.mubr.f32.mxu0 0.0
      %2853 = vmatmul.mubr.f32.gmra.mxu0 %v2682
      %v2854 = vpop.f32.mrf.mxu0
      %v2855 = vadd.f32 0.0, %v2854
      %v2856 = vpop.f32.mrf.mxu0
      %2857 = vdwg.mxu0
      %v2858 = vadd.f32 %v2638, %v2751
      %v2859 = vadd.f32 %v2638, %v2753
      %v2860 = vadd.f32 %v2638, %v2840
      %v2861 = vadd.f32 %v2643, %v2757
      %v2862 = vadd.f32 %v2643, %v2759
      %v2863 = vadd.f32 %v2643, %v2845
      %v2864 = vadd.f32 %v2648, %v2763
      %v2865 = vadd.f32 %v2648, %v2765
      %v2866 = vadd.f32 %v2648, %v2850
      %v2867 = vadd.f32 %v2653, %v2769
      %v2868 = vadd.f32 %v2653, %v2771
      %v2869 = vadd.f32 %v2653, %v2855
      %s2870 = scalar_lea.vmem %s4, 32
      %v2871 = vld [vmem:[%s2870] sm:$0xff]
      %v2872 = vld [vmem:[%s2870 + $0x8] sm:$0xff]
      %v2873 = vld [vmem:[%s2870 + $0x10] sm:$0xff]
      %v2874 = vld [vmem:[%s2870 + $0x18] sm:$0xff]
      %2887 = vrot.lane.b32.xlu0 %v2655, 127
      %v2888 = vpop.permute.xlu0 %2887
      %2889 = vrot.lane.b32.xlu0 %v2656, 127
      %v2890 = vpop.permute.xlu0 %2889
      %2891 = vrot.lane.b32.xlu0 %v2657, 127
      %v2892 = vpop.permute.xlu0 %2891
      %2893 = vrot.lane.b32.xlu0 %v2658, 127
      %v2894 = vpop.permute.xlu0 %2893
      %2895 = vrot.lane.b32.xlu0 %v2659, 127
      %v2896 = vpop.permute.xlu0 %2895
      %2897 = vrot.lane.b32.xlu0 %v2660, 127
      %v2898 = vpop.permute.xlu0 %2897
      %2899 = vrot.lane.b32.xlu0 %v2661, 127
      %v2900 = vpop.permute.xlu0 %2899
      %2901 = vrot.lane.b32.xlu0 %v2662, 127
      %v2902 = vpop.permute.xlu0 %2901
      %2903 = vrot.lane.b32.xlu0 %v2663, 127
      %v2904 = vpop.permute.xlu0 %2903
      %2905 = vrot.lane.b32.xlu0 %v2664, 127
      %v2906 = vpop.permute.xlu0 %2905
      %2907 = vrot.lane.b32.xlu0 %v2665, 127
      %v2908 = vpop.permute.xlu0 %2907
      %2909 = vrot.lane.b32.xlu0 %v2666, 127
      %v2910 = vpop.permute.xlu0 %2909
      %v2911 = vsel %vm692, %v2888, %v2890
      %v2912 = vsel %vm692, %v2890, %v2892
      %v2913 = vsel %vm692, %v2894, %v2896
      %v2914 = vsel %vm692, %v2896, %v2898
      %v2915 = vsel %vm692, %v2900, %v2902
      %v2916 = vsel %vm692, %v2902, %v2904
      %v2917 = vsel %vm692, %v2906, %v2908
      %v2918 = vsel %vm692, %v2908, %v2910
      %v2932 = vsel %vm2671, %v2871, 0
      %v2935 = vsel %vm2671, %v2872, 0
      %v2938 = vsel %vm2671, %v2873, 0
      %v2941 = vsel %vm2671, %v2874, 0
      %2943 = vmatprep.subr.mxu0 0.0
      %2944 = vmatpush1.msra.mxu0 0.0
      %2945 = vmatprep.subr.mxu0 0.0
      %2946 = vmatpush1.msra.mxu0 0.0
      %2947 = vmatprep.subr.mxu0 0.0
      %2948 = vmatpush1.msra.mxu0 0.0
      %2949 = vmatprep.subr.mxu0 0.0
      %2950 = vmatpush1.msra.mxu0 0.0
      %2951 = vmatprep.subr.mxu0 0.0
      %2952 = vmatpush1.msra.mxu0 0.0
      %2953 = vmatprep.subr.mxu0 0.0
      %2954 = vmatpush1.msra.mxu0 0.0
      %2955 = vmatprep.subr.mxu0 0.0
      %2956 = vmatpush1.msra.mxu0 0.0
      %2957 = vmatprep.subr.mxu0 0.0
      %2958 = vmatpush1.msra.mxu0 0.0
      %2959 = vmatprep.subr.mxu0 0.0
      %2960 = vmatpush1.msra.mxu0 0.0
      %2961 = vmatprep.subr.mxu0 0.0
      %2962 = vmatpush1.msra.mxu0 0.0
      %2963 = vmatprep.subr.mxu0 0.0
      %2964 = vmatpush1.msra.mxu0 0.0
      %2965 = vmatprep.subr.mxu0 0.0
      %2966 = vmatpush1.msra.mxu0 0.0
      %2967 = vmatprep.subr.mxu0 %v2918
      %2968 = vmatpush1.msra.mxu0 %v2917
      %2969 = vmatprep.subr.mxu0 %v2916
      %2970 = vmatpush1.msra.mxu0 %v2915
      %2971 = vmatprep.subr.mxu0 %v2914
      %2972 = vmatpush1.msra.mxu0 %v2913
      %2973 = vmatprep.subr.mxu0 %v2912
      %2974 = vmatpush1.msra.mxu0 %v2911
      %2975 = vmatprep.subr.mxu0 0.0
      %2976 = vmatpush2.msra.mxu0 0.0
      %2977 = vmatprep.subr.mxu0 0.0
      %2978 = vmatpush2.msra.mxu0 0.0
      %2979 = vmatprep.subr.mxu0 0.0
      %2980 = vmatpush2.msra.mxu0 0.0
      %2981 = vmatprep.subr.mxu0 0.0
      %2982 = vmatpush2.msra.mxu0 0.0
      %2983 = vmatprep.subr.mxu0 0.0
      %2984 = vmatpush2.msra.mxu0 0.0
      %2985 = vmatprep.subr.mxu0 0.0
      %2986 = vmatpush2.msra.mxu0 0.0
      %2987 = vmatprep.subr.mxu0 0.0
      %2988 = vmatpush2.msra.mxu0 0.0
      %2989 = vmatprep.subr.mxu0 0.0
      %2990 = vmatpush2.msra.mxu0 0.0
      %2991 = vmatprep.subr.mxu0 0.0
      %2992 = vmatpush2.msra.mxu0 0.0
      %2993 = vmatprep.subr.mxu0 0.0
      %2994 = vmatpush2.msra.mxu0 0.0
      %2995 = vmatprep.subr.mxu0 0.0
      %2996 = vmatpush2.msra.mxu0 0.0
      %2997 = vmatprep.subr.mxu0 0.0
      %2998 = vmatpush2.msra.mxu0 0.0
      %2999 = vmatprep.subr.mxu0 0.0
      %3000 = vmatpush2.msra.mxu0 0.0
      %3001 = vmatprep.subr.mxu0 0.0
      %3002 = vmatpush2.msra.mxu0 0.0
      %3003 = vmatprep.subr.mxu0 0.0
      %3004 = vmatpush2.msra.mxu0 0.0
      %3005 = vmatprep.subr.mxu0 0.0
      %3006 = vmatpush2.msra.mxu0 0.0
      %3007 = vmatprep.mubr.f32.mxu0 0.0
      %3008 = vmatmul.mubr.f32.gmra.mxu0 %v2932
      %v3009 = vpop.f32.mrf.mxu0
      %v3010 = vadd.f32 0.0, %v3009
      %v3011 = vpop.f32.mrf.mxu0
      %v3012 = vadd.f32 0.0, %v3011
      %3013 = vmatprep.mubr.f32.mxu0 0.0
      %3014 = vmatmul.mubr.f32.gmra.mxu0 %v2935
      %v3015 = vpop.f32.mrf.mxu0
      %v3016 = vadd.f32 0.0, %v3015
      %v3017 = vpop.f32.mrf.mxu0
      %v3018 = vadd.f32 0.0, %v3017
      %3019 = vmatprep.mubr.f32.mxu0 0.0
      %3020 = vmatmul.mubr.f32.gmra.mxu0 %v2938
      %v3021 = vpop.f32.mrf.mxu0
      %v3022 = vadd.f32 0.0, %v3021
      %v3023 = vpop.f32.mrf.mxu0
      %v3024 = vadd.f32 0.0, %v3023
      %3025 = vmatprep.mubr.f32.mxu0 0.0
      %3026 = vmatmul.mubr.f32.gmra.mxu0 %v2941
      %v3027 = vpop.f32.mrf.mxu0
      %v3028 = vadd.f32 0.0, %v3027
      %v3029 = vpop.f32.mrf.mxu0
      %v3030 = vadd.f32 0.0, %v3029
      %3031 = vdwg.mxu0
      %3032 = vmatprep.subr.mxu0 0.0
      %3033 = vmatpush1.msra.mxu0 0.0
      %3034 = vmatprep.subr.mxu0 0.0
      %3035 = vmatpush1.msra.mxu0 0.0
      %3036 = vmatprep.subr.mxu0 0.0
      %3037 = vmatpush1.msra.mxu0 0.0
      %3038 = vmatprep.subr.mxu0 0.0
      %3039 = vmatpush1.msra.mxu0 0.0
      %3040 = vmatprep.subr.mxu0 0.0
      %3041 = vmatpush1.msra.mxu0 0.0
      %3042 = vmatprep.subr.mxu0 0.0
      %3043 = vmatpush1.msra.mxu0 0.0
      %3044 = vmatprep.subr.mxu0 0.0
      %3045 = vmatpush1.msra.mxu0 0.0
      %3046 = vmatprep.subr.mxu0 0.0
      %3047 = vmatpush1.msra.mxu0 0.0
      %3048 = vmatprep.subr.mxu0 0.0
      %3049 = vmatpush1.msra.mxu0 0.0
      %3050 = vmatprep.subr.mxu0 0.0
      %3051 = vmatpush1.msra.mxu0 0.0
      %3052 = vmatprep.subr.mxu0 0.0
      %3053 = vmatpush1.msra.mxu0 0.0
      %3054 = vmatprep.subr.mxu0 0.0
      %3055 = vmatpush1.msra.mxu0 0.0
      %3056 = vmatprep.subr.mxu0 0.0
      %3057 = vmatpush1.msra.mxu0 %v2910
      %3058 = vmatprep.subr.mxu0 0.0
      %3059 = vmatpush1.msra.mxu0 %v2904
      %3060 = vmatprep.subr.mxu0 0.0
      %3061 = vmatpush1.msra.mxu0 %v2898
      %3062 = vmatprep.subr.mxu0 0.0
      %3063 = vmatpush1.msra.mxu0 %v2892
      %3064 = vmatprep.subr.mxu0 0.0
      %3065 = vmatpush2.msra.mxu0 0.0
      %3066 = vmatprep.subr.mxu0 0.0
      %3067 = vmatpush2.msra.mxu0 0.0
      %3068 = vmatprep.subr.mxu0 0.0
      %3069 = vmatpush2.msra.mxu0 0.0
      %3070 = vmatprep.subr.mxu0 0.0
      %3071 = vmatpush2.msra.mxu0 0.0
      %3072 = vmatprep.subr.mxu0 0.0
      %3073 = vmatpush2.msra.mxu0 0.0
      %3074 = vmatprep.subr.mxu0 0.0
      %3075 = vmatpush2.msra.mxu0 0.0
      %3076 = vmatprep.subr.mxu0 0.0
      %3077 = vmatpush2.msra.mxu0 0.0
      %3078 = vmatprep.subr.mxu0 0.0
      %3079 = vmatpush2.msra.mxu0 0.0
      %3080 = vmatprep.subr.mxu0 0.0
      %3081 = vmatpush2.msra.mxu0 0.0
      %3082 = vmatprep.subr.mxu0 0.0
      %3083 = vmatpush2.msra.mxu0 0.0
      %3084 = vmatprep.subr.mxu0 0.0
      %3085 = vmatpush2.msra.mxu0 0.0
      %3086 = vmatprep.subr.mxu0 0.0
      %3087 = vmatpush2.msra.mxu0 0.0
      %3088 = vmatprep.subr.mxu0 0.0
      %3089 = vmatpush2.msra.mxu0 0.0
      %3090 = vmatprep.subr.mxu0 0.0
      %3091 = vmatpush2.msra.mxu0 0.0
      %3092 = vmatprep.subr.mxu0 0.0
      %3093 = vmatpush2.msra.mxu0 0.0
      %3094 = vmatprep.subr.mxu0 0.0
      %3095 = vmatpush2.msra.mxu0 0.0
      %3096 = vmatprep.mubr.f32.mxu0 0.0
      %3097 = vmatmul.mubr.f32.gmra.mxu0 %v2932
      %v3098 = vpop.f32.mrf.mxu0
      %v3099 = vadd.f32 0.0, %v3098
      %v3100 = vpop.f32.mrf.mxu0
      %3101 = vmatprep.mubr.f32.mxu0 0.0
      %3102 = vmatmul.mubr.f32.gmra.mxu0 %v2935
      %v3103 = vpop.f32.mrf.mxu0
      %v3104 = vadd.f32 0.0, %v3103
      %v3105 = vpop.f32.mrf.mxu0
      %3106 = vmatprep.mubr.f32.mxu0 0.0
      %3107 = vmatmul.mubr.f32.gmra.mxu0 %v2938
      %v3108 = vpop.f32.mrf.mxu0
      %v3109 = vadd.f32 0.0, %v3108
      %v3110 = vpop.f32.mrf.mxu0
      %3111 = vmatprep.mubr.f32.mxu0 0.0
      %3112 = vmatmul.mubr.f32.gmra.mxu0 %v2941
      %v3113 = vpop.f32.mrf.mxu0
      %v3114 = vadd.f32 0.0, %v3113
      %v3115 = vpop.f32.mrf.mxu0
      %3116 = vdwg.mxu0
      %v3117 = vadd.f32 %v2858, %v3010
      %v3118 = vadd.f32 %v2859, %v3012
      %v3119 = vadd.f32 %v2860, %v3099
      %v3120 = vadd.f32 %v2861, %v3016
      %v3121 = vadd.f32 %v2862, %v3018
      %v3122 = vadd.f32 %v2863, %v3104
      %v3123 = vadd.f32 %v2864, %v3022
      %v3124 = vadd.f32 %v2865, %v3024
      %v3125 = vadd.f32 %v2866, %v3109
      %v3126 = vadd.f32 %v2867, %v3028
      %v3127 = vadd.f32 %v2868, %v3030
      %v3128 = vadd.f32 %v2869, %v3114
      %s3129 = scalar_lea.vmem %s4, 64
      %v3130 = vld [vmem:[%s3129] sm:$0xff]
      %v3131 = vld [vmem:[%s3129 + $0x8] sm:$0xff]
      %v3132 = vld [vmem:[%s3129 + $0x10] sm:$0xff]
      %v3133 = vld [vmem:[%s3129 + $0x18] sm:$0xff]
      %3134 = vrot.lane.b32.xlu0 %v2655, 126
      %v3135 = vpop.permute.xlu0 %3134
      %3136 = vrot.lane.b32.xlu0 %v2656, 126
      %v3137 = vpop.permute.xlu0 %3136
      %3138 = vrot.lane.b32.xlu0 %v2657, 126
      %v3139 = vpop.permute.xlu0 %3138
      %3140 = vrot.lane.b32.xlu0 %v2658, 126
      %v3141 = vpop.permute.xlu0 %3140
      %3142 = vrot.lane.b32.xlu0 %v2659, 126
      %v3143 = vpop.permute.xlu0 %3142
      %3144 = vrot.lane.b32.xlu0 %v2660, 126
      %v3145 = vpop.permute.xlu0 %3144
      %3146 = vrot.lane.b32.xlu0 %v2661, 126
      %v3147 = vpop.permute.xlu0 %3146
      %3148 = vrot.lane.b32.xlu0 %v2662, 126
      %v3149 = vpop.permute.xlu0 %3148
      %3150 = vrot.lane.b32.xlu0 %v2663, 126
      %v3151 = vpop.permute.xlu0 %3150
      %3152 = vrot.lane.b32.xlu0 %v2664, 126
      %v3153 = vpop.permute.xlu0 %3152
      %3154 = vrot.lane.b32.xlu0 %v2665, 126
      %v3155 = vpop.permute.xlu0 %3154
      %3156 = vrot.lane.b32.xlu0 %v2666, 126
      %v3157 = vpop.permute.xlu0 %3156
      %v3158 = vsel %vm915, %v3135, %v3137
      %v3159 = vsel %vm915, %v3137, %v3139
      %v3160 = vsel %vm915, %v3141, %v3143
      %v3161 = vsel %vm915, %v3143, %v3145
      %v3162 = vsel %vm915, %v3147, %v3149
      %v3163 = vsel %vm915, %v3149, %v3151
      %v3164 = vsel %vm915, %v3153, %v3155
      %v3165 = vsel %vm915, %v3155, %v3157
      %v3179 = vsel %vm2671, %v3130, 0
      %v3182 = vsel %vm2671, %v3131, 0
      %v3185 = vsel %vm2671, %v3132, 0
      %v3188 = vsel %vm2671, %v3133, 0
      %3190 = vmatprep.subr.mxu0 0.0
      %3191 = vmatpush1.msra.mxu0 0.0
      %3192 = vmatprep.subr.mxu0 0.0
      %3193 = vmatpush1.msra.mxu0 0.0
      %3194 = vmatprep.subr.mxu0 0.0
      %3195 = vmatpush1.msra.mxu0 0.0
      %3196 = vmatprep.subr.mxu0 0.0
      %3197 = vmatpush1.msra.mxu0 0.0
      %3198 = vmatprep.subr.mxu0 0.0
      %3199 = vmatpush1.msra.mxu0 0.0
      %3200 = vmatprep.subr.mxu0 0.0
      %3201 = vmatpush1.msra.mxu0 0.0
      %3202 = vmatprep.subr.mxu0 0.0
      %3203 = vmatpush1.msra.mxu0 0.0
      %3204 = vmatprep.subr.mxu0 0.0
      %3205 = vmatpush1.msra.mxu0 0.0
      %3206 = vmatprep.subr.mxu0 0.0
      %3207 = vmatpush1.msra.mxu0 0.0
      %3208 = vmatprep.subr.mxu0 0.0
      %3209 = vmatpush1.msra.mxu0 0.0
      %3210 = vmatprep.subr.mxu0 0.0
      %3211 = vmatpush1.msra.mxu0 0.0
      %3212 = vmatprep.subr.mxu0 0.0
      %3213 = vmatpush1.msra.mxu0 0.0
      %3214 = vmatprep.subr.mxu0 %v3165
      %3215 = vmatpush1.msra.mxu0 %v3164
      %3216 = vmatprep.subr.mxu0 %v3163
      %3217 = vmatpush1.msra.mxu0 %v3162
      %3218 = vmatprep.subr.mxu0 %v3161
      %3219 = vmatpush1.msra.mxu0 %v3160
      %3220 = vmatprep.subr.mxu0 %v3159
      %3221 = vmatpush1.msra.mxu0 %v3158
      %3222 = vmatprep.subr.mxu0 0.0
      %3223 = vmatpush2.msra.mxu0 0.0
      %3224 = vmatprep.subr.mxu0 0.0
      %3225 = vmatpush2.msra.mxu0 0.0
      %3226 = vmatprep.subr.mxu0 0.0
      %3227 = vmatpush2.msra.mxu0 0.0
      %3228 = vmatprep.subr.mxu0 0.0
      %3229 = vmatpush2.msra.mxu0 0.0
      %3230 = vmatprep.subr.mxu0 0.0
      %3231 = vmatpush2.msra.mxu0 0.0
      %3232 = vmatprep.subr.mxu0 0.0
      %3233 = vmatpush2.msra.mxu0 0.0
      %3234 = vmatprep.subr.mxu0 0.0
      %3235 = vmatpush2.msra.mxu0 0.0
      %3236 = vmatprep.subr.mxu0 0.0
      %3237 = vmatpush2.msra.mxu0 0.0
      %3238 = vmatprep.subr.mxu0 0.0
      %3239 = vmatpush2.msra.mxu0 0.0
      %3240 = vmatprep.subr.mxu0 0.0
      %3241 = vmatpush2.msra.mxu0 0.0
      %3242 = vmatprep.subr.mxu0 0.0
      %3243 = vmatpush2.msra.mxu0 0.0
      %3244 = vmatprep.subr.mxu0 0.0
      %3245 = vmatpush2.msra.mxu0 0.0
      %3246 = vmatprep.subr.mxu0 0.0
      %3247 = vmatpush2.msra.mxu0 0.0
      %3248 = vmatprep.subr.mxu0 0.0
      %3249 = vmatpush2.msra.mxu0 0.0
      %3250 = vmatprep.subr.mxu0 0.0
      %3251 = vmatpush2.msra.mxu0 0.0
      %3252 = vmatprep.subr.mxu0 0.0
      %3253 = vmatpush2.msra.mxu0 0.0
      %3254 = vmatprep.mubr.f32.mxu0 0.0
      %3255 = vmatmul.mubr.f32.gmra.mxu0 %v3179
      %v3256 = vpop.f32.mrf.mxu0
      %v3257 = vadd.f32 0.0, %v3256
      %v3258 = vpop.f32.mrf.mxu0
      %v3259 = vadd.f32 0.0, %v3258
      %3260 = vmatprep.mubr.f32.mxu0 0.0
      %3261 = vmatmul.mubr.f32.gmra.mxu0 %v3182
      %v3262 = vpop.f32.mrf.mxu0
      %v3263 = vadd.f32 0.0, %v3262
      %v3264 = vpop.f32.mrf.mxu0
      %v3265 = vadd.f32 0.0, %v3264
      %3266 = vmatprep.mubr.f32.mxu0 0.0
      %3267 = vmatmul.mubr.f32.gmra.mxu0 %v3185
      %v3268 = vpop.f32.mrf.mxu0
      %v3269 = vadd.f32 0.0, %v3268
      %v3270 = vpop.f32.mrf.mxu0
      %v3271 = vadd.f32 0.0, %v3270
      %3272 = vmatprep.mubr.f32.mxu0 0.0
      %3273 = vmatmul.mubr.f32.gmra.mxu0 %v3188
      %v3274 = vpop.f32.mrf.mxu0
      %v3275 = vadd.f32 0.0, %v3274
      %v3276 = vpop.f32.mrf.mxu0
      %v3277 = vadd.f32 0.0, %v3276
      %3278 = vdwg.mxu0
      %3279 = vmatprep.subr.mxu0 0.0
      %3280 = vmatpush1.msra.mxu0 0.0
      %3281 = vmatprep.subr.mxu0 0.0
      %3282 = vmatpush1.msra.mxu0 0.0
      %3283 = vmatprep.subr.mxu0 0.0
      %3284 = vmatpush1.msra.mxu0 0.0
      %3285 = vmatprep.subr.mxu0 0.0
      %3286 = vmatpush1.msra.mxu0 0.0
      %3287 = vmatprep.subr.mxu0 0.0
      %3288 = vmatpush1.msra.mxu0 0.0
      %3289 = vmatprep.subr.mxu0 0.0
      %3290 = vmatpush1.msra.mxu0 0.0
      %3291 = vmatprep.subr.mxu0 0.0
      %3292 = vmatpush1.msra.mxu0 0.0
      %3293 = vmatprep.subr.mxu0 0.0
      %3294 = vmatpush1.msra.mxu0 0.0
      %3295 = vmatprep.subr.mxu0 0.0
      %3296 = vmatpush1.msra.mxu0 0.0
      %3297 = vmatprep.subr.mxu0 0.0
      %3298 = vmatpush1.msra.mxu0 0.0
      %3299 = vmatprep.subr.mxu0 0.0
      %3300 = vmatpush1.msra.mxu0 0.0
      %3301 = vmatprep.subr.mxu0 0.0
      %3302 = vmatpush1.msra.mxu0 0.0
      %3303 = vmatprep.subr.mxu0 0.0
      %3304 = vmatpush1.msra.mxu0 %v3157
      %3305 = vmatprep.subr.mxu0 0.0
      %3306 = vmatpush1.msra.mxu0 %v3151
      %3307 = vmatprep.subr.mxu0 0.0
      %3308 = vmatpush1.msra.mxu0 %v3145
      %3309 = vmatprep.subr.mxu0 0.0
      %3310 = vmatpush1.msra.mxu0 %v3139
      %3311 = vmatprep.subr.mxu0 0.0
      %3312 = vmatpush2.msra.mxu0 0.0
      %3313 = vmatprep.subr.mxu0 0.0
      %3314 = vmatpush2.msra.mxu0 0.0
      %3315 = vmatprep.subr.mxu0 0.0
      %3316 = vmatpush2.msra.mxu0 0.0
      %3317 = vmatprep.subr.mxu0 0.0
      %3318 = vmatpush2.msra.mxu0 0.0
      %3319 = vmatprep.subr.mxu0 0.0
      %3320 = vmatpush2.msra.mxu0 0.0
      %3321 = vmatprep.subr.mxu0 0.0
      %3322 = vmatpush2.msra.mxu0 0.0
      %3323 = vmatprep.subr.mxu0 0.0
      %3324 = vmatpush2.msra.mxu0 0.0
      %3325 = vmatprep.subr.mxu0 0.0
      %3326 = vmatpush2.msra.mxu0 0.0
      %3327 = vmatprep.subr.mxu0 0.0
      %3328 = vmatpush2.msra.mxu0 0.0
      %3329 = vmatprep.subr.mxu0 0.0
      %3330 = vmatpush2.msra.mxu0 0.0
      %3331 = vmatprep.subr.mxu0 0.0
      %3332 = vmatpush2.msra.mxu0 0.0
      %3333 = vmatprep.subr.mxu0 0.0
      %3334 = vmatpush2.msra.mxu0 0.0
      %3335 = vmatprep.subr.mxu0 0.0
      %3336 = vmatpush2.msra.mxu0 0.0
      %3337 = vmatprep.subr.mxu0 0.0
      %3338 = vmatpush2.msra.mxu0 0.0
      %3339 = vmatprep.subr.mxu0 0.0
      %3340 = vmatpush2.msra.mxu0 0.0
      %3341 = vmatprep.subr.mxu0 0.0
      %3342 = vmatpush2.msra.mxu0 0.0
      %3343 = vmatprep.mubr.f32.mxu0 0.0
      %3344 = vmatmul.mubr.f32.gmra.mxu0 %v3179
      %v3345 = vpop.f32.mrf.mxu0
      %v3346 = vadd.f32 0.0, %v3345
      %v3347 = vpop.f32.mrf.mxu0
      %3348 = vmatprep.mubr.f32.mxu0 0.0
      %3349 = vmatmul.mubr.f32.gmra.mxu0 %v3182
      %v3350 = vpop.f32.mrf.mxu0
      %v3351 = vadd.f32 0.0, %v3350
      %v3352 = vpop.f32.mrf.mxu0
      %3353 = vmatprep.mubr.f32.mxu0 0.0
      %3354 = vmatmul.mubr.f32.gmra.mxu0 %v3185
      %v3355 = vpop.f32.mrf.mxu0
      %v3356 = vadd.f32 0.0, %v3355
      %v3357 = vpop.f32.mrf.mxu0
      %3358 = vmatprep.mubr.f32.mxu0 0.0
      %3359 = vmatmul.mubr.f32.gmra.mxu0 %v3188
      %v3360 = vpop.f32.mrf.mxu0
      %v3361 = vadd.f32 0.0, %v3360
      %v3362 = vpop.f32.mrf.mxu0
      %3363 = vdwg.mxu0
      %v3364 = vadd.f32 %v3117, %v3257
      %v3365 = vadd.f32 %v3118, %v3259
      %v3366 = vadd.f32 %v3119, %v3346
      %v3367 = vadd.f32 %v3120, %v3263
      %v3368 = vadd.f32 %v3121, %v3265
      %v3369 = vadd.f32 %v3122, %v3351
      %v3370 = vadd.f32 %v3123, %v3269
      %v3371 = vadd.f32 %v3124, %v3271
      %v3372 = vadd.f32 %v3125, %v3356
      %v3373 = vadd.f32 %v3126, %v3275
      %v3374 = vadd.f32 %v3127, %v3277
      %v3375 = vadd.f32 %v3128, %v3361
      %s3376 = scalar_lea.vmem %s4, 96
      %v3377 = vld [vmem:[%s3376] sm:$0xff]
      %v3378 = vld [vmem:[%s3376 + $0x8] sm:$0xff]
      %v3379 = vld [vmem:[%s3376 + $0x10] sm:$0xff]
      %v3380 = vld [vmem:[%s3376 + $0x18] sm:$0xff]
      %3381 = vrot.lane.b32.xlu0 %v2655, 110
      %v3382 = vpop.permute.xlu0 %3381
      %3383 = vrot.lane.b32.xlu0 %v2656, 110
      %v3384 = vpop.permute.xlu0 %3383
      %3385 = vrot.lane.b32.xlu0 %v2657, 110
      %v3386 = vpop.permute.xlu0 %3385
      %3387 = vrot.lane.b32.xlu0 %v2658, 110
      %v3388 = vpop.permute.xlu0 %3387
      %3389 = vrot.lane.b32.xlu0 %v2659, 110
      %v3390 = vpop.permute.xlu0 %3389
      %3391 = vrot.lane.b32.xlu0 %v2660, 110
      %v3392 = vpop.permute.xlu0 %3391
      %3393 = vrot.lane.b32.xlu0 %v2661, 110
      %v3394 = vpop.permute.xlu0 %3393
      %3395 = vrot.lane.b32.xlu0 %v2662, 110
      %v3396 = vpop.permute.xlu0 %3395
      %3397 = vrot.lane.b32.xlu0 %v2663, 110
      %v3398 = vpop.permute.xlu0 %3397
      %3399 = vrot.lane.b32.xlu0 %v2664, 110
      %v3400 = vpop.permute.xlu0 %3399
      %3401 = vrot.lane.b32.xlu0 %v2665, 110
      %v3402 = vpop.permute.xlu0 %3401
      %3403 = vrot.lane.b32.xlu0 %v2666, 110
      %v3404 = vpop.permute.xlu0 %3403
      %v3405 = vsel %vm1138, %v3382, %v3384
      %v3406 = vsel %vm1138, %v3384, %v3386
      %v3407 = vsel %vm1138, %v3388, %v3390
      %v3408 = vsel %vm1138, %v3390, %v3392
      %v3409 = vsel %vm1138, %v3394, %v3396
      %v3410 = vsel %vm1138, %v3396, %v3398
      %v3411 = vsel %vm1138, %v3400, %v3402
      %v3412 = vsel %vm1138, %v3402, %v3404
      %v3426 = vsel %vm2671, %v3377, 0
      %v3429 = vsel %vm2671, %v3378, 0
      %v3432 = vsel %vm2671, %v3379, 0
      %v3435 = vsel %vm2671, %v3380, 0
      %3437 = vmatprep.subr.mxu0 0.0
      %3438 = vmatpush1.msra.mxu0 0.0
      %3439 = vmatprep.subr.mxu0 0.0
      %3440 = vmatpush1.msra.mxu0 0.0
      %3441 = vmatprep.subr.mxu0 0.0
      %3442 = vmatpush1.msra.mxu0 0.0
      %3443 = vmatprep.subr.mxu0 0.0
      %3444 = vmatpush1.msra.mxu0 0.0
      %3445 = vmatprep.subr.mxu0 0.0
      %3446 = vmatpush1.msra.mxu0 0.0
      %3447 = vmatprep.subr.mxu0 0.0
      %3448 = vmatpush1.msra.mxu0 0.0
      %3449 = vmatprep.subr.mxu0 0.0
      %3450 = vmatpush1.msra.mxu0 0.0
      %3451 = vmatprep.subr.mxu0 0.0
      %3452 = vmatpush1.msra.mxu0 0.0
      %3453 = vmatprep.subr.mxu0 0.0
      %3454 = vmatpush1.msra.mxu0 0.0
      %3455 = vmatprep.subr.mxu0 0.0
      %3456 = vmatpush1.msra.mxu0 0.0
      %3457 = vmatprep.subr.mxu0 0.0
      %3458 = vmatpush1.msra.mxu0 0.0
      %3459 = vmatprep.subr.mxu0 0.0
      %3460 = vmatpush1.msra.mxu0 0.0
      %3461 = vmatprep.subr.mxu0 %v3412
      %3462 = vmatpush1.msra.mxu0 %v3411
      %3463 = vmatprep.subr.mxu0 %v3410
      %3464 = vmatpush1.msra.mxu0 %v3409
      %3465 = vmatprep.subr.mxu0 %v3408
      %3466 = vmatpush1.msra.mxu0 %v3407
      %3467 = vmatprep.subr.mxu0 %v3406
      %3468 = vmatpush1.msra.mxu0 %v3405
      %3469 = vmatprep.subr.mxu0 0.0
      %3470 = vmatpush2.msra.mxu0 0.0
      %3471 = vmatprep.subr.mxu0 0.0
      %3472 = vmatpush2.msra.mxu0 0.0
      %3473 = vmatprep.subr.mxu0 0.0
      %3474 = vmatpush2.msra.mxu0 0.0
      %3475 = vmatprep.subr.mxu0 0.0
      %3476 = vmatpush2.msra.mxu0 0.0
      %3477 = vmatprep.subr.mxu0 0.0
      %3478 = vmatpush2.msra.mxu0 0.0
      %3479 = vmatprep.subr.mxu0 0.0
      %3480 = vmatpush2.msra.mxu0 0.0
      %3481 = vmatprep.subr.mxu0 0.0
      %3482 = vmatpush2.msra.mxu0 0.0
      %3483 = vmatprep.subr.mxu0 0.0
      %3484 = vmatpush2.msra.mxu0 0.0
      %3485 = vmatprep.subr.mxu0 0.0
      %3486 = vmatpush2.msra.mxu0 0.0
      %3487 = vmatprep.subr.mxu0 0.0
      %3488 = vmatpush2.msra.mxu0 0.0
      %3489 = vmatprep.subr.mxu0 0.0
      %3490 = vmatpush2.msra.mxu0 0.0
      %3491 = vmatprep.subr.mxu0 0.0
      %3492 = vmatpush2.msra.mxu0 0.0
      %3493 = vmatprep.subr.mxu0 0.0
      %3494 = vmatpush2.msra.mxu0 0.0
      %3495 = vmatprep.subr.mxu0 0.0
      %3496 = vmatpush2.msra.mxu0 0.0
      %3497 = vmatprep.subr.mxu0 0.0
      %3498 = vmatpush2.msra.mxu0 0.0
      %3499 = vmatprep.subr.mxu0 0.0
      %3500 = vmatpush2.msra.mxu0 0.0
      %3501 = vmatprep.mubr.f32.mxu0 0.0
      %3502 = vmatmul.mubr.f32.gmra.mxu0 %v3426
      %v3503 = vpop.f32.mrf.mxu0
      %v3504 = vadd.f32 0.0, %v3503
      %v3505 = vpop.f32.mrf.mxu0
      %v3506 = vadd.f32 0.0, %v3505
      %3507 = vmatprep.mubr.f32.mxu0 0.0
      %3508 = vmatmul.mubr.f32.gmra.mxu0 %v3429
      %v3509 = vpop.f32.mrf.mxu0
      %v3510 = vadd.f32 0.0, %v3509
      %v3511 = vpop.f32.mrf.mxu0
      %v3512 = vadd.f32 0.0, %v3511
      %3513 = vmatprep.mubr.f32.mxu0 0.0
      %3514 = vmatmul.mubr.f32.gmra.mxu0 %v3432
      %v3515 = vpop.f32.mrf.mxu0
      %v3516 = vadd.f32 0.0, %v3515
      %v3517 = vpop.f32.mrf.mxu0
      %v3518 = vadd.f32 0.0, %v3517
      %3519 = vmatprep.mubr.f32.mxu0 0.0
      %3520 = vmatmul.mubr.f32.gmra.mxu0 %v3435
      %v3521 = vpop.f32.mrf.mxu0
      %v3522 = vadd.f32 0.0, %v3521
      %v3523 = vpop.f32.mrf.mxu0
      %v3524 = vadd.f32 0.0, %v3523
      %3525 = vdwg.mxu0
      %3526 = vmatprep.subr.mxu0 0.0
      %3527 = vmatpush1.msra.mxu0 0.0
      %3528 = vmatprep.subr.mxu0 0.0
      %3529 = vmatpush1.msra.mxu0 0.0
      %3530 = vmatprep.subr.mxu0 0.0
      %3531 = vmatpush1.msra.mxu0 0.0
      %3532 = vmatprep.subr.mxu0 0.0
      %3533 = vmatpush1.msra.mxu0 0.0
      %3534 = vmatprep.subr.mxu0 0.0
      %3535 = vmatpush1.msra.mxu0 0.0
      %3536 = vmatprep.subr.mxu0 0.0
      %3537 = vmatpush1.msra.mxu0 0.0
      %3538 = vmatprep.subr.mxu0 0.0
      %3539 = vmatpush1.msra.mxu0 0.0
      %3540 = vmatprep.subr.mxu0 0.0
      %3541 = vmatpush1.msra.mxu0 0.0
      %3542 = vmatprep.subr.mxu0 0.0
      %3543 = vmatpush1.msra.mxu0 0.0
      %3544 = vmatprep.subr.mxu0 0.0
      %3545 = vmatpush1.msra.mxu0 0.0
      %3546 = vmatprep.subr.mxu0 0.0
      %3547 = vmatpush1.msra.mxu0 0.0
      %3548 = vmatprep.subr.mxu0 0.0
      %3549 = vmatpush1.msra.mxu0 0.0
      %3550 = vmatprep.subr.mxu0 0.0
      %3551 = vmatpush1.msra.mxu0 %v3404
      %3552 = vmatprep.subr.mxu0 0.0
      %3553 = vmatpush1.msra.mxu0 %v3398
      %3554 = vmatprep.subr.mxu0 0.0
      %3555 = vmatpush1.msra.mxu0 %v3392
      %3556 = vmatprep.subr.mxu0 0.0
      %3557 = vmatpush1.msra.mxu0 %v3386
      %3558 = vmatprep.subr.mxu0 0.0
      %3559 = vmatpush2.msra.mxu0 0.0
      %3560 = vmatprep.subr.mxu0 0.0
      %3561 = vmatpush2.msra.mxu0 0.0
      %3562 = vmatprep.subr.mxu0 0.0
      %3563 = vmatpush2.msra.mxu0 0.0
      %3564 = vmatprep.subr.mxu0 0.0
      %3565 = vmatpush2.msra.mxu0 0.0
      %3566 = vmatprep.subr.mxu0 0.0
      %3567 = vmatpush2.msra.mxu0 0.0
      %3568 = vmatprep.subr.mxu0 0.0
      %3569 = vmatpush2.msra.mxu0 0.0
      %3570 = vmatprep.subr.mxu0 0.0
      %3571 = vmatpush2.msra.mxu0 0.0
      %3572 = vmatprep.subr.mxu0 0.0
      %3573 = vmatpush2.msra.mxu0 0.0
      %3574 = vmatprep.subr.mxu0 0.0
      %3575 = vmatpush2.msra.mxu0 0.0
      %3576 = vmatprep.subr.mxu0 0.0
      %3577 = vmatpush2.msra.mxu0 0.0
      %3578 = vmatprep.subr.mxu0 0.0
      %3579 = vmatpush2.msra.mxu0 0.0
      %3580 = vmatprep.subr.mxu0 0.0
      %3581 = vmatpush2.msra.mxu0 0.0
      %3582 = vmatprep.subr.mxu0 0.0
      %3583 = vmatpush2.msra.mxu0 0.0
      %3584 = vmatprep.subr.mxu0 0.0
      %3585 = vmatpush2.msra.mxu0 0.0
      %3586 = vmatprep.subr.mxu0 0.0
      %3587 = vmatpush2.msra.mxu0 0.0
      %3588 = vmatprep.subr.mxu0 0.0
      %3589 = vmatpush2.msra.mxu0 0.0
      %3590 = vmatprep.mubr.f32.mxu0 0.0
      %3591 = vmatmul.mubr.f32.gmra.mxu0 %v3426
      %v3592 = vpop.f32.mrf.mxu0
      %v3593 = vadd.f32 0.0, %v3592
      %v3594 = vpop.f32.mrf.mxu0
      %3595 = vmatprep.mubr.f32.mxu0 0.0
      %3596 = vmatmul.mubr.f32.gmra.mxu0 %v3429
      %v3597 = vpop.f32.mrf.mxu0
      %v3598 = vadd.f32 0.0, %v3597
      %v3599 = vpop.f32.mrf.mxu0
      %3600 = vmatprep.mubr.f32.mxu0 0.0
      %3601 = vmatmul.mubr.f32.gmra.mxu0 %v3432
      %v3602 = vpop.f32.mrf.mxu0
      %v3603 = vadd.f32 0.0, %v3602
      %v3604 = vpop.f32.mrf.mxu0
      %3605 = vmatprep.mubr.f32.mxu0 0.0
      %3606 = vmatmul.mubr.f32.gmra.mxu0 %v3435
      %v3607 = vpop.f32.mrf.mxu0
      %v3608 = vadd.f32 0.0, %v3607
      %v3609 = vpop.f32.mrf.mxu0
      %3610 = vdwg.mxu0
      %v3611 = vadd.f32 %v3364, %v3504
      %v3612 = vadd.f32 %v3365, %v3506
      %v3613 = vadd.f32 %v3366, %v3593
      %v3614 = vadd.f32 %v3367, %v3510
      %v3615 = vadd.f32 %v3368, %v3512
      %v3616 = vadd.f32 %v3369, %v3598
      %v3617 = vadd.f32 %v3370, %v3516
      %v3618 = vadd.f32 %v3371, %v3518
      %v3619 = vadd.f32 %v3372, %v3603
      %v3620 = vadd.f32 %v3373, %v3522
      %v3621 = vadd.f32 %v3374, %v3524
      %v3622 = vadd.f32 %v3375, %v3608
      %s3623 = scalar_lea.vmem %s4, 128
      %v3624 = vld [vmem:[%s3623] sm:$0xff]
      %v3625 = vld [vmem:[%s3623 + $0x8] sm:$0xff]
      %v3626 = vld [vmem:[%s3623 + $0x10] sm:$0xff]
      %v3627 = vld [vmem:[%s3623 + $0x18] sm:$0xff]
      %3628 = vrot.lane.b32.xlu0 %v2655, 109
      %v3629 = vpop.permute.xlu0 %3628
      %3630 = vrot.lane.b32.xlu0 %v2656, 109
      %v3631 = vpop.permute.xlu0 %3630
      %3632 = vrot.lane.b32.xlu0 %v2657, 109
      %v3633 = vpop.permute.xlu0 %3632
      %3634 = vrot.lane.b32.xlu0 %v2658, 109
      %v3635 = vpop.permute.xlu0 %3634
      %3636 = vrot.lane.b32.xlu0 %v2659, 109
      %v3637 = vpop.permute.xlu0 %3636
      %3638 = vrot.lane.b32.xlu0 %v2660, 109
      %v3639 = vpop.permute.xlu0 %3638
      %3640 = vrot.lane.b32.xlu0 %v2661, 109
      %v3641 = vpop.permute.xlu0 %3640
      %3642 = vrot.lane.b32.xlu0 %v2662, 109
      %v3643 = vpop.permute.xlu0 %3642
      %3644 = vrot.lane.b32.xlu0 %v2663, 109
      %v3645 = vpop.permute.xlu0 %3644
      %3646 = vrot.lane.b32.xlu0 %v2664, 109
      %v3647 = vpop.permute.xlu0 %3646
      %3648 = vrot.lane.b32.xlu0 %v2665, 109
      %v3649 = vpop.permute.xlu0 %3648
      %3650 = vrot.lane.b32.xlu0 %v2666, 109
      %v3651 = vpop.permute.xlu0 %3650
      %v3652 = vsel %vm1361, %v3629, %v3631
      %v3653 = vsel %vm1361, %v3631, %v3633
      %v3654 = vsel %vm1361, %v3635, %v3637
      %v3655 = vsel %vm1361, %v3637, %v3639
      %v3656 = vsel %vm1361, %v3641, %v3643
      %v3657 = vsel %vm1361, %v3643, %v3645
      %v3658 = vsel %vm1361, %v3647, %v3649
      %v3659 = vsel %vm1361, %v3649, %v3651
      %v3673 = vsel %vm2671, %v3624, 0
      %v3676 = vsel %vm2671, %v3625, 0
      %v3679 = vsel %vm2671, %v3626, 0
      %v3682 = vsel %vm2671, %v3627, 0
      %3684 = vmatprep.subr.mxu0 0.0
      %3685 = vmatpush1.msra.mxu0 0.0
      %3686 = vmatprep.subr.mxu0 0.0
      %3687 = vmatpush1.msra.mxu0 0.0
      %3688 = vmatprep.subr.mxu0 0.0
      %3689 = vmatpush1.msra.mxu0 0.0
      %3690 = vmatprep.subr.mxu0 0.0
      %3691 = vmatpush1.msra.mxu0 0.0
      %3692 = vmatprep.subr.mxu0 0.0
      %3693 = vmatpush1.msra.mxu0 0.0
      %3694 = vmatprep.subr.mxu0 0.0
      %3695 = vmatpush1.msra.mxu0 0.0
      %3696 = vmatprep.subr.mxu0 0.0
      %3697 = vmatpush1.msra.mxu0 0.0
      %3698 = vmatprep.subr.mxu0 0.0
      %3699 = vmatpush1.msra.mxu0 0.0
      %3700 = vmatprep.subr.mxu0 0.0
      %3701 = vmatpush1.msra.mxu0 0.0
      %3702 = vmatprep.subr.mxu0 0.0
      %3703 = vmatpush1.msra.mxu0 0.0
      %3704 = vmatprep.subr.mxu0 0.0
      %3705 = vmatpush1.msra.mxu0 0.0
      %3706 = vmatprep.subr.mxu0 0.0
      %3707 = vmatpush1.msra.mxu0 0.0
      %3708 = vmatprep.subr.mxu0 %v3659
      %3709 = vmatpush1.msra.mxu0 %v3658
      %3710 = vmatprep.subr.mxu0 %v3657
      %3711 = vmatpush1.msra.mxu0 %v3656
      %3712 = vmatprep.subr.mxu0 %v3655
      %3713 = vmatpush1.msra.mxu0 %v3654
      %3714 = vmatprep.subr.mxu0 %v3653
      %3715 = vmatpush1.msra.mxu0 %v3652
      %3716 = vmatprep.subr.mxu0 0.0
      %3717 = vmatpush2.msra.mxu0 0.0
      %3718 = vmatprep.subr.mxu0 0.0
      %3719 = vmatpush2.msra.mxu0 0.0
      %3720 = vmatprep.subr.mxu0 0.0
      %3721 = vmatpush2.msra.mxu0 0.0
      %3722 = vmatprep.subr.mxu0 0.0
      %3723 = vmatpush2.msra.mxu0 0.0
      %3724 = vmatprep.subr.mxu0 0.0
      %3725 = vmatpush2.msra.mxu0 0.0
      %3726 = vmatprep.subr.mxu0 0.0
      %3727 = vmatpush2.msra.mxu0 0.0
      %3728 = vmatprep.subr.mxu0 0.0
      %3729 = vmatpush2.msra.mxu0 0.0
      %3730 = vmatprep.subr.mxu0 0.0
      %3731 = vmatpush2.msra.mxu0 0.0
      %3732 = vmatprep.subr.mxu0 0.0
      %3733 = vmatpush2.msra.mxu0 0.0
      %3734 = vmatprep.subr.mxu0 0.0
      %3735 = vmatpush2.msra.mxu0 0.0
      %3736 = vmatprep.subr.mxu0 0.0
      %3737 = vmatpush2.msra.mxu0 0.0
      %3738 = vmatprep.subr.mxu0 0.0
      %3739 = vmatpush2.msra.mxu0 0.0
      %3740 = vmatprep.subr.mxu0 0.0
      %3741 = vmatpush2.msra.mxu0 0.0
      %3742 = vmatprep.subr.mxu0 0.0
      %3743 = vmatpush2.msra.mxu0 0.0
      %3744 = vmatprep.subr.mxu0 0.0
      %3745 = vmatpush2.msra.mxu0 0.0
      %3746 = vmatprep.subr.mxu0 0.0
      %3747 = vmatpush2.msra.mxu0 0.0
      %3748 = vmatprep.mubr.f32.mxu0 0.0
      %3749 = vmatmul.mubr.f32.gmra.mxu0 %v3673
      %v3750 = vpop.f32.mrf.mxu0
      %v3751 = vadd.f32 0.0, %v3750
      %v3752 = vpop.f32.mrf.mxu0
      %v3753 = vadd.f32 0.0, %v3752
      %3754 = vmatprep.mubr.f32.mxu0 0.0
      %3755 = vmatmul.mubr.f32.gmra.mxu0 %v3676
      %v3756 = vpop.f32.mrf.mxu0
      %v3757 = vadd.f32 0.0, %v3756
      %v3758 = vpop.f32.mrf.mxu0
      %v3759 = vadd.f32 0.0, %v3758
      %3760 = vmatprep.mubr.f32.mxu0 0.0
      %3761 = vmatmul.mubr.f32.gmra.mxu0 %v3679
      %v3762 = vpop.f32.mrf.mxu0
      %v3763 = vadd.f32 0.0, %v3762
      %v3764 = vpop.f32.mrf.mxu0
      %v3765 = vadd.f32 0.0, %v3764
      %3766 = vmatprep.mubr.f32.mxu0 0.0
      %3767 = vmatmul.mubr.f32.gmra.mxu0 %v3682
      %v3768 = vpop.f32.mrf.mxu0
      %v3769 = vadd.f32 0.0, %v3768
      %v3770 = vpop.f32.mrf.mxu0
      %v3771 = vadd.f32 0.0, %v3770
      %3772 = vdwg.mxu0
      %3773 = vmatprep.subr.mxu0 0.0
      %3774 = vmatpush1.msra.mxu0 0.0
      %3775 = vmatprep.subr.mxu0 0.0
      %3776 = vmatpush1.msra.mxu0 0.0
      %3777 = vmatprep.subr.mxu0 0.0
      %3778 = vmatpush1.msra.mxu0 0.0
      %3779 = vmatprep.subr.mxu0 0.0
      %3780 = vmatpush1.msra.mxu0 0.0
      %3781 = vmatprep.subr.mxu0 0.0
      %3782 = vmatpush1.msra.mxu0 0.0
      %3783 = vmatprep.subr.mxu0 0.0
      %3784 = vmatpush1.msra.mxu0 0.0
      %3785 = vmatprep.subr.mxu0 0.0
      %3786 = vmatpush1.msra.mxu0 0.0
      %3787 = vmatprep.subr.mxu0 0.0
      %3788 = vmatpush1.msra.mxu0 0.0
      %3789 = vmatprep.subr.mxu0 0.0
      %3790 = vmatpush1.msra.mxu0 0.0
      %3791 = vmatprep.subr.mxu0 0.0
      %3792 = vmatpush1.msra.mxu0 0.0
      %3793 = vmatprep.subr.mxu0 0.0
      %3794 = vmatpush1.msra.mxu0 0.0
      %3795 = vmatprep.subr.mxu0 0.0
      %3796 = vmatpush1.msra.mxu0 0.0
      %3797 = vmatprep.subr.mxu0 0.0
      %3798 = vmatpush1.msra.mxu0 %v3651
      %3799 = vmatprep.subr.mxu0 0.0
      %3800 = vmatpush1.msra.mxu0 %v3645
      %3801 = vmatprep.subr.mxu0 0.0
      %3802 = vmatpush1.msra.mxu0 %v3639
      %3803 = vmatprep.subr.mxu0 0.0
      %3804 = vmatpush1.msra.mxu0 %v3633
      %3805 = vmatprep.subr.mxu0 0.0
      %3806 = vmatpush2.msra.mxu0 0.0
      %3807 = vmatprep.subr.mxu0 0.0
      %3808 = vmatpush2.msra.mxu0 0.0
      %3809 = vmatprep.subr.mxu0 0.0
      %3810 = vmatpush2.msra.mxu0 0.0
      %3811 = vmatprep.subr.mxu0 0.0
      %3812 = vmatpush2.msra.mxu0 0.0
      %3813 = vmatprep.subr.mxu0 0.0
      %3814 = vmatpush2.msra.mxu0 0.0
      %3815 = vmatprep.subr.mxu0 0.0
      %3816 = vmatpush2.msra.mxu0 0.0
      %3817 = vmatprep.subr.mxu0 0.0
      %3818 = vmatpush2.msra.mxu0 0.0
      %3819 = vmatprep.subr.mxu0 0.0
      %3820 = vmatpush2.msra.mxu0 0.0
      %3821 = vmatprep.subr.mxu0 0.0
      %3822 = vmatpush2.msra.mxu0 0.0
      %3823 = vmatprep.subr.mxu0 0.0
      %3824 = vmatpush2.msra.mxu0 0.0
      %3825 = vmatprep.subr.mxu0 0.0
      %3826 = vmatpush2.msra.mxu0 0.0
      %3827 = vmatprep.subr.mxu0 0.0
      %3828 = vmatpush2.msra.mxu0 0.0
      %3829 = vmatprep.subr.mxu0 0.0
      %3830 = vmatpush2.msra.mxu0 0.0
      %3831 = vmatprep.subr.mxu0 0.0
      %3832 = vmatpush2.msra.mxu0 0.0
      %3833 = vmatprep.subr.mxu0 0.0
      %3834 = vmatpush2.msra.mxu0 0.0
      %3835 = vmatprep.subr.mxu0 0.0
      %3836 = vmatpush2.msra.mxu0 0.0
      %3837 = vmatprep.mubr.f32.mxu0 0.0
      %3838 = vmatmul.mubr.f32.gmra.mxu0 %v3673
      %v3839 = vpop.f32.mrf.mxu0
      %v3840 = vadd.f32 0.0, %v3839
      %v3841 = vpop.f32.mrf.mxu0
      %3842 = vmatprep.mubr.f32.mxu0 0.0
      %3843 = vmatmul.mubr.f32.gmra.mxu0 %v3676
      %v3844 = vpop.f32.mrf.mxu0
      %v3845 = vadd.f32 0.0, %v3844
      %v3846 = vpop.f32.mrf.mxu0
      %3847 = vmatprep.mubr.f32.mxu0 0.0
      %3848 = vmatmul.mubr.f32.gmra.mxu0 %v3679
      %v3849 = vpop.f32.mrf.mxu0
      %v3850 = vadd.f32 0.0, %v3849
      %v3851 = vpop.f32.mrf.mxu0
      %3852 = vmatprep.mubr.f32.mxu0 0.0
      %3853 = vmatmul.mubr.f32.gmra.mxu0 %v3682
      %v3854 = vpop.f32.mrf.mxu0
      %v3855 = vadd.f32 0.0, %v3854
      %v3856 = vpop.f32.mrf.mxu0
      %3857 = vdwg.mxu0
      %v3858 = vadd.f32 %v3611, %v3751
      %v3859 = vadd.f32 %v3612, %v3753
      %v3860 = vadd.f32 %v3613, %v3840
      %v3861 = vadd.f32 %v3614, %v3757
      %v3862 = vadd.f32 %v3615, %v3759
      %v3863 = vadd.f32 %v3616, %v3845
      %v3864 = vadd.f32 %v3617, %v3763
      %v3865 = vadd.f32 %v3618, %v3765
      %v3866 = vadd.f32 %v3619, %v3850
      %v3867 = vadd.f32 %v3620, %v3769
      %v3868 = vadd.f32 %v3621, %v3771
      %v3869 = vadd.f32 %v3622, %v3855
      %s3870 = scalar_lea.vmem %s4, 160
      %v3871 = vld [vmem:[%s3870] sm:$0xff]
      %v3872 = vld [vmem:[%s3870 + $0x8] sm:$0xff]
      %v3873 = vld [vmem:[%s3870 + $0x10] sm:$0xff]
      %v3874 = vld [vmem:[%s3870 + $0x18] sm:$0xff]
      %3875 = vrot.lane.b32.xlu0 %v2655, 108
      %v3876 = vpop.permute.xlu0 %3875
      %3877 = vrot.lane.b32.xlu0 %v2656, 108
      %v3878 = vpop.permute.xlu0 %3877
      %3879 = vrot.lane.b32.xlu0 %v2657, 108
      %v3880 = vpop.permute.xlu0 %3879
      %3881 = vrot.lane.b32.xlu0 %v2658, 108
      %v3882 = vpop.permute.xlu0 %3881
      %3883 = vrot.lane.b32.xlu0 %v2659, 108
      %v3884 = vpop.permute.xlu0 %3883
      %3885 = vrot.lane.b32.xlu0 %v2660, 108
      %v3886 = vpop.permute.xlu0 %3885
      %3887 = vrot.lane.b32.xlu0 %v2661, 108
      %v3888 = vpop.permute.xlu0 %3887
      %3889 = vrot.lane.b32.xlu0 %v2662, 108
      %v3890 = vpop.permute.xlu0 %3889
      %3891 = vrot.lane.b32.xlu0 %v2663, 108
      %v3892 = vpop.permute.xlu0 %3891
      %3893 = vrot.lane.b32.xlu0 %v2664, 108
      %v3894 = vpop.permute.xlu0 %3893
      %3895 = vrot.lane.b32.xlu0 %v2665, 108
      %v3896 = vpop.permute.xlu0 %3895
      %3897 = vrot.lane.b32.xlu0 %v2666, 108
      %v3898 = vpop.permute.xlu0 %3897
      %v3899 = vsel %vm1584, %v3876, %v3878
      %v3900 = vsel %vm1584, %v3878, %v3880
      %v3901 = vsel %vm1584, %v3882, %v3884
      %v3902 = vsel %vm1584, %v3884, %v3886
      %v3903 = vsel %vm1584, %v3888, %v3890
      %v3904 = vsel %vm1584, %v3890, %v3892
      %v3905 = vsel %vm1584, %v3894, %v3896
      %v3906 = vsel %vm1584, %v3896, %v3898
      %v3920 = vsel %vm2671, %v3871, 0
      %v3923 = vsel %vm2671, %v3872, 0
      %v3926 = vsel %vm2671, %v3873, 0
      %v3929 = vsel %vm2671, %v3874, 0
      %3931 = vmatprep.subr.mxu0 0.0
      %3932 = vmatpush1.msra.mxu0 0.0
      %3933 = vmatprep.subr.mxu0 0.0
      %3934 = vmatpush1.msra.mxu0 0.0
      %3935 = vmatprep.subr.mxu0 0.0
      %3936 = vmatpush1.msra.mxu0 0.0
      %3937 = vmatprep.subr.mxu0 0.0
      %3938 = vmatpush1.msra.mxu0 0.0
      %3939 = vmatprep.subr.mxu0 0.0
      %3940 = vmatpush1.msra.mxu0 0.0
      %3941 = vmatprep.subr.mxu0 0.0
      %3942 = vmatpush1.msra.mxu0 0.0
      %3943 = vmatprep.subr.mxu0 0.0
      %3944 = vmatpush1.msra.mxu0 0.0
      %3945 = vmatprep.subr.mxu0 0.0
      %3946 = vmatpush1.msra.mxu0 0.0
      %3947 = vmatprep.subr.mxu0 0.0
      %3948 = vmatpush1.msra.mxu0 0.0
      %3949 = vmatprep.subr.mxu0 0.0
      %3950 = vmatpush1.msra.mxu0 0.0
      %3951 = vmatprep.subr.mxu0 0.0
      %3952 = vmatpush1.msra.mxu0 0.0
      %3953 = vmatprep.subr.mxu0 0.0
      %3954 = vmatpush1.msra.mxu0 0.0
      %3955 = vmatprep.subr.mxu0 %v3906
      %3956 = vmatpush1.msra.mxu0 %v3905
      %3957 = vmatprep.subr.mxu0 %v3904
      %3958 = vmatpush1.msra.mxu0 %v3903
      %3959 = vmatprep.subr.mxu0 %v3902
      %3960 = vmatpush1.msra.mxu0 %v3901
      %3961 = vmatprep.subr.mxu0 %v3900
      %3962 = vmatpush1.msra.mxu0 %v3899
      %3963 = vmatprep.subr.mxu0 0.0
      %3964 = vmatpush2.msra.mxu0 0.0
      %3965 = vmatprep.subr.mxu0 0.0
      %3966 = vmatpush2.msra.mxu0 0.0
      %3967 = vmatprep.subr.mxu0 0.0
      %3968 = vmatpush2.msra.mxu0 0.0
      %3969 = vmatprep.subr.mxu0 0.0
      %3970 = vmatpush2.msra.mxu0 0.0
      %3971 = vmatprep.subr.mxu0 0.0
      %3972 = vmatpush2.msra.mxu0 0.0
      %3973 = vmatprep.subr.mxu0 0.0
      %3974 = vmatpush2.msra.mxu0 0.0
      %3975 = vmatprep.subr.mxu0 0.0
      %3976 = vmatpush2.msra.mxu0 0.0
      %3977 = vmatprep.subr.mxu0 0.0
      %3978 = vmatpush2.msra.mxu0 0.0
      %3979 = vmatprep.subr.mxu0 0.0
      %3980 = vmatpush2.msra.mxu0 0.0
      %3981 = vmatprep.subr.mxu0 0.0
      %3982 = vmatpush2.msra.mxu0 0.0
      %3983 = vmatprep.subr.mxu0 0.0
      %3984 = vmatpush2.msra.mxu0 0.0
      %3985 = vmatprep.subr.mxu0 0.0
      %3986 = vmatpush2.msra.mxu0 0.0
      %3987 = vmatprep.subr.mxu0 0.0
      %3988 = vmatpush2.msra.mxu0 0.0
      %3989 = vmatprep.subr.mxu0 0.0
      %3990 = vmatpush2.msra.mxu0 0.0
      %3991 = vmatprep.subr.mxu0 0.0
      %3992 = vmatpush2.msra.mxu0 0.0
      %3993 = vmatprep.subr.mxu0 0.0
      %3994 = vmatpush2.msra.mxu0 0.0
      %3995 = vmatprep.mubr.f32.mxu0 0.0
      %3996 = vmatmul.mubr.f32.gmra.mxu0 %v3920
      %v3997 = vpop.f32.mrf.mxu0
      %v3998 = vadd.f32 0.0, %v3997
      %v3999 = vpop.f32.mrf.mxu0
      %v4000 = vadd.f32 0.0, %v3999
      %4001 = vmatprep.mubr.f32.mxu0 0.0
      %4002 = vmatmul.mubr.f32.gmra.mxu0 %v3923
      %v4003 = vpop.f32.mrf.mxu0
      %v4004 = vadd.f32 0.0, %v4003
      %v4005 = vpop.f32.mrf.mxu0
      %v4006 = vadd.f32 0.0, %v4005
      %4007 = vmatprep.mubr.f32.mxu0 0.0
      %4008 = vmatmul.mubr.f32.gmra.mxu0 %v3926
      %v4009 = vpop.f32.mrf.mxu0
      %v4010 = vadd.f32 0.0, %v4009
      %v4011 = vpop.f32.mrf.mxu0
      %v4012 = vadd.f32 0.0, %v4011
      %4013 = vmatprep.mubr.f32.mxu0 0.0
      %4014 = vmatmul.mubr.f32.gmra.mxu0 %v3929
      %v4015 = vpop.f32.mrf.mxu0
      %v4016 = vadd.f32 0.0, %v4015
      %v4017 = vpop.f32.mrf.mxu0
      %v4018 = vadd.f32 0.0, %v4017
      %4019 = vdwg.mxu0
      %4020 = vmatprep.subr.mxu0 0.0
      %4021 = vmatpush1.msra.mxu0 0.0
      %4022 = vmatprep.subr.mxu0 0.0
      %4023 = vmatpush1.msra.mxu0 0.0
      %4024 = vmatprep.subr.mxu0 0.0
      %4025 = vmatpush1.msra.mxu0 0.0
      %4026 = vmatprep.subr.mxu0 0.0
      %4027 = vmatpush1.msra.mxu0 0.0
      %4028 = vmatprep.subr.mxu0 0.0
      %4029 = vmatpush1.msra.mxu0 0.0
      %4030 = vmatprep.subr.mxu0 0.0
      %4031 = vmatpush1.msra.mxu0 0.0
      %4032 = vmatprep.subr.mxu0 0.0
      %4033 = vmatpush1.msra.mxu0 0.0
      %4034 = vmatprep.subr.mxu0 0.0
      %4035 = vmatpush1.msra.mxu0 0.0
      %4036 = vmatprep.subr.mxu0 0.0
      %4037 = vmatpush1.msra.mxu0 0.0
      %4038 = vmatprep.subr.mxu0 0.0
      %4039 = vmatpush1.msra.mxu0 0.0
      %4040 = vmatprep.subr.mxu0 0.0
      %4041 = vmatpush1.msra.mxu0 0.0
      %4042 = vmatprep.subr.mxu0 0.0
      %4043 = vmatpush1.msra.mxu0 0.0
      %4044 = vmatprep.subr.mxu0 0.0
      %4045 = vmatpush1.msra.mxu0 %v3898
      %4046 = vmatprep.subr.mxu0 0.0
      %4047 = vmatpush1.msra.mxu0 %v3892
      %4048 = vmatprep.subr.mxu0 0.0
      %4049 = vmatpush1.msra.mxu0 %v3886
      %4050 = vmatprep.subr.mxu0 0.0
      %4051 = vmatpush1.msra.mxu0 %v3880
      %4052 = vmatprep.subr.mxu0 0.0
      %4053 = vmatpush2.msra.mxu0 0.0
      %4054 = vmatprep.subr.mxu0 0.0
      %4055 = vmatpush2.msra.mxu0 0.0
      %4056 = vmatprep.subr.mxu0 0.0
      %4057 = vmatpush2.msra.mxu0 0.0
      %4058 = vmatprep.subr.mxu0 0.0
      %4059 = vmatpush2.msra.mxu0 0.0
      %4060 = vmatprep.subr.mxu0 0.0
      %4061 = vmatpush2.msra.mxu0 0.0
      %4062 = vmatprep.subr.mxu0 0.0
      %4063 = vmatpush2.msra.mxu0 0.0
      %4064 = vmatprep.subr.mxu0 0.0
      %4065 = vmatpush2.msra.mxu0 0.0
      %4066 = vmatprep.subr.mxu0 0.0
      %4067 = vmatpush2.msra.mxu0 0.0
      %4068 = vmatprep.subr.mxu0 0.0
      %4069 = vmatpush2.msra.mxu0 0.0
      %4070 = vmatprep.subr.mxu0 0.0
      %4071 = vmatpush2.msra.mxu0 0.0
      %4072 = vmatprep.subr.mxu0 0.0
      %4073 = vmatpush2.msra.mxu0 0.0
      %4074 = vmatprep.subr.mxu0 0.0
      %4075 = vmatpush2.msra.mxu0 0.0
      %4076 = vmatprep.subr.mxu0 0.0
      %4077 = vmatpush2.msra.mxu0 0.0
      %4078 = vmatprep.subr.mxu0 0.0
      %4079 = vmatpush2.msra.mxu0 0.0
      %4080 = vmatprep.subr.mxu0 0.0
      %4081 = vmatpush2.msra.mxu0 0.0
      %4082 = vmatprep.subr.mxu0 0.0
      %4083 = vmatpush2.msra.mxu0 0.0
      %4084 = vmatprep.mubr.f32.mxu0 0.0
      %4085 = vmatmul.mubr.f32.gmra.mxu0 %v3920
      %v4086 = vpop.f32.mrf.mxu0
      %v4087 = vadd.f32 0.0, %v4086
      %v4088 = vpop.f32.mrf.mxu0
      %4089 = vmatprep.mubr.f32.mxu0 0.0
      %4090 = vmatmul.mubr.f32.gmra.mxu0 %v3923
      %v4091 = vpop.f32.mrf.mxu0
      %v4092 = vadd.f32 0.0, %v4091
      %v4093 = vpop.f32.mrf.mxu0
      %4094 = vmatprep.mubr.f32.mxu0 0.0
      %4095 = vmatmul.mubr.f32.gmra.mxu0 %v3926
      %v4096 = vpop.f32.mrf.mxu0
      %v4097 = vadd.f32 0.0, %v4096
      %v4098 = vpop.f32.mrf.mxu0
      %4099 = vmatprep.mubr.f32.mxu0 0.0
      %4100 = vmatmul.mubr.f32.gmra.mxu0 %v3929
      %v4101 = vpop.f32.mrf.mxu0
      %v4102 = vadd.f32 0.0, %v4101
      %v4103 = vpop.f32.mrf.mxu0
      %4104 = vdwg.mxu0
      %v4105 = vadd.f32 %v3858, %v3998
      %v4106 = vadd.f32 %v3859, %v4000
      %v4107 = vadd.f32 %v3860, %v4087
      %v4108 = vadd.f32 %v3861, %v4004
      %v4109 = vadd.f32 %v3862, %v4006
      %v4110 = vadd.f32 %v3863, %v4092
      %v4111 = vadd.f32 %v3864, %v4010
      %v4112 = vadd.f32 %v3865, %v4012
      %v4113 = vadd.f32 %v3866, %v4097
      %v4114 = vadd.f32 %v3867, %v4016
      %v4115 = vadd.f32 %v3868, %v4018
      %v4116 = vadd.f32 %v3869, %v4102
      %s4117 = scalar_lea.vmem %s4, 192
      %v4118 = vld [vmem:[%s4117] sm:$0xff]
      %v4119 = vld [vmem:[%s4117 + $0x8] sm:$0xff]
      %v4120 = vld [vmem:[%s4117 + $0x10] sm:$0xff]
      %v4121 = vld [vmem:[%s4117 + $0x18] sm:$0xff]
      %4122 = vrot.lane.b32.xlu0 %v2655, 92
      %v4123 = vpop.permute.xlu0 %4122
      %4124 = vrot.lane.b32.xlu0 %v2656, 92
      %v4125 = vpop.permute.xlu0 %4124
      %4126 = vrot.lane.b32.xlu0 %v2657, 92
      %v4127 = vpop.permute.xlu0 %4126
      %4128 = vrot.lane.b32.xlu0 %v2658, 92
      %v4129 = vpop.permute.xlu0 %4128
      %4130 = vrot.lane.b32.xlu0 %v2659, 92
      %v4131 = vpop.permute.xlu0 %4130
      %4132 = vrot.lane.b32.xlu0 %v2660, 92
      %v4133 = vpop.permute.xlu0 %4132
      %4134 = vrot.lane.b32.xlu0 %v2661, 92
      %v4135 = vpop.permute.xlu0 %4134
      %4136 = vrot.lane.b32.xlu0 %v2662, 92
      %v4137 = vpop.permute.xlu0 %4136
      %4138 = vrot.lane.b32.xlu0 %v2663, 92
      %v4139 = vpop.permute.xlu0 %4138
      %4140 = vrot.lane.b32.xlu0 %v2664, 92
      %v4141 = vpop.permute.xlu0 %4140
      %4142 = vrot.lane.b32.xlu0 %v2665, 92
      %v4143 = vpop.permute.xlu0 %4142
      %4144 = vrot.lane.b32.xlu0 %v2666, 92
      %v4145 = vpop.permute.xlu0 %4144
      %v4146 = vsel %vm1807, %v4123, %v4125
      %v4147 = vsel %vm1807, %v4125, %v4127
      %v4148 = vsel %vm1807, %v4129, %v4131
      %v4149 = vsel %vm1807, %v4131, %v4133
      %v4150 = vsel %vm1807, %v4135, %v4137
      %v4151 = vsel %vm1807, %v4137, %v4139
      %v4152 = vsel %vm1807, %v4141, %v4143
      %v4153 = vsel %vm1807, %v4143, %v4145
      %v4167 = vsel %vm2671, %v4118, 0
      %v4170 = vsel %vm2671, %v4119, 0
      %v4173 = vsel %vm2671, %v4120, 0
      %v4176 = vsel %vm2671, %v4121, 0
      %4178 = vmatprep.subr.mxu0 0.0
      %4179 = vmatpush1.msra.mxu0 0.0
      %4180 = vmatprep.subr.mxu0 0.0
      %4181 = vmatpush1.msra.mxu0 0.0
      %4182 = vmatprep.subr.mxu0 0.0
      %4183 = vmatpush1.msra.mxu0 0.0
      %4184 = vmatprep.subr.mxu0 0.0
      %4185 = vmatpush1.msra.mxu0 0.0
      %4186 = vmatprep.subr.mxu0 0.0
      %4187 = vmatpush1.msra.mxu0 0.0
      %4188 = vmatprep.subr.mxu0 0.0
      %4189 = vmatpush1.msra.mxu0 0.0
      %4190 = vmatprep.subr.mxu0 0.0
      %4191 = vmatpush1.msra.mxu0 0.0
      %4192 = vmatprep.subr.mxu0 0.0
      %4193 = vmatpush1.msra.mxu0 0.0
      %4194 = vmatprep.subr.mxu0 0.0
      %4195 = vmatpush1.msra.mxu0 0.0
      %4196 = vmatprep.subr.mxu0 0.0
      %4197 = vmatpush1.msra.mxu0 0.0
      %4198 = vmatprep.subr.mxu0 0.0
      %4199 = vmatpush1.msra.mxu0 0.0
      %4200 = vmatprep.subr.mxu0 0.0
      %4201 = vmatpush1.msra.mxu0 0.0
      %4202 = vmatprep.subr.mxu0 %v4153
      %4203 = vmatpush1.msra.mxu0 %v4152
      %4204 = vmatprep.subr.mxu0 %v4151
      %4205 = vmatpush1.msra.mxu0 %v4150
      %4206 = vmatprep.subr.mxu0 %v4149
      %4207 = vmatpush1.msra.mxu0 %v4148
      %4208 = vmatprep.subr.mxu0 %v4147
      %4209 = vmatpush1.msra.mxu0 %v4146
      %4210 = vmatprep.subr.mxu0 0.0
      %4211 = vmatpush2.msra.mxu0 0.0
      %4212 = vmatprep.subr.mxu0 0.0
      %4213 = vmatpush2.msra.mxu0 0.0
      %4214 = vmatprep.subr.mxu0 0.0
      %4215 = vmatpush2.msra.mxu0 0.0
      %4216 = vmatprep.subr.mxu0 0.0
      %4217 = vmatpush2.msra.mxu0 0.0
      %4218 = vmatprep.subr.mxu0 0.0
      %4219 = vmatpush2.msra.mxu0 0.0
      %4220 = vmatprep.subr.mxu0 0.0
      %4221 = vmatpush2.msra.mxu0 0.0
      %4222 = vmatprep.subr.mxu0 0.0
      %4223 = vmatpush2.msra.mxu0 0.0
      %4224 = vmatprep.subr.mxu0 0.0
      %4225 = vmatpush2.msra.mxu0 0.0
      %4226 = vmatprep.subr.mxu0 0.0
      %4227 = vmatpush2.msra.mxu0 0.0
      %4228 = vmatprep.subr.mxu0 0.0
      %4229 = vmatpush2.msra.mxu0 0.0
      %4230 = vmatprep.subr.mxu0 0.0
      %4231 = vmatpush2.msra.mxu0 0.0
      %4232 = vmatprep.subr.mxu0 0.0
      %4233 = vmatpush2.msra.mxu0 0.0
      %4234 = vmatprep.subr.mxu0 0.0
      %4235 = vmatpush2.msra.mxu0 0.0
      %4236 = vmatprep.subr.mxu0 0.0
      %4237 = vmatpush2.msra.mxu0 0.0
      %4238 = vmatprep.subr.mxu0 0.0
      %4239 = vmatpush2.msra.mxu0 0.0
      %4240 = vmatprep.subr.mxu0 0.0
      %4241 = vmatpush2.msra.mxu0 0.0
      %4242 = vmatprep.mubr.f32.mxu0 0.0
      %4243 = vmatmul.mubr.f32.gmra.mxu0 %v4167
      %v4244 = vpop.f32.mrf.mxu0
      %v4245 = vadd.f32 0.0, %v4244
      %v4246 = vpop.f32.mrf.mxu0
      %v4247 = vadd.f32 0.0, %v4246
      %4248 = vmatprep.mubr.f32.mxu0 0.0
      %4249 = vmatmul.mubr.f32.gmra.mxu0 %v4170
      %v4250 = vpop.f32.mrf.mxu0
      %v4251 = vadd.f32 0.0, %v4250
      %v4252 = vpop.f32.mrf.mxu0
      %v4253 = vadd.f32 0.0, %v4252
      %4254 = vmatprep.mubr.f32.mxu0 0.0
      %4255 = vmatmul.mubr.f32.gmra.mxu0 %v4173
      %v4256 = vpop.f32.mrf.mxu0
      %v4257 = vadd.f32 0.0, %v4256
      %v4258 = vpop.f32.mrf.mxu0
      %v4259 = vadd.f32 0.0, %v4258
      %4260 = vmatprep.mubr.f32.mxu0 0.0
      %4261 = vmatmul.mubr.f32.gmra.mxu0 %v4176
      %v4262 = vpop.f32.mrf.mxu0
      %v4263 = vadd.f32 0.0, %v4262
      %v4264 = vpop.f32.mrf.mxu0
      %v4265 = vadd.f32 0.0, %v4264
      %4266 = vdwg.mxu0
      %4267 = vmatprep.subr.mxu0 0.0
      %4268 = vmatpush1.msra.mxu0 0.0
      %4269 = vmatprep.subr.mxu0 0.0
      %4270 = vmatpush1.msra.mxu0 0.0
      %4271 = vmatprep.subr.mxu0 0.0
      %4272 = vmatpush1.msra.mxu0 0.0
      %4273 = vmatprep.subr.mxu0 0.0
      %4274 = vmatpush1.msra.mxu0 0.0
      %4275 = vmatprep.subr.mxu0 0.0
      %4276 = vmatpush1.msra.mxu0 0.0
      %4277 = vmatprep.subr.mxu0 0.0
      %4278 = vmatpush1.msra.mxu0 0.0
      %4279 = vmatprep.subr.mxu0 0.0
      %4280 = vmatpush1.msra.mxu0 0.0
      %4281 = vmatprep.subr.mxu0 0.0
      %4282 = vmatpush1.msra.mxu0 0.0
      %4283 = vmatprep.subr.mxu0 0.0
      %4284 = vmatpush1.msra.mxu0 0.0
      %4285 = vmatprep.subr.mxu0 0.0
      %4286 = vmatpush1.msra.mxu0 0.0
      %4287 = vmatprep.subr.mxu0 0.0
      %4288 = vmatpush1.msra.mxu0 0.0
      %4289 = vmatprep.subr.mxu0 0.0
      %4290 = vmatpush1.msra.mxu0 0.0
      %4291 = vmatprep.subr.mxu0 0.0
      %4292 = vmatpush1.msra.mxu0 %v4145
      %4293 = vmatprep.subr.mxu0 0.0
      %4294 = vmatpush1.msra.mxu0 %v4139
      %4295 = vmatprep.subr.mxu0 0.0
      %4296 = vmatpush1.msra.mxu0 %v4133
      %4297 = vmatprep.subr.mxu0 0.0
      %4298 = vmatpush1.msra.mxu0 %v4127
      %4299 = vmatprep.subr.mxu0 0.0
      %4300 = vmatpush2.msra.mxu0 0.0
      %4301 = vmatprep.subr.mxu0 0.0
      %4302 = vmatpush2.msra.mxu0 0.0
      %4303 = vmatprep.subr.mxu0 0.0
      %4304 = vmatpush2.msra.mxu0 0.0
      %4305 = vmatprep.subr.mxu0 0.0
      %4306 = vmatpush2.msra.mxu0 0.0
      %4307 = vmatprep.subr.mxu0 0.0
      %4308 = vmatpush2.msra.mxu0 0.0
      %4309 = vmatprep.subr.mxu0 0.0
      %4310 = vmatpush2.msra.mxu0 0.0
      %4311 = vmatprep.subr.mxu0 0.0
      %4312 = vmatpush2.msra.mxu0 0.0
      %4313 = vmatprep.subr.mxu0 0.0
      %4314 = vmatpush2.msra.mxu0 0.0
      %4315 = vmatprep.subr.mxu0 0.0
      %4316 = vmatpush2.msra.mxu0 0.0
      %4317 = vmatprep.subr.mxu0 0.0
      %4318 = vmatpush2.msra.mxu0 0.0
      %4319 = vmatprep.subr.mxu0 0.0
      %4320 = vmatpush2.msra.mxu0 0.0
      %4321 = vmatprep.subr.mxu0 0.0
      %4322 = vmatpush2.msra.mxu0 0.0
      %4323 = vmatprep.subr.mxu0 0.0
      %4324 = vmatpush2.msra.mxu0 0.0
      %4325 = vmatprep.subr.mxu0 0.0
      %4326 = vmatpush2.msra.mxu0 0.0
      %4327 = vmatprep.subr.mxu0 0.0
      %4328 = vmatpush2.msra.mxu0 0.0
      %4329 = vmatprep.subr.mxu0 0.0
      %4330 = vmatpush2.msra.mxu0 0.0
      %4331 = vmatprep.mubr.f32.mxu0 0.0
      %4332 = vmatmul.mubr.f32.gmra.mxu0 %v4167
      %v4333 = vpop.f32.mrf.mxu0
      %v4334 = vadd.f32 0.0, %v4333
      %v4335 = vpop.f32.mrf.mxu0
      %4336 = vmatprep.mubr.f32.mxu0 0.0
      %4337 = vmatmul.mubr.f32.gmra.mxu0 %v4170
      %v4338 = vpop.f32.mrf.mxu0
      %v4339 = vadd.f32 0.0, %v4338
      %v4340 = vpop.f32.mrf.mxu0
      %4341 = vmatprep.mubr.f32.mxu0 0.0
      %4342 = vmatmul.mubr.f32.gmra.mxu0 %v4173
      %v4343 = vpop.f32.mrf.mxu0
      %v4344 = vadd.f32 0.0, %v4343
      %v4345 = vpop.f32.mrf.mxu0
      %4346 = vmatprep.mubr.f32.mxu0 0.0
      %4347 = vmatmul.mubr.f32.gmra.mxu0 %v4176
      %v4348 = vpop.f32.mrf.mxu0
      %v4349 = vadd.f32 0.0, %v4348
      %v4350 = vpop.f32.mrf.mxu0
      %4351 = vdwg.mxu0
      %v4352 = vadd.f32 %v4105, %v4245
      %v4353 = vadd.f32 %v4106, %v4247
      %v4354 = vadd.f32 %v4107, %v4334
      %v4355 = vadd.f32 %v4108, %v4251
      %v4356 = vadd.f32 %v4109, %v4253
      %v4357 = vadd.f32 %v4110, %v4339
      %v4358 = vadd.f32 %v4111, %v4257
      %v4359 = vadd.f32 %v4112, %v4259
      %v4360 = vadd.f32 %v4113, %v4344
      %v4361 = vadd.f32 %v4114, %v4263
      %v4362 = vadd.f32 %v4115, %v4265
      %v4363 = vadd.f32 %v4116, %v4349
      %s4364 = scalar_lea.vmem %s4, 224
      %v4365 = vld [vmem:[%s4364] sm:$0xff]
      %v4366 = vld [vmem:[%s4364 + $0x8] sm:$0xff]
      %v4367 = vld [vmem:[%s4364 + $0x10] sm:$0xff]
      %v4368 = vld [vmem:[%s4364 + $0x18] sm:$0xff]
      %4369 = vrot.lane.b32.xlu0 %v2655, 91
      %v4370 = vpop.permute.xlu0 %4369
      %4371 = vrot.lane.b32.xlu0 %v2656, 91
      %v4372 = vpop.permute.xlu0 %4371
      %4373 = vrot.lane.b32.xlu0 %v2657, 91
      %v4374 = vpop.permute.xlu0 %4373
      %4375 = vrot.lane.b32.xlu0 %v2658, 91
      %v4376 = vpop.permute.xlu0 %4375
      %4377 = vrot.lane.b32.xlu0 %v2659, 91
      %v4378 = vpop.permute.xlu0 %4377
      %4379 = vrot.lane.b32.xlu0 %v2660, 91
      %v4380 = vpop.permute.xlu0 %4379
      %4381 = vrot.lane.b32.xlu0 %v2661, 91
      %v4382 = vpop.permute.xlu0 %4381
      %4383 = vrot.lane.b32.xlu0 %v2662, 91
      %v4384 = vpop.permute.xlu0 %4383
      %4385 = vrot.lane.b32.xlu0 %v2663, 91
      %v4386 = vpop.permute.xlu0 %4385
      %4387 = vrot.lane.b32.xlu0 %v2664, 91
      %v4388 = vpop.permute.xlu0 %4387
      %4389 = vrot.lane.b32.xlu0 %v2665, 91
      %v4390 = vpop.permute.xlu0 %4389
      %4391 = vrot.lane.b32.xlu0 %v2666, 91
      %v4392 = vpop.permute.xlu0 %4391
      %v4393 = vsel %vm2030, %v4370, %v4372
      %v4394 = vsel %vm2030, %v4372, %v4374
      %v4395 = vsel %vm2030, %v4376, %v4378
      %v4396 = vsel %vm2030, %v4378, %v4380
      %v4397 = vsel %vm2030, %v4382, %v4384
      %v4398 = vsel %vm2030, %v4384, %v4386
      %v4399 = vsel %vm2030, %v4388, %v4390
      %v4400 = vsel %vm2030, %v4390, %v4392
      %v4414 = vsel %vm2671, %v4365, 0
      %v4417 = vsel %vm2671, %v4366, 0
      %v4420 = vsel %vm2671, %v4367, 0
      %v4423 = vsel %vm2671, %v4368, 0
      %4425 = vmatprep.subr.mxu0 0.0
      %4426 = vmatpush1.msra.mxu0 0.0
      %4427 = vmatprep.subr.mxu0 0.0
      %4428 = vmatpush1.msra.mxu0 0.0
      %4429 = vmatprep.subr.mxu0 0.0
      %4430 = vmatpush1.msra.mxu0 0.0
      %4431 = vmatprep.subr.mxu0 0.0
      %4432 = vmatpush1.msra.mxu0 0.0
      %4433 = vmatprep.subr.mxu0 0.0
      %4434 = vmatpush1.msra.mxu0 0.0
      %4435 = vmatprep.subr.mxu0 0.0
      %4436 = vmatpush1.msra.mxu0 0.0
      %4437 = vmatprep.subr.mxu0 0.0
      %4438 = vmatpush1.msra.mxu0 0.0
      %4439 = vmatprep.subr.mxu0 0.0
      %4440 = vmatpush1.msra.mxu0 0.0
      %4441 = vmatprep.subr.mxu0 0.0
      %4442 = vmatpush1.msra.mxu0 0.0
      %4443 = vmatprep.subr.mxu0 0.0
      %4444 = vmatpush1.msra.mxu0 0.0
      %4445 = vmatprep.subr.mxu0 0.0
      %4446 = vmatpush1.msra.mxu0 0.0
      %4447 = vmatprep.subr.mxu0 0.0
      %4448 = vmatpush1.msra.mxu0 0.0
      %4449 = vmatprep.subr.mxu0 %v4400
      %4450 = vmatpush1.msra.mxu0 %v4399
      %4451 = vmatprep.subr.mxu0 %v4398
      %4452 = vmatpush1.msra.mxu0 %v4397
      %4453 = vmatprep.subr.mxu0 %v4396
      %4454 = vmatpush1.msra.mxu0 %v4395
      %4455 = vmatprep.subr.mxu0 %v4394
      %4456 = vmatpush1.msra.mxu0 %v4393
      %4457 = vmatprep.subr.mxu0 0.0
      %4458 = vmatpush2.msra.mxu0 0.0
      %4459 = vmatprep.subr.mxu0 0.0
      %4460 = vmatpush2.msra.mxu0 0.0
      %4461 = vmatprep.subr.mxu0 0.0
      %4462 = vmatpush2.msra.mxu0 0.0
      %4463 = vmatprep.subr.mxu0 0.0
      %4464 = vmatpush2.msra.mxu0 0.0
      %4465 = vmatprep.subr.mxu0 0.0
      %4466 = vmatpush2.msra.mxu0 0.0
      %4467 = vmatprep.subr.mxu0 0.0
      %4468 = vmatpush2.msra.mxu0 0.0
      %4469 = vmatprep.subr.mxu0 0.0
      %4470 = vmatpush2.msra.mxu0 0.0
      %4471 = vmatprep.subr.mxu0 0.0
      %4472 = vmatpush2.msra.mxu0 0.0
      %4473 = vmatprep.subr.mxu0 0.0
      %4474 = vmatpush2.msra.mxu0 0.0
      %4475 = vmatprep.subr.mxu0 0.0
      %4476 = vmatpush2.msra.mxu0 0.0
      %4477 = vmatprep.subr.mxu0 0.0
      %4478 = vmatpush2.msra.mxu0 0.0
      %4479 = vmatprep.subr.mxu0 0.0
      %4480 = vmatpush2.msra.mxu0 0.0
      %4481 = vmatprep.subr.mxu0 0.0
      %4482 = vmatpush2.msra.mxu0 0.0
      %4483 = vmatprep.subr.mxu0 0.0
      %4484 = vmatpush2.msra.mxu0 0.0
      %4485 = vmatprep.subr.mxu0 0.0
      %4486 = vmatpush2.msra.mxu0 0.0
      %4487 = vmatprep.subr.mxu0 0.0
      %4488 = vmatpush2.msra.mxu0 0.0
      %4489 = vmatprep.mubr.f32.mxu0 0.0
      %4490 = vmatmul.mubr.f32.gmra.mxu0 %v4414
      %v4491 = vpop.f32.mrf.mxu0
      %v4492 = vadd.f32 0.0, %v4491
      %v4493 = vpop.f32.mrf.mxu0
      %v4494 = vadd.f32 0.0, %v4493
      %4495 = vmatprep.mubr.f32.mxu0 0.0
      %4496 = vmatmul.mubr.f32.gmra.mxu0 %v4417
      %v4497 = vpop.f32.mrf.mxu0
      %v4498 = vadd.f32 0.0, %v4497
      %v4499 = vpop.f32.mrf.mxu0
      %v4500 = vadd.f32 0.0, %v4499
      %4501 = vmatprep.mubr.f32.mxu0 0.0
      %4502 = vmatmul.mubr.f32.gmra.mxu0 %v4420
      %v4503 = vpop.f32.mrf.mxu0
      %v4504 = vadd.f32 0.0, %v4503
      %v4505 = vpop.f32.mrf.mxu0
      %v4506 = vadd.f32 0.0, %v4505
      %4507 = vmatprep.mubr.f32.mxu0 0.0
      %4508 = vmatmul.mubr.f32.gmra.mxu0 %v4423
      %v4509 = vpop.f32.mrf.mxu0
      %v4510 = vadd.f32 0.0, %v4509
      %v4511 = vpop.f32.mrf.mxu0
      %v4512 = vadd.f32 0.0, %v4511
      %4513 = vdwg.mxu0
      %4514 = vmatprep.subr.mxu0 0.0
      %4515 = vmatpush1.msra.mxu0 0.0
      %4516 = vmatprep.subr.mxu0 0.0
      %4517 = vmatpush1.msra.mxu0 0.0
      %4518 = vmatprep.subr.mxu0 0.0
      %4519 = vmatpush1.msra.mxu0 0.0
      %4520 = vmatprep.subr.mxu0 0.0
      %4521 = vmatpush1.msra.mxu0 0.0
      %4522 = vmatprep.subr.mxu0 0.0
      %4523 = vmatpush1.msra.mxu0 0.0
      %4524 = vmatprep.subr.mxu0 0.0
      %4525 = vmatpush1.msra.mxu0 0.0
      %4526 = vmatprep.subr.mxu0 0.0
      %4527 = vmatpush1.msra.mxu0 0.0
      %4528 = vmatprep.subr.mxu0 0.0
      %4529 = vmatpush1.msra.mxu0 0.0
      %4530 = vmatprep.subr.mxu0 0.0
      %4531 = vmatpush1.msra.mxu0 0.0
      %4532 = vmatprep.subr.mxu0 0.0
      %4533 = vmatpush1.msra.mxu0 0.0
      %4534 = vmatprep.subr.mxu0 0.0
      %4535 = vmatpush1.msra.mxu0 0.0
      %4536 = vmatprep.subr.mxu0 0.0
      %4537 = vmatpush1.msra.mxu0 0.0
      %4538 = vmatprep.subr.mxu0 0.0
      %4539 = vmatpush1.msra.mxu0 %v4392
      %4540 = vmatprep.subr.mxu0 0.0
      %4541 = vmatpush1.msra.mxu0 %v4386
      %4542 = vmatprep.subr.mxu0 0.0
      %4543 = vmatpush1.msra.mxu0 %v4380
      %4544 = vmatprep.subr.mxu0 0.0
      %4545 = vmatpush1.msra.mxu0 %v4374
      %4546 = vmatprep.subr.mxu0 0.0
      %4547 = vmatpush2.msra.mxu0 0.0
      %4548 = vmatprep.subr.mxu0 0.0
      %4549 = vmatpush2.msra.mxu0 0.0
      %4550 = vmatprep.subr.mxu0 0.0
      %4551 = vmatpush2.msra.mxu0 0.0
      %4552 = vmatprep.subr.mxu0 0.0
      %4553 = vmatpush2.msra.mxu0 0.0
      %4554 = vmatprep.subr.mxu0 0.0
      %4555 = vmatpush2.msra.mxu0 0.0
      %4556 = vmatprep.subr.mxu0 0.0
      %4557 = vmatpush2.msra.mxu0 0.0
      %4558 = vmatprep.subr.mxu0 0.0
      %4559 = vmatpush2.msra.mxu0 0.0
      %4560 = vmatprep.subr.mxu0 0.0
      %4561 = vmatpush2.msra.mxu0 0.0
      %4562 = vmatprep.subr.mxu0 0.0
      %4563 = vmatpush2.msra.mxu0 0.0
      %4564 = vmatprep.subr.mxu0 0.0
      %4565 = vmatpush2.msra.mxu0 0.0
      %4566 = vmatprep.subr.mxu0 0.0
      %4567 = vmatpush2.msra.mxu0 0.0
      %4568 = vmatprep.subr.mxu0 0.0
      %4569 = vmatpush2.msra.mxu0 0.0
      %4570 = vmatprep.subr.mxu0 0.0
      %4571 = vmatpush2.msra.mxu0 0.0
      %4572 = vmatprep.subr.mxu0 0.0
      %4573 = vmatpush2.msra.mxu0 0.0
      %4574 = vmatprep.subr.mxu0 0.0
      %4575 = vmatpush2.msra.mxu0 0.0
      %4576 = vmatprep.subr.mxu0 0.0
      %4577 = vmatpush2.msra.mxu0 0.0
      %4578 = vmatprep.mubr.f32.mxu0 0.0
      %4579 = vmatmul.mubr.f32.gmra.mxu0 %v4414
      %v4580 = vpop.f32.mrf.mxu0
      %v4581 = vadd.f32 0.0, %v4580
      %v4582 = vpop.f32.mrf.mxu0
      %4583 = vmatprep.mubr.f32.mxu0 0.0
      %4584 = vmatmul.mubr.f32.gmra.mxu0 %v4417
      %v4585 = vpop.f32.mrf.mxu0
      %v4586 = vadd.f32 0.0, %v4585
      %v4587 = vpop.f32.mrf.mxu0
      %4588 = vmatprep.mubr.f32.mxu0 0.0
      %4589 = vmatmul.mubr.f32.gmra.mxu0 %v4420
      %v4590 = vpop.f32.mrf.mxu0
      %v4591 = vadd.f32 0.0, %v4590
      %v4592 = vpop.f32.mrf.mxu0
      %4593 = vmatprep.mubr.f32.mxu0 0.0
      %4594 = vmatmul.mubr.f32.gmra.mxu0 %v4423
      %v4595 = vpop.f32.mrf.mxu0
      %v4596 = vadd.f32 0.0, %v4595
      %v4597 = vpop.f32.mrf.mxu0
      %4598 = vdwg.mxu0
      %v4599 = vadd.f32 %v4352, %v4492
      %v4600 = vadd.f32 %v4353, %v4494
      %v4601 = vadd.f32 %v4354, %v4581
      %v4602 = vadd.f32 %v4355, %v4498
      %v4603 = vadd.f32 %v4356, %v4500
      %v4604 = vadd.f32 %v4357, %v4586
      %v4605 = vadd.f32 %v4358, %v4504
      %v4606 = vadd.f32 %v4359, %v4506
      %v4607 = vadd.f32 %v4360, %v4591
      %v4608 = vadd.f32 %v4361, %v4510
      %v4609 = vadd.f32 %v4362, %v4512
      %v4610 = vadd.f32 %v4363, %v4596
      %s4611 = scalar_lea.vmem %s4, 256
      %v4612 = vld [vmem:[%s4611] sm:$0xff]
      %v4613 = vld [vmem:[%s4611 + $0x8] sm:$0xff]
      %v4614 = vld [vmem:[%s4611 + $0x10] sm:$0xff]
      %v4615 = vld [vmem:[%s4611 + $0x18] sm:$0xff]
      %4616 = vrot.lane.b32.xlu0 %v2655, 90
      %v4617 = vpop.permute.xlu0 %4616
      %4618 = vrot.lane.b32.xlu0 %v2656, 90
      %v4619 = vpop.permute.xlu0 %4618
      %4620 = vrot.lane.b32.xlu0 %v2657, 90
      %v4621 = vpop.permute.xlu0 %4620
      %4622 = vrot.lane.b32.xlu0 %v2658, 90
      %v4623 = vpop.permute.xlu0 %4622
      %4624 = vrot.lane.b32.xlu0 %v2659, 90
      %v4625 = vpop.permute.xlu0 %4624
      %4626 = vrot.lane.b32.xlu0 %v2660, 90
      %v4627 = vpop.permute.xlu0 %4626
      %4628 = vrot.lane.b32.xlu0 %v2661, 90
      %v4629 = vpop.permute.xlu0 %4628
      %4630 = vrot.lane.b32.xlu0 %v2662, 90
      %v4631 = vpop.permute.xlu0 %4630
      %4632 = vrot.lane.b32.xlu0 %v2663, 90
      %v4633 = vpop.permute.xlu0 %4632
      %4634 = vrot.lane.b32.xlu0 %v2664, 90
      %v4635 = vpop.permute.xlu0 %4634
      %4636 = vrot.lane.b32.xlu0 %v2665, 90
      %v4637 = vpop.permute.xlu0 %4636
      %4638 = vrot.lane.b32.xlu0 %v2666, 90
      %v4639 = vpop.permute.xlu0 %4638
      %v4640 = vsel %vm2253, %v4617, %v4619
      %v4641 = vsel %vm2253, %v4619, %v4621
      %v4642 = vsel %vm2253, %v4623, %v4625
      %v4643 = vsel %vm2253, %v4625, %v4627
      %v4644 = vsel %vm2253, %v4629, %v4631
      %v4645 = vsel %vm2253, %v4631, %v4633
      %v4646 = vsel %vm2253, %v4635, %v4637
      %v4647 = vsel %vm2253, %v4637, %v4639
      %v4661 = vsel %vm2671, %v4612, 0
      %v4664 = vsel %vm2671, %v4613, 0
      %v4667 = vsel %vm2671, %v4614, 0
      %v4670 = vsel %vm2671, %v4615, 0
      %4672 = vmatprep.subr.mxu0 0.0
      %4673 = vmatpush1.msra.mxu0 0.0
      %4674 = vmatprep.subr.mxu0 0.0
      %4675 = vmatpush1.msra.mxu0 0.0
      %4676 = vmatprep.subr.mxu0 0.0
      %4677 = vmatpush1.msra.mxu0 0.0
      %4678 = vmatprep.subr.mxu0 0.0
      %4679 = vmatpush1.msra.mxu0 0.0
      %4680 = vmatprep.subr.mxu0 0.0
      %4681 = vmatpush1.msra.mxu0 0.0
      %4682 = vmatprep.subr.mxu0 0.0
      %4683 = vmatpush1.msra.mxu0 0.0
      %4684 = vmatprep.subr.mxu0 0.0
      %4685 = vmatpush1.msra.mxu0 0.0
      %4686 = vmatprep.subr.mxu0 0.0
      %4687 = vmatpush1.msra.mxu0 0.0
      %4688 = vmatprep.subr.mxu0 0.0
      %4689 = vmatpush1.msra.mxu0 0.0
      %4690 = vmatprep.subr.mxu0 0.0
      %4691 = vmatpush1.msra.mxu0 0.0
      %4692 = vmatprep.subr.mxu0 0.0
      %4693 = vmatpush1.msra.mxu0 0.0
      %4694 = vmatprep.subr.mxu0 0.0
      %4695 = vmatpush1.msra.mxu0 0.0
      %4696 = vmatprep.subr.mxu0 %v4647
      %4697 = vmatpush1.msra.mxu0 %v4646
      %4698 = vmatprep.subr.mxu0 %v4645
      %4699 = vmatpush1.msra.mxu0 %v4644
      %4700 = vmatprep.subr.mxu0 %v4643
      %4701 = vmatpush1.msra.mxu0 %v4642
      %4702 = vmatprep.subr.mxu0 %v4641
      %4703 = vmatpush1.msra.mxu0 %v4640
      %4704 = vmatprep.subr.mxu0 0.0
      %4705 = vmatpush2.msra.mxu0 0.0
      %4706 = vmatprep.subr.mxu0 0.0
      %4707 = vmatpush2.msra.mxu0 0.0
      %4708 = vmatprep.subr.mxu0 0.0
      %4709 = vmatpush2.msra.mxu0 0.0
      %4710 = vmatprep.subr.mxu0 0.0
      %4711 = vmatpush2.msra.mxu0 0.0
      %4712 = vmatprep.subr.mxu0 0.0
      %4713 = vmatpush2.msra.mxu0 0.0
      %4714 = vmatprep.subr.mxu0 0.0
      %4715 = vmatpush2.msra.mxu0 0.0
      %4716 = vmatprep.subr.mxu0 0.0
      %4717 = vmatpush2.msra.mxu0 0.0
      %4718 = vmatprep.subr.mxu0 0.0
      %4719 = vmatpush2.msra.mxu0 0.0
      %4720 = vmatprep.subr.mxu0 0.0
      %4721 = vmatpush2.msra.mxu0 0.0
      %4722 = vmatprep.subr.mxu0 0.0
      %4723 = vmatpush2.msra.mxu0 0.0
      %4724 = vmatprep.subr.mxu0 0.0
      %4725 = vmatpush2.msra.mxu0 0.0
      %4726 = vmatprep.subr.mxu0 0.0
      %4727 = vmatpush2.msra.mxu0 0.0
      %4728 = vmatprep.subr.mxu0 0.0
      %4729 = vmatpush2.msra.mxu0 0.0
      %4730 = vmatprep.subr.mxu0 0.0
      %4731 = vmatpush2.msra.mxu0 0.0
      %4732 = vmatprep.subr.mxu0 0.0
      %4733 = vmatpush2.msra.mxu0 0.0
      %4734 = vmatprep.subr.mxu0 0.0
      %4735 = vmatpush2.msra.mxu0 0.0
      %4736 = vmatprep.mubr.f32.mxu0 0.0
      %4737 = vmatmul.mubr.f32.gmra.mxu0 %v4661
      %v4738 = vpop.f32.mrf.mxu0
      %v4739 = vadd.f32 0.0, %v4738
      %v4740 = vpop.f32.mrf.mxu0
      %v4741 = vadd.f32 0.0, %v4740
      %4742 = vmatprep.mubr.f32.mxu0 0.0
      %4743 = vmatmul.mubr.f32.gmra.mxu0 %v4664
      %v4744 = vpop.f32.mrf.mxu0
      %v4745 = vadd.f32 0.0, %v4744
      %v4746 = vpop.f32.mrf.mxu0
      %v4747 = vadd.f32 0.0, %v4746
      %4748 = vmatprep.mubr.f32.mxu0 0.0
      %4749 = vmatmul.mubr.f32.gmra.mxu0 %v4667
      %v4750 = vpop.f32.mrf.mxu0
      %v4751 = vadd.f32 0.0, %v4750
      %v4752 = vpop.f32.mrf.mxu0
      %v4753 = vadd.f32 0.0, %v4752
      %4754 = vmatprep.mubr.f32.mxu0 0.0
      %4755 = vmatmul.mubr.f32.gmra.mxu0 %v4670
      %v4756 = vpop.f32.mrf.mxu0
      %v4757 = vadd.f32 0.0, %v4756
      %v4758 = vpop.f32.mrf.mxu0
      %v4759 = vadd.f32 0.0, %v4758
      %4760 = vdwg.mxu0
      %4761 = vmatprep.subr.mxu0 0.0
      %4762 = vmatpush1.msra.mxu0 0.0
      %4763 = vmatprep.subr.mxu0 0.0
      %4764 = vmatpush1.msra.mxu0 0.0
      %4765 = vmatprep.subr.mxu0 0.0
      %4766 = vmatpush1.msra.mxu0 0.0
      %4767 = vmatprep.subr.mxu0 0.0
      %4768 = vmatpush1.msra.mxu0 0.0
      %4769 = vmatprep.subr.mxu0 0.0
      %4770 = vmatpush1.msra.mxu0 0.0
      %4771 = vmatprep.subr.mxu0 0.0
      %4772 = vmatpush1.msra.mxu0 0.0
      %4773 = vmatprep.subr.mxu0 0.0
      %4774 = vmatpush1.msra.mxu0 0.0
      %4775 = vmatprep.subr.mxu0 0.0
      %4776 = vmatpush1.msra.mxu0 0.0
      %4777 = vmatprep.subr.mxu0 0.0
      %4778 = vmatpush1.msra.mxu0 0.0
      %4779 = vmatprep.subr.mxu0 0.0
      %4780 = vmatpush1.msra.mxu0 0.0
      %4781 = vmatprep.subr.mxu0 0.0
      %4782 = vmatpush1.msra.mxu0 0.0
      %4783 = vmatprep.subr.mxu0 0.0
      %4784 = vmatpush1.msra.mxu0 0.0
      %4785 = vmatprep.subr.mxu0 0.0
      %4786 = vmatpush1.msra.mxu0 %v4639
      %4787 = vmatprep.subr.mxu0 0.0
      %4788 = vmatpush1.msra.mxu0 %v4633
      %4789 = vmatprep.subr.mxu0 0.0
      %4790 = vmatpush1.msra.mxu0 %v4627
      %4791 = vmatprep.subr.mxu0 0.0
      %4792 = vmatpush1.msra.mxu0 %v4621
      %4793 = vmatprep.subr.mxu0 0.0
      %4794 = vmatpush2.msra.mxu0 0.0
      %4795 = vmatprep.subr.mxu0 0.0
      %4796 = vmatpush2.msra.mxu0 0.0
      %4797 = vmatprep.subr.mxu0 0.0
      %4798 = vmatpush2.msra.mxu0 0.0
      %4799 = vmatprep.subr.mxu0 0.0
      %4800 = vmatpush2.msra.mxu0 0.0
      %4801 = vmatprep.subr.mxu0 0.0
      %4802 = vmatpush2.msra.mxu0 0.0
      %4803 = vmatprep.subr.mxu0 0.0
      %4804 = vmatpush2.msra.mxu0 0.0
      %4805 = vmatprep.subr.mxu0 0.0
      %4806 = vmatpush2.msra.mxu0 0.0
      %4807 = vmatprep.subr.mxu0 0.0
      %4808 = vmatpush2.msra.mxu0 0.0
      %4809 = vmatprep.subr.mxu0 0.0
      %4810 = vmatpush2.msra.mxu0 0.0
      %4811 = vmatprep.subr.mxu0 0.0
      %4812 = vmatpush2.msra.mxu0 0.0
      %4813 = vmatprep.subr.mxu0 0.0
      %4814 = vmatpush2.msra.mxu0 0.0
      %4815 = vmatprep.subr.mxu0 0.0
      %4816 = vmatpush2.msra.mxu0 0.0
      %4817 = vmatprep.subr.mxu0 0.0
      %4818 = vmatpush2.msra.mxu0 0.0
      %4819 = vmatprep.subr.mxu0 0.0
      %4820 = vmatpush2.msra.mxu0 0.0
      %4821 = vmatprep.subr.mxu0 0.0
      %4822 = vmatpush2.msra.mxu0 0.0
      %4823 = vmatprep.subr.mxu0 0.0
      %4824 = vmatpush2.msra.mxu0 0.0
      %4825 = vmatprep.mubr.f32.mxu0 0.0
      %4826 = vmatmul.mubr.f32.gmra.mxu0 %v4661
      %v4827 = vpop.f32.mrf.mxu0
      %v4828 = vadd.f32 0.0, %v4827
      %v4829 = vpop.f32.mrf.mxu0
      %4830 = vmatprep.mubr.f32.mxu0 0.0
      %4831 = vmatmul.mubr.f32.gmra.mxu0 %v4664
      %v4832 = vpop.f32.mrf.mxu0
      %v4833 = vadd.f32 0.0, %v4832
      %v4834 = vpop.f32.mrf.mxu0
      %4835 = vmatprep.mubr.f32.mxu0 0.0
      %4836 = vmatmul.mubr.f32.gmra.mxu0 %v4667
      %v4837 = vpop.f32.mrf.mxu0
      %v4838 = vadd.f32 0.0, %v4837
      %v4839 = vpop.f32.mrf.mxu0
      %4840 = vmatprep.mubr.f32.mxu0 0.0
      %4841 = vmatmul.mubr.f32.gmra.mxu0 %v4670
      %v4842 = vpop.f32.mrf.mxu0
      %v4843 = vadd.f32 0.0, %v4842
      %v4844 = vpop.f32.mrf.mxu0
      %4845 = vdwg.mxu0
      %v4846 = vadd.f32 %v4599, %v4739
      %v4847 = vadd.f32 %v4600, %v4741
      %v4848 = vadd.f32 %v4601, %v4828
      %v4849 = vadd.f32 %v4602, %v4745
      %v4850 = vadd.f32 %v4603, %v4747
      %v4851 = vadd.f32 %v4604, %v4833
      %v4852 = vadd.f32 %v4605, %v4751
      %v4853 = vadd.f32 %v4606, %v4753
      %v4854 = vadd.f32 %v4607, %v4838
      %v4855 = vadd.f32 %v4608, %v4757
      %v4856 = vadd.f32 %v4609, %v4759
      %v4857 = vadd.f32 %v4610, %v4843
      %vm4858 = vcmp.gt.f32.partialorder %v4846, 0.0
      %vm4859 = vcmp.gt.f32.partialorder %v4847, 0.0
      %vm4860 = vcmp.gt.f32.partialorder %v4848, 0.0
      %vm4861 = vcmp.gt.f32.partialorder %v4849, 0.0
      %vm4862 = vcmp.gt.f32.partialorder %v4850, 0.0
      %vm4863 = vcmp.gt.f32.partialorder %v4851, 0.0
      %vm4864 = vcmp.gt.f32.partialorder %v4852, 0.0
      %vm4865 = vcmp.gt.f32.partialorder %v4853, 0.0
      %vm4866 = vcmp.gt.f32.partialorder %v4854, 0.0
      %vm4867 = vcmp.gt.f32.partialorder %v4855, 0.0
      %vm4868 = vcmp.gt.f32.partialorder %v4856, 0.0
      %vm4869 = vcmp.gt.f32.partialorder %v4857, 0.0
      %v4870 = vmin.f32 %v4846, 0.0
      %v4871 = vmin.f32 %v4847, 0.0
      %v4872 = vmin.f32 %v4848, 0.0
      %v4873 = vmin.f32 %v4849, 0.0
      %v4874 = vmin.f32 %v4850, 0.0
      %v4875 = vmin.f32 %v4851, 0.0
      %v4876 = vmin.f32 %v4852, 0.0
      %v4877 = vmin.f32 %v4853, 0.0
      %v4878 = vmin.f32 %v4854, 0.0
      %v4879 = vmin.f32 %v4855, 0.0
      %v4880 = vmin.f32 %v4856, 0.0
      %v4881 = vmin.f32 %v4857, 0.0
      %v4882 = vmul.f32 %v4870, 1.442695
      %v4883 = vpow.pop %v4882
      %v4884 = vmul.f32 %v4871, 1.442695
      %v4885 = vpow.pop %v4884
      %v4886 = vmul.f32 %v4872, 1.442695
      %v4887 = vpow.pop %v4886
      %v4888 = vmul.f32 %v4873, 1.442695
      %v4889 = vpow.pop %v4888
      %v4890 = vmul.f32 %v4874, 1.442695
      %v4891 = vpow.pop %v4890
      %v4892 = vmul.f32 %v4875, 1.442695
      %v4893 = vpow.pop %v4892
      %v4894 = vmul.f32 %v4876, 1.442695
      %v4895 = vpow.pop %v4894
      %v4896 = vmul.f32 %v4877, 1.442695
      %v4897 = vpow.pop %v4896
      %v4898 = vmul.f32 %v4878, 1.442695
      %v4899 = vpow.pop %v4898
      %v4900 = vmul.f32 %v4879, 1.442695
      %v4901 = vpow.pop %v4900
      %v4902 = vmul.f32 %v4880, 1.442695
      %v4903 = vpow.pop %v4902
      %v4904 = vmul.f32 %v4881, 1.442695
      %v4905 = vpow.pop %v4904
      %v4906 = vsub.f32 %v4883, 1.0
      %v4907 = vsub.f32 %v4885, 1.0
      %v4908 = vsub.f32 %v4887, 1.0
      %v4909 = vsub.f32 %v4889, 1.0
      %v4910 = vsub.f32 %v4891, 1.0
      %v4911 = vsub.f32 %v4893, 1.0
      %v4912 = vsub.f32 %v4895, 1.0
      %v4913 = vsub.f32 %v4897, 1.0
      %v4914 = vsub.f32 %v4899, 1.0
      %v4915 = vsub.f32 %v4901, 1.0
      %v4916 = vsub.f32 %v4903, 1.0
      %v4917 = vsub.f32 %v4905, 1.0
      %v4918 = vsel %vm4858, %v4846, %v4906
      %v4919 = vsel %vm4859, %v4847, %v4907
      %v4920 = vsel %vm4860, %v4848, %v4908
      %v4921 = vsel %vm4861, %v4849, %v4909
      %v4922 = vsel %vm4862, %v4850, %v4910
      %v4923 = vsel %vm4863, %v4851, %v4911
      %v4924 = vsel %vm4864, %v4852, %v4912
      %v4925 = vsel %vm4865, %v4853, %v4913
      %v4926 = vsel %vm4866, %v4854, %v4914
      %v4927 = vsel %vm4867, %v4855, %v4915
      %v4928 = vsel %vm4868, %v4856, %v4916
      %v4929 = vsel %vm4869, %v4857, %v4917
      %v4930 = vmul.f32 %v4918, %v2536
      %v4931 = vmul.f32 %v4919, %v2540
      %v4932 = vmul.f32 %v4920, %v2544
      %v4933 = vmul.f32 %v4921, %v2536
      %v4934 = vmul.f32 %v4922, %v2540
      %v4935 = vmul.f32 %v4923, %v2544
      %v4936 = vmul.f32 %v4924, %v2536
      %v4937 = vmul.f32 %v4925, %v2540
      %v4938 = vmul.f32 %v4926, %v2544
      %v4939 = vmul.f32 %v4927, %v2536
      %v4940 = vmul.f32 %v4928, %v2540
      %v4941 = vmul.f32 %v4929, %v2544
      %4954 = vrot.lane.b32.xlu0 %v4930, 19
      %v4955 = vpop.permute.xlu0 %4954
      %4956 = vrot.lane.b32.xlu0 %v4931, 19
      %v4957 = vpop.permute.xlu0 %4956
      %4958 = vrot.lane.b32.xlu0 %v4932, 19
      %v4959 = vpop.permute.xlu0 %4958
      %4960 = vrot.lane.b32.xlu0 %v4933, 19
      %v4961 = vpop.permute.xlu0 %4960
      %4962 = vrot.lane.b32.xlu0 %v4934, 19
      %v4963 = vpop.permute.xlu0 %4962
      %4964 = vrot.lane.b32.xlu0 %v4935, 19
      %v4965 = vpop.permute.xlu0 %4964
      %4966 = vrot.lane.b32.xlu0 %v4936, 19
      %v4967 = vpop.permute.xlu0 %4966
      %4968 = vrot.lane.b32.xlu0 %v4937, 19
      %v4969 = vpop.permute.xlu0 %4968
      %4970 = vrot.lane.b32.xlu0 %v4938, 19
      %v4971 = vpop.permute.xlu0 %4970
      %4972 = vrot.lane.b32.xlu0 %v4939, 19
      %v4973 = vpop.permute.xlu0 %4972
      %4974 = vrot.lane.b32.xlu0 %v4940, 19
      %v4975 = vpop.permute.xlu0 %4974
      %4976 = vrot.lane.b32.xlu0 %v4941, 19
      %v4977 = vpop.permute.xlu0 %4976
      %v4978 = vsel %vm2596, %v4955, %v4957
      %v4979 = vsel %vm2596, %v4957, %v4959
      %v4980 = vsel %vm2596, %v4961, %v4963
      %v4981 = vsel %vm2596, %v4963, %v4965
      %v4982 = vsel %vm2596, %v4967, %v4969
      %v4983 = vsel %vm2596, %v4969, %v4971
      %v4984 = vsel %vm2596, %v4973, %v4975
      %v4985 = vsel %vm2596, %v4975, %v4977
      %4998 = vst.msk [vmem:[#allocation4] sm:$0xff] %vm2617, %v4955
      %4999 = vst [vmem:[#allocation4 + $0x8] sm:$0xff] %v4978
      %5000 = vst.msk [vmem:[#allocation4 + $0x10] sm:$0xff] %vm2620, %v4979
      %5001 = vst.msk [vmem:[#allocation4 + $0x18] sm:$0xff] %vm2617, %v4961
      %5002 = vst [vmem:[#allocation4 + $0x20] sm:$0xff] %v4980
      %5003 = vst.msk [vmem:[#allocation4 + $0x28] sm:$0xff] %vm2620, %v4981
      %5004 = vst.msk [vmem:[#allocation4 + $0x30] sm:$0xff] %vm2617, %v4967
      %5005 = vst [vmem:[#allocation4 + $0x38] sm:$0xff] %v4982
      %5006 = vst.msk [vmem:[#allocation4 + $0x40] sm:$0xff] %vm2620, %v4983
      %5007 = vst.msk [vmem:[#allocation4 + $0x48] sm:$0xff] %vm2617, %v4973
      %5008 = vst [vmem:[#allocation4 + $0x50] sm:$0xff] %v4984
      %5009 = vst.msk [vmem:[#allocation4 + $0x58] sm:$0xff] %vm2620, %v4985
      %v5010 = vld [vmem:[#allocation5] sm:$0x1]
      %5012 = vset.pattern.permute.xlu0 0
      %5013 = vperm.xlu0 %5012, %v5010
      %v5014 = vpop.permute.xlu0 %5013
      %v5016 = vlaneseq
      %v5017 = vshrl.u32 %v5016, 7
      %v5018 = vsub.s32 0, %v5017
      %v5019 = vrot.slane %v5014, %v5018
      %v5020 = vld [vmem:[#allocation4] sm:$0xff]
      %v5021 = vld [vmem:[#allocation4 + $0x8] sm:$0xff]
      %v5022 = vld [vmem:[#allocation4 + $0x10] sm:$0xff]
      %v5023 = vld [vmem:[#allocation4 + $0x18] sm:$0xff]
      %v5024 = vld [vmem:[#allocation4 + $0x20] sm:$0xff]
      %v5025 = vld [vmem:[#allocation4 + $0x28] sm:$0xff]
      %v5026 = vld [vmem:[#allocation4 + $0x30] sm:$0xff]
      %v5027 = vld [vmem:[#allocation4 + $0x38] sm:$0xff]
      %v5028 = vld [vmem:[#allocation4 + $0x40] sm:$0xff]
      %v5029 = vld [vmem:[#allocation4 + $0x48] sm:$0xff]
      %v5030 = vld [vmem:[#allocation4 + $0x50] sm:$0xff]
      %v5031 = vld [vmem:[#allocation4 + $0x58] sm:$0xff]
      %v5032 = vld [vmem:[%s6] sm:$0x1]
      %v5034 = vsel %vm2671, %v5032, 0
      %5036 = vmatprep.subr.mxu0 0.0
      %5037 = vmatpush1.msra.mxu0 0.0
      %5038 = vmatprep.subr.mxu0 0.0
      %5039 = vmatpush1.msra.mxu0 0.0
      %5040 = vmatprep.subr.mxu0 0.0
      %5041 = vmatpush1.msra.mxu0 0.0
      %5042 = vmatprep.subr.mxu0 0.0
      %5043 = vmatpush1.msra.mxu0 0.0
      %5044 = vmatprep.subr.mxu0 0.0
      %5045 = vmatpush1.msra.mxu0 0.0
      %5046 = vmatprep.subr.mxu0 0.0
      %5047 = vmatpush1.msra.mxu0 0.0
      %5048 = vmatprep.subr.mxu0 0.0
      %5049 = vmatpush1.msra.mxu0 0.0
      %5050 = vmatprep.subr.mxu0 0.0
      %5051 = vmatpush1.msra.mxu0 0.0
      %5052 = vmatprep.subr.mxu0 0.0
      %5053 = vmatpush1.msra.mxu0 0.0
      %5054 = vmatprep.subr.mxu0 0.0
      %5055 = vmatpush1.msra.mxu0 0.0
      %5056 = vmatprep.subr.mxu0 0.0
      %5057 = vmatpush1.msra.mxu0 0.0
      %5058 = vmatprep.subr.mxu0 0.0
      %5059 = vmatpush1.msra.mxu0 0.0
      %5060 = vmatprep.subr.mxu0 %v5030
      %5061 = vmatpush1.msra.mxu0 %v5029
      %5062 = vmatprep.subr.mxu0 %v5027
      %5063 = vmatpush1.msra.mxu0 %v5026
      %5064 = vmatprep.subr.mxu0 %v5024
      %5065 = vmatpush1.msra.mxu0 %v5023
      %5066 = vmatprep.subr.mxu0 %v5021
      %5067 = vmatpush1.msra.mxu0 %v5020
      %5068 = vmatprep.subr.mxu0 0.0
      %5069 = vmatpush2.msra.mxu0 0.0
      %5070 = vmatprep.subr.mxu0 0.0
      %5071 = vmatpush2.msra.mxu0 0.0
      %5072 = vmatprep.subr.mxu0 0.0
      %5073 = vmatpush2.msra.mxu0 0.0
      %5074 = vmatprep.subr.mxu0 0.0
      %5075 = vmatpush2.msra.mxu0 0.0
      %5076 = vmatprep.subr.mxu0 0.0
      %5077 = vmatpush2.msra.mxu0 0.0
      %5078 = vmatprep.subr.mxu0 0.0
      %5079 = vmatpush2.msra.mxu0 0.0
      %5080 = vmatprep.subr.mxu0 0.0
      %5081 = vmatpush2.msra.mxu0 0.0
      %5082 = vmatprep.subr.mxu0 0.0
      %5083 = vmatpush2.msra.mxu0 0.0
      %5084 = vmatprep.subr.mxu0 0.0
      %5085 = vmatpush2.msra.mxu0 0.0
      %5086 = vmatprep.subr.mxu0 0.0
      %5087 = vmatpush2.msra.mxu0 0.0
      %5088 = vmatprep.subr.mxu0 0.0
      %5089 = vmatpush2.msra.mxu0 0.0
      %5090 = vmatprep.subr.mxu0 0.0
      %5091 = vmatpush2.msra.mxu0 0.0
      %5092 = vmatprep.subr.mxu0 0.0
      %5093 = vmatpush2.msra.mxu0 0.0
      %5094 = vmatprep.subr.mxu0 0.0
      %5095 = vmatpush2.msra.mxu0 0.0
      %5096 = vmatprep.subr.mxu0 0.0
      %5097 = vmatpush2.msra.mxu0 0.0
      %5098 = vmatprep.subr.mxu0 0.0
      %5099 = vmatpush2.msra.mxu0 0.0
      %5100 = vmatprep.mubr.f32.mxu0 0.0
      %5101 = vmatmul.mubr.f32.gmra.mxu0 %v5034
      %v5102 = vpop.f32.mrf.mxu0
      %v5103 = vadd.f32 0.0, %v5102
      %v5104 = vpop.f32.mrf.mxu0
      %v5105 = vadd.f32 0.0, %v5104
      %5106 = vdwg.mxu0
      %5107 = vmatprep.subr.mxu0 0.0
      %5108 = vmatpush1.msra.mxu0 0.0
      %5109 = vmatprep.subr.mxu0 0.0
      %5110 = vmatpush1.msra.mxu0 0.0
      %5111 = vmatprep.subr.mxu0 0.0
      %5112 = vmatpush1.msra.mxu0 0.0
      %5113 = vmatprep.subr.mxu0 0.0
      %5114 = vmatpush1.msra.mxu0 0.0
      %5115 = vmatprep.subr.mxu0 0.0
      %5116 = vmatpush1.msra.mxu0 0.0
      %5117 = vmatprep.subr.mxu0 0.0
      %5118 = vmatpush1.msra.mxu0 0.0
      %5119 = vmatprep.subr.mxu0 0.0
      %5120 = vmatpush1.msra.mxu0 0.0
      %5121 = vmatprep.subr.mxu0 0.0
      %5122 = vmatpush1.msra.mxu0 0.0
      %5123 = vmatprep.subr.mxu0 0.0
      %5124 = vmatpush1.msra.mxu0 0.0
      %5125 = vmatprep.subr.mxu0 0.0
      %5126 = vmatpush1.msra.mxu0 0.0
      %5127 = vmatprep.subr.mxu0 0.0
      %5128 = vmatpush1.msra.mxu0 0.0
      %5129 = vmatprep.subr.mxu0 0.0
      %5130 = vmatpush1.msra.mxu0 0.0
      %5131 = vmatprep.subr.mxu0 0.0
      %5132 = vmatpush1.msra.mxu0 %v5031
      %5133 = vmatprep.subr.mxu0 0.0
      %5134 = vmatpush1.msra.mxu0 %v5028
      %5135 = vmatprep.subr.mxu0 0.0
      %5136 = vmatpush1.msra.mxu0 %v5025
      %5137 = vmatprep.subr.mxu0 0.0
      %5138 = vmatpush1.msra.mxu0 %v5022
      %5139 = vmatprep.subr.mxu0 0.0
      %5140 = vmatpush2.msra.mxu0 0.0
      %5141 = vmatprep.subr.mxu0 0.0
      %5142 = vmatpush2.msra.mxu0 0.0
      %5143 = vmatprep.subr.mxu0 0.0
      %5144 = vmatpush2.msra.mxu0 0.0
      %5145 = vmatprep.subr.mxu0 0.0
      %5146 = vmatpush2.msra.mxu0 0.0
      %5147 = vmatprep.subr.mxu0 0.0
      %5148 = vmatpush2.msra.mxu0 0.0
      %5149 = vmatprep.subr.mxu0 0.0
      %5150 = vmatpush2.msra.mxu0 0.0
      %5151 = vmatprep.subr.mxu0 0.0
      %5152 = vmatpush2.msra.mxu0 0.0
      %5153 = vmatprep.subr.mxu0 0.0
      %5154 = vmatpush2.msra.mxu0 0.0
      %5155 = vmatprep.subr.mxu0 0.0
      %5156 = vmatpush2.msra.mxu0 0.0
      %5157 = vmatprep.subr.mxu0 0.0
      %5158 = vmatpush2.msra.mxu0 0.0
      %5159 = vmatprep.subr.mxu0 0.0
      %5160 = vmatpush2.msra.mxu0 0.0
      %5161 = vmatprep.subr.mxu0 0.0
      %5162 = vmatpush2.msra.mxu0 0.0
      %5163 = vmatprep.subr.mxu0 0.0
      %5164 = vmatpush2.msra.mxu0 0.0
      %5165 = vmatprep.subr.mxu0 0.0
      %5166 = vmatpush2.msra.mxu0 0.0
      %5167 = vmatprep.subr.mxu0 0.0
      %5168 = vmatpush2.msra.mxu0 0.0
      %5169 = vmatprep.subr.mxu0 0.0
      %5170 = vmatpush2.msra.mxu0 0.0
      %5171 = vmatprep.mubr.f32.mxu0 0.0
      %5172 = vmatmul.mubr.f32.gmra.mxu0 %v5034
      %v5173 = vpop.f32.mrf.mxu0
      %v5174 = vadd.f32 0.0, %v5173
      %v5175 = vpop.f32.mrf.mxu0
      %5176 = vdwg.mxu0
      %v5177 = vadd.f32 %v5019, %v5103
      %v5178 = vadd.f32 %v5019, %v5105
      %v5179 = vadd.f32 %v5019, %v5174
      %s5180 = scalar_lea.vmem %s6, 1
      %v5181 = vld [vmem:[%s5180] sm:$0x1]
      %5194 = vrot.lane.b32.xlu0 %v5020, 127
      %v5195 = vpop.permute.xlu0 %5194
      %5196 = vrot.lane.b32.xlu0 %v5021, 127
      %v5197 = vpop.permute.xlu0 %5196
      %5198 = vrot.lane.b32.xlu0 %v5022, 127
      %v5199 = vpop.permute.xlu0 %5198
      %5200 = vrot.lane.b32.xlu0 %v5023, 127
      %v5201 = vpop.permute.xlu0 %5200
      %5202 = vrot.lane.b32.xlu0 %v5024, 127
      %v5203 = vpop.permute.xlu0 %5202
      %5204 = vrot.lane.b32.xlu0 %v5025, 127
      %v5205 = vpop.permute.xlu0 %5204
      %5206 = vrot.lane.b32.xlu0 %v5026, 127
      %v5207 = vpop.permute.xlu0 %5206
      %5208 = vrot.lane.b32.xlu0 %v5027, 127
      %v5209 = vpop.permute.xlu0 %5208
      %5210 = vrot.lane.b32.xlu0 %v5028, 127
      %v5211 = vpop.permute.xlu0 %5210
      %5212 = vrot.lane.b32.xlu0 %v5029, 127
      %v5213 = vpop.permute.xlu0 %5212
      %5214 = vrot.lane.b32.xlu0 %v5030, 127
      %v5215 = vpop.permute.xlu0 %5214
      %5216 = vrot.lane.b32.xlu0 %v5031, 127
      %v5217 = vpop.permute.xlu0 %5216
      %v5218 = vsel %vm692, %v5195, %v5197
      %v5219 = vsel %vm692, %v5197, %v5199
      %v5220 = vsel %vm692, %v5201, %v5203
      %v5221 = vsel %vm692, %v5203, %v5205
      %v5222 = vsel %vm692, %v5207, %v5209
      %v5223 = vsel %vm692, %v5209, %v5211
      %v5224 = vsel %vm692, %v5213, %v5215
      %v5225 = vsel %vm692, %v5215, %v5217
      %v5239 = vsel %vm2671, %v5181, 0
      %5241 = vmatprep.subr.mxu0 0.0
      %5242 = vmatpush1.msra.mxu0 0.0
      %5243 = vmatprep.subr.mxu0 0.0
      %5244 = vmatpush1.msra.mxu0 0.0
      %5245 = vmatprep.subr.mxu0 0.0
      %5246 = vmatpush1.msra.mxu0 0.0
      %5247 = vmatprep.subr.mxu0 0.0
      %5248 = vmatpush1.msra.mxu0 0.0
      %5249 = vmatprep.subr.mxu0 0.0
      %5250 = vmatpush1.msra.mxu0 0.0
      %5251 = vmatprep.subr.mxu0 0.0
      %5252 = vmatpush1.msra.mxu0 0.0
      %5253 = vmatprep.subr.mxu0 0.0
      %5254 = vmatpush1.msra.mxu0 0.0
      %5255 = vmatprep.subr.mxu0 0.0
      %5256 = vmatpush1.msra.mxu0 0.0
      %5257 = vmatprep.subr.mxu0 0.0
      %5258 = vmatpush1.msra.mxu0 0.0
      %5259 = vmatprep.subr.mxu0 0.0
      %5260 = vmatpush1.msra.mxu0 0.0
      %5261 = vmatprep.subr.mxu0 0.0
      %5262 = vmatpush1.msra.mxu0 0.0
      %5263 = vmatprep.subr.mxu0 0.0
      %5264 = vmatpush1.msra.mxu0 0.0
      %5265 = vmatprep.subr.mxu0 %v5225
      %5266 = vmatpush1.msra.mxu0 %v5224
      %5267 = vmatprep.subr.mxu0 %v5223
      %5268 = vmatpush1.msra.mxu0 %v5222
      %5269 = vmatprep.subr.mxu0 %v5221
      %5270 = vmatpush1.msra.mxu0 %v5220
      %5271 = vmatprep.subr.mxu0 %v5219
      %5272 = vmatpush1.msra.mxu0 %v5218
      %5273 = vmatprep.subr.mxu0 0.0
      %5274 = vmatpush2.msra.mxu0 0.0
      %5275 = vmatprep.subr.mxu0 0.0
      %5276 = vmatpush2.msra.mxu0 0.0
      %5277 = vmatprep.subr.mxu0 0.0
      %5278 = vmatpush2.msra.mxu0 0.0
      %5279 = vmatprep.subr.mxu0 0.0
      %5280 = vmatpush2.msra.mxu0 0.0
      %5281 = vmatprep.subr.mxu0 0.0
      %5282 = vmatpush2.msra.mxu0 0.0
      %5283 = vmatprep.subr.mxu0 0.0
      %5284 = vmatpush2.msra.mxu0 0.0
      %5285 = vmatprep.subr.mxu0 0.0
      %5286 = vmatpush2.msra.mxu0 0.0
      %5287 = vmatprep.subr.mxu0 0.0
      %5288 = vmatpush2.msra.mxu0 0.0
      %5289 = vmatprep.subr.mxu0 0.0
      %5290 = vmatpush2.msra.mxu0 0.0
      %5291 = vmatprep.subr.mxu0 0.0
      %5292 = vmatpush2.msra.mxu0 0.0
      %5293 = vmatprep.subr.mxu0 0.0
      %5294 = vmatpush2.msra.mxu0 0.0
      %5295 = vmatprep.subr.mxu0 0.0
      %5296 = vmatpush2.msra.mxu0 0.0
      %5297 = vmatprep.subr.mxu0 0.0
      %5298 = vmatpush2.msra.mxu0 0.0
      %5299 = vmatprep.subr.mxu0 0.0
      %5300 = vmatpush2.msra.mxu0 0.0
      %5301 = vmatprep.subr.mxu0 0.0
      %5302 = vmatpush2.msra.mxu0 0.0
      %5303 = vmatprep.subr.mxu0 0.0
      %5304 = vmatpush2.msra.mxu0 0.0
      %5305 = vmatprep.mubr.f32.mxu0 0.0
      %5306 = vmatmul.mubr.f32.gmra.mxu0 %v5239
      %v5307 = vpop.f32.mrf.mxu0
      %v5308 = vadd.f32 0.0, %v5307
      %v5309 = vpop.f32.mrf.mxu0
      %v5310 = vadd.f32 0.0, %v5309
      %5311 = vdwg.mxu0
      %5312 = vmatprep.subr.mxu0 0.0
      %5313 = vmatpush1.msra.mxu0 0.0
      %5314 = vmatprep.subr.mxu0 0.0
      %5315 = vmatpush1.msra.mxu0 0.0
      %5316 = vmatprep.subr.mxu0 0.0
      %5317 = vmatpush1.msra.mxu0 0.0
      %5318 = vmatprep.subr.mxu0 0.0
      %5319 = vmatpush1.msra.mxu0 0.0
      %5320 = vmatprep.subr.mxu0 0.0
      %5321 = vmatpush1.msra.mxu0 0.0
      %5322 = vmatprep.subr.mxu0 0.0
      %5323 = vmatpush1.msra.mxu0 0.0
      %5324 = vmatprep.subr.mxu0 0.0
      %5325 = vmatpush1.msra.mxu0 0.0
      %5326 = vmatprep.subr.mxu0 0.0
      %5327 = vmatpush1.msra.mxu0 0.0
      %5328 = vmatprep.subr.mxu0 0.0
      %5329 = vmatpush1.msra.mxu0 0.0
      %5330 = vmatprep.subr.mxu0 0.0
      %5331 = vmatpush1.msra.mxu0 0.0
      %5332 = vmatprep.subr.mxu0 0.0
      %5333 = vmatpush1.msra.mxu0 0.0
      %5334 = vmatprep.subr.mxu0 0.0
      %5335 = vmatpush1.msra.mxu0 0.0
      %5336 = vmatprep.subr.mxu0 0.0
      %5337 = vmatpush1.msra.mxu0 %v5217
      %5338 = vmatprep.subr.mxu0 0.0
      %5339 = vmatpush1.msra.mxu0 %v5211
      %5340 = vmatprep.subr.mxu0 0.0
      %5341 = vmatpush1.msra.mxu0 %v5205
      %5342 = vmatprep.subr.mxu0 0.0
      %5343 = vmatpush1.msra.mxu0 %v5199
      %5344 = vmatprep.subr.mxu0 0.0
      %5345 = vmatpush2.msra.mxu0 0.0
      %5346 = vmatprep.subr.mxu0 0.0
      %5347 = vmatpush2.msra.mxu0 0.0
      %5348 = vmatprep.subr.mxu0 0.0
      %5349 = vmatpush2.msra.mxu0 0.0
      %5350 = vmatprep.subr.mxu0 0.0
      %5351 = vmatpush2.msra.mxu0 0.0
      %5352 = vmatprep.subr.mxu0 0.0
      %5353 = vmatpush2.msra.mxu0 0.0
      %5354 = vmatprep.subr.mxu0 0.0
      %5355 = vmatpush2.msra.mxu0 0.0
      %5356 = vmatprep.subr.mxu0 0.0
      %5357 = vmatpush2.msra.mxu0 0.0
      %5358 = vmatprep.subr.mxu0 0.0
      %5359 = vmatpush2.msra.mxu0 0.0
      %5360 = vmatprep.subr.mxu0 0.0
      %5361 = vmatpush2.msra.mxu0 0.0
      %5362 = vmatprep.subr.mxu0 0.0
      %5363 = vmatpush2.msra.mxu0 0.0
      %5364 = vmatprep.subr.mxu0 0.0
      %5365 = vmatpush2.msra.mxu0 0.0
      %5366 = vmatprep.subr.mxu0 0.0
      %5367 = vmatpush2.msra.mxu0 0.0
      %5368 = vmatprep.subr.mxu0 0.0
      %5369 = vmatpush2.msra.mxu0 0.0
      %5370 = vmatprep.subr.mxu0 0.0
      %5371 = vmatpush2.msra.mxu0 0.0
      %5372 = vmatprep.subr.mxu0 0.0
      %5373 = vmatpush2.msra.mxu0 0.0
      %5374 = vmatprep.subr.mxu0 0.0
      %5375 = vmatpush2.msra.mxu0 0.0
      %5376 = vmatprep.mubr.f32.mxu0 0.0
      %5377 = vmatmul.mubr.f32.gmra.mxu0 %v5239
      %v5378 = vpop.f32.mrf.mxu0
      %v5379 = vadd.f32 0.0, %v5378
      %v5380 = vpop.f32.mrf.mxu0
      %5381 = vdwg.mxu0
      %v5382 = vadd.f32 %v5177, %v5308
      %v5383 = vadd.f32 %v5178, %v5310
      %v5384 = vadd.f32 %v5179, %v5379
      %s5385 = scalar_lea.vmem %s6, 2
      %v5386 = vld [vmem:[%s5385] sm:$0x1]
      %5387 = vrot.lane.b32.xlu0 %v5020, 126
      %v5388 = vpop.permute.xlu0 %5387
      %5389 = vrot.lane.b32.xlu0 %v5021, 126
      %v5390 = vpop.permute.xlu0 %5389
      %5391 = vrot.lane.b32.xlu0 %v5022, 126
      %v5392 = vpop.permute.xlu0 %5391
      %5393 = vrot.lane.b32.xlu0 %v5023, 126
      %v5394 = vpop.permute.xlu0 %5393
      %5395 = vrot.lane.b32.xlu0 %v5024, 126
      %v5396 = vpop.permute.xlu0 %5395
      %5397 = vrot.lane.b32.xlu0 %v5025, 126
      %v5398 = vpop.permute.xlu0 %5397
      %5399 = vrot.lane.b32.xlu0 %v5026, 126
      %v5400 = vpop.permute.xlu0 %5399
      %5401 = vrot.lane.b32.xlu0 %v5027, 126
      %v5402 = vpop.permute.xlu0 %5401
      %5403 = vrot.lane.b32.xlu0 %v5028, 126
      %v5404 = vpop.permute.xlu0 %5403
      %5405 = vrot.lane.b32.xlu0 %v5029, 126
      %v5406 = vpop.permute.xlu0 %5405
      %5407 = vrot.lane.b32.xlu0 %v5030, 126
      %v5408 = vpop.permute.xlu0 %5407
      %5409 = vrot.lane.b32.xlu0 %v5031, 126
      %v5410 = vpop.permute.xlu0 %5409
      %v5411 = vsel %vm915, %v5388, %v5390
      %v5412 = vsel %vm915, %v5390, %v5392
      %v5413 = vsel %vm915, %v5394, %v5396
      %v5414 = vsel %vm915, %v5396, %v5398
      %v5415 = vsel %vm915, %v5400, %v5402
      %v5416 = vsel %vm915, %v5402, %v5404
      %v5417 = vsel %vm915, %v5406, %v5408
      %v5418 = vsel %vm915, %v5408, %v5410
      %v5432 = vsel %vm2671, %v5386, 0
      %5434 = vmatprep.subr.mxu0 0.0
      %5435 = vmatpush1.msra.mxu0 0.0
      %5436 = vmatprep.subr.mxu0 0.0
      %5437 = vmatpush1.msra.mxu0 0.0
      %5438 = vmatprep.subr.mxu0 0.0
      %5439 = vmatpush1.msra.mxu0 0.0
      %5440 = vmatprep.subr.mxu0 0.0
      %5441 = vmatpush1.msra.mxu0 0.0
      %5442 = vmatprep.subr.mxu0 0.0
      %5443 = vmatpush1.msra.mxu0 0.0
      %5444 = vmatprep.subr.mxu0 0.0
      %5445 = vmatpush1.msra.mxu0 0.0
      %5446 = vmatprep.subr.mxu0 0.0
      %5447 = vmatpush1.msra.mxu0 0.0
      %5448 = vmatprep.subr.mxu0 0.0
      %5449 = vmatpush1.msra.mxu0 0.0
      %5450 = vmatprep.subr.mxu0 0.0
      %5451 = vmatpush1.msra.mxu0 0.0
      %5452 = vmatprep.subr.mxu0 0.0
      %5453 = vmatpush1.msra.mxu0 0.0
      %5454 = vmatprep.subr.mxu0 0.0
      %5455 = vmatpush1.msra.mxu0 0.0
      %5456 = vmatprep.subr.mxu0 0.0
      %5457 = vmatpush1.msra.mxu0 0.0
      %5458 = vmatprep.subr.mxu0 %v5418
      %5459 = vmatpush1.msra.mxu0 %v5417
      %5460 = vmatprep.subr.mxu0 %v5416
      %5461 = vmatpush1.msra.mxu0 %v5415
      %5462 = vmatprep.subr.mxu0 %v5414
      %5463 = vmatpush1.msra.mxu0 %v5413
      %5464 = vmatprep.subr.mxu0 %v5412
      %5465 = vmatpush1.msra.mxu0 %v5411
      %5466 = vmatprep.subr.mxu0 0.0
      %5467 = vmatpush2.msra.mxu0 0.0
      %5468 = vmatprep.subr.mxu0 0.0
      %5469 = vmatpush2.msra.mxu0 0.0
      %5470 = vmatprep.subr.mxu0 0.0
      %5471 = vmatpush2.msra.mxu0 0.0
      %5472 = vmatprep.subr.mxu0 0.0
      %5473 = vmatpush2.msra.mxu0 0.0
      %5474 = vmatprep.subr.mxu0 0.0
      %5475 = vmatpush2.msra.mxu0 0.0
      %5476 = vmatprep.subr.mxu0 0.0
      %5477 = vmatpush2.msra.mxu0 0.0
      %5478 = vmatprep.subr.mxu0 0.0
      %5479 = vmatpush2.msra.mxu0 0.0
      %5480 = vmatprep.subr.mxu0 0.0
      %5481 = vmatpush2.msra.mxu0 0.0
      %5482 = vmatprep.subr.mxu0 0.0
      %5483 = vmatpush2.msra.mxu0 0.0
      %5484 = vmatprep.subr.mxu0 0.0
      %5485 = vmatpush2.msra.mxu0 0.0
      %5486 = vmatprep.subr.mxu0 0.0
      %5487 = vmatpush2.msra.mxu0 0.0
      %5488 = vmatprep.subr.mxu0 0.0
      %5489 = vmatpush2.msra.mxu0 0.0
      %5490 = vmatprep.subr.mxu0 0.0
      %5491 = vmatpush2.msra.mxu0 0.0
      %5492 = vmatprep.subr.mxu0 0.0
      %5493 = vmatpush2.msra.mxu0 0.0
      %5494 = vmatprep.subr.mxu0 0.0
      %5495 = vmatpush2.msra.mxu0 0.0
      %5496 = vmatprep.subr.mxu0 0.0
      %5497 = vmatpush2.msra.mxu0 0.0
      %5498 = vmatprep.mubr.f32.mxu0 0.0
      %5499 = vmatmul.mubr.f32.gmra.mxu0 %v5432
      %v5500 = vpop.f32.mrf.mxu0
      %v5501 = vadd.f32 0.0, %v5500
      %v5502 = vpop.f32.mrf.mxu0
      %v5503 = vadd.f32 0.0, %v5502
      %5504 = vdwg.mxu0
      %5505 = vmatprep.subr.mxu0 0.0
      %5506 = vmatpush1.msra.mxu0 0.0
      %5507 = vmatprep.subr.mxu0 0.0
      %5508 = vmatpush1.msra.mxu0 0.0
      %5509 = vmatprep.subr.mxu0 0.0
      %5510 = vmatpush1.msra.mxu0 0.0
      %5511 = vmatprep.subr.mxu0 0.0
      %5512 = vmatpush1.msra.mxu0 0.0
      %5513 = vmatprep.subr.mxu0 0.0
      %5514 = vmatpush1.msra.mxu0 0.0
      %5515 = vmatprep.subr.mxu0 0.0
      %5516 = vmatpush1.msra.mxu0 0.0
      %5517 = vmatprep.subr.mxu0 0.0
      %5518 = vmatpush1.msra.mxu0 0.0
      %5519 = vmatprep.subr.mxu0 0.0
      %5520 = vmatpush1.msra.mxu0 0.0
      %5521 = vmatprep.subr.mxu0 0.0
      %5522 = vmatpush1.msra.mxu0 0.0
      %5523 = vmatprep.subr.mxu0 0.0
      %5524 = vmatpush1.msra.mxu0 0.0
      %5525 = vmatprep.subr.mxu0 0.0
      %5526 = vmatpush1.msra.mxu0 0.0
      %5527 = vmatprep.subr.mxu0 0.0
      %5528 = vmatpush1.msra.mxu0 0.0
      %5529 = vmatprep.subr.mxu0 0.0
      %5530 = vmatpush1.msra.mxu0 %v5410
      %5531 = vmatprep.subr.mxu0 0.0
      %5532 = vmatpush1.msra.mxu0 %v5404
      %5533 = vmatprep.subr.mxu0 0.0
      %5534 = vmatpush1.msra.mxu0 %v5398
      %5535 = vmatprep.subr.mxu0 0.0
      %5536 = vmatpush1.msra.mxu0 %v5392
      %5537 = vmatprep.subr.mxu0 0.0
      %5538 = vmatpush2.msra.mxu0 0.0
      %5539 = vmatprep.subr.mxu0 0.0
      %5540 = vmatpush2.msra.mxu0 0.0
      %5541 = vmatprep.subr.mxu0 0.0
      %5542 = vmatpush2.msra.mxu0 0.0
      %5543 = vmatprep.subr.mxu0 0.0
      %5544 = vmatpush2.msra.mxu0 0.0
      %5545 = vmatprep.subr.mxu0 0.0
      %5546 = vmatpush2.msra.mxu0 0.0
      %5547 = vmatprep.subr.mxu0 0.0
      %5548 = vmatpush2.msra.mxu0 0.0
      %5549 = vmatprep.subr.mxu0 0.0
      %5550 = vmatpush2.msra.mxu0 0.0
      %5551 = vmatprep.subr.mxu0 0.0
      %5552 = vmatpush2.msra.mxu0 0.0
      %5553 = vmatprep.subr.mxu0 0.0
      %5554 = vmatpush2.msra.mxu0 0.0
      %5555 = vmatprep.subr.mxu0 0.0
      %5556 = vmatpush2.msra.mxu0 0.0
      %5557 = vmatprep.subr.mxu0 0.0
      %5558 = vmatpush2.msra.mxu0 0.0
      %5559 = vmatprep.subr.mxu0 0.0
      %5560 = vmatpush2.msra.mxu0 0.0
      %5561 = vmatprep.subr.mxu0 0.0
      %5562 = vmatpush2.msra.mxu0 0.0
      %5563 = vmatprep.subr.mxu0 0.0
      %5564 = vmatpush2.msra.mxu0 0.0
      %5565 = vmatprep.subr.mxu0 0.0
      %5566 = vmatpush2.msra.mxu0 0.0
      %5567 = vmatprep.subr.mxu0 0.0
      %5568 = vmatpush2.msra.mxu0 0.0
      %5569 = vmatprep.mubr.f32.mxu0 0.0
      %5570 = vmatmul.mubr.f32.gmra.mxu0 %v5432
      %v5571 = vpop.f32.mrf.mxu0
      %v5572 = vadd.f32 0.0, %v5571
      %v5573 = vpop.f32.mrf.mxu0
      %5574 = vdwg.mxu0
      %v5575 = vadd.f32 %v5382, %v5501
      %v5576 = vadd.f32 %v5383, %v5503
      %v5577 = vadd.f32 %v5384, %v5572
      %s5578 = scalar_lea.vmem %s6, 3
      %v5579 = vld [vmem:[%s5578] sm:$0x1]
      %5580 = vrot.lane.b32.xlu0 %v5020, 110
      %v5581 = vpop.permute.xlu0 %5580
      %5582 = vrot.lane.b32.xlu0 %v5021, 110
      %v5583 = vpop.permute.xlu0 %5582
      %5584 = vrot.lane.b32.xlu0 %v5022, 110
      %v5585 = vpop.permute.xlu0 %5584
      %5586 = vrot.lane.b32.xlu0 %v5023, 110
      %v5587 = vpop.permute.xlu0 %5586
      %5588 = vrot.lane.b32.xlu0 %v5024, 110
      %v5589 = vpop.permute.xlu0 %5588
      %5590 = vrot.lane.b32.xlu0 %v5025, 110
      %v5591 = vpop.permute.xlu0 %5590
      %5592 = vrot.lane.b32.xlu0 %v5026, 110
      %v5593 = vpop.permute.xlu0 %5592
      %5594 = vrot.lane.b32.xlu0 %v5027, 110
      %v5595 = vpop.permute.xlu0 %5594
      %5596 = vrot.lane.b32.xlu0 %v5028, 110
      %v5597 = vpop.permute.xlu0 %5596
      %5598 = vrot.lane.b32.xlu0 %v5029, 110
      %v5599 = vpop.permute.xlu0 %5598
      %5600 = vrot.lane.b32.xlu0 %v5030, 110
      %v5601 = vpop.permute.xlu0 %5600
      %5602 = vrot.lane.b32.xlu0 %v5031, 110
      %v5603 = vpop.permute.xlu0 %5602
      %v5604 = vsel %vm1138, %v5581, %v5583
      %v5605 = vsel %vm1138, %v5583, %v5585
      %v5606 = vsel %vm1138, %v5587, %v5589
      %v5607 = vsel %vm1138, %v5589, %v5591
      %v5608 = vsel %vm1138, %v5593, %v5595
      %v5609 = vsel %vm1138, %v5595, %v5597
      %v5610 = vsel %vm1138, %v5599, %v5601
      %v5611 = vsel %vm1138, %v5601, %v5603
      %v5625 = vsel %vm2671, %v5579, 0
      %5627 = vmatprep.subr.mxu0 0.0
      %5628 = vmatpush1.msra.mxu0 0.0
      %5629 = vmatprep.subr.mxu0 0.0
      %5630 = vmatpush1.msra.mxu0 0.0
      %5631 = vmatprep.subr.mxu0 0.0
      %5632 = vmatpush1.msra.mxu0 0.0
      %5633 = vmatprep.subr.mxu0 0.0
      %5634 = vmatpush1.msra.mxu0 0.0
      %5635 = vmatprep.subr.mxu0 0.0
      %5636 = vmatpush1.msra.mxu0 0.0
      %5637 = vmatprep.subr.mxu0 0.0
      %5638 = vmatpush1.msra.mxu0 0.0
      %5639 = vmatprep.subr.mxu0 0.0
      %5640 = vmatpush1.msra.mxu0 0.0
      %5641 = vmatprep.subr.mxu0 0.0
      %5642 = vmatpush1.msra.mxu0 0.0
      %5643 = vmatprep.subr.mxu0 0.0
      %5644 = vmatpush1.msra.mxu0 0.0
      %5645 = vmatprep.subr.mxu0 0.0
      %5646 = vmatpush1.msra.mxu0 0.0
      %5647 = vmatprep.subr.mxu0 0.0
      %5648 = vmatpush1.msra.mxu0 0.0
      %5649 = vmatprep.subr.mxu0 0.0
      %5650 = vmatpush1.msra.mxu0 0.0
      %5651 = vmatprep.subr.mxu0 %v5611
      %5652 = vmatpush1.msra.mxu0 %v5610
      %5653 = vmatprep.subr.mxu0 %v5609
      %5654 = vmatpush1.msra.mxu0 %v5608
      %5655 = vmatprep.subr.mxu0 %v5607
      %5656 = vmatpush1.msra.mxu0 %v5606
      %5657 = vmatprep.subr.mxu0 %v5605
      %5658 = vmatpush1.msra.mxu0 %v5604
      %5659 = vmatprep.subr.mxu0 0.0
      %5660 = vmatpush2.msra.mxu0 0.0
      %5661 = vmatprep.subr.mxu0 0.0
      %5662 = vmatpush2.msra.mxu0 0.0
      %5663 = vmatprep.subr.mxu0 0.0
      %5664 = vmatpush2.msra.mxu0 0.0
      %5665 = vmatprep.subr.mxu0 0.0
      %5666 = vmatpush2.msra.mxu0 0.0
      %5667 = vmatprep.subr.mxu0 0.0
      %5668 = vmatpush2.msra.mxu0 0.0
      %5669 = vmatprep.subr.mxu0 0.0
      %5670 = vmatpush2.msra.mxu0 0.0
      %5671 = vmatprep.subr.mxu0 0.0
      %5672 = vmatpush2.msra.mxu0 0.0
      %5673 = vmatprep.subr.mxu0 0.0
      %5674 = vmatpush2.msra.mxu0 0.0
      %5675 = vmatprep.subr.mxu0 0.0
      %5676 = vmatpush2.msra.mxu0 0.0
      %5677 = vmatprep.subr.mxu0 0.0
      %5678 = vmatpush2.msra.mxu0 0.0
      %5679 = vmatprep.subr.mxu0 0.0
      %5680 = vmatpush2.msra.mxu0 0.0
      %5681 = vmatprep.subr.mxu0 0.0
      %5682 = vmatpush2.msra.mxu0 0.0
      %5683 = vmatprep.subr.mxu0 0.0
      %5684 = vmatpush2.msra.mxu0 0.0
      %5685 = vmatprep.subr.mxu0 0.0
      %5686 = vmatpush2.msra.mxu0 0.0
      %5687 = vmatprep.subr.mxu0 0.0
      %5688 = vmatpush2.msra.mxu0 0.0
      %5689 = vmatprep.subr.mxu0 0.0
      %5690 = vmatpush2.msra.mxu0 0.0
      %5691 = vmatprep.mubr.f32.mxu0 0.0
      %5692 = vmatmul.mubr.f32.gmra.mxu0 %v5625
      %v5693 = vpop.f32.mrf.mxu0
      %v5694 = vadd.f32 0.0, %v5693
      %v5695 = vpop.f32.mrf.mxu0
      %v5696 = vadd.f32 0.0, %v5695
      %5697 = vdwg.mxu0
      %5698 = vmatprep.subr.mxu0 0.0
      %5699 = vmatpush1.msra.mxu0 0.0
      %5700 = vmatprep.subr.mxu0 0.0
      %5701 = vmatpush1.msra.mxu0 0.0
      %5702 = vmatprep.subr.mxu0 0.0
      %5703 = vmatpush1.msra.mxu0 0.0
      %5704 = vmatprep.subr.mxu0 0.0
      %5705 = vmatpush1.msra.mxu0 0.0
      %5706 = vmatprep.subr.mxu0 0.0
      %5707 = vmatpush1.msra.mxu0 0.0
      %5708 = vmatprep.subr.mxu0 0.0
      %5709 = vmatpush1.msra.mxu0 0.0
      %5710 = vmatprep.subr.mxu0 0.0
      %5711 = vmatpush1.msra.mxu0 0.0
      %5712 = vmatprep.subr.mxu0 0.0
      %5713 = vmatpush1.msra.mxu0 0.0
      %5714 = vmatprep.subr.mxu0 0.0
      %5715 = vmatpush1.msra.mxu0 0.0
      %5716 = vmatprep.subr.mxu0 0.0
      %5717 = vmatpush1.msra.mxu0 0.0
      %5718 = vmatprep.subr.mxu0 0.0
      %5719 = vmatpush1.msra.mxu0 0.0
      %5720 = vmatprep.subr.mxu0 0.0
      %5721 = vmatpush1.msra.mxu0 0.0
      %5722 = vmatprep.subr.mxu0 0.0
      %5723 = vmatpush1.msra.mxu0 %v5603
      %5724 = vmatprep.subr.mxu0 0.0
      %5725 = vmatpush1.msra.mxu0 %v5597
      %5726 = vmatprep.subr.mxu0 0.0
      %5727 = vmatpush1.msra.mxu0 %v5591
      %5728 = vmatprep.subr.mxu0 0.0
      %5729 = vmatpush1.msra.mxu0 %v5585
      %5730 = vmatprep.subr.mxu0 0.0
      %5731 = vmatpush2.msra.mxu0 0.0
      %5732 = vmatprep.subr.mxu0 0.0
      %5733 = vmatpush2.msra.mxu0 0.0
      %5734 = vmatprep.subr.mxu0 0.0
      %5735 = vmatpush2.msra.mxu0 0.0
      %5736 = vmatprep.subr.mxu0 0.0
      %5737 = vmatpush2.msra.mxu0 0.0
      %5738 = vmatprep.subr.mxu0 0.0
      %5739 = vmatpush2.msra.mxu0 0.0
      %5740 = vmatprep.subr.mxu0 0.0
      %5741 = vmatpush2.msra.mxu0 0.0
      %5742 = vmatprep.subr.mxu0 0.0
      %5743 = vmatpush2.msra.mxu0 0.0
      %5744 = vmatprep.subr.mxu0 0.0
      %5745 = vmatpush2.msra.mxu0 0.0
      %5746 = vmatprep.subr.mxu0 0.0
      %5747 = vmatpush2.msra.mxu0 0.0
      %5748 = vmatprep.subr.mxu0 0.0
      %5749 = vmatpush2.msra.mxu0 0.0
      %5750 = vmatprep.subr.mxu0 0.0
      %5751 = vmatpush2.msra.mxu0 0.0
      %5752 = vmatprep.subr.mxu0 0.0
      %5753 = vmatpush2.msra.mxu0 0.0
      %5754 = vmatprep.subr.mxu0 0.0
      %5755 = vmatpush2.msra.mxu0 0.0
      %5756 = vmatprep.subr.mxu0 0.0
      %5757 = vmatpush2.msra.mxu0 0.0
      %5758 = vmatprep.subr.mxu0 0.0
      %5759 = vmatpush2.msra.mxu0 0.0
      %5760 = vmatprep.subr.mxu0 0.0
      %5761 = vmatpush2.msra.mxu0 0.0
      %5762 = vmatprep.mubr.f32.mxu0 0.0
      %5763 = vmatmul.mubr.f32.gmra.mxu0 %v5625
      %v5764 = vpop.f32.mrf.mxu0
      %v5765 = vadd.f32 0.0, %v5764
      %v5766 = vpop.f32.mrf.mxu0
      %5767 = vdwg.mxu0
      %v5768 = vadd.f32 %v5575, %v5694
      %v5769 = vadd.f32 %v5576, %v5696
      %v5770 = vadd.f32 %v5577, %v5765
      %s5771 = scalar_lea.vmem %s6, 4
      %v5772 = vld [vmem:[%s5771] sm:$0x1]
      %5773 = vrot.lane.b32.xlu0 %v5020, 109
      %v5774 = vpop.permute.xlu0 %5773
      %5775 = vrot.lane.b32.xlu0 %v5021, 109
      %v5776 = vpop.permute.xlu0 %5775
      %5777 = vrot.lane.b32.xlu0 %v5022, 109
      %v5778 = vpop.permute.xlu0 %5777
      %5779 = vrot.lane.b32.xlu0 %v5023, 109
      %v5780 = vpop.permute.xlu0 %5779
      %5781 = vrot.lane.b32.xlu0 %v5024, 109
      %v5782 = vpop.permute.xlu0 %5781
      %5783 = vrot.lane.b32.xlu0 %v5025, 109
      %v5784 = vpop.permute.xlu0 %5783
      %5785 = vrot.lane.b32.xlu0 %v5026, 109
      %v5786 = vpop.permute.xlu0 %5785
      %5787 = vrot.lane.b32.xlu0 %v5027, 109
      %v5788 = vpop.permute.xlu0 %5787
      %5789 = vrot.lane.b32.xlu0 %v5028, 109
      %v5790 = vpop.permute.xlu0 %5789
      %5791 = vrot.lane.b32.xlu0 %v5029, 109
      %v5792 = vpop.permute.xlu0 %5791
      %5793 = vrot.lane.b32.xlu0 %v5030, 109
      %v5794 = vpop.permute.xlu0 %5793
      %5795 = vrot.lane.b32.xlu0 %v5031, 109
      %v5796 = vpop.permute.xlu0 %5795
      %v5797 = vsel %vm1361, %v5774, %v5776
      %v5798 = vsel %vm1361, %v5776, %v5778
      %v5799 = vsel %vm1361, %v5780, %v5782
      %v5800 = vsel %vm1361, %v5782, %v5784
      %v5801 = vsel %vm1361, %v5786, %v5788
      %v5802 = vsel %vm1361, %v5788, %v5790
      %v5803 = vsel %vm1361, %v5792, %v5794
      %v5804 = vsel %vm1361, %v5794, %v5796
      %v5818 = vsel %vm2671, %v5772, 0
      %5820 = vmatprep.subr.mxu0 0.0
      %5821 = vmatpush1.msra.mxu0 0.0
      %5822 = vmatprep.subr.mxu0 0.0
      %5823 = vmatpush1.msra.mxu0 0.0
      %5824 = vmatprep.subr.mxu0 0.0
      %5825 = vmatpush1.msra.mxu0 0.0
      %5826 = vmatprep.subr.mxu0 0.0
      %5827 = vmatpush1.msra.mxu0 0.0
      %5828 = vmatprep.subr.mxu0 0.0
      %5829 = vmatpush1.msra.mxu0 0.0
      %5830 = vmatprep.subr.mxu0 0.0
      %5831 = vmatpush1.msra.mxu0 0.0
      %5832 = vmatprep.subr.mxu0 0.0
      %5833 = vmatpush1.msra.mxu0 0.0
      %5834 = vmatprep.subr.mxu0 0.0
      %5835 = vmatpush1.msra.mxu0 0.0
      %5836 = vmatprep.subr.mxu0 0.0
      %5837 = vmatpush1.msra.mxu0 0.0
      %5838 = vmatprep.subr.mxu0 0.0
      %5839 = vmatpush1.msra.mxu0 0.0
      %5840 = vmatprep.subr.mxu0 0.0
      %5841 = vmatpush1.msra.mxu0 0.0
      %5842 = vmatprep.subr.mxu0 0.0
      %5843 = vmatpush1.msra.mxu0 0.0
      %5844 = vmatprep.subr.mxu0 %v5804
      %5845 = vmatpush1.msra.mxu0 %v5803
      %5846 = vmatprep.subr.mxu0 %v5802
      %5847 = vmatpush1.msra.mxu0 %v5801
      %5848 = vmatprep.subr.mxu0 %v5800
      %5849 = vmatpush1.msra.mxu0 %v5799
      %5850 = vmatprep.subr.mxu0 %v5798
      %5851 = vmatpush1.msra.mxu0 %v5797
      %5852 = vmatprep.subr.mxu0 0.0
      %5853 = vmatpush2.msra.mxu0 0.0
      %5854 = vmatprep.subr.mxu0 0.0
      %5855 = vmatpush2.msra.mxu0 0.0
      %5856 = vmatprep.subr.mxu0 0.0
      %5857 = vmatpush2.msra.mxu0 0.0
      %5858 = vmatprep.subr.mxu0 0.0
      %5859 = vmatpush2.msra.mxu0 0.0
      %5860 = vmatprep.subr.mxu0 0.0
      %5861 = vmatpush2.msra.mxu0 0.0
      %5862 = vmatprep.subr.mxu0 0.0
      %5863 = vmatpush2.msra.mxu0 0.0
      %5864 = vmatprep.subr.mxu0 0.0
      %5865 = vmatpush2.msra.mxu0 0.0
      %5866 = vmatprep.subr.mxu0 0.0
      %5867 = vmatpush2.msra.mxu0 0.0
      %5868 = vmatprep.subr.mxu0 0.0
      %5869 = vmatpush2.msra.mxu0 0.0
      %5870 = vmatprep.subr.mxu0 0.0
      %5871 = vmatpush2.msra.mxu0 0.0
      %5872 = vmatprep.subr.mxu0 0.0
      %5873 = vmatpush2.msra.mxu0 0.0
      %5874 = vmatprep.subr.mxu0 0.0
      %5875 = vmatpush2.msra.mxu0 0.0
      %5876 = vmatprep.subr.mxu0 0.0
      %5877 = vmatpush2.msra.mxu0 0.0
      %5878 = vmatprep.subr.mxu0 0.0
      %5879 = vmatpush2.msra.mxu0 0.0
      %5880 = vmatprep.subr.mxu0 0.0
      %5881 = vmatpush2.msra.mxu0 0.0
      %5882 = vmatprep.subr.mxu0 0.0
      %5883 = vmatpush2.msra.mxu0 0.0
      %5884 = vmatprep.mubr.f32.mxu0 0.0
      %5885 = vmatmul.mubr.f32.gmra.mxu0 %v5818
      %v5886 = vpop.f32.mrf.mxu0
      %v5887 = vadd.f32 0.0, %v5886
      %v5888 = vpop.f32.mrf.mxu0
      %v5889 = vadd.f32 0.0, %v5888
      %5890 = vdwg.mxu0
      %5891 = vmatprep.subr.mxu0 0.0
      %5892 = vmatpush1.msra.mxu0 0.0
      %5893 = vmatprep.subr.mxu0 0.0
      %5894 = vmatpush1.msra.mxu0 0.0
      %5895 = vmatprep.subr.mxu0 0.0
      %5896 = vmatpush1.msra.mxu0 0.0
      %5897 = vmatprep.subr.mxu0 0.0
      %5898 = vmatpush1.msra.mxu0 0.0
      %5899 = vmatprep.subr.mxu0 0.0
      %5900 = vmatpush1.msra.mxu0 0.0
      %5901 = vmatprep.subr.mxu0 0.0
      %5902 = vmatpush1.msra.mxu0 0.0
      %5903 = vmatprep.subr.mxu0 0.0
      %5904 = vmatpush1.msra.mxu0 0.0
      %5905 = vmatprep.subr.mxu0 0.0
      %5906 = vmatpush1.msra.mxu0 0.0
      %5907 = vmatprep.subr.mxu0 0.0
      %5908 = vmatpush1.msra.mxu0 0.0
      %5909 = vmatprep.subr.mxu0 0.0
      %5910 = vmatpush1.msra.mxu0 0.0
      %5911 = vmatprep.subr.mxu0 0.0
      %5912 = vmatpush1.msra.mxu0 0.0
      %5913 = vmatprep.subr.mxu0 0.0
      %5914 = vmatpush1.msra.mxu0 0.0
      %5915 = vmatprep.subr.mxu0 0.0
      %5916 = vmatpush1.msra.mxu0 %v5796
      %5917 = vmatprep.subr.mxu0 0.0
      %5918 = vmatpush1.msra.mxu0 %v5790
      %5919 = vmatprep.subr.mxu0 0.0
      %5920 = vmatpush1.msra.mxu0 %v5784
      %5921 = vmatprep.subr.mxu0 0.0
      %5922 = vmatpush1.msra.mxu0 %v5778
      %5923 = vmatprep.subr.mxu0 0.0
      %5924 = vmatpush2.msra.mxu0 0.0
      %5925 = vmatprep.subr.mxu0 0.0
      %5926 = vmatpush2.msra.mxu0 0.0
      %5927 = vmatprep.subr.mxu0 0.0
      %5928 = vmatpush2.msra.mxu0 0.0
      %5929 = vmatprep.subr.mxu0 0.0
      %5930 = vmatpush2.msra.mxu0 0.0
      %5931 = vmatprep.subr.mxu0 0.0
      %5932 = vmatpush2.msra.mxu0 0.0
      %5933 = vmatprep.subr.mxu0 0.0
      %5934 = vmatpush2.msra.mxu0 0.0
      %5935 = vmatprep.subr.mxu0 0.0
      %5936 = vmatpush2.msra.mxu0 0.0
      %5937 = vmatprep.subr.mxu0 0.0
      %5938 = vmatpush2.msra.mxu0 0.0
      %5939 = vmatprep.subr.mxu0 0.0
      %5940 = vmatpush2.msra.mxu0 0.0
      %5941 = vmatprep.subr.mxu0 0.0
      %5942 = vmatpush2.msra.mxu0 0.0
      %5943 = vmatprep.subr.mxu0 0.0
      %5944 = vmatpush2.msra.mxu0 0.0
      %5945 = vmatprep.subr.mxu0 0.0
      %5946 = vmatpush2.msra.mxu0 0.0
      %5947 = vmatprep.subr.mxu0 0.0
      %5948 = vmatpush2.msra.mxu0 0.0
      %5949 = vmatprep.subr.mxu0 0.0
      %5950 = vmatpush2.msra.mxu0 0.0
      %5951 = vmatprep.subr.mxu0 0.0
      %5952 = vmatpush2.msra.mxu0 0.0
      %5953 = vmatprep.subr.mxu0 0.0
      %5954 = vmatpush2.msra.mxu0 0.0
      %5955 = vmatprep.mubr.f32.mxu0 0.0
      %5956 = vmatmul.mubr.f32.gmra.mxu0 %v5818
      %v5957 = vpop.f32.mrf.mxu0
      %v5958 = vadd.f32 0.0, %v5957
      %v5959 = vpop.f32.mrf.mxu0
      %5960 = vdwg.mxu0
      %v5961 = vadd.f32 %v5768, %v5887
      %v5962 = vadd.f32 %v5769, %v5889
      %v5963 = vadd.f32 %v5770, %v5958
      %s5964 = scalar_lea.vmem %s6, 5
      %v5965 = vld [vmem:[%s5964] sm:$0x1]
      %5966 = vrot.lane.b32.xlu0 %v5020, 108
      %v5967 = vpop.permute.xlu0 %5966
      %5968 = vrot.lane.b32.xlu0 %v5021, 108
      %v5969 = vpop.permute.xlu0 %5968
      %5970 = vrot.lane.b32.xlu0 %v5022, 108
      %v5971 = vpop.permute.xlu0 %5970
      %5972 = vrot.lane.b32.xlu0 %v5023, 108
      %v5973 = vpop.permute.xlu0 %5972
      %5974 = vrot.lane.b32.xlu0 %v5024, 108
      %v5975 = vpop.permute.xlu0 %5974
      %5976 = vrot.lane.b32.xlu0 %v5025, 108
      %v5977 = vpop.permute.xlu0 %5976
      %5978 = vrot.lane.b32.xlu0 %v5026, 108
      %v5979 = vpop.permute.xlu0 %5978
      %5980 = vrot.lane.b32.xlu0 %v5027, 108
      %v5981 = vpop.permute.xlu0 %5980
      %5982 = vrot.lane.b32.xlu0 %v5028, 108
      %v5983 = vpop.permute.xlu0 %5982
      %5984 = vrot.lane.b32.xlu0 %v5029, 108
      %v5985 = vpop.permute.xlu0 %5984
      %5986 = vrot.lane.b32.xlu0 %v5030, 108
      %v5987 = vpop.permute.xlu0 %5986
      %5988 = vrot.lane.b32.xlu0 %v5031, 108
      %v5989 = vpop.permute.xlu0 %5988
      %v5990 = vsel %vm1584, %v5967, %v5969
      %v5991 = vsel %vm1584, %v5969, %v5971
      %v5992 = vsel %vm1584, %v5973, %v5975
      %v5993 = vsel %vm1584, %v5975, %v5977
      %v5994 = vsel %vm1584, %v5979, %v5981
      %v5995 = vsel %vm1584, %v5981, %v5983
      %v5996 = vsel %vm1584, %v5985, %v5987
      %v5997 = vsel %vm1584, %v5987, %v5989
      %v6011 = vsel %vm2671, %v5965, 0
      %6013 = vmatprep.subr.mxu0 0.0
      %6014 = vmatpush1.msra.mxu0 0.0
      %6015 = vmatprep.subr.mxu0 0.0
      %6016 = vmatpush1.msra.mxu0 0.0
      %6017 = vmatprep.subr.mxu0 0.0
      %6018 = vmatpush1.msra.mxu0 0.0
      %6019 = vmatprep.subr.mxu0 0.0
      %6020 = vmatpush1.msra.mxu0 0.0
      %6021 = vmatprep.subr.mxu0 0.0
      %6022 = vmatpush1.msra.mxu0 0.0
      %6023 = vmatprep.subr.mxu0 0.0
      %6024 = vmatpush1.msra.mxu0 0.0
      %6025 = vmatprep.subr.mxu0 0.0
      %6026 = vmatpush1.msra.mxu0 0.0
      %6027 = vmatprep.subr.mxu0 0.0
      %6028 = vmatpush1.msra.mxu0 0.0
      %6029 = vmatprep.subr.mxu0 0.0
      %6030 = vmatpush1.msra.mxu0 0.0
      %6031 = vmatprep.subr.mxu0 0.0
      %6032 = vmatpush1.msra.mxu0 0.0
      %6033 = vmatprep.subr.mxu0 0.0
      %6034 = vmatpush1.msra.mxu0 0.0
      %6035 = vmatprep.subr.mxu0 0.0
      %6036 = vmatpush1.msra.mxu0 0.0
      %6037 = vmatprep.subr.mxu0 %v5997
      %6038 = vmatpush1.msra.mxu0 %v5996
      %6039 = vmatprep.subr.mxu0 %v5995
      %6040 = vmatpush1.msra.mxu0 %v5994
      %6041 = vmatprep.subr.mxu0 %v5993
      %6042 = vmatpush1.msra.mxu0 %v5992
      %6043 = vmatprep.subr.mxu0 %v5991
      %6044 = vmatpush1.msra.mxu0 %v5990
      %6045 = vmatprep.subr.mxu0 0.0
      %6046 = vmatpush2.msra.mxu0 0.0
      %6047 = vmatprep.subr.mxu0 0.0
      %6048 = vmatpush2.msra.mxu0 0.0
      %6049 = vmatprep.subr.mxu0 0.0
      %6050 = vmatpush2.msra.mxu0 0.0
      %6051 = vmatprep.subr.mxu0 0.0
      %6052 = vmatpush2.msra.mxu0 0.0
      %6053 = vmatprep.subr.mxu0 0.0
      %6054 = vmatpush2.msra.mxu0 0.0
      %6055 = vmatprep.subr.mxu0 0.0
      %6056 = vmatpush2.msra.mxu0 0.0
      %6057 = vmatprep.subr.mxu0 0.0
      %6058 = vmatpush2.msra.mxu0 0.0
      %6059 = vmatprep.subr.mxu0 0.0
      %6060 = vmatpush2.msra.mxu0 0.0
      %6061 = vmatprep.subr.mxu0 0.0
      %6062 = vmatpush2.msra.mxu0 0.0
      %6063 = vmatprep.subr.mxu0 0.0
      %6064 = vmatpush2.msra.mxu0 0.0
      %6065 = vmatprep.subr.mxu0 0.0
      %6066 = vmatpush2.msra.mxu0 0.0
      %6067 = vmatprep.subr.mxu0 0.0
      %6068 = vmatpush2.msra.mxu0 0.0
      %6069 = vmatprep.subr.mxu0 0.0
      %6070 = vmatpush2.msra.mxu0 0.0
      %6071 = vmatprep.subr.mxu0 0.0
      %6072 = vmatpush2.msra.mxu0 0.0
      %6073 = vmatprep.subr.mxu0 0.0
      %6074 = vmatpush2.msra.mxu0 0.0
      %6075 = vmatprep.subr.mxu0 0.0
      %6076 = vmatpush2.msra.mxu0 0.0
      %6077 = vmatprep.mubr.f32.mxu0 0.0
      %6078 = vmatmul.mubr.f32.gmra.mxu0 %v6011
      %v6079 = vpop.f32.mrf.mxu0
      %v6080 = vadd.f32 0.0, %v6079
      %v6081 = vpop.f32.mrf.mxu0
      %v6082 = vadd.f32 0.0, %v6081
      %6083 = vdwg.mxu0
      %6084 = vmatprep.subr.mxu0 0.0
      %6085 = vmatpush1.msra.mxu0 0.0
      %6086 = vmatprep.subr.mxu0 0.0
      %6087 = vmatpush1.msra.mxu0 0.0
      %6088 = vmatprep.subr.mxu0 0.0
      %6089 = vmatpush1.msra.mxu0 0.0
      %6090 = vmatprep.subr.mxu0 0.0
      %6091 = vmatpush1.msra.mxu0 0.0
      %6092 = vmatprep.subr.mxu0 0.0
      %6093 = vmatpush1.msra.mxu0 0.0
      %6094 = vmatprep.subr.mxu0 0.0
      %6095 = vmatpush1.msra.mxu0 0.0
      %6096 = vmatprep.subr.mxu0 0.0
      %6097 = vmatpush1.msra.mxu0 0.0
      %6098 = vmatprep.subr.mxu0 0.0
      %6099 = vmatpush1.msra.mxu0 0.0
      %6100 = vmatprep.subr.mxu0 0.0
      %6101 = vmatpush1.msra.mxu0 0.0
      %6102 = vmatprep.subr.mxu0 0.0
      %6103 = vmatpush1.msra.mxu0 0.0
      %6104 = vmatprep.subr.mxu0 0.0
      %6105 = vmatpush1.msra.mxu0 0.0
      %6106 = vmatprep.subr.mxu0 0.0
      %6107 = vmatpush1.msra.mxu0 0.0
      %6108 = vmatprep.subr.mxu0 0.0
      %6109 = vmatpush1.msra.mxu0 %v5989
      %6110 = vmatprep.subr.mxu0 0.0
      %6111 = vmatpush1.msra.mxu0 %v5983
      %6112 = vmatprep.subr.mxu0 0.0
      %6113 = vmatpush1.msra.mxu0 %v5977
      %6114 = vmatprep.subr.mxu0 0.0
      %6115 = vmatpush1.msra.mxu0 %v5971
      %6116 = vmatprep.subr.mxu0 0.0
      %6117 = vmatpush2.msra.mxu0 0.0
      %6118 = vmatprep.subr.mxu0 0.0
      %6119 = vmatpush2.msra.mxu0 0.0
      %6120 = vmatprep.subr.mxu0 0.0
      %6121 = vmatpush2.msra.mxu0 0.0
      %6122 = vmatprep.subr.mxu0 0.0
      %6123 = vmatpush2.msra.mxu0 0.0
      %6124 = vmatprep.subr.mxu0 0.0
      %6125 = vmatpush2.msra.mxu0 0.0
      %6126 = vmatprep.subr.mxu0 0.0
      %6127 = vmatpush2.msra.mxu0 0.0
      %6128 = vmatprep.subr.mxu0 0.0
      %6129 = vmatpush2.msra.mxu0 0.0
      %6130 = vmatprep.subr.mxu0 0.0
      %6131 = vmatpush2.msra.mxu0 0.0
      %6132 = vmatprep.subr.mxu0 0.0
      %6133 = vmatpush2.msra.mxu0 0.0
      %6134 = vmatprep.subr.mxu0 0.0
      %6135 = vmatpush2.msra.mxu0 0.0
      %6136 = vmatprep.subr.mxu0 0.0
      %6137 = vmatpush2.msra.mxu0 0.0
      %6138 = vmatprep.subr.mxu0 0.0
      %6139 = vmatpush2.msra.mxu0 0.0
      %6140 = vmatprep.subr.mxu0 0.0
      %6141 = vmatpush2.msra.mxu0 0.0
      %6142 = vmatprep.subr.mxu0 0.0
      %6143 = vmatpush2.msra.mxu0 0.0
      %6144 = vmatprep.subr.mxu0 0.0
      %6145 = vmatpush2.msra.mxu0 0.0
      %6146 = vmatprep.subr.mxu0 0.0
      %6147 = vmatpush2.msra.mxu0 0.0
      %6148 = vmatprep.mubr.f32.mxu0 0.0
      %6149 = vmatmul.mubr.f32.gmra.mxu0 %v6011
      %v6150 = vpop.f32.mrf.mxu0
      %v6151 = vadd.f32 0.0, %v6150
      %v6152 = vpop.f32.mrf.mxu0
      %6153 = vdwg.mxu0
      %v6154 = vadd.f32 %v5961, %v6080
      %v6155 = vadd.f32 %v5962, %v6082
      %v6156 = vadd.f32 %v5963, %v6151
      %s6157 = scalar_lea.vmem %s6, 6
      %v6158 = vld [vmem:[%s6157] sm:$0x1]
      %6159 = vrot.lane.b32.xlu0 %v5020, 92
      %v6160 = vpop.permute.xlu0 %6159
      %6161 = vrot.lane.b32.xlu0 %v5021, 92
      %v6162 = vpop.permute.xlu0 %6161
      %6163 = vrot.lane.b32.xlu0 %v5022, 92
      %v6164 = vpop.permute.xlu0 %6163
      %6165 = vrot.lane.b32.xlu0 %v5023, 92
      %v6166 = vpop.permute.xlu0 %6165
      %6167 = vrot.lane.b32.xlu0 %v5024, 92
      %v6168 = vpop.permute.xlu0 %6167
      %6169 = vrot.lane.b32.xlu0 %v5025, 92
      %v6170 = vpop.permute.xlu0 %6169
      %6171 = vrot.lane.b32.xlu0 %v5026, 92
      %v6172 = vpop.permute.xlu0 %6171
      %6173 = vrot.lane.b32.xlu0 %v5027, 92
      %v6174 = vpop.permute.xlu0 %6173
      %6175 = vrot.lane.b32.xlu0 %v5028, 92
      %v6176 = vpop.permute.xlu0 %6175
      %6177 = vrot.lane.b32.xlu0 %v5029, 92
      %v6178 = vpop.permute.xlu0 %6177
      %6179 = vrot.lane.b32.xlu0 %v5030, 92
      %v6180 = vpop.permute.xlu0 %6179
      %6181 = vrot.lane.b32.xlu0 %v5031, 92
      %v6182 = vpop.permute.xlu0 %6181
      %v6183 = vsel %vm1807, %v6160, %v6162
      %v6184 = vsel %vm1807, %v6162, %v6164
      %v6185 = vsel %vm1807, %v6166, %v6168
      %v6186 = vsel %vm1807, %v6168, %v6170
      %v6187 = vsel %vm1807, %v6172, %v6174
      %v6188 = vsel %vm1807, %v6174, %v6176
      %v6189 = vsel %vm1807, %v6178, %v6180
      %v6190 = vsel %vm1807, %v6180, %v6182
      %v6204 = vsel %vm2671, %v6158, 0
      %6206 = vmatprep.subr.mxu0 0.0
      %6207 = vmatpush1.msra.mxu0 0.0
      %6208 = vmatprep.subr.mxu0 0.0
      %6209 = vmatpush1.msra.mxu0 0.0
      %6210 = vmatprep.subr.mxu0 0.0
      %6211 = vmatpush1.msra.mxu0 0.0
      %6212 = vmatprep.subr.mxu0 0.0
      %6213 = vmatpush1.msra.mxu0 0.0
      %6214 = vmatprep.subr.mxu0 0.0
      %6215 = vmatpush1.msra.mxu0 0.0
      %6216 = vmatprep.subr.mxu0 0.0
      %6217 = vmatpush1.msra.mxu0 0.0
      %6218 = vmatprep.subr.mxu0 0.0
      %6219 = vmatpush1.msra.mxu0 0.0
      %6220 = vmatprep.subr.mxu0 0.0
      %6221 = vmatpush1.msra.mxu0 0.0
      %6222 = vmatprep.subr.mxu0 0.0
      %6223 = vmatpush1.msra.mxu0 0.0
      %6224 = vmatprep.subr.mxu0 0.0
      %6225 = vmatpush1.msra.mxu0 0.0
      %6226 = vmatprep.subr.mxu0 0.0
      %6227 = vmatpush1.msra.mxu0 0.0
      %6228 = vmatprep.subr.mxu0 0.0
      %6229 = vmatpush1.msra.mxu0 0.0
      %6230 = vmatprep.subr.mxu0 %v6190
      %6231 = vmatpush1.msra.mxu0 %v6189
      %6232 = vmatprep.subr.mxu0 %v6188
      %6233 = vmatpush1.msra.mxu0 %v6187
      %6234 = vmatprep.subr.mxu0 %v6186
      %6235 = vmatpush1.msra.mxu0 %v6185
      %6236 = vmatprep.subr.mxu0 %v6184
      %6237 = vmatpush1.msra.mxu0 %v6183
      %6238 = vmatprep.subr.mxu0 0.0
      %6239 = vmatpush2.msra.mxu0 0.0
      %6240 = vmatprep.subr.mxu0 0.0
      %6241 = vmatpush2.msra.mxu0 0.0
      %6242 = vmatprep.subr.mxu0 0.0
      %6243 = vmatpush2.msra.mxu0 0.0
      %6244 = vmatprep.subr.mxu0 0.0
      %6245 = vmatpush2.msra.mxu0 0.0
      %6246 = vmatprep.subr.mxu0 0.0
      %6247 = vmatpush2.msra.mxu0 0.0
      %6248 = vmatprep.subr.mxu0 0.0
      %6249 = vmatpush2.msra.mxu0 0.0
      %6250 = vmatprep.subr.mxu0 0.0
      %6251 = vmatpush2.msra.mxu0 0.0
      %6252 = vmatprep.subr.mxu0 0.0
      %6253 = vmatpush2.msra.mxu0 0.0
      %6254 = vmatprep.subr.mxu0 0.0
      %6255 = vmatpush2.msra.mxu0 0.0
      %6256 = vmatprep.subr.mxu0 0.0
      %6257 = vmatpush2.msra.mxu0 0.0
      %6258 = vmatprep.subr.mxu0 0.0
      %6259 = vmatpush2.msra.mxu0 0.0
      %6260 = vmatprep.subr.mxu0 0.0
      %6261 = vmatpush2.msra.mxu0 0.0
      %6262 = vmatprep.subr.mxu0 0.0
      %6263 = vmatpush2.msra.mxu0 0.0
      %6264 = vmatprep.subr.mxu0 0.0
      %6265 = vmatpush2.msra.mxu0 0.0
      %6266 = vmatprep.subr.mxu0 0.0
      %6267 = vmatpush2.msra.mxu0 0.0
      %6268 = vmatprep.subr.mxu0 0.0
      %6269 = vmatpush2.msra.mxu0 0.0
      %6270 = vmatprep.mubr.f32.mxu0 0.0
      %6271 = vmatmul.mubr.f32.gmra.mxu0 %v6204
      %v6272 = vpop.f32.mrf.mxu0
      %v6273 = vadd.f32 0.0, %v6272
      %v6274 = vpop.f32.mrf.mxu0
      %v6275 = vadd.f32 0.0, %v6274
      %6276 = vdwg.mxu0
      %6277 = vmatprep.subr.mxu0 0.0
      %6278 = vmatpush1.msra.mxu0 0.0
      %6279 = vmatprep.subr.mxu0 0.0
      %6280 = vmatpush1.msra.mxu0 0.0
      %6281 = vmatprep.subr.mxu0 0.0
      %6282 = vmatpush1.msra.mxu0 0.0
      %6283 = vmatprep.subr.mxu0 0.0
      %6284 = vmatpush1.msra.mxu0 0.0
      %6285 = vmatprep.subr.mxu0 0.0
      %6286 = vmatpush1.msra.mxu0 0.0
      %6287 = vmatprep.subr.mxu0 0.0
      %6288 = vmatpush1.msra.mxu0 0.0
      %6289 = vmatprep.subr.mxu0 0.0
      %6290 = vmatpush1.msra.mxu0 0.0
      %6291 = vmatprep.subr.mxu0 0.0
      %6292 = vmatpush1.msra.mxu0 0.0
      %6293 = vmatprep.subr.mxu0 0.0
      %6294 = vmatpush1.msra.mxu0 0.0
      %6295 = vmatprep.subr.mxu0 0.0
      %6296 = vmatpush1.msra.mxu0 0.0
      %6297 = vmatprep.subr.mxu0 0.0
      %6298 = vmatpush1.msra.mxu0 0.0
      %6299 = vmatprep.subr.mxu0 0.0
      %6300 = vmatpush1.msra.mxu0 0.0
      %6301 = vmatprep.subr.mxu0 0.0
      %6302 = vmatpush1.msra.mxu0 %v6182
      %6303 = vmatprep.subr.mxu0 0.0
      %6304 = vmatpush1.msra.mxu0 %v6176
      %6305 = vmatprep.subr.mxu0 0.0
      %6306 = vmatpush1.msra.mxu0 %v6170
      %6307 = vmatprep.subr.mxu0 0.0
      %6308 = vmatpush1.msra.mxu0 %v6164
      %6309 = vmatprep.subr.mxu0 0.0
      %6310 = vmatpush2.msra.mxu0 0.0
      %6311 = vmatprep.subr.mxu0 0.0
      %6312 = vmatpush2.msra.mxu0 0.0
      %6313 = vmatprep.subr.mxu0 0.0
      %6314 = vmatpush2.msra.mxu0 0.0
      %6315 = vmatprep.subr.mxu0 0.0
      %6316 = vmatpush2.msra.mxu0 0.0
      %6317 = vmatprep.subr.mxu0 0.0
      %6318 = vmatpush2.msra.mxu0 0.0
      %6319 = vmatprep.subr.mxu0 0.0
      %6320 = vmatpush2.msra.mxu0 0.0
      %6321 = vmatprep.subr.mxu0 0.0
      %6322 = vmatpush2.msra.mxu0 0.0
      %6323 = vmatprep.subr.mxu0 0.0
      %6324 = vmatpush2.msra.mxu0 0.0
      %6325 = vmatprep.subr.mxu0 0.0
      %6326 = vmatpush2.msra.mxu0 0.0
      %6327 = vmatprep.subr.mxu0 0.0
      %6328 = vmatpush2.msra.mxu0 0.0
      %6329 = vmatprep.subr.mxu0 0.0
      %6330 = vmatpush2.msra.mxu0 0.0
      %6331 = vmatprep.subr.mxu0 0.0
      %6332 = vmatpush2.msra.mxu0 0.0
      %6333 = vmatprep.subr.mxu0 0.0
      %6334 = vmatpush2.msra.mxu0 0.0
      %6335 = vmatprep.subr.mxu0 0.0
      %6336 = vmatpush2.msra.mxu0 0.0
      %6337 = vmatprep.subr.mxu0 0.0
      %6338 = vmatpush2.msra.mxu0 0.0
      %6339 = vmatprep.subr.mxu0 0.0
      %6340 = vmatpush2.msra.mxu0 0.0
      %6341 = vmatprep.mubr.f32.mxu0 0.0
      %6342 = vmatmul.mubr.f32.gmra.mxu0 %v6204
      %v6343 = vpop.f32.mrf.mxu0
      %v6344 = vadd.f32 0.0, %v6343
      %v6345 = vpop.f32.mrf.mxu0
      %6346 = vdwg.mxu0
      %v6347 = vadd.f32 %v6154, %v6273
      %v6348 = vadd.f32 %v6155, %v6275
      %v6349 = vadd.f32 %v6156, %v6344
      %s6350 = scalar_lea.vmem %s6, 7
      %v6351 = vld [vmem:[%s6350] sm:$0x1]
      %6352 = vrot.lane.b32.xlu0 %v5020, 91
      %v6353 = vpop.permute.xlu0 %6352
      %6354 = vrot.lane.b32.xlu0 %v5021, 91
      %v6355 = vpop.permute.xlu0 %6354
      %6356 = vrot.lane.b32.xlu0 %v5022, 91
      %v6357 = vpop.permute.xlu0 %6356
      %6358 = vrot.lane.b32.xlu0 %v5023, 91
      %v6359 = vpop.permute.xlu0 %6358
      %6360 = vrot.lane.b32.xlu0 %v5024, 91
      %v6361 = vpop.permute.xlu0 %6360
      %6362 = vrot.lane.b32.xlu0 %v5025, 91
      %v6363 = vpop.permute.xlu0 %6362
      %6364 = vrot.lane.b32.xlu0 %v5026, 91
      %v6365 = vpop.permute.xlu0 %6364
      %6366 = vrot.lane.b32.xlu0 %v5027, 91
      %v6367 = vpop.permute.xlu0 %6366
      %6368 = vrot.lane.b32.xlu0 %v5028, 91
      %v6369 = vpop.permute.xlu0 %6368
      %6370 = vrot.lane.b32.xlu0 %v5029, 91
      %v6371 = vpop.permute.xlu0 %6370
      %6372 = vrot.lane.b32.xlu0 %v5030, 91
      %v6373 = vpop.permute.xlu0 %6372
      %6374 = vrot.lane.b32.xlu0 %v5031, 91
      %v6375 = vpop.permute.xlu0 %6374
      %v6376 = vsel %vm2030, %v6353, %v6355
      %v6377 = vsel %vm2030, %v6355, %v6357
      %v6378 = vsel %vm2030, %v6359, %v6361
      %v6379 = vsel %vm2030, %v6361, %v6363
      %v6380 = vsel %vm2030, %v6365, %v6367
      %v6381 = vsel %vm2030, %v6367, %v6369
      %v6382 = vsel %vm2030, %v6371, %v6373
      %v6383 = vsel %vm2030, %v6373, %v6375
      %v6397 = vsel %vm2671, %v6351, 0
      %6399 = vmatprep.subr.mxu0 0.0
      %6400 = vmatpush1.msra.mxu0 0.0
      %6401 = vmatprep.subr.mxu0 0.0
      %6402 = vmatpush1.msra.mxu0 0.0
      %6403 = vmatprep.subr.mxu0 0.0
      %6404 = vmatpush1.msra.mxu0 0.0
      %6405 = vmatprep.subr.mxu0 0.0
      %6406 = vmatpush1.msra.mxu0 0.0
      %6407 = vmatprep.subr.mxu0 0.0
      %6408 = vmatpush1.msra.mxu0 0.0
      %6409 = vmatprep.subr.mxu0 0.0
      %6410 = vmatpush1.msra.mxu0 0.0
      %6411 = vmatprep.subr.mxu0 0.0
      %6412 = vmatpush1.msra.mxu0 0.0
      %6413 = vmatprep.subr.mxu0 0.0
      %6414 = vmatpush1.msra.mxu0 0.0
      %6415 = vmatprep.subr.mxu0 0.0
      %6416 = vmatpush1.msra.mxu0 0.0
      %6417 = vmatprep.subr.mxu0 0.0
      %6418 = vmatpush1.msra.mxu0 0.0
      %6419 = vmatprep.subr.mxu0 0.0
      %6420 = vmatpush1.msra.mxu0 0.0
      %6421 = vmatprep.subr.mxu0 0.0
      %6422 = vmatpush1.msra.mxu0 0.0
      %6423 = vmatprep.subr.mxu0 %v6383
      %6424 = vmatpush1.msra.mxu0 %v6382
      %6425 = vmatprep.subr.mxu0 %v6381
      %6426 = vmatpush1.msra.mxu0 %v6380
      %6427 = vmatprep.subr.mxu0 %v6379
      %6428 = vmatpush1.msra.mxu0 %v6378
      %6429 = vmatprep.subr.mxu0 %v6377
      %6430 = vmatpush1.msra.mxu0 %v6376
      %6431 = vmatprep.subr.mxu0 0.0
      %6432 = vmatpush2.msra.mxu0 0.0
      %6433 = vmatprep.subr.mxu0 0.0
      %6434 = vmatpush2.msra.mxu0 0.0
      %6435 = vmatprep.subr.mxu0 0.0
      %6436 = vmatpush2.msra.mxu0 0.0
      %6437 = vmatprep.subr.mxu0 0.0
      %6438 = vmatpush2.msra.mxu0 0.0
      %6439 = vmatprep.subr.mxu0 0.0
      %6440 = vmatpush2.msra.mxu0 0.0
      %6441 = vmatprep.subr.mxu0 0.0
      %6442 = vmatpush2.msra.mxu0 0.0
      %6443 = vmatprep.subr.mxu0 0.0
      %6444 = vmatpush2.msra.mxu0 0.0
      %6445 = vmatprep.subr.mxu0 0.0
      %6446 = vmatpush2.msra.mxu0 0.0
      %6447 = vmatprep.subr.mxu0 0.0
      %6448 = vmatpush2.msra.mxu0 0.0
      %6449 = vmatprep.subr.mxu0 0.0
      %6450 = vmatpush2.msra.mxu0 0.0
      %6451 = vmatprep.subr.mxu0 0.0
      %6452 = vmatpush2.msra.mxu0 0.0
      %6453 = vmatprep.subr.mxu0 0.0
      %6454 = vmatpush2.msra.mxu0 0.0
      %6455 = vmatprep.subr.mxu0 0.0
      %6456 = vmatpush2.msra.mxu0 0.0
      %6457 = vmatprep.subr.mxu0 0.0
      %6458 = vmatpush2.msra.mxu0 0.0
      %6459 = vmatprep.subr.mxu0 0.0
      %6460 = vmatpush2.msra.mxu0 0.0
      %6461 = vmatprep.subr.mxu0 0.0
      %6462 = vmatpush2.msra.mxu0 0.0
      %6463 = vmatprep.mubr.f32.mxu0 0.0
      %6464 = vmatmul.mubr.f32.gmra.mxu0 %v6397
      %v6465 = vpop.f32.mrf.mxu0
      %v6466 = vadd.f32 0.0, %v6465
      %v6467 = vpop.f32.mrf.mxu0
      %v6468 = vadd.f32 0.0, %v6467
      %6469 = vdwg.mxu0
      %6470 = vmatprep.subr.mxu0 0.0
      %6471 = vmatpush1.msra.mxu0 0.0
      %6472 = vmatprep.subr.mxu0 0.0
      %6473 = vmatpush1.msra.mxu0 0.0
      %6474 = vmatprep.subr.mxu0 0.0
      %6475 = vmatpush1.msra.mxu0 0.0
      %6476 = vmatprep.subr.mxu0 0.0
      %6477 = vmatpush1.msra.mxu0 0.0
      %6478 = vmatprep.subr.mxu0 0.0
      %6479 = vmatpush1.msra.mxu0 0.0
      %6480 = vmatprep.subr.mxu0 0.0
      %6481 = vmatpush1.msra.mxu0 0.0
      %6482 = vmatprep.subr.mxu0 0.0
      %6483 = vmatpush1.msra.mxu0 0.0
      %6484 = vmatprep.subr.mxu0 0.0
      %6485 = vmatpush1.msra.mxu0 0.0
      %6486 = vmatprep.subr.mxu0 0.0
      %6487 = vmatpush1.msra.mxu0 0.0
      %6488 = vmatprep.subr.mxu0 0.0
      %6489 = vmatpush1.msra.mxu0 0.0
      %6490 = vmatprep.subr.mxu0 0.0
      %6491 = vmatpush1.msra.mxu0 0.0
      %6492 = vmatprep.subr.mxu0 0.0
      %6493 = vmatpush1.msra.mxu0 0.0
      %6494 = vmatprep.subr.mxu0 0.0
      %6495 = vmatpush1.msra.mxu0 %v6375
      %6496 = vmatprep.subr.mxu0 0.0
      %6497 = vmatpush1.msra.mxu0 %v6369
      %6498 = vmatprep.subr.mxu0 0.0
      %6499 = vmatpush1.msra.mxu0 %v6363
      %6500 = vmatprep.subr.mxu0 0.0
      %6501 = vmatpush1.msra.mxu0 %v6357
      %6502 = vmatprep.subr.mxu0 0.0
      %6503 = vmatpush2.msra.mxu0 0.0
      %6504 = vmatprep.subr.mxu0 0.0
      %6505 = vmatpush2.msra.mxu0 0.0
      %6506 = vmatprep.subr.mxu0 0.0
      %6507 = vmatpush2.msra.mxu0 0.0
      %6508 = vmatprep.subr.mxu0 0.0
      %6509 = vmatpush2.msra.mxu0 0.0
      %6510 = vmatprep.subr.mxu0 0.0
      %6511 = vmatpush2.msra.mxu0 0.0
      %6512 = vmatprep.subr.mxu0 0.0
      %6513 = vmatpush2.msra.mxu0 0.0
      %6514 = vmatprep.subr.mxu0 0.0
      %6515 = vmatpush2.msra.mxu0 0.0
      %6516 = vmatprep.subr.mxu0 0.0
      %6517 = vmatpush2.msra.mxu0 0.0
      %6518 = vmatprep.subr.mxu0 0.0
      %6519 = vmatpush2.msra.mxu0 0.0
      %6520 = vmatprep.subr.mxu0 0.0
      %6521 = vmatpush2.msra.mxu0 0.0
      %6522 = vmatprep.subr.mxu0 0.0
      %6523 = vmatpush2.msra.mxu0 0.0
      %6524 = vmatprep.subr.mxu0 0.0
      %6525 = vmatpush2.msra.mxu0 0.0
      %6526 = vmatprep.subr.mxu0 0.0
      %6527 = vmatpush2.msra.mxu0 0.0
      %6528 = vmatprep.subr.mxu0 0.0
      %6529 = vmatpush2.msra.mxu0 0.0
      %6530 = vmatprep.subr.mxu0 0.0
      %6531 = vmatpush2.msra.mxu0 0.0
      %6532 = vmatprep.subr.mxu0 0.0
      %6533 = vmatpush2.msra.mxu0 0.0
      %6534 = vmatprep.mubr.f32.mxu0 0.0
      %6535 = vmatmul.mubr.f32.gmra.mxu0 %v6397
      %v6536 = vpop.f32.mrf.mxu0
      %v6537 = vadd.f32 0.0, %v6536
      %v6538 = vpop.f32.mrf.mxu0
      %6539 = vdwg.mxu0
      %v6540 = vadd.f32 %v6347, %v6466
      %v6541 = vadd.f32 %v6348, %v6468
      %v6542 = vadd.f32 %v6349, %v6537
      %s6543 = scalar_lea.vmem %s6, 8
      %v6544 = vld [vmem:[%s6543] sm:$0x1]
      %6545 = vrot.lane.b32.xlu0 %v5020, 90
      %v6546 = vpop.permute.xlu0 %6545
      %6547 = vrot.lane.b32.xlu0 %v5021, 90
      %v6548 = vpop.permute.xlu0 %6547
      %6549 = vrot.lane.b32.xlu0 %v5022, 90
      %v6550 = vpop.permute.xlu0 %6549
      %6551 = vrot.lane.b32.xlu0 %v5023, 90
      %v6552 = vpop.permute.xlu0 %6551
      %6553 = vrot.lane.b32.xlu0 %v5024, 90
      %v6554 = vpop.permute.xlu0 %6553
      %6555 = vrot.lane.b32.xlu0 %v5025, 90
      %v6556 = vpop.permute.xlu0 %6555
      %6557 = vrot.lane.b32.xlu0 %v5026, 90
      %v6558 = vpop.permute.xlu0 %6557
      %6559 = vrot.lane.b32.xlu0 %v5027, 90
      %v6560 = vpop.permute.xlu0 %6559
      %6561 = vrot.lane.b32.xlu0 %v5028, 90
      %v6562 = vpop.permute.xlu0 %6561
      %6563 = vrot.lane.b32.xlu0 %v5029, 90
      %v6564 = vpop.permute.xlu0 %6563
      %6565 = vrot.lane.b32.xlu0 %v5030, 90
      %v6566 = vpop.permute.xlu0 %6565
      %6567 = vrot.lane.b32.xlu0 %v5031, 90
      %v6568 = vpop.permute.xlu0 %6567
      %v6569 = vsel %vm2253, %v6546, %v6548
      %v6570 = vsel %vm2253, %v6548, %v6550
      %v6571 = vsel %vm2253, %v6552, %v6554
      %v6572 = vsel %vm2253, %v6554, %v6556
      %v6573 = vsel %vm2253, %v6558, %v6560
      %v6574 = vsel %vm2253, %v6560, %v6562
      %v6575 = vsel %vm2253, %v6564, %v6566
      %v6576 = vsel %vm2253, %v6566, %v6568
      %v6590 = vsel %vm2671, %v6544, 0
      %6592 = vmatprep.subr.mxu0 0.0
      %6593 = vmatpush1.msra.mxu0 0.0
      %6594 = vmatprep.subr.mxu0 0.0
      %6595 = vmatpush1.msra.mxu0 0.0
      %6596 = vmatprep.subr.mxu0 0.0
      %6597 = vmatpush1.msra.mxu0 0.0
      %6598 = vmatprep.subr.mxu0 0.0
      %6599 = vmatpush1.msra.mxu0 0.0
      %6600 = vmatprep.subr.mxu0 0.0
      %6601 = vmatpush1.msra.mxu0 0.0
      %6602 = vmatprep.subr.mxu0 0.0
      %6603 = vmatpush1.msra.mxu0 0.0
      %6604 = vmatprep.subr.mxu0 0.0
      %6605 = vmatpush1.msra.mxu0 0.0
      %6606 = vmatprep.subr.mxu0 0.0
      %6607 = vmatpush1.msra.mxu0 0.0
      %6608 = vmatprep.subr.mxu0 0.0
      %6609 = vmatpush1.msra.mxu0 0.0
      %6610 = vmatprep.subr.mxu0 0.0
      %6611 = vmatpush1.msra.mxu0 0.0
      %6612 = vmatprep.subr.mxu0 0.0
      %6613 = vmatpush1.msra.mxu0 0.0
      %6614 = vmatprep.subr.mxu0 0.0
      %6615 = vmatpush1.msra.mxu0 0.0
      %6616 = vmatprep.subr.mxu0 %v6576
      %6617 = vmatpush1.msra.mxu0 %v6575
      %6618 = vmatprep.subr.mxu0 %v6574
      %6619 = vmatpush1.msra.mxu0 %v6573
      %6620 = vmatprep.subr.mxu0 %v6572
      %6621 = vmatpush1.msra.mxu0 %v6571
      %6622 = vmatprep.subr.mxu0 %v6570
      %6623 = vmatpush1.msra.mxu0 %v6569
      %6624 = vmatprep.subr.mxu0 0.0
      %6625 = vmatpush2.msra.mxu0 0.0
      %6626 = vmatprep.subr.mxu0 0.0
      %6627 = vmatpush2.msra.mxu0 0.0
      %6628 = vmatprep.subr.mxu0 0.0
      %6629 = vmatpush2.msra.mxu0 0.0
      %6630 = vmatprep.subr.mxu0 0.0
      %6631 = vmatpush2.msra.mxu0 0.0
      %6632 = vmatprep.subr.mxu0 0.0
      %6633 = vmatpush2.msra.mxu0 0.0
      %6634 = vmatprep.subr.mxu0 0.0
      %6635 = vmatpush2.msra.mxu0 0.0
      %6636 = vmatprep.subr.mxu0 0.0
      %6637 = vmatpush2.msra.mxu0 0.0
      %6638 = vmatprep.subr.mxu0 0.0
      %6639 = vmatpush2.msra.mxu0 0.0
      %6640 = vmatprep.subr.mxu0 0.0
      %6641 = vmatpush2.msra.mxu0 0.0
      %6642 = vmatprep.subr.mxu0 0.0
      %6643 = vmatpush2.msra.mxu0 0.0
      %6644 = vmatprep.subr.mxu0 0.0
      %6645 = vmatpush2.msra.mxu0 0.0
      %6646 = vmatprep.subr.mxu0 0.0
      %6647 = vmatpush2.msra.mxu0 0.0
      %6648 = vmatprep.subr.mxu0 0.0
      %6649 = vmatpush2.msra.mxu0 0.0
      %6650 = vmatprep.subr.mxu0 0.0
      %6651 = vmatpush2.msra.mxu0 0.0
      %6652 = vmatprep.subr.mxu0 0.0
      %6653 = vmatpush2.msra.mxu0 0.0
      %6654 = vmatprep.subr.mxu0 0.0
      %6655 = vmatpush2.msra.mxu0 0.0
      %6656 = vmatprep.mubr.f32.mxu0 0.0
      %6657 = vmatmul.mubr.f32.gmra.mxu0 %v6590
      %v6658 = vpop.f32.mrf.mxu0
      %v6659 = vadd.f32 0.0, %v6658
      %v6660 = vpop.f32.mrf.mxu0
      %v6661 = vadd.f32 0.0, %v6660
      %6662 = vdwg.mxu0
      %6663 = vmatprep.subr.mxu0 0.0
      %6664 = vmatpush1.msra.mxu0 0.0
      %6665 = vmatprep.subr.mxu0 0.0
      %6666 = vmatpush1.msra.mxu0 0.0
      %6667 = vmatprep.subr.mxu0 0.0
      %6668 = vmatpush1.msra.mxu0 0.0
      %6669 = vmatprep.subr.mxu0 0.0
      %6670 = vmatpush1.msra.mxu0 0.0
      %6671 = vmatprep.subr.mxu0 0.0
      %6672 = vmatpush1.msra.mxu0 0.0
      %6673 = vmatprep.subr.mxu0 0.0
      %6674 = vmatpush1.msra.mxu0 0.0
      %6675 = vmatprep.subr.mxu0 0.0
      %6676 = vmatpush1.msra.mxu0 0.0
      %6677 = vmatprep.subr.mxu0 0.0
      %6678 = vmatpush1.msra.mxu0 0.0
      %6679 = vmatprep.subr.mxu0 0.0
      %6680 = vmatpush1.msra.mxu0 0.0
      %6681 = vmatprep.subr.mxu0 0.0
      %6682 = vmatpush1.msra.mxu0 0.0
      %6683 = vmatprep.subr.mxu0 0.0
      %6684 = vmatpush1.msra.mxu0 0.0
      %6685 = vmatprep.subr.mxu0 0.0
      %6686 = vmatpush1.msra.mxu0 0.0
      %6687 = vmatprep.subr.mxu0 0.0
      %6688 = vmatpush1.msra.mxu0 %v6568
      %6689 = vmatprep.subr.mxu0 0.0
      %6690 = vmatpush1.msra.mxu0 %v6562
      %6691 = vmatprep.subr.mxu0 0.0
      %6692 = vmatpush1.msra.mxu0 %v6556
      %6693 = vmatprep.subr.mxu0 0.0
      %6694 = vmatpush1.msra.mxu0 %v6550
      %6695 = vmatprep.subr.mxu0 0.0
      %6696 = vmatpush2.msra.mxu0 0.0
      %6697 = vmatprep.subr.mxu0 0.0
      %6698 = vmatpush2.msra.mxu0 0.0
      %6699 = vmatprep.subr.mxu0 0.0
      %6700 = vmatpush2.msra.mxu0 0.0
      %6701 = vmatprep.subr.mxu0 0.0
      %6702 = vmatpush2.msra.mxu0 0.0
      %6703 = vmatprep.subr.mxu0 0.0
      %6704 = vmatpush2.msra.mxu0 0.0
      %6705 = vmatprep.subr.mxu0 0.0
      %6706 = vmatpush2.msra.mxu0 0.0
      %6707 = vmatprep.subr.mxu0 0.0
      %6708 = vmatpush2.msra.mxu0 0.0
      %6709 = vmatprep.subr.mxu0 0.0
      %6710 = vmatpush2.msra.mxu0 0.0
      %6711 = vmatprep.subr.mxu0 0.0
      %6712 = vmatpush2.msra.mxu0 0.0
      %6713 = vmatprep.subr.mxu0 0.0
      %6714 = vmatpush2.msra.mxu0 0.0
      %6715 = vmatprep.subr.mxu0 0.0
      %6716 = vmatpush2.msra.mxu0 0.0
      %6717 = vmatprep.subr.mxu0 0.0
      %6718 = vmatpush2.msra.mxu0 0.0
      %6719 = vmatprep.subr.mxu0 0.0
      %6720 = vmatpush2.msra.mxu0 0.0
      %6721 = vmatprep.subr.mxu0 0.0
      %6722 = vmatpush2.msra.mxu0 0.0
      %6723 = vmatprep.subr.mxu0 0.0
      %6724 = vmatpush2.msra.mxu0 0.0
      %6725 = vmatprep.subr.mxu0 0.0
      %6726 = vmatpush2.msra.mxu0 0.0
      %6727 = vmatprep.mubr.f32.mxu0 0.0
      %6728 = vmatmul.mubr.f32.gmra.mxu0 %v6590
      %v6729 = vpop.f32.mrf.mxu0
      %v6730 = vadd.f32 0.0, %v6729
      %v6731 = vpop.f32.mrf.mxu0
      %6732 = vdwg.mxu0
      %v6733 = vadd.f32 %v6540, %v6659
      %v6734 = vadd.f32 %v6541, %v6661
      %v6735 = vadd.f32 %v6542, %v6730
      %v6739 = vcombine.low %v6733, %v6734
      %v6741 = vunpack.c.l.s4 1966171168
      %v6742 = vunpack.c.0.s8 %v6741
      %v6743 = vlaneseq
      %v6744 = vshrl.u32 %v6743, 7
      %v6745 = vsub.s32 %v6742, %v6744
      %v6746 = vrot.slane %v6739, %v6745
      %v6748 = vunpack.c.l.s4 1966171168
      %v6749 = vunpack.c.0.s8 %v6748
      %v6750 = vlaneseq
      %v6751 = vshrl.u32 %v6750, 7
      %v6752 = vsub.s32 %v6749, %v6751
      %v6753 = vrot.slane %v6735, %v6752
      %v6754 = vcombine.low %v6746, %v6753
      %v6756 = vunpack.c.l.s4 1966171168
      %v6757 = vunpack.c.0.s8 %v6756
      %v6758 = vlaneseq
      %v6759 = vshrl.u32 %v6758, 7
      %v6760 = vsub.s32 %v6757, %v6759
      %v6761 = vrot.slane %v6754, %v6760
      %v6763 = vlaneseq
      %vm6764 = vcmp.ge.s32.totalorder %v6763, 0
      %vm6765 = vcmp.lt.s32.totalorder %v6763, 324
      %vm6766 = vmand %vm6764, %vm6765
      %6767 = vst.msk [vmem:[%s305] sm:$0x7] %vm6766, %v6761
      %p6768 = scmp.lt.s32.totalorder %s21, 1
      %s6769 = scalar_select %p6768, %s21, 1
      %s6770 = smul.addr %s6769, 3
      %s6771 = scalar_lea.vmem %s8, %s6770
      // Predicated region
      $region53: #{decoder3x3_forward.1} parent=51 // pred_check
        %p6772 = pneg %p212
      $region54: #{decoder3x3_forward.1} parent=51 // pred_check_branch
        %6774 = sbr.rel (%p6772) target = $region56
      $region55: #{decoder3x3_forward.1} parent=51 // pred_region
        _
      $region56: #{decoder3x3_forward.1} parent=51 // pred_fallthru
        _
    $region52: #{decoder3x3_forward.1} parent=5 // pred_fallthru
      _
    %p6775 = scmp.le.s32.totalorder 2, %s16
    // Predicated region
    $region57: #{decoder3x3_forward.1} parent=5 // pred_check
      %p6776 = pneg %p6775
    $region58: #{decoder3x3_forward.1} parent=5 // pred_check_branch
      %6778 = sbr.rel (%p6776) target = $region60
    $region59: #{decoder3x3_forward.1} parent=5 // pred_region
      %s6779 = ssub.s32 %s16, 2
      // Predicated region
      $region61: #{decoder3x3_forward.1} parent=59 // pred_check
        %p6780 = pneg %p218
      $region62: #{decoder3x3_forward.1} parent=59 // pred_check_branch
        %6782 = sbr.rel (%p6780) target = $region64
      $region63: #{decoder3x3_forward.1} parent=59 // pred_region
        %p6783 = scmp.lt.s32.totalorder %s22, 1
        %s6784 = scalar_select %p6783, %s22, 1
        %s6785 = smul.addr %s6784, 3
        %s6786 = scalar_lea.vmem %s8, %s6785
      $region64: #{decoder3x3_forward.1} parent=59 // pred_fallthru
        _
    $region60: #{decoder3x3_forward.1} parent=5 // pred_fallthru
      _
  $region6: #{decoder3x3_forward.1} parent=0 // loop_footer
    %s20 = sadd.s32 1, %s16
  $region7: #{decoder3x3_forward.1} parent=0 // loop_footer_branch
    %15 = sbr.rel target = $region3
  $region8: #{decoder3x3_forward.1} parent=0 // loop_exit
    _

</llo_original>
